<compile_context>
chip_gen: v5e
topology: v5e:2x2
jax: 0.10.0
libtpu: 0.0.40
codegen_flags: <defaults>
</compile_context>

<pallas_src>
import math
import jax
import jax.numpy as jnp
from jax.experimental import pallas as pl
from jax.experimental.pallas import tpu as pltpu

C3 = 38          # conv3 output channels (fixed by the module)
POOL_H = 100     # AdaptiveAvgPool2d target height
POOL_W = 256     # AdaptiveAvgPool2d target width


# ----------------------------- Pallas kernels ------------------------------ #
def _conv1_kernel(p_ref, w_ref, b_ref, o_ref):
    # relu(patches @ W + b) : one fused MXU matmul for the whole 3x3 conv1.
    y = jnp.dot(p_ref[...], w_ref[...], preferred_element_type=jnp.float32)
    o_ref[...] = jnp.maximum(y + b_ref[...], 0.0)


def _conv2_conv3_kernel(p_ref, w2_ref, b2_ref, w3_ref, b3_ref, o_ref):
    # relu(patches @ W2 + b2) @ W3 + b3 : 3x3 conv2 (+ReLU) fused with 1x1 conv3.
    y2 = jnp.dot(p_ref[...], w2_ref[...], preferred_element_type=jnp.float32)
    y2 = jnp.maximum(y2 + b2_ref[...], 0.0)
    y3 = jnp.dot(y2, w3_ref[...], preferred_element_type=jnp.float32)
    o_ref[...] = y3 + b3_ref[...]


def _pool_matmul_kernel(r_ref, y_ref, o_ref):
    # One separable-pooling contraction per batch element: (P, K) @ (K, N).
    o_ref[...] = jnp.dot(r_ref[...], y_ref[...], preferred_element_type=jnp.float32)


# ----------------------------- pallas_call wrappers ------------------------ #
def _conv1_call(patches, w_mat, b):
    M, K = patches.shape
    N = w_mat.shape[1]
    return pl.pallas_call(
        _conv1_kernel,
        out_shape=jax.ShapeDtypeStruct((M, N), jnp.float32),
        grid=(1,),
        in_specs=[pl.BlockSpec((M, K), lambda i: (0, 0)),
                  pl.BlockSpec((K, N), lambda i: (0, 0)),
                  pl.BlockSpec((1, N), lambda i: (0, 0))],
        out_specs=pl.BlockSpec((M, N), lambda i: (0, 0)),
    )(patches, w_mat, b)


def _conv23_call(patches, w2_mat, b2, w3_mat, b3):
    M, K = patches.shape
    N2 = w2_mat.shape[1]
    N3 = w3_mat.shape[1]
    return pl.pallas_call(
        _conv2_conv3_kernel,
        out_shape=jax.ShapeDtypeStruct((M, N3), jnp.float32),
        grid=(1,),
        in_specs=[pl.BlockSpec((M, K), lambda i: (0, 0)),
                  pl.BlockSpec((K, N2), lambda i: (0, 0)),
                  pl.BlockSpec((1, N2), lambda i: (0, 0)),
                  pl.BlockSpec((N2, N3), lambda i: (0, 0)),
                  pl.BlockSpec((1, N3), lambda i: (0, 0))],
        out_specs=pl.BlockSpec((M, N3), lambda i: (0, 0)),
    )(patches, w2_mat, b2, w3_mat, b3)


def _pool_call(r_mat, y_bkn):
    # r_mat: (P, K) averaging matrix; y_bkn: (B, K, N).  Returns (B, P, N).
    B, K, N = y_bkn.shape
    P = r_mat.shape[0]
    return pl.pallas_call(
        _pool_matmul_kernel,
        out_shape=jax.ShapeDtypeStruct((B, P, N), jnp.float32),
        grid=(B,),
        in_specs=[pl.BlockSpec((P, K), lambda b: (0, 0)),
                  pl.BlockSpec((None, K, N), lambda b: (b, 0, 0))],
        out_specs=pl.BlockSpec((None, P, N), lambda b: (b, 0, 0)),
        compiler_params=pltpu.CompilerParams(dimension_semantics=("parallel",)),
    )(r_mat, y_bkn)


# ----------------------------- layout helpers (wrapper) -------------------- #
def _extract_patches_3x3(x_nhwc):
    """im2col for a 3x3 / pad=1 conv: (B,H,W,C) -> (B*H*W, 9*C). Layout only."""
    B, H, W, C = x_nhwc.shape
    xp = jnp.pad(x_nhwc, ((0, 0), (1, 1), (1, 1), (0, 0)))
    taps = [xp[:, dy:dy + H, dx:dx + W, :] for dy in range(3) for dx in range(3)]
    return jnp.concatenate(taps, axis=-1).reshape(B * H * W, 9 * C)


def _adaptive_pool_matrix(in_size, out_size):
    """Row-averaging matrix R (out, in) such that R @ x == adaptive_avg_pool1d(x)."""
    i = jnp.arange(out_size)
    starts = (i * in_size) // out_size
    ends = ((i + 1) * in_size + out_size - 1) // out_size          # ceil div
    cols = jnp.arange(in_size)
    mask = (cols[None, :] >= starts[:, None]) & (cols[None, :] < ends[:, None])
    return mask.astype(jnp.float32) / (ends - starts)[:, None].astype(jnp.float32)


# ----------------------------- module forward ------------------------------ #
def conv_transformer_forward(x_nchw, params):
    """Equivalent of ConvTransformerForCon.forward.  x: (B, C_in, H, W)."""
    B, Cin, H, W = x_nchw.shape
    x_nhwc = jnp.transpose(x_nchw, (0, 2, 3, 1))

    # conv1 (3x3, pad=1) + ReLU ------------------------------------------------
    w1m = jnp.transpose(params["w1"], (2, 3, 1, 0)).reshape(9 * Cin, -1)
    b1 = params["b1"].reshape(1, -1)
    Cmid = w1m.shape[1]
    p1 = _extract_patches_3x3(x_nhwc)                       # (B*H*W, 9*Cin)
    y1 = _conv1_call(p1, w1m, b1)                           # (B*H*W, Cmid)

    # conv2 (3x3, pad=1) + ReLU, fused with conv3 (1x1) -----------------------
    w2m = jnp.transpose(params["w2"], (2, 3, 1, 0)).reshape(9 * Cmid, -1)
    b2 = params["b2"].reshape(1, -1)
    w3m = params["w3"][:, :, 0, 0].T                        # (Cout, 38)
    b3 = params["b3"].reshape(1, -1)
    p2 = _extract_patches_3x3(y1.reshape(B, H, W, Cmid))    # (B*H*W, 9*Cmid)
    y3 = _conv23_call(p2, w2m, b2, w3m, b3)                 # (B*H*W, 38)

    # AdaptiveAvgPool2d((100, 256)) as two separable, lane-dense matmuls ------
    Rh = _adaptive_pool_matrix(H, POOL_H)                   # (100, H)
    Rw = _adaptive_pool_matrix(W, POOL_W)                   # (256, W)
    a = _pool_call(Rh, y3.reshape(B, H, W * C3))            # (B, 100, W*38)
    a = a.reshape(B, POOL_H, W, C3).transpose(0, 2, 1, 3).reshape(B, W, POOL_H * C3)
    t = _pool_call(Rw, a)                                   # (B, 256, 100*38)
    pooled = t.reshape(B, POOL_W, POOL_H, C3)               # [b, j, i, c]

    # x.permute(0, 2, 3, 1).reshape(256, 100, -1)   (pooled NCHW is [b, c, i, j])
    x_perm = jnp.transpose(pooled, (0, 2, 1, 3))            # [b, i, j, c]
    return x_perm.reshape(POOL_W, POOL_H, -1)


# ----------------------------- parameter init ------------------------------ #
def init_params(key, c_in, c_mid, c_out):
    """PyTorch-style Conv2d init: U(-1/sqrt(fan_in), 1/sqrt(fan_in))."""
    def conv_init(k, co, ci, kh, kw):
        bound = 1.0 / math.sqrt(ci * kh * kw)
        k1, k2 = jax.random.split(k)
        w = jax.random.uniform(k1, (co, ci, kh, kw), jnp.float32, -bound, bound)
        b = jax.random.uniform(k2, (co,), jnp.float32, -bound, bound)
        return w, b

    k1, k2, k3 = jax.random.split(key, 3)
    w1, b1 = conv_init(k1, c_mid, c_in, 3, 3)
    w2, b2 = conv_init(k2, c_out, c_mid, 3, 3)
    w3, b3 = conv_init(k3, C3, c_out, 1, 1)
    return {"w1": w1, "b1": b1, "w2": w2, "b2": b2, "w3": w3, "b3": b3}


# ----------------------------- pure-JAX reference --------------------------- #
def _reference_forward(x, params):
    dn = ("NCHW", "OIHW", "NCHW")
    y = jax.lax.conv_general_dilated(x, params["w1"], (1, 1), ((1, 1), (1, 1)),
                                     dimension_numbers=dn)
    y = jax.nn.relu(y + params["b1"][None, :, None, None])
    y = jax.lax.conv_general_dilated(y, params["w2"], (1, 1), ((1, 1), (1, 1)),
                                     dimension_numbers=dn)
    y = jax.nn.relu(y + params["b2"][None, :, None, None])
    y = jax.lax.conv_general_dilated(y, params["w3"], (1, 1), ((0, 0), (0, 0)),
                                     dimension_numbers=dn)
    y = y + params["b3"][None, :, None, None]
    B, C, H, W = y.shape
    Rh = _adaptive_pool_matrix(H, POOL_H)
    Rw = _adaptive_pool_matrix(W, POOL_W)
    p = jnp.einsum("ih,bchw,jw->bcij", Rh, y, Rw)           # adaptive avg pool
    return jnp.transpose(p, (0, 2, 3, 1)).reshape(POOL_W, POOL_H, -1)


if __name__ == "__main__":
    B, C_in, H, W = 2, 4, 16, 16
    C_mid, C_out = 8, 8

    key = jax.random.PRNGKey(0)
    key, pkey, xkey = jax.random.split(key, 3)
    params = init_params(pkey, C_in, C_mid, C_out)
    x = jax.random.normal(xkey, (B, C_in, H, W), jnp.float32)

    fwd = jax.jit(conv_transformer_forward)
    y = jax.block_until_ready(fwd(x, params))
    assert y.shape == (POOL_W, POOL_H, B * C3), y.shape

    y_ref = _reference_forward(x, params)
    assert jnp.allclose(y, y_ref, atol=1e-4, rtol=1e-4), \
        float(jnp.max(jnp.abs(y - y_ref)))

    print("KERNEL_OK")
</pallas_src>

<mosaic_0001>
module attributes {stable_mosaic.version = 11 : i64} {
  func.func @_conv1_kernel(%arg0: i32, %arg1: memref<512x36xf32, #tpu.memory_space<vmem>>, %arg2: memref<36x8xf32, #tpu.memory_space<vmem>>, %arg3: memref<1x8xf32, #tpu.memory_space<vmem>>, %arg4: memref<512x8xf32, #tpu.memory_space<vmem>>) attributes {dimension_semantics = [#tpu.dimension_semantics<arbitrary>], iteration_bounds = array<i64: 1>, scalar_prefetch = 0 : i64, scratch_operands = 0 : i64, tpu.core_type = #tpu.core_type<tc>, window_params = [{pipeline_mode = #tpu.pipeline_mode<synchronous>, transform_indices = @transform_0, window_bounds = array<i64: 512, 36>}, {pipeline_mode = #tpu.pipeline_mode<synchronous>, transform_indices = @transform_1, window_bounds = array<i64: 36, 8>}, {pipeline_mode = #tpu.pipeline_mode<synchronous>, transform_indices = @transform_2, window_bounds = array<i64: 1, 8>}, {pipeline_mode = #tpu.pipeline_mode<synchronous>, transform_indices = @transform_3, window_bounds = array<i64: 512, 8>}]} {
    %c0 = arith.constant 0 : index
    %c0_0 = arith.constant 0 : index
    %0 = vector.load %arg1[%c0, %c0_0] : memref<512x36xf32, #tpu.memory_space<vmem>>, vector<512x36xf32>
    %c0_1 = arith.constant 0 : index
    %c0_2 = arith.constant 0 : index
    %1 = vector.load %arg2[%c0_1, %c0_2] : memref<36x8xf32, #tpu.memory_space<vmem>>, vector<36x8xf32>
    %cst = arith.constant dense<0.000000e+00> : vector<512x8xf32>
    %2 = tpu.matmul %0, %1, %cst {dimension_numbers = #tpu.dot_dimension_numbers<[1], [0], [0], [1], [0, 0, 1, 1], [], []>} : vector<512x36xf32>, vector<36x8xf32>, vector<512x8xf32> -> vector<512x8xf32>
    %c0_3 = arith.constant 0 : index
    %c0_4 = arith.constant 0 : index
    %3 = vector.load %arg3[%c0_3, %c0_4] : memref<1x8xf32, #tpu.memory_space<vmem>>, vector<1x8xf32>
    %4 = vector.broadcast %3 : vector<1x8xf32> to vector<512x8xf32>
    %5 = arith.addf %2, %4 : vector<512x8xf32>
    %cst_5 = arith.constant 0.000000e+00 : f32
    %6 = vector.broadcast %cst_5 : f32 to vector<512x8xf32>
    %7 = arith.maximumf %5, %6 : vector<512x8xf32>
    %c0_6 = arith.constant 0 : index
    %c0_7 = arith.constant 0 : index
    %8 = vector.load %arg4[%c0_6, %c0_7] : memref<512x8xf32, #tpu.memory_space<vmem>>, vector<512x8xf32>
    tpu.vector_store %arg4[%c0_6, %c0_7], %7 {strides = array<i32>} : memref<512x8xf32, #tpu.memory_space<vmem>>, vector<512x8xf32>,
    return
  }
  func.func @transform_0(%arg0: i32) -> (i32, i32) {
    %c0_i32 = arith.constant 0 : i32
    %c0_i32_0 = arith.constant 0 : i32
    %c0_i32_1 = arith.constant 0 : i32
    return %c0_i32, %c0_i32_0 : i32, i32
  }
  func.func @transform_1(%arg0: i32) -> (i32, i32) {
    %c0_i32 = arith.constant 0 : i32
    %c0_i32_0 = arith.constant 0 : i32
    %c0_i32_1 = arith.constant 0 : i32
    return %c0_i32, %c0_i32_0 : i32, i32
  }
  func.func @transform_2(%arg0: i32) -> (i32, i32) {
    %c0_i32 = arith.constant 0 : i32
    %c0_i32_0 = arith.constant 0 : i32
    %c0_i32_1 = arith.constant 0 : i32
    return %c0_i32, %c0_i32_0 : i32, i32
  }
  func.func @transform_3(%arg0: i32) -> (i32, i32) {
    %c0_i32 = arith.constant 0 : i32
    %c0_i32_0 = arith.constant 0 : i32
    %c0_i32_1 = arith.constant 0 : i32
    return %c0_i32, %c0_i32_0 : i32, i32
  }
}

module attributes {stable_mosaic.version = 11 : i64} {
  func.func @_conv2_conv3_kernel(%arg0: i32, %arg1: memref<512x72xf32, #tpu.memory_space<vmem>>, %arg2: memref<72x8xf32, #tpu.memory_space<vmem>>, %arg3: memref<1x8xf32, #tpu.memory_space<vmem>>, %arg4: memref<8x38xf32, #tpu.memory_space<vmem>>, %arg5: memref<1x38xf32, #tpu.memory_space<vmem>>, %arg6: memref<512x38xf32, #tpu.memory_space<vmem>>) attributes {dimension_semantics = [#tpu.dimension_semantics<arbitrary>], iteration_bounds = array<i64: 1>, scalar_prefetch = 0 : i64, scratch_operands = 0 : i64, tpu.core_type = #tpu.core_type<tc>, window_params = [{pipeline_mode = #tpu.pipeline_mode<synchronous>, transform_indices = @transform_0, window_bounds = array<i64: 512, 72>}, {pipeline_mode = #tpu.pipeline_mode<synchronous>, transform_indices = @transform_1, window_bounds = array<i64: 72, 8>}, {pipeline_mode = #tpu.pipeline_mode<synchronous>, transform_indices = @transform_2, window_bounds = array<i64: 1, 8>}, {pipeline_mode = #tpu.pipeline_mode<synchronous>, transform_indices = @transform_3, window_bounds = array<i64: 8, 38>}, {pipeline_mode = #tpu.pipeline_mode<synchronous>, transform_indices = @transform_4, window_bounds = array<i64: 1, 38>}, {pipeline_mode = #tpu.pipeline_mode<synchronous>, transform_indices = @transform_5, window_bounds = array<i64: 512, 38>}]} {
    %c0 = arith.constant 0 : index
    %c0_0 = arith.constant 0 : index
    %0 = vector.load %arg1[%c0, %c0_0] : memref<512x72xf32, #tpu.memory_space<vmem>>, vector<512x72xf32>
    %c0_1 = arith.constant 0 : index
    %c0_2 = arith.constant 0 : index
    %1 = vector.load %arg2[%c0_1, %c0_2] : memref<72x8xf32, #tpu.memory_space<vmem>>, vector<72x8xf32>
    %cst = arith.constant dense<0.000000e+00> : vector<512x8xf32>
    %2 = tpu.matmul %0, %1, %cst {dimension_numbers = #tpu.dot_dimension_numbers<[1], [0], [0], [1], [0, 0, 1, 1], [], []>} : vector<512x72xf32>, vector<72x8xf32>, vector<512x8xf32> -> vector<512x8xf32>
    %c0_3 = arith.constant 0 : index
    %c0_4 = arith.constant 0 : index
    %3 = vector.load %arg3[%c0_3, %c0_4] : memref<1x8xf32, #tpu.memory_space<vmem>>, vector<1x8xf32>
    %4 = vector.broadcast %3 : vector<1x8xf32> to vector<512x8xf32>
    %5 = arith.addf %2, %4 : vector<512x8xf32>
    %cst_5 = arith.constant 0.000000e+00 : f32
    %6 = vector.broadcast %cst_5 : f32 to vector<512x8xf32>
    %7 = arith.maximumf %5, %6 : vector<512x8xf32>
    %c0_6 = arith.constant 0 : index
    %c0_7 = arith.constant 0 : index
    %8 = vector.load %arg4[%c0_6, %c0_7] : memref<8x38xf32, #tpu.memory_space<vmem>>, vector<8x38xf32>
    %cst_8 = arith.constant dense<0.000000e+00> : vector<512x38xf32>
    %9 = tpu.matmul %7, %8, %cst_8 {dimension_numbers = #tpu.dot_dimension_numbers<[1], [0], [0], [1], [0, 0, 1, 1], [], []>} : vector<512x8xf32>, vector<8x38xf32>, vector<512x38xf32> -> vector<512x38xf32>
    %c0_9 = arith.constant 0 : index
    %c0_10 = arith.constant 0 : index
    %10 = vector.load %arg5[%c0_9, %c0_10] : memref<1x38xf32, #tpu.memory_space<vmem>>, vector<1x38xf32>
    %11 = vector.broadcast %10 : vector<1x38xf32> to vector<512x38xf32>
    %12 = arith.addf %9, %11 : vector<512x38xf32>
    %c0_11 = arith.constant 0 : index
    %c0_12 = arith.constant 0 : index
    %13 = vector.load %arg6[%c0_11, %c0_12] : memref<512x38xf32, #tpu.memory_space<vmem>>, vector<512x38xf32>
    tpu.vector_store %arg6[%c0_11, %c0_12], %12 {strides = array<i32>} : memref<512x38xf32, #tpu.memory_space<vmem>>, vector<512x38xf32>,
    return
  }
  func.func @transform_0(%arg0: i32) -> (i32, i32) {
    %c0_i32 = arith.constant 0 : i32
    %c0_i32_0 = arith.constant 0 : i32
    %c0_i32_1 = arith.constant 0 : i32
    return %c0_i32, %c0_i32_0 : i32, i32
  }
  func.func @transform_1(%arg0: i32) -> (i32, i32) {
    %c0_i32 = arith.constant 0 : i32
    %c0_i32_0 = arith.constant 0 : i32
    %c0_i32_1 = arith.constant 0 : i32
    return %c0_i32, %c0_i32_0 : i32, i32
  }
  func.func @transform_2(%arg0: i32) -> (i32, i32) {
    %c0_i32 = arith.constant 0 : i32
    %c0_i32_0 = arith.constant 0 : i32
    %c0_i32_1 = arith.constant 0 : i32
    return %c0_i32, %c0_i32_0 : i32, i32
  }
  func.func @transform_3(%arg0: i32) -> (i32, i32) {
    %c0_i32 = arith.constant 0 : i32
    %c0_i32_0 = arith.constant 0 : i32
    %c0_i32_1 = arith.constant 0 : i32
    return %c0_i32, %c0_i32_0 : i32, i32
  }
  func.func @transform_4(%arg0: i32) -> (i32, i32) {
    %c0_i32 = arith.constant 0 : i32
    %c0_i32_0 = arith.constant 0 : i32
    %c0_i32_1 = arith.constant 0 : i32
    return %c0_i32, %c0_i32_0 : i32, i32
  }
  func.func @transform_5(%arg0: i32) -> (i32, i32) {
    %c0_i32 = arith.constant 0 : i32
    %c0_i32_0 = arith.constant 0 : i32
    %c0_i32_1 = arith.constant 0 : i32
    return %c0_i32, %c0_i32_0 : i32, i32
  }
}

module attributes {stable_mosaic.version = 11 : i64} {
  func.func @_pool_matmul_kernel(%arg0: i32, %arg1: memref<100x16xf32, #tpu.memory_space<vmem>>, %arg2: memref<1x16x608xf32, #tpu.memory_space<vmem>>, %arg3: memref<1x100x608xf32, #tpu.memory_space<vmem>>) attributes {dimension_semantics = [#tpu.dimension_semantics<parallel>], iteration_bounds = array<i64: 2>, scalar_prefetch = 0 : i64, scratch_operands = 0 : i64, tpu.core_type = #tpu.core_type<tc>, window_params = [{pipeline_mode = #tpu.pipeline_mode<synchronous>, transform_indices = @transform_0, window_bounds = array<i64: 100, 16>}, {transform_indices = @transform_1, window_bounds = array<i64: 1, 16, 608>}, {transform_indices = @transform_2, window_bounds = array<i64: 1, 100, 608>}]} {
    %c0 = arith.constant 0 : index
    %c0_0 = arith.constant 0 : index
    %0 = vector.load %arg1[%c0, %c0_0] : memref<100x16xf32, #tpu.memory_space<vmem>>, vector<100x16xf32>
    %c0_1 = arith.constant 0 : index
    %c0_2 = arith.constant 0 : index
    %c0_3 = arith.constant 0 : index
    %1 = vector.load %arg2[%c0_1, %c0_2, %c0_3] : memref<1x16x608xf32, #tpu.memory_space<vmem>>, vector<1x16x608xf32>
    %2 = vector.shape_cast %1 : vector<1x16x608xf32> to vector<16x608xf32>
    %cst = arith.constant dense<0.000000e+00> : vector<100x608xf32>
    %3 = tpu.matmul %0, %2, %cst {dimension_numbers = #tpu.dot_dimension_numbers<[1], [0], [0], [1], [0, 0, 1, 1], [], []>} : vector<100x16xf32>, vector<16x608xf32>, vector<100x608xf32> -> vector<100x608xf32>
    %c0_4 = arith.constant 0 : index
    %c0_5 = arith.constant 0 : index
    %c0_6 = arith.constant 0 : index
    %4 = vector.load %arg3[%c0_4, %c0_5, %c0_6] : memref<1x100x608xf32, #tpu.memory_space<vmem>>, vector<1x100x608xf32>
    %5 = vector.shape_cast %4 : vector<1x100x608xf32> to vector<100x608xf32>
    %6 = vector.shape_cast %3 : vector<100x608xf32> to vector<1x100x608xf32>
    tpu.vector_store %arg3[%c0_4, %c0_5, %c0_6], %6 {strides = array<i32>} : memref<1x100x608xf32, #tpu.memory_space<vmem>>, vector<1x100x608xf32>,
    return
  }
  func.func @transform_0(%arg0: i32) -> (i32, i32) {
    %c0_i32 = arith.constant 0 : i32
    %c0_i32_0 = arith.constant 0 : i32
    %c0_i32_1 = arith.constant 0 : i32
    return %c0_i32, %c0_i32_0 : i32, i32
  }
  func.func @transform_1(%arg0: i32) -> (i32, i32, i32) {
    %c0_i32 = arith.constant 0 : i32
    %c0_i32_0 = arith.constant 0 : i32
    %c0_i32_1 = arith.constant 0 : i32
    return %arg0, %c0_i32, %c0_i32_0 : i32, i32, i32
  }
  func.func @transform_2(%arg0: i32) -> (i32, i32, i32) {
    %c0_i32 = arith.constant 0 : i32
    %c0_i32_0 = arith.constant 0 : i32
    %c0_i32_1 = arith.constant 0 : i32
    return %arg0, %c0_i32, %c0_i32_0 : i32, i32, i32
  }
}

module attributes {stable_mosaic.version = 11 : i64} {
  func.func @_pool_matmul_kernel(%arg0: i32, %arg1: memref<256x16xf32, #tpu.memory_space<vmem>>, %arg2: memref<1x16x3800xf32, #tpu.memory_space<vmem>>, %arg3: memref<1x256x3800xf32, #tpu.memory_space<vmem>>) attributes {dimension_semantics = [#tpu.dimension_semantics<parallel>], iteration_bounds = array<i64: 2>, scalar_prefetch = 0 : i64, scratch_operands = 0 : i64, tpu.core_type = #tpu.core_type<tc>, window_params = [{pipeline_mode = #tpu.pipeline_mode<synchronous>, transform_indices = @transform_0, window_bounds = array<i64: 256, 16>}, {transform_indices = @transform_1, window_bounds = array<i64: 1, 16, 3800>}, {transform_indices = @transform_2, window_bounds = array<i64: 1, 256, 3800>}]} {
    %c0 = arith.constant 0 : index
    %c0_0 = arith.constant 0 : index
    %0 = vector.load %arg1[%c0, %c0_0] : memref<256x16xf32, #tpu.memory_space<vmem>>, vector<256x16xf32>
    %c0_1 = arith.constant 0 : index
    %c0_2 = arith.constant 0 : index
    %c0_3 = arith.constant 0 : index
    %1 = vector.load %arg2[%c0_1, %c0_2, %c0_3] : memref<1x16x3800xf32, #tpu.memory_space<vmem>>, vector<1x16x3800xf32>
    %2 = vector.shape_cast %1 : vector<1x16x3800xf32> to vector<16x3800xf32>
    %cst = arith.constant dense<0.000000e+00> : vector<256x3800xf32>
    %3 = tpu.matmul %0, %2, %cst {dimension_numbers = #tpu.dot_dimension_numbers<[1], [0], [0], [1], [0, 0, 1, 1], [], []>} : vector<256x16xf32>, vector<16x3800xf32>, vector<256x3800xf32> -> vector<256x3800xf32>
    %c0_4 = arith.constant 0 : index
    %c0_5 = arith.constant 0 : index
    %c0_6 = arith.constant 0 : index
    %4 = vector.load %arg3[%c0_4, %c0_5, %c0_6] : memref<1x256x3800xf32, #tpu.memory_space<vmem>>, vector<1x256x3800xf32>
    %5 = vector.shape_cast %4 : vector<1x256x3800xf32> to vector<256x3800xf32>
    %6 = vector.shape_cast %3 : vector<256x3800xf32> to vector<1x256x3800xf32>
    tpu.vector_store %arg3[%c0_4, %c0_5, %c0_6], %6 {strides = array<i32>} : memref<1x256x3800xf32, #tpu.memory_space<vmem>>, vector<1x256x3800xf32>,
    return
  }
  func.func @transform_0(%arg0: i32) -> (i32, i32) {
    %c0_i32 = arith.constant 0 : i32
    %c0_i32_0 = arith.constant 0 : i32
    %c0_i32_1 = arith.constant 0 : i32
    return %c0_i32, %c0_i32_0 : i32, i32
  }
  func.func @transform_1(%arg0: i32) -> (i32, i32, i32) {
    %c0_i32 = arith.constant 0 : i32
    %c0_i32_0 = arith.constant 0 : i32
    %c0_i32_1 = arith.constant 0 : i32
    return %arg0, %c0_i32, %c0_i32_0 : i32, i32, i32
  }
  func.func @transform_2(%arg0: i32) -> (i32, i32, i32) {
    %c0_i32 = arith.constant 0 : i32
    %c0_i32_0 = arith.constant 0 : i32
    %c0_i32_1 = arith.constant 0 : i32
    return %arg0, %c0_i32, %c0_i32_0 : i32, i32, i32
  }
}

</mosaic_0001>

<llo_original>
// kernel: conv_transformer_forward.4
$region0: #{conv_transformer_forward.4}
  #allocation0 [shape = 'u32[]', space=smem, size = 0x4, offset = 0x4, fixed_abs, tag = 'smem constant byte address 0x4 - core index']
  #allocation1 [shape = 'u32[72,128]{1,0:T(1,128)}', space=vmem, size = 0x9000, scoped, tag = 'internal scratch']
  %s0 = inlined_call_operand.vmem [shape: f32[512,36], index: 0, kind: input, shape index: {}]
  %s1 = inlined_call_operand.vmem [shape: f32[36,8], index: 1, kind: input, shape index: {}]
  %s2 = inlined_call_operand.hbm [shape: f32[1,8], index: 2, kind: input, shape index: {}]
  %s3 = inlined_call_operand.vmem [shape: f32[512,8], index: 3, kind: output, shape index: {}]
  %s4 = sld [smem:[#allocation0]]
  $region26: #{conv_transformer_forward.4} parent=0
    _
  %s6 = ssub.s32 1, %s4
  %s7 = scalar_select 0, %s6, %s4
  $region1: #{conv_transformer_forward.4} parent=0
    #allocation2 [shape = 'u8[512]{0}', space=vmem, size = 0x400, scoped, tag = 'input window, operand 2, single buffered']
    #allocation3 [shape = 's32[1]{0}', space=sflag, size = 0x4, scoped, tag = 'scoped memory for conv_transformer_forward.4']
    %8 = vsyncpa [#allocation3], 0
    // Predicated region
    $region2: #{conv_transformer_forward.4} parent=1 // pred_check
      _
    $region3: #{conv_transformer_forward.4} parent=1 // pred_check_branch
      %10 = sbr.rel (0) target = $region5
    $region4: #{conv_transformer_forward.4} parent=1 // pred_region
      _
    $region5: #{conv_transformer_forward.4} parent=1 // pred_fallthru
      _
    // Predicated region
    $region6: #{conv_transformer_forward.4} parent=1 // pred_check
      _
    $region7: #{conv_transformer_forward.4} parent=1 // pred_check_branch
      %12 = sbr.rel (0) target = $region9
    $region8: #{conv_transformer_forward.4} parent=1 // pred_region
      _
    $region9: #{conv_transformer_forward.4} parent=1 // pred_fallthru
      _
    // Predicated region
    $region10: #{conv_transformer_forward.4} parent=1 // pred_check
      _
    $region11: #{conv_transformer_forward.4} parent=1 // pred_check_branch
      %14 = sbr.rel (0) target = $region13
    $region12: #{conv_transformer_forward.4} parent=1 // pred_region
      %16 = vsyncadd [#allocation3], 0
      %s18 = sshll.u32 %s2, 4
      %s19 = int_to_ptr.hbm [resolvable:$true] %s18
      %s20 = sshll.u32 [#allocation2], 4
      %s21 = int_to_ptr.vmem [resolvable:$true] %s20
      %23 = dma.hbm_to_vmem [thread:$0]  %s19, 16, %s21, [#allocation3]
    $region13: #{conv_transformer_forward.4} parent=1 // pred_fallthru
      _
    // Predicated region
    $region14: #{conv_transformer_forward.4} parent=1 // pred_check
      _
    $region15: #{conv_transformer_forward.4} parent=1 // pred_check_branch
      %25 = sbr.rel (0) target = $region17
    $region16: #{conv_transformer_forward.4} parent=1 // pred_region
      %27 = dma.done [#allocation3], 16
    $region17: #{conv_transformer_forward.4} parent=1 // pred_fallthru
      _
    %v28 = vld [vmem:[%s0] sm:$0xff]
    %v29 = vld [vmem:[%s0 + $0x8] sm:$0xff]
    %v30 = vld [vmem:[%s0 + $0x10] sm:$0xff]
    %v31 = vld [vmem:[%s0 + $0x18] sm:$0xff]
    %v32 = vld [vmem:[%s0 + $0x20] sm:$0xff]
    %v33 = vld [vmem:[%s0 + $0x28] sm:$0xff]
    %v34 = vld [vmem:[%s0 + $0x30] sm:$0xff]
    %v35 = vld [vmem:[%s0 + $0x38] sm:$0xff]
    %v36 = vld [vmem:[%s0 + $0x40] sm:$0xff]
    %v37 = vld [vmem:[%s0 + $0x48] sm:$0xff]
    %v38 = vld [vmem:[%s0 + $0x50] sm:$0xff]
    %v39 = vld [vmem:[%s0 + $0x58] sm:$0xff]
    %v40 = vld [vmem:[%s0 + $0x60] sm:$0xff]
    %v41 = vld [vmem:[%s0 + $0x68] sm:$0xff]
    %v42 = vld [vmem:[%s0 + $0x70] sm:$0xff]
    %v43 = vld [vmem:[%s0 + $0x78] sm:$0xff]
    %v44 = vld [vmem:[%s0 + $0x80] sm:$0xff]
    %v45 = vld [vmem:[%s0 + $0x88] sm:$0xff]
    %v46 = vld [vmem:[%s0 + $0x90] sm:$0xff]
    %v47 = vld [vmem:[%s0 + $0x98] sm:$0xff]
    %v48 = vld [vmem:[%s0 + $0xa0] sm:$0xff]
    %v49 = vld [vmem:[%s0 + $0xa8] sm:$0xff]
    %v50 = vld [vmem:[%s0 + $0xb0] sm:$0xff]
    %v51 = vld [vmem:[%s0 + $0xb8] sm:$0xff]
    %v52 = vld [vmem:[%s0 + $0xc0] sm:$0xff]
    %v53 = vld [vmem:[%s0 + $0xc8] sm:$0xff]
    %v54 = vld [vmem:[%s0 + $0xd0] sm:$0xff]
    %v55 = vld [vmem:[%s0 + $0xd8] sm:$0xff]
    %v56 = vld [vmem:[%s0 + $0xe0] sm:$0xff]
    %v57 = vld [vmem:[%s0 + $0xe8] sm:$0xff]
    %v58 = vld [vmem:[%s0 + $0xf0] sm:$0xff]
    %v59 = vld [vmem:[%s0 + $0xf8] sm:$0xff]
    %v60 = vld [vmem:[%s0 + $0x100] sm:$0xff]
    %v61 = vld [vmem:[%s0 + $0x108] sm:$0xff]
    %v62 = vld [vmem:[%s0 + $0x110] sm:$0xff]
    %v63 = vld [vmem:[%s0 + $0x118] sm:$0xff]
    %v64 = vld [vmem:[%s0 + $0x120] sm:$0xff]
    %v65 = vld [vmem:[%s0 + $0x128] sm:$0xff]
    %v66 = vld [vmem:[%s0 + $0x130] sm:$0xff]
    %v67 = vld [vmem:[%s0 + $0x138] sm:$0xff]
    %v68 = vld [vmem:[%s0 + $0x140] sm:$0xff]
    %v69 = vld [vmem:[%s0 + $0x148] sm:$0xff]
    %v70 = vld [vmem:[%s0 + $0x150] sm:$0xff]
    %v71 = vld [vmem:[%s0 + $0x158] sm:$0xff]
    %v72 = vld [vmem:[%s0 + $0x160] sm:$0xff]
    %v73 = vld [vmem:[%s0 + $0x168] sm:$0xff]
    %v74 = vld [vmem:[%s0 + $0x170] sm:$0xff]
    %v75 = vld [vmem:[%s0 + $0x178] sm:$0xff]
    %v76 = vld [vmem:[%s0 + $0x180] sm:$0xff]
    %v77 = vld [vmem:[%s0 + $0x188] sm:$0xff]
    %v78 = vld [vmem:[%s0 + $0x190] sm:$0xff]
    %v79 = vld [vmem:[%s0 + $0x198] sm:$0xff]
    %v80 = vld [vmem:[%s0 + $0x1a0] sm:$0xff]
    %v81 = vld [vmem:[%s0 + $0x1a8] sm:$0xff]
    %v82 = vld [vmem:[%s0 + $0x1b0] sm:$0xff]
    %v83 = vld [vmem:[%s0 + $0x1b8] sm:$0xff]
    %v84 = vld [vmem:[%s0 + $0x1c0] sm:$0xff]
    %v85 = vld [vmem:[%s0 + $0x1c8] sm:$0xff]
    %v86 = vld [vmem:[%s0 + $0x1d0] sm:$0xff]
    %v87 = vld [vmem:[%s0 + $0x1d8] sm:$0xff]
    %v88 = vld [vmem:[%s0 + $0x1e0] sm:$0xff]
    %v89 = vld [vmem:[%s0 + $0x1e8] sm:$0xff]
    %v90 = vld [vmem:[%s0 + $0x1f0] sm:$0xff]
    %v91 = vld [vmem:[%s0 + $0x1f8] sm:$0xff]
    %v92 = vld [vmem:[%s1] sm:$0xff]
    %v93 = vld [vmem:[%s1 + $0x8] sm:$0xff]
    %v94 = vld [vmem:[%s1 + $0x10] sm:$0xff]
    %v95 = vld [vmem:[%s1 + $0x18] sm:$0xff]
    %v96 = vld [vmem:[%s1 + $0x20] sm:$0xf]
    %v97 = vld [vmem:[#allocation2] sm:$0x1]
    %v99 = vperm.slane %v97, 0
    %vm101 = vcmask 293888
    %v103 = vsel %vm101, %v28, 0
    %v106 = vsel %vm101, %v29, 0
    %v109 = vsel %vm101, %v30, 0
    %v112 = vsel %vm101, %v31, 0
    %v115 = vsel %vm101, %v32, 0
    %v118 = vsel %vm101, %v33, 0
    %v121 = vsel %vm101, %v34, 0
    %v124 = vsel %vm101, %v35, 0
    %v127 = vsel %vm101, %v36, 0
    %v130 = vsel %vm101, %v37, 0
    %v133 = vsel %vm101, %v38, 0
    %v136 = vsel %vm101, %v39, 0
    %v139 = vsel %vm101, %v40, 0
    %v142 = vsel %vm101, %v41, 0
    %v145 = vsel %vm101, %v42, 0
    %v148 = vsel %vm101, %v43, 0
    %v151 = vsel %vm101, %v44, 0
    %v154 = vsel %vm101, %v45, 0
    %v157 = vsel %vm101, %v46, 0
    %v160 = vsel %vm101, %v47, 0
    %v163 = vsel %vm101, %v48, 0
    %v166 = vsel %vm101, %v49, 0
    %v169 = vsel %vm101, %v50, 0
    %v172 = vsel %vm101, %v51, 0
    %v175 = vsel %vm101, %v52, 0
    %v178 = vsel %vm101, %v53, 0
    %v181 = vsel %vm101, %v54, 0
    %v184 = vsel %vm101, %v55, 0
    %v187 = vsel %vm101, %v56, 0
    %v190 = vsel %vm101, %v57, 0
    %v193 = vsel %vm101, %v58, 0
    %v196 = vsel %vm101, %v59, 0
    %v199 = vsel %vm101, %v60, 0
    %v202 = vsel %vm101, %v61, 0
    %v205 = vsel %vm101, %v62, 0
    %v208 = vsel %vm101, %v63, 0
    %v211 = vsel %vm101, %v64, 0
    %v214 = vsel %vm101, %v65, 0
    %v217 = vsel %vm101, %v66, 0
    %v220 = vsel %vm101, %v67, 0
    %v223 = vsel %vm101, %v68, 0
    %v226 = vsel %vm101, %v69, 0
    %v229 = vsel %vm101, %v70, 0
    %v232 = vsel %vm101, %v71, 0
    %v235 = vsel %vm101, %v72, 0
    %v238 = vsel %vm101, %v73, 0
    %v241 = vsel %vm101, %v74, 0
    %v244 = vsel %vm101, %v75, 0
    %v247 = vsel %vm101, %v76, 0
    %v250 = vsel %vm101, %v77, 0
    %v253 = vsel %vm101, %v78, 0
    %v256 = vsel %vm101, %v79, 0
    %v259 = vsel %vm101, %v80, 0
    %v262 = vsel %vm101, %v81, 0
    %v265 = vsel %vm101, %v82, 0
    %v268 = vsel %vm101, %v83, 0
    %v271 = vsel %vm101, %v84, 0
    %v274 = vsel %vm101, %v85, 0
    %v277 = vsel %vm101, %v86, 0
    %v280 = vsel %vm101, %v87, 0
    %v283 = vsel %vm101, %v88, 0
    %v286 = vsel %vm101, %v89, 0
    %v289 = vsel %vm101, %v90, 0
    %v292 = vsel %vm101, %v91, 0
    %vm294 = vcmask 1043456
    %v296 = vsel %vm294, %v96, 0
    %298 = vmatpush.msra.mxu0 0.0
    %299 = vmatpush.msra.mxu0 0.0
    %300 = vmatpush.msra.mxu0 0.0
    %301 = vmatpush.msra.mxu0 0.0
    %302 = vmatpush.msra.mxu0 0.0
    %303 = vmatpush.msra.mxu0 0.0
    %304 = vmatpush.msra.mxu0 0.0
    %305 = vmatpush.msra.mxu0 0.0
    %306 = vmatpush.msra.mxu0 0.0
    %307 = vmatpush.msra.mxu0 0.0
    %308 = vmatpush.msra.mxu0 0.0
    %309 = vmatpush.msra.mxu0 %v296
    %310 = vmatpush.msra.mxu0 %v95
    %311 = vmatpush.msra.mxu0 %v94
    %312 = vmatpush.msra.mxu0 %v93
    %313 = vmatpush.msra.mxu0 %v92
    %314 = vmatmul.f32.gmra.mxu0 %v103
    %v315 = vpop.f32.mrf.mxu0
    %v316 = vadd.f32 %v99, %v315
    %317 = vmatmul.f32.gmra.mxu0 %v106
    %v318 = vpop.f32.mrf.mxu0
    %v319 = vadd.f32 %v99, %v318
    %320 = vmatmul.f32.gmra.mxu0 %v109
    %v321 = vpop.f32.mrf.mxu0
    %v322 = vadd.f32 %v99, %v321
    %323 = vmatmul.f32.gmra.mxu0 %v112
    %v324 = vpop.f32.mrf.mxu0
    %v325 = vadd.f32 %v99, %v324
    %326 = vmatmul.f32.gmra.mxu0 %v115
    %v327 = vpop.f32.mrf.mxu0
    %v328 = vadd.f32 %v99, %v327
    %329 = vmatmul.f32.gmra.mxu0 %v118
    %v330 = vpop.f32.mrf.mxu0
    %v331 = vadd.f32 %v99, %v330
    %332 = vmatmul.f32.gmra.mxu0 %v121
    %v333 = vpop.f32.mrf.mxu0
    %v334 = vadd.f32 %v99, %v333
    %335 = vmatmul.f32.gmra.mxu0 %v124
    %v336 = vpop.f32.mrf.mxu0
    %v337 = vadd.f32 %v99, %v336
    %338 = vmatmul.f32.gmra.mxu0 %v127
    %v339 = vpop.f32.mrf.mxu0
    %v340 = vadd.f32 %v99, %v339
    %341 = vmatmul.f32.gmra.mxu0 %v130
    %v342 = vpop.f32.mrf.mxu0
    %v343 = vadd.f32 %v99, %v342
    %344 = vmatmul.f32.gmra.mxu0 %v133
    %v345 = vpop.f32.mrf.mxu0
    %v346 = vadd.f32 %v99, %v345
    %347 = vmatmul.f32.gmra.mxu0 %v136
    %v348 = vpop.f32.mrf.mxu0
    %v349 = vadd.f32 %v99, %v348
    %350 = vmatmul.f32.gmra.mxu0 %v139
    %v351 = vpop.f32.mrf.mxu0
    %v352 = vadd.f32 %v99, %v351
    %353 = vmatmul.f32.gmra.mxu0 %v142
    %v354 = vpop.f32.mrf.mxu0
    %v355 = vadd.f32 %v99, %v354
    %356 = vmatmul.f32.gmra.mxu0 %v145
    %v357 = vpop.f32.mrf.mxu0
    %v358 = vadd.f32 %v99, %v357
    %359 = vmatmul.f32.gmra.mxu0 %v148
    %v360 = vpop.f32.mrf.mxu0
    %v361 = vadd.f32 %v99, %v360
    %362 = vmatmul.f32.gmra.mxu0 %v151
    %v363 = vpop.f32.mrf.mxu0
    %v364 = vadd.f32 %v99, %v363
    %365 = vmatmul.f32.gmra.mxu0 %v154
    %v366 = vpop.f32.mrf.mxu0
    %v367 = vadd.f32 %v99, %v366
    %368 = vmatmul.f32.gmra.mxu0 %v157
    %v369 = vpop.f32.mrf.mxu0
    %v370 = vadd.f32 %v99, %v369
    %371 = vmatmul.f32.gmra.mxu0 %v160
    %v372 = vpop.f32.mrf.mxu0
    %v373 = vadd.f32 %v99, %v372
    %374 = vmatmul.f32.gmra.mxu0 %v163
    %v375 = vpop.f32.mrf.mxu0
    %v376 = vadd.f32 %v99, %v375
    %377 = vmatmul.f32.gmra.mxu0 %v166
    %v378 = vpop.f32.mrf.mxu0
    %v379 = vadd.f32 %v99, %v378
    %380 = vmatmul.f32.gmra.mxu0 %v169
    %v381 = vpop.f32.mrf.mxu0
    %v382 = vadd.f32 %v99, %v381
    %383 = vmatmul.f32.gmra.mxu0 %v172
    %v384 = vpop.f32.mrf.mxu0
    %v385 = vadd.f32 %v99, %v384
    %386 = vmatmul.f32.gmra.mxu0 %v175
    %v387 = vpop.f32.mrf.mxu0
    %v388 = vadd.f32 %v99, %v387
    %389 = vmatmul.f32.gmra.mxu0 %v178
    %v390 = vpop.f32.mrf.mxu0
    %v391 = vadd.f32 %v99, %v390
    %392 = vmatmul.f32.gmra.mxu0 %v181
    %v393 = vpop.f32.mrf.mxu0
    %v394 = vadd.f32 %v99, %v393
    %395 = vmatmul.f32.gmra.mxu0 %v184
    %v396 = vpop.f32.mrf.mxu0
    %v397 = vadd.f32 %v99, %v396
    %398 = vmatmul.f32.gmra.mxu0 %v187
    %v399 = vpop.f32.mrf.mxu0
    %v400 = vadd.f32 %v99, %v399
    %401 = vmatmul.f32.gmra.mxu0 %v190
    %v402 = vpop.f32.mrf.mxu0
    %v403 = vadd.f32 %v99, %v402
    %404 = vmatmul.f32.gmra.mxu0 %v193
    %v405 = vpop.f32.mrf.mxu0
    %v406 = vadd.f32 %v99, %v405
    %407 = vmatmul.f32.gmra.mxu0 %v196
    %v408 = vpop.f32.mrf.mxu0
    %v409 = vadd.f32 %v99, %v408
    %410 = vmatmul.f32.gmra.mxu0 %v199
    %v411 = vpop.f32.mrf.mxu0
    %v412 = vadd.f32 %v99, %v411
    %413 = vmatmul.f32.gmra.mxu0 %v202
    %v414 = vpop.f32.mrf.mxu0
    %v415 = vadd.f32 %v99, %v414
    %416 = vmatmul.f32.gmra.mxu0 %v205
    %v417 = vpop.f32.mrf.mxu0
    %v418 = vadd.f32 %v99, %v417
    %419 = vmatmul.f32.gmra.mxu0 %v208
    %v420 = vpop.f32.mrf.mxu0
    %v421 = vadd.f32 %v99, %v420
    %422 = vmatmul.f32.gmra.mxu0 %v211
    %v423 = vpop.f32.mrf.mxu0
    %v424 = vadd.f32 %v99, %v423
    %425 = vmatmul.f32.gmra.mxu0 %v214
    %v426 = vpop.f32.mrf.mxu0
    %v427 = vadd.f32 %v99, %v426
    %428 = vmatmul.f32.gmra.mxu0 %v217
    %v429 = vpop.f32.mrf.mxu0
    %v430 = vadd.f32 %v99, %v429
    %431 = vmatmul.f32.gmra.mxu0 %v220
    %v432 = vpop.f32.mrf.mxu0
    %v433 = vadd.f32 %v99, %v432
    %434 = vmatmul.f32.gmra.mxu0 %v223
    %v435 = vpop.f32.mrf.mxu0
    %v436 = vadd.f32 %v99, %v435
    %437 = vmatmul.f32.gmra.mxu0 %v226
    %v438 = vpop.f32.mrf.mxu0
    %v439 = vadd.f32 %v99, %v438
    %440 = vmatmul.f32.gmra.mxu0 %v229
    %v441 = vpop.f32.mrf.mxu0
    %v442 = vadd.f32 %v99, %v441
    %443 = vmatmul.f32.gmra.mxu0 %v232
    %v444 = vpop.f32.mrf.mxu0
    %v445 = vadd.f32 %v99, %v444
    %446 = vmatmul.f32.gmra.mxu0 %v235
    %v447 = vpop.f32.mrf.mxu0
    %v448 = vadd.f32 %v99, %v447
    %449 = vmatmul.f32.gmra.mxu0 %v238
    %v450 = vpop.f32.mrf.mxu0
    %v451 = vadd.f32 %v99, %v450
    %452 = vmatmul.f32.gmra.mxu0 %v241
    %v453 = vpop.f32.mrf.mxu0
    %v454 = vadd.f32 %v99, %v453
    %455 = vmatmul.f32.gmra.mxu0 %v244
    %v456 = vpop.f32.mrf.mxu0
    %v457 = vadd.f32 %v99, %v456
    %458 = vmatmul.f32.gmra.mxu0 %v247
    %v459 = vpop.f32.mrf.mxu0
    %v460 = vadd.f32 %v99, %v459
    %461 = vmatmul.f32.gmra.mxu0 %v250
    %v462 = vpop.f32.mrf.mxu0
    %v463 = vadd.f32 %v99, %v462
    %464 = vmatmul.f32.gmra.mxu0 %v253
    %v465 = vpop.f32.mrf.mxu0
    %v466 = vadd.f32 %v99, %v465
    %467 = vmatmul.f32.gmra.mxu0 %v256
    %v468 = vpop.f32.mrf.mxu0
    %v469 = vadd.f32 %v99, %v468
    %470 = vmatmul.f32.gmra.mxu0 %v259
    %v471 = vpop.f32.mrf.mxu0
    %v472 = vadd.f32 %v99, %v471
    %473 = vmatmul.f32.gmra.mxu0 %v262
    %v474 = vpop.f32.mrf.mxu0
    %v475 = vadd.f32 %v99, %v474
    %476 = vmatmul.f32.gmra.mxu0 %v265
    %v477 = vpop.f32.mrf.mxu0
    %v478 = vadd.f32 %v99, %v477
    %479 = vmatmul.f32.gmra.mxu0 %v268
    %v480 = vpop.f32.mrf.mxu0
    %v481 = vadd.f32 %v99, %v480
    %482 = vmatmul.f32.gmra.mxu0 %v271
    %v483 = vpop.f32.mrf.mxu0
    %v484 = vadd.f32 %v99, %v483
    %485 = vmatmul.f32.gmra.mxu0 %v274
    %v486 = vpop.f32.mrf.mxu0
    %v487 = vadd.f32 %v99, %v486
    %488 = vmatmul.f32.gmra.mxu0 %v277
    %v489 = vpop.f32.mrf.mxu0
    %v490 = vadd.f32 %v99, %v489
    %491 = vmatmul.f32.gmra.mxu0 %v280
    %v492 = vpop.f32.mrf.mxu0
    %v493 = vadd.f32 %v99, %v492
    %494 = vmatmul.f32.gmra.mxu0 %v283
    %v495 = vpop.f32.mrf.mxu0
    %v496 = vadd.f32 %v99, %v495
    %497 = vmatmul.f32.gmra.mxu0 %v286
    %v498 = vpop.f32.mrf.mxu0
    %v499 = vadd.f32 %v99, %v498
    %500 = vmatmul.f32.gmra.mxu0 %v289
    %v501 = vpop.f32.mrf.mxu0
    %v502 = vadd.f32 %v99, %v501
    %503 = vmatmul.f32.gmra.mxu0 %v292
    %v504 = vpop.f32.mrf.mxu0
    %v505 = vadd.f32 %v99, %v504
    %506 = vdwg.mxu0
    %v507 = vmax.f32 %v316, 0.0
    %v508 = vmax.f32 %v319, 0.0
    %v509 = vmax.f32 %v322, 0.0
    %v510 = vmax.f32 %v325, 0.0
    %v511 = vmax.f32 %v328, 0.0
    %v512 = vmax.f32 %v331, 0.0
    %v513 = vmax.f32 %v334, 0.0
    %v514 = vmax.f32 %v337, 0.0
    %v515 = vmax.f32 %v340, 0.0
    %v516 = vmax.f32 %v343, 0.0
    %v517 = vmax.f32 %v346, 0.0
    %v518 = vmax.f32 %v349, 0.0
    %v519 = vmax.f32 %v352, 0.0
    %v520 = vmax.f32 %v355, 0.0
    %v521 = vmax.f32 %v358, 0.0
    %v522 = vmax.f32 %v361, 0.0
    %v523 = vmax.f32 %v364, 0.0
    %v524 = vmax.f32 %v367, 0.0
    %v525 = vmax.f32 %v370, 0.0
    %v526 = vmax.f32 %v373, 0.0
    %v527 = vmax.f32 %v376, 0.0
    %v528 = vmax.f32 %v379, 0.0
    %v529 = vmax.f32 %v382, 0.0
    %v530 = vmax.f32 %v385, 0.0
    %v531 = vmax.f32 %v388, 0.0
    %v532 = vmax.f32 %v391, 0.0
    %v533 = vmax.f32 %v394, 0.0
    %v534 = vmax.f32 %v397, 0.0
    %v535 = vmax.f32 %v400, 0.0
    %v536 = vmax.f32 %v403, 0.0
    %v537 = vmax.f32 %v406, 0.0
    %v538 = vmax.f32 %v409, 0.0
    %v539 = vmax.f32 %v412, 0.0
    %v540 = vmax.f32 %v415, 0.0
    %v541 = vmax.f32 %v418, 0.0
    %v542 = vmax.f32 %v421, 0.0
    %v543 = vmax.f32 %v424, 0.0
    %v544 = vmax.f32 %v427, 0.0
    %v545 = vmax.f32 %v430, 0.0
    %v546 = vmax.f32 %v433, 0.0
    %v547 = vmax.f32 %v436, 0.0
    %v548 = vmax.f32 %v439, 0.0
    %v549 = vmax.f32 %v442, 0.0
    %v550 = vmax.f32 %v445, 0.0
    %v551 = vmax.f32 %v448, 0.0
    %v552 = vmax.f32 %v451, 0.0
    %v553 = vmax.f32 %v454, 0.0
    %v554 = vmax.f32 %v457, 0.0
    %v555 = vmax.f32 %v460, 0.0
    %v556 = vmax.f32 %v463, 0.0
    %v557 = vmax.f32 %v466, 0.0
    %v558 = vmax.f32 %v469, 0.0
    %v559 = vmax.f32 %v472, 0.0
    %v560 = vmax.f32 %v475, 0.0
    %v561 = vmax.f32 %v478, 0.0
    %v562 = vmax.f32 %v481, 0.0
    %v563 = vmax.f32 %v484, 0.0
    %v564 = vmax.f32 %v487, 0.0
    %v565 = vmax.f32 %v490, 0.0
    %v566 = vmax.f32 %v493, 0.0
    %v567 = vmax.f32 %v496, 0.0
    %v568 = vmax.f32 %v499, 0.0
    %v569 = vmax.f32 %v502, 0.0
    %v570 = vmax.f32 %v505, 0.0
    %vm571 = vcmask 64512
    %572 = vst.msk [vmem:[%s3] sm:$0xff] %vm571, %v507
    %573 = vst.msk [vmem:[%s3 + $0x8] sm:$0xff] %vm571, %v508
    %574 = vst.msk [vmem:[%s3 + $0x10] sm:$0xff] %vm571, %v509
    %575 = vst.msk [vmem:[%s3 + $0x18] sm:$0xff] %vm571, %v510
    %576 = vst.msk [vmem:[%s3 + $0x20] sm:$0xff] %vm571, %v511
    %577 = vst.msk [vmem:[%s3 + $0x28] sm:$0xff] %vm571, %v512
    %578 = vst.msk [vmem:[%s3 + $0x30] sm:$0xff] %vm571, %v513
    %579 = vst.msk [vmem:[%s3 + $0x38] sm:$0xff] %vm571, %v514
    %580 = vst.msk [vmem:[%s3 + $0x40] sm:$0xff] %vm571, %v515
    %581 = vst.msk [vmem:[%s3 + $0x48] sm:$0xff] %vm571, %v516
    %582 = vst.msk [vmem:[%s3 + $0x50] sm:$0xff] %vm571, %v517
    %583 = vst.msk [vmem:[%s3 + $0x58] sm:$0xff] %vm571, %v518
    %584 = vst.msk [vmem:[%s3 + $0x60] sm:$0xff] %vm571, %v519
    %585 = vst.msk [vmem:[%s3 + $0x68] sm:$0xff] %vm571, %v520
    %586 = vst.msk [vmem:[%s3 + $0x70] sm:$0xff] %vm571, %v521
    %587 = vst.msk [vmem:[%s3 + $0x78] sm:$0xff] %vm571, %v522
    %588 = vst.msk [vmem:[%s3 + $0x80] sm:$0xff] %vm571, %v523
    %589 = vst.msk [vmem:[%s3 + $0x88] sm:$0xff] %vm571, %v524
    %590 = vst.msk [vmem:[%s3 + $0x90] sm:$0xff] %vm571, %v525
    %591 = vst.msk [vmem:[%s3 + $0x98] sm:$0xff] %vm571, %v526
    %592 = vst.msk [vmem:[%s3 + $0xa0] sm:$0xff] %vm571, %v527
    %593 = vst.msk [vmem:[%s3 + $0xa8] sm:$0xff] %vm571, %v528
    %594 = vst.msk [vmem:[%s3 + $0xb0] sm:$0xff] %vm571, %v529
    %595 = vst.msk [vmem:[%s3 + $0xb8] sm:$0xff] %vm571, %v530
    %596 = vst.msk [vmem:[%s3 + $0xc0] sm:$0xff] %vm571, %v531
    %597 = vst.msk [vmem:[%s3 + $0xc8] sm:$0xff] %vm571, %v532
    %598 = vst.msk [vmem:[%s3 + $0xd0] sm:$0xff] %vm571, %v533
    %599 = vst.msk [vmem:[%s3 + $0xd8] sm:$0xff] %vm571, %v534
    %600 = vst.msk [vmem:[%s3 + $0xe0] sm:$0xff] %vm571, %v535
    %601 = vst.msk [vmem:[%s3 + $0xe8] sm:$0xff] %vm571, %v536
    %602 = vst.msk [vmem:[%s3 + $0xf0] sm:$0xff] %vm571, %v537
    %603 = vst.msk [vmem:[%s3 + $0xf8] sm:$0xff] %vm571, %v538
    %604 = vst.msk [vmem:[%s3 + $0x100] sm:$0xff] %vm571, %v539
    %605 = vst.msk [vmem:[%s3 + $0x108] sm:$0xff] %vm571, %v540
    %606 = vst.msk [vmem:[%s3 + $0x110] sm:$0xff] %vm571, %v541
    %607 = vst.msk [vmem:[%s3 + $0x118] sm:$0xff] %vm571, %v542
    %608 = vst.msk [vmem:[%s3 + $0x120] sm:$0xff] %vm571, %v543
    %609 = vst.msk [vmem:[%s3 + $0x128] sm:$0xff] %vm571, %v544
    %610 = vst.msk [vmem:[%s3 + $0x130] sm:$0xff] %vm571, %v545
    %611 = vst.msk [vmem:[%s3 + $0x138] sm:$0xff] %vm571, %v546
    %612 = vst.msk [vmem:[%s3 + $0x140] sm:$0xff] %vm571, %v547
    %613 = vst.msk [vmem:[%s3 + $0x148] sm:$0xff] %vm571, %v548
    %614 = vst.msk [vmem:[%s3 + $0x150] sm:$0xff] %vm571, %v549
    %615 = vst.msk [vmem:[%s3 + $0x158] sm:$0xff] %vm571, %v550
    %616 = vst.msk [vmem:[%s3 + $0x160] sm:$0xff] %vm571, %v551
    %617 = vst.msk [vmem:[%s3 + $0x168] sm:$0xff] %vm571, %v552
    %618 = vst.msk [vmem:[%s3 + $0x170] sm:$0xff] %vm571, %v553
    %619 = vst.msk [vmem:[%s3 + $0x178] sm:$0xff] %vm571, %v554
    %620 = vst.msk [vmem:[%s3 + $0x180] sm:$0xff] %vm571, %v555
    %621 = vst.msk [vmem:[%s3 + $0x188] sm:$0xff] %vm571, %v556
    %622 = vst.msk [vmem:[%s3 + $0x190] sm:$0xff] %vm571, %v557
    %623 = vst.msk [vmem:[%s3 + $0x198] sm:$0xff] %vm571, %v558
    %624 = vst.msk [vmem:[%s3 + $0x1a0] sm:$0xff] %vm571, %v559
    %625 = vst.msk [vmem:[%s3 + $0x1a8] sm:$0xff] %vm571, %v560
    %626 = vst.msk [vmem:[%s3 + $0x1b0] sm:$0xff] %vm571, %v561
    %627 = vst.msk [vmem:[%s3 + $0x1b8] sm:$0xff] %vm571, %v562
    %628 = vst.msk [vmem:[%s3 + $0x1c0] sm:$0xff] %vm571, %v563
    %629 = vst.msk [vmem:[%s3 + $0x1c8] sm:$0xff] %vm571, %v564
    %630 = vst.msk [vmem:[%s3 + $0x1d0] sm:$0xff] %vm571, %v565
    %631 = vst.msk [vmem:[%s3 + $0x1d8] sm:$0xff] %vm571, %v566
    %632 = vst.msk [vmem:[%s3 + $0x1e0] sm:$0xff] %vm571, %v567
    %633 = vst.msk [vmem:[%s3 + $0x1e8] sm:$0xff] %vm571, %v568
    %634 = vst.msk [vmem:[%s3 + $0x1f0] sm:$0xff] %vm571, %v569
    %635 = vst.msk [vmem:[%s3 + $0x1f8] sm:$0xff] %vm571, %v570
    // Predicated region
    $region18: #{conv_transformer_forward.4} parent=1 // pred_check
      _
    $region19: #{conv_transformer_forward.4} parent=1 // pred_check_branch
      %637 = sbr.rel (0) target = $region21
    $region20: #{conv_transformer_forward.4} parent=1 // pred_region
      _
    $region21: #{conv_transformer_forward.4} parent=1 // pred_fallthru
      _
    // Predicated region
    $region22: #{conv_transformer_forward.4} parent=1 // pred_check
      _
    $region23: #{conv_transformer_forward.4} parent=1 // pred_check_branch
      %639 = sbr.rel (0) target = $region25
    $region24: #{conv_transformer_forward.4} parent=1 // pred_region
      _
    $region25: #{conv_transformer_forward.4} parent=1 // pred_fallthru
      _
    %640 = vsyncpa [#allocation3], 1

// kernel: conv_transformer_forward.5
$region0: #{conv_transformer_forward.5}
  #allocation0 [shape = 'u32[]', space=smem, size = 0x4, offset = 0x4, fixed_abs, tag = 'smem constant byte address 0x4 - core index']
  #allocation1 [shape = 'u32[72,128]{1,0:T(1,128)}', space=vmem, size = 0x9000, scoped, tag = 'internal scratch']
  %s0 = inlined_call_operand.vmem [shape: f32[512,72], index: 0, kind: input, shape index: {}]
  %s1 = inlined_call_operand.vmem [shape: f32[72,8], index: 1, kind: input, shape index: {}]
  %s2 = inlined_call_operand.vmem [shape: f32[1,8], index: 2, kind: input, shape index: {}]
  %s3 = inlined_call_operand.vmem [shape: f32[8,38], index: 3, kind: input, shape index: {}]
  %s4 = inlined_call_operand.vmem [shape: f32[1,38], index: 4, kind: input, shape index: {}]
  %s5 = inlined_call_operand.vmem [shape: f32[512,38], index: 5, kind: output, shape index: {}]
  %s6 = sld [smem:[#allocation0]]
  $region30: #{conv_transformer_forward.5} parent=0
    _
  %s8 = ssub.s32 1, %s6
  %s9 = scalar_select 0, %s8, %s6
  // Predicated region
  $region2: #{conv_transformer_forward.5} parent=0 // pred_check
    _
  $region3: #{conv_transformer_forward.5} parent=0 // pred_check_branch
    %11 = sbr.rel (0) target = $region5
  $region4: #{conv_transformer_forward.5} parent=0 // pred_region
    _
  $region5: #{conv_transformer_forward.5} parent=0 // pred_fallthru
    _
  // Predicated region
  $region6: #{conv_transformer_forward.5} parent=0 // pred_check
    _
  $region7: #{conv_transformer_forward.5} parent=0 // pred_check_branch
    %13 = sbr.rel (0) target = $region9
  $region8: #{conv_transformer_forward.5} parent=0 // pred_region
    _
  $region9: #{conv_transformer_forward.5} parent=0 // pred_fallthru
    _
  // Predicated region
  $region10: #{conv_transformer_forward.5} parent=0 // pred_check
    _
  $region11: #{conv_transformer_forward.5} parent=0 // pred_check_branch
    %15 = sbr.rel (0) target = $region13
  $region12: #{conv_transformer_forward.5} parent=0 // pred_region
    _
  $region13: #{conv_transformer_forward.5} parent=0 // pred_fallthru
    _
  // Predicated region
  $region14: #{conv_transformer_forward.5} parent=0 // pred_check
    _
  $region15: #{conv_transformer_forward.5} parent=0 // pred_check_branch
    %17 = sbr.rel (0) target = $region17
  $region16: #{conv_transformer_forward.5} parent=0 // pred_region
    _
  $region17: #{conv_transformer_forward.5} parent=0 // pred_fallthru
    _
  // Predicated region
  $region18: #{conv_transformer_forward.5} parent=0 // pred_check
    _
  $region19: #{conv_transformer_forward.5} parent=0 // pred_check_branch
    %19 = sbr.rel (0) target = $region21
  $region20: #{conv_transformer_forward.5} parent=0 // pred_region
    _
  $region21: #{conv_transformer_forward.5} parent=0 // pred_fallthru
    _
  %v20 = vld [vmem:[%s0] sm:$0xff]
  %v21 = vld [vmem:[%s0 + $0x8] sm:$0xff]
  %v22 = vld [vmem:[%s0 + $0x10] sm:$0xff]
  %v23 = vld [vmem:[%s0 + $0x18] sm:$0xff]
  %v24 = vld [vmem:[%s0 + $0x20] sm:$0xff]
  %v25 = vld [vmem:[%s0 + $0x28] sm:$0xff]
  %v26 = vld [vmem:[%s0 + $0x30] sm:$0xff]
  %v27 = vld [vmem:[%s0 + $0x38] sm:$0xff]
  %v28 = vld [vmem:[%s0 + $0x40] sm:$0xff]
  %v29 = vld [vmem:[%s0 + $0x48] sm:$0xff]
  %v30 = vld [vmem:[%s0 + $0x50] sm:$0xff]
  %v31 = vld [vmem:[%s0 + $0x58] sm:$0xff]
  %v32 = vld [vmem:[%s0 + $0x60] sm:$0xff]
  %v33 = vld [vmem:[%s0 + $0x68] sm:$0xff]
  %v34 = vld [vmem:[%s0 + $0x70] sm:$0xff]
  %v35 = vld [vmem:[%s0 + $0x78] sm:$0xff]
  %v36 = vld [vmem:[%s0 + $0x80] sm:$0xff]
  %v37 = vld [vmem:[%s0 + $0x88] sm:$0xff]
  %v38 = vld [vmem:[%s0 + $0x90] sm:$0xff]
  %v39 = vld [vmem:[%s0 + $0x98] sm:$0xff]
  %v40 = vld [vmem:[%s0 + $0xa0] sm:$0xff]
  %v41 = vld [vmem:[%s0 + $0xa8] sm:$0xff]
  %v42 = vld [vmem:[%s0 + $0xb0] sm:$0xff]
  %v43 = vld [vmem:[%s0 + $0xb8] sm:$0xff]
  %v44 = vld [vmem:[%s0 + $0xc0] sm:$0xff]
  %v45 = vld [vmem:[%s0 + $0xc8] sm:$0xff]
  %v46 = vld [vmem:[%s0 + $0xd0] sm:$0xff]
  %v47 = vld [vmem:[%s0 + $0xd8] sm:$0xff]
  %v48 = vld [vmem:[%s0 + $0xe0] sm:$0xff]
  %v49 = vld [vmem:[%s0 + $0xe8] sm:$0xff]
  %v50 = vld [vmem:[%s0 + $0xf0] sm:$0xff]
  %v51 = vld [vmem:[%s0 + $0xf8] sm:$0xff]
  %v52 = vld [vmem:[%s0 + $0x100] sm:$0xff]
  %v53 = vld [vmem:[%s0 + $0x108] sm:$0xff]
  %v54 = vld [vmem:[%s0 + $0x110] sm:$0xff]
  %v55 = vld [vmem:[%s0 + $0x118] sm:$0xff]
  %v56 = vld [vmem:[%s0 + $0x120] sm:$0xff]
  %v57 = vld [vmem:[%s0 + $0x128] sm:$0xff]
  %v58 = vld [vmem:[%s0 + $0x130] sm:$0xff]
  %v59 = vld [vmem:[%s0 + $0x138] sm:$0xff]
  %v60 = vld [vmem:[%s0 + $0x140] sm:$0xff]
  %v61 = vld [vmem:[%s0 + $0x148] sm:$0xff]
  %v62 = vld [vmem:[%s0 + $0x150] sm:$0xff]
  %v63 = vld [vmem:[%s0 + $0x158] sm:$0xff]
  %v64 = vld [vmem:[%s0 + $0x160] sm:$0xff]
  %v65 = vld [vmem:[%s0 + $0x168] sm:$0xff]
  %v66 = vld [vmem:[%s0 + $0x170] sm:$0xff]
  %v67 = vld [vmem:[%s0 + $0x178] sm:$0xff]
  %v68 = vld [vmem:[%s0 + $0x180] sm:$0xff]
  %v69 = vld [vmem:[%s0 + $0x188] sm:$0xff]
  %v70 = vld [vmem:[%s0 + $0x190] sm:$0xff]
  %v71 = vld [vmem:[%s0 + $0x198] sm:$0xff]
  %v72 = vld [vmem:[%s0 + $0x1a0] sm:$0xff]
  %v73 = vld [vmem:[%s0 + $0x1a8] sm:$0xff]
  %v74 = vld [vmem:[%s0 + $0x1b0] sm:$0xff]
  %v75 = vld [vmem:[%s0 + $0x1b8] sm:$0xff]
  %v76 = vld [vmem:[%s0 + $0x1c0] sm:$0xff]
  %v77 = vld [vmem:[%s0 + $0x1c8] sm:$0xff]
  %v78 = vld [vmem:[%s0 + $0x1d0] sm:$0xff]
  %v79 = vld [vmem:[%s0 + $0x1d8] sm:$0xff]
  %v80 = vld [vmem:[%s0 + $0x1e0] sm:$0xff]
  %v81 = vld [vmem:[%s0 + $0x1e8] sm:$0xff]
  %v82 = vld [vmem:[%s0 + $0x1f0] sm:$0xff]
  %v83 = vld [vmem:[%s0 + $0x1f8] sm:$0xff]
  %v84 = vld [vmem:[%s1] sm:$0xff]
  %v85 = vld [vmem:[%s1 + $0x8] sm:$0xff]
  %v86 = vld [vmem:[%s1 + $0x10] sm:$0xff]
  %v87 = vld [vmem:[%s1 + $0x18] sm:$0xff]
  %v88 = vld [vmem:[%s1 + $0x20] sm:$0xff]
  %v89 = vld [vmem:[%s1 + $0x28] sm:$0xff]
  %v90 = vld [vmem:[%s1 + $0x30] sm:$0xff]
  %v91 = vld [vmem:[%s1 + $0x38] sm:$0xff]
  %v92 = vld [vmem:[%s1 + $0x40] sm:$0xff]
  %v93 = vld [vmem:[%s2] sm:$0x1]
  %v95 = vperm.slane %v93, 0
  %vm97 = vcmask 588800
  %v99 = vsel %vm97, %v20, 0
  %v102 = vsel %vm97, %v21, 0
  %v105 = vsel %vm97, %v22, 0
  %v108 = vsel %vm97, %v23, 0
  %v111 = vsel %vm97, %v24, 0
  %v114 = vsel %vm97, %v25, 0
  %v117 = vsel %vm97, %v26, 0
  %v120 = vsel %vm97, %v27, 0
  %v123 = vsel %vm97, %v28, 0
  %v126 = vsel %vm97, %v29, 0
  %v129 = vsel %vm97, %v30, 0
  %v132 = vsel %vm97, %v31, 0
  %v135 = vsel %vm97, %v32, 0
  %v138 = vsel %vm97, %v33, 0
  %v141 = vsel %vm97, %v34, 0
  %v144 = vsel %vm97, %v35, 0
  %v147 = vsel %vm97, %v36, 0
  %v150 = vsel %vm97, %v37, 0
  %v153 = vsel %vm97, %v38, 0
  %v156 = vsel %vm97, %v39, 0
  %v159 = vsel %vm97, %v40, 0
  %v162 = vsel %vm97, %v41, 0
  %v165 = vsel %vm97, %v42, 0
  %v168 = vsel %vm97, %v43, 0
  %v171 = vsel %vm97, %v44, 0
  %v174 = vsel %vm97, %v45, 0
  %v177 = vsel %vm97, %v46, 0
  %v180 = vsel %vm97, %v47, 0
  %v183 = vsel %vm97, %v48, 0
  %v186 = vsel %vm97, %v49, 0
  %v189 = vsel %vm97, %v50, 0
  %v192 = vsel %vm97, %v51, 0
  %v195 = vsel %vm97, %v52, 0
  %v198 = vsel %vm97, %v53, 0
  %v201 = vsel %vm97, %v54, 0
  %v204 = vsel %vm97, %v55, 0
  %v207 = vsel %vm97, %v56, 0
  %v210 = vsel %vm97, %v57, 0
  %v213 = vsel %vm97, %v58, 0
  %v216 = vsel %vm97, %v59, 0
  %v219 = vsel %vm97, %v60, 0
  %v222 = vsel %vm97, %v61, 0
  %v225 = vsel %vm97, %v62, 0
  %v228 = vsel %vm97, %v63, 0
  %v231 = vsel %vm97, %v64, 0
  %v234 = vsel %vm97, %v65, 0
  %v237 = vsel %vm97, %v66, 0
  %v240 = vsel %vm97, %v67, 0
  %v243 = vsel %vm97, %v68, 0
  %v246 = vsel %vm97, %v69, 0
  %v249 = vsel %vm97, %v70, 0
  %v252 = vsel %vm97, %v71, 0
  %v255 = vsel %vm97, %v72, 0
  %v258 = vsel %vm97, %v73, 0
  %v261 = vsel %vm97, %v74, 0
  %v264 = vsel %vm97, %v75, 0
  %v267 = vsel %vm97, %v76, 0
  %v270 = vsel %vm97, %v77, 0
  %v273 = vsel %vm97, %v78, 0
  %v276 = vsel %vm97, %v79, 0
  %v279 = vsel %vm97, %v80, 0
  %v282 = vsel %vm97, %v81, 0
  %v285 = vsel %vm97, %v82, 0
  %v288 = vsel %vm97, %v83, 0
  %290 = vmatpush.msra.mxu0 0.0
  %291 = vmatpush.msra.mxu0 0.0
  %292 = vmatpush.msra.mxu0 0.0
  %293 = vmatpush.msra.mxu0 0.0
  %294 = vmatpush.msra.mxu0 0.0
  %295 = vmatpush.msra.mxu0 0.0
  %296 = vmatpush.msra.mxu0 0.0
  %297 = vmatpush.msra.mxu0 %v92
  %298 = vmatpush.msra.mxu0 %v91
  %299 = vmatpush.msra.mxu0 %v90
  %300 = vmatpush.msra.mxu0 %v89
  %301 = vmatpush.msra.mxu0 %v88
  %302 = vmatpush.msra.mxu0 %v87
  %303 = vmatpush.msra.mxu0 %v86
  %304 = vmatpush.msra.mxu0 %v85
  %305 = vmatpush.msra.mxu0 %v84
  %306 = vmatmul.f32.gmra.mxu0 %v99
  %v307 = vpop.f32.mrf.mxu0
  %v308 = vadd.f32 %v95, %v307
  %309 = vmatmul.f32.gmra.mxu0 %v102
  %v310 = vpop.f32.mrf.mxu0
  %v311 = vadd.f32 %v95, %v310
  %312 = vmatmul.f32.gmra.mxu0 %v105
  %v313 = vpop.f32.mrf.mxu0
  %v314 = vadd.f32 %v95, %v313
  %315 = vmatmul.f32.gmra.mxu0 %v108
  %v316 = vpop.f32.mrf.mxu0
  %v317 = vadd.f32 %v95, %v316
  %318 = vmatmul.f32.gmra.mxu0 %v111
  %v319 = vpop.f32.mrf.mxu0
  %v320 = vadd.f32 %v95, %v319
  %321 = vmatmul.f32.gmra.mxu0 %v114
  %v322 = vpop.f32.mrf.mxu0
  %v323 = vadd.f32 %v95, %v322
  %324 = vmatmul.f32.gmra.mxu0 %v117
  %v325 = vpop.f32.mrf.mxu0
  %v326 = vadd.f32 %v95, %v325
  %327 = vmatmul.f32.gmra.mxu0 %v120
  %v328 = vpop.f32.mrf.mxu0
  %v329 = vadd.f32 %v95, %v328
  %330 = vmatmul.f32.gmra.mxu0 %v123
  %v331 = vpop.f32.mrf.mxu0
  %v332 = vadd.f32 %v95, %v331
  %333 = vmatmul.f32.gmra.mxu0 %v126
  %v334 = vpop.f32.mrf.mxu0
  %v335 = vadd.f32 %v95, %v334
  %336 = vmatmul.f32.gmra.mxu0 %v129
  %v337 = vpop.f32.mrf.mxu0
  %v338 = vadd.f32 %v95, %v337
  %339 = vmatmul.f32.gmra.mxu0 %v132
  %v340 = vpop.f32.mrf.mxu0
  %v341 = vadd.f32 %v95, %v340
  %342 = vmatmul.f32.gmra.mxu0 %v135
  %v343 = vpop.f32.mrf.mxu0
  %v344 = vadd.f32 %v95, %v343
  %345 = vmatmul.f32.gmra.mxu0 %v138
  %v346 = vpop.f32.mrf.mxu0
  %v347 = vadd.f32 %v95, %v346
  %348 = vmatmul.f32.gmra.mxu0 %v141
  %v349 = vpop.f32.mrf.mxu0
  %v350 = vadd.f32 %v95, %v349
  %351 = vmatmul.f32.gmra.mxu0 %v144
  %v352 = vpop.f32.mrf.mxu0
  %v353 = vadd.f32 %v95, %v352
  %354 = vmatmul.f32.gmra.mxu0 %v147
  %v355 = vpop.f32.mrf.mxu0
  %v356 = vadd.f32 %v95, %v355
  %357 = vmatmul.f32.gmra.mxu0 %v150
  %v358 = vpop.f32.mrf.mxu0
  %v359 = vadd.f32 %v95, %v358
  %360 = vmatmul.f32.gmra.mxu0 %v153
  %v361 = vpop.f32.mrf.mxu0
  %v362 = vadd.f32 %v95, %v361
  %363 = vmatmul.f32.gmra.mxu0 %v156
  %v364 = vpop.f32.mrf.mxu0
  %v365 = vadd.f32 %v95, %v364
  %366 = vmatmul.f32.gmra.mxu0 %v159
  %v367 = vpop.f32.mrf.mxu0
  %v368 = vadd.f32 %v95, %v367
  %369 = vmatmul.f32.gmra.mxu0 %v162
  %v370 = vpop.f32.mrf.mxu0
  %v371 = vadd.f32 %v95, %v370
  %372 = vmatmul.f32.gmra.mxu0 %v165
  %v373 = vpop.f32.mrf.mxu0
  %v374 = vadd.f32 %v95, %v373
  %375 = vmatmul.f32.gmra.mxu0 %v168
  %v376 = vpop.f32.mrf.mxu0
  %v377 = vadd.f32 %v95, %v376
  %378 = vmatmul.f32.gmra.mxu0 %v171
  %v379 = vpop.f32.mrf.mxu0
  %v380 = vadd.f32 %v95, %v379
  %381 = vmatmul.f32.gmra.mxu0 %v174
  %v382 = vpop.f32.mrf.mxu0
  %v383 = vadd.f32 %v95, %v382
  %384 = vmatmul.f32.gmra.mxu0 %v177
  %v385 = vpop.f32.mrf.mxu0
  %v386 = vadd.f32 %v95, %v385
  %387 = vmatmul.f32.gmra.mxu0 %v180
  %v388 = vpop.f32.mrf.mxu0
  %v389 = vadd.f32 %v95, %v388
  %390 = vmatmul.f32.gmra.mxu0 %v183
  %v391 = vpop.f32.mrf.mxu0
  %v392 = vadd.f32 %v95, %v391
  %393 = vmatmul.f32.gmra.mxu0 %v186
  %v394 = vpop.f32.mrf.mxu0
  %v395 = vadd.f32 %v95, %v394
  %396 = vmatmul.f32.gmra.mxu0 %v189
  %v397 = vpop.f32.mrf.mxu0
  %v398 = vadd.f32 %v95, %v397
  %399 = vmatmul.f32.gmra.mxu0 %v192
  %v400 = vpop.f32.mrf.mxu0
  %v401 = vadd.f32 %v95, %v400
  %402 = vmatmul.f32.gmra.mxu0 %v195
  %v403 = vpop.f32.mrf.mxu0
  %v404 = vadd.f32 %v95, %v403
  %405 = vmatmul.f32.gmra.mxu0 %v198
  %v406 = vpop.f32.mrf.mxu0
  %v407 = vadd.f32 %v95, %v406
  %408 = vmatmul.f32.gmra.mxu0 %v201
  %v409 = vpop.f32.mrf.mxu0
  %v410 = vadd.f32 %v95, %v409
  %411 = vmatmul.f32.gmra.mxu0 %v204
  %v412 = vpop.f32.mrf.mxu0
  %v413 = vadd.f32 %v95, %v412
  %414 = vmatmul.f32.gmra.mxu0 %v207
  %v415 = vpop.f32.mrf.mxu0
  %v416 = vadd.f32 %v95, %v415
  %417 = vmatmul.f32.gmra.mxu0 %v210
  %v418 = vpop.f32.mrf.mxu0
  %v419 = vadd.f32 %v95, %v418
  %420 = vmatmul.f32.gmra.mxu0 %v213
  %v421 = vpop.f32.mrf.mxu0
  %v422 = vadd.f32 %v95, %v421
  %423 = vmatmul.f32.gmra.mxu0 %v216
  %v424 = vpop.f32.mrf.mxu0
  %v425 = vadd.f32 %v95, %v424
  %426 = vmatmul.f32.gmra.mxu0 %v219
  %v427 = vpop.f32.mrf.mxu0
  %v428 = vadd.f32 %v95, %v427
  %429 = vmatmul.f32.gmra.mxu0 %v222
  %v430 = vpop.f32.mrf.mxu0
  %v431 = vadd.f32 %v95, %v430
  %432 = vmatmul.f32.gmra.mxu0 %v225
  %v433 = vpop.f32.mrf.mxu0
  %v434 = vadd.f32 %v95, %v433
  %435 = vmatmul.f32.gmra.mxu0 %v228
  %v436 = vpop.f32.mrf.mxu0
  %v437 = vadd.f32 %v95, %v436
  %438 = vmatmul.f32.gmra.mxu0 %v231
  %v439 = vpop.f32.mrf.mxu0
  %v440 = vadd.f32 %v95, %v439
  %441 = vmatmul.f32.gmra.mxu0 %v234
  %v442 = vpop.f32.mrf.mxu0
  %v443 = vadd.f32 %v95, %v442
  %444 = vmatmul.f32.gmra.mxu0 %v237
  %v445 = vpop.f32.mrf.mxu0
  %v446 = vadd.f32 %v95, %v445
  %447 = vmatmul.f32.gmra.mxu0 %v240
  %v448 = vpop.f32.mrf.mxu0
  %v449 = vadd.f32 %v95, %v448
  %450 = vmatmul.f32.gmra.mxu0 %v243
  %v451 = vpop.f32.mrf.mxu0
  %v452 = vadd.f32 %v95, %v451
  %453 = vmatmul.f32.gmra.mxu0 %v246
  %v454 = vpop.f32.mrf.mxu0
  %v455 = vadd.f32 %v95, %v454
  %456 = vmatmul.f32.gmra.mxu0 %v249
  %v457 = vpop.f32.mrf.mxu0
  %v458 = vadd.f32 %v95, %v457
  %459 = vmatmul.f32.gmra.mxu0 %v252
  %v460 = vpop.f32.mrf.mxu0
  %v461 = vadd.f32 %v95, %v460
  %462 = vmatmul.f32.gmra.mxu0 %v255
  %v463 = vpop.f32.mrf.mxu0
  %v464 = vadd.f32 %v95, %v463
  %465 = vmatmul.f32.gmra.mxu0 %v258
  %v466 = vpop.f32.mrf.mxu0
  %v467 = vadd.f32 %v95, %v466
  %468 = vmatmul.f32.gmra.mxu0 %v261
  %v469 = vpop.f32.mrf.mxu0
  %v470 = vadd.f32 %v95, %v469
  %471 = vmatmul.f32.gmra.mxu0 %v264
  %v472 = vpop.f32.mrf.mxu0
  %v473 = vadd.f32 %v95, %v472
  %474 = vmatmul.f32.gmra.mxu0 %v267
  %v475 = vpop.f32.mrf.mxu0
  %v476 = vadd.f32 %v95, %v475
  %477 = vmatmul.f32.gmra.mxu0 %v270
  %v478 = vpop.f32.mrf.mxu0
  %v479 = vadd.f32 %v95, %v478
  %480 = vmatmul.f32.gmra.mxu0 %v273
  %v481 = vpop.f32.mrf.mxu0
  %v482 = vadd.f32 %v95, %v481
  %483 = vmatmul.f32.gmra.mxu0 %v276
  %v484 = vpop.f32.mrf.mxu0
  %v485 = vadd.f32 %v95, %v484
  %486 = vmatmul.f32.gmra.mxu0 %v279
  %v487 = vpop.f32.mrf.mxu0
  %v488 = vadd.f32 %v95, %v487
  %489 = vmatmul.f32.gmra.mxu0 %v282
  %v490 = vpop.f32.mrf.mxu0
  %v491 = vadd.f32 %v95, %v490
  %492 = vmatmul.f32.gmra.mxu0 %v285
  %v493 = vpop.f32.mrf.mxu0
  %v494 = vadd.f32 %v95, %v493
  %495 = vmatmul.f32.gmra.mxu0 %v288
  %v496 = vpop.f32.mrf.mxu0
  %v497 = vadd.f32 %v95, %v496
  %498 = vdwg.mxu0
  %v499 = vmax.f32 %v308, 0.0
  %v500 = vmax.f32 %v311, 0.0
  %v501 = vmax.f32 %v314, 0.0
  %v502 = vmax.f32 %v317, 0.0
  %v503 = vmax.f32 %v320, 0.0
  %v504 = vmax.f32 %v323, 0.0
  %v505 = vmax.f32 %v326, 0.0
  %v506 = vmax.f32 %v329, 0.0
  %v507 = vmax.f32 %v332, 0.0
  %v508 = vmax.f32 %v335, 0.0
  %v509 = vmax.f32 %v338, 0.0
  %v510 = vmax.f32 %v341, 0.0
  %v511 = vmax.f32 %v344, 0.0
  %v512 = vmax.f32 %v347, 0.0
  %v513 = vmax.f32 %v350, 0.0
  %v514 = vmax.f32 %v353, 0.0
  %v515 = vmax.f32 %v356, 0.0
  %v516 = vmax.f32 %v359, 0.0
  %v517 = vmax.f32 %v362, 0.0
  %v518 = vmax.f32 %v365, 0.0
  %v519 = vmax.f32 %v368, 0.0
  %v520 = vmax.f32 %v371, 0.0
  %v521 = vmax.f32 %v374, 0.0
  %v522 = vmax.f32 %v377, 0.0
  %v523 = vmax.f32 %v380, 0.0
  %v524 = vmax.f32 %v383, 0.0
  %v525 = vmax.f32 %v386, 0.0
  %v526 = vmax.f32 %v389, 0.0
  %v527 = vmax.f32 %v392, 0.0
  %v528 = vmax.f32 %v395, 0.0
  %v529 = vmax.f32 %v398, 0.0
  %v530 = vmax.f32 %v401, 0.0
  %v531 = vmax.f32 %v404, 0.0
  %v532 = vmax.f32 %v407, 0.0
  %v533 = vmax.f32 %v410, 0.0
  %v534 = vmax.f32 %v413, 0.0
  %v535 = vmax.f32 %v416, 0.0
  %v536 = vmax.f32 %v419, 0.0
  %v537 = vmax.f32 %v422, 0.0
  %v538 = vmax.f32 %v425, 0.0
  %v539 = vmax.f32 %v428, 0.0
  %v540 = vmax.f32 %v431, 0.0
  %v541 = vmax.f32 %v434, 0.0
  %v542 = vmax.f32 %v437, 0.0
  %v543 = vmax.f32 %v440, 0.0
  %v544 = vmax.f32 %v443, 0.0
  %v545 = vmax.f32 %v446, 0.0
  %v546 = vmax.f32 %v449, 0.0
  %v547 = vmax.f32 %v452, 0.0
  %v548 = vmax.f32 %v455, 0.0
  %v549 = vmax.f32 %v458, 0.0
  %v550 = vmax.f32 %v461, 0.0
  %v551 = vmax.f32 %v464, 0.0
  %v552 = vmax.f32 %v467, 0.0
  %v553 = vmax.f32 %v470, 0.0
  %v554 = vmax.f32 %v473, 0.0
  %v555 = vmax.f32 %v476, 0.0
  %v556 = vmax.f32 %v479, 0.0
  %v557 = vmax.f32 %v482, 0.0
  %v558 = vmax.f32 %v485, 0.0
  %v559 = vmax.f32 %v488, 0.0
  %v560 = vmax.f32 %v491, 0.0
  %v561 = vmax.f32 %v494, 0.0
  %v562 = vmax.f32 %v497, 0.0
  %v563 = vld [vmem:[%s3] sm:$0xff]
  %v564 = vld [vmem:[%s4] sm:$0x1]
  %v566 = vperm.slane %v564, 0
  %vm568 = vcmask 64512
  %v570 = vsel %vm568, %v499, 0
  %v573 = vsel %vm568, %v500, 0
  %v576 = vsel %vm568, %v501, 0
  %v579 = vsel %vm568, %v502, 0
  %v582 = vsel %vm568, %v503, 0
  %v585 = vsel %vm568, %v504, 0
  %v588 = vsel %vm568, %v505, 0
  %v591 = vsel %vm568, %v506, 0
  %v594 = vsel %vm568, %v507, 0
  %v597 = vsel %vm568, %v508, 0
  %v600 = vsel %vm568, %v509, 0
  %v603 = vsel %vm568, %v510, 0
  %v606 = vsel %vm568, %v511, 0
  %v609 = vsel %vm568, %v512, 0
  %v612 = vsel %vm568, %v513, 0
  %v615 = vsel %vm568, %v514, 0
  %v618 = vsel %vm568, %v515, 0
  %v621 = vsel %vm568, %v516, 0
  %v624 = vsel %vm568, %v517, 0
  %v627 = vsel %vm568, %v518, 0
  %v630 = vsel %vm568, %v519, 0
  %v633 = vsel %vm568, %v520, 0
  %v636 = vsel %vm568, %v521, 0
  %v639 = vsel %vm568, %v522, 0
  %v642 = vsel %vm568, %v523, 0
  %v645 = vsel %vm568, %v524, 0
  %v648 = vsel %vm568, %v525, 0
  %v651 = vsel %vm568, %v526, 0
  %v654 = vsel %vm568, %v527, 0
  %v657 = vsel %vm568, %v528, 0
  %v660 = vsel %vm568, %v529, 0
  %v663 = vsel %vm568, %v530, 0
  %v666 = vsel %vm568, %v531, 0
  %v669 = vsel %vm568, %v532, 0
  %v672 = vsel %vm568, %v533, 0
  %v675 = vsel %vm568, %v534, 0
  %v678 = vsel %vm568, %v535, 0
  %v681 = vsel %vm568, %v536, 0
  %v684 = vsel %vm568, %v537, 0
  %v687 = vsel %vm568, %v538, 0
  %v690 = vsel %vm568, %v539, 0
  %v693 = vsel %vm568, %v540, 0
  %v696 = vsel %vm568, %v541, 0
  %v699 = vsel %vm568, %v542, 0
  %v702 = vsel %vm568, %v543, 0
  %v705 = vsel %vm568, %v544, 0
  %v708 = vsel %vm568, %v545, 0
  %v711 = vsel %vm568, %v546, 0
  %v714 = vsel %vm568, %v547, 0
  %v717 = vsel %vm568, %v548, 0
  %v720 = vsel %vm568, %v549, 0
  %v723 = vsel %vm568, %v550, 0
  %v726 = vsel %vm568, %v551, 0
  %v729 = vsel %vm568, %v552, 0
  %v732 = vsel %vm568, %v553, 0
  %v735 = vsel %vm568, %v554, 0
  %v738 = vsel %vm568, %v555, 0
  %v741 = vsel %vm568, %v556, 0
  %v744 = vsel %vm568, %v557, 0
  %v747 = vsel %vm568, %v558, 0
  %v750 = vsel %vm568, %v559, 0
  %v753 = vsel %vm568, %v560, 0
  %v756 = vsel %vm568, %v561, 0
  %v759 = vsel %vm568, %v562, 0
  %761 = vmatpush.msra.mxu0 0.0
  %762 = vmatpush.msra.mxu0 0.0
  %763 = vmatpush.msra.mxu0 0.0
  %764 = vmatpush.msra.mxu0 0.0
  %765 = vmatpush.msra.mxu0 0.0
  %766 = vmatpush.msra.mxu0 0.0
  %767 = vmatpush.msra.mxu0 0.0
  %768 = vmatpush.msra.mxu0 0.0
  %769 = vmatpush.msra.mxu0 0.0
  %770 = vmatpush.msra.mxu0 0.0
  %771 = vmatpush.msra.mxu0 0.0
  %772 = vmatpush.msra.mxu0 0.0
  %773 = vmatpush.msra.mxu0 0.0
  %774 = vmatpush.msra.mxu0 0.0
  %775 = vmatpush.msra.mxu0 0.0
  %776 = vmatpush.msra.mxu0 %v563
  %777 = vmatmul.f32.gmra.mxu0 %v570
  %v778 = vpop.f32.mrf.mxu0
  %v779 = vadd.f32 %v566, %v778
  %780 = vmatmul.f32.gmra.mxu0 %v573
  %v781 = vpop.f32.mrf.mxu0
  %v782 = vadd.f32 %v566, %v781
  %783 = vmatmul.f32.gmra.mxu0 %v576
  %v784 = vpop.f32.mrf.mxu0
  %v785 = vadd.f32 %v566, %v784
  %786 = vmatmul.f32.gmra.mxu0 %v579
  %v787 = vpop.f32.mrf.mxu0
  %v788 = vadd.f32 %v566, %v787
  %789 = vmatmul.f32.gmra.mxu0 %v582
  %v790 = vpop.f32.mrf.mxu0
  %v791 = vadd.f32 %v566, %v790
  %792 = vmatmul.f32.gmra.mxu0 %v585
  %v793 = vpop.f32.mrf.mxu0
  %v794 = vadd.f32 %v566, %v793
  %795 = vmatmul.f32.gmra.mxu0 %v588
  %v796 = vpop.f32.mrf.mxu0
  %v797 = vadd.f32 %v566, %v796
  %798 = vmatmul.f32.gmra.mxu0 %v591
  %v799 = vpop.f32.mrf.mxu0
  %v800 = vadd.f32 %v566, %v799
  %801 = vmatmul.f32.gmra.mxu0 %v594
  %v802 = vpop.f32.mrf.mxu0
  %v803 = vadd.f32 %v566, %v802
  %804 = vmatmul.f32.gmra.mxu0 %v597
  %v805 = vpop.f32.mrf.mxu0
  %v806 = vadd.f32 %v566, %v805
  %807 = vmatmul.f32.gmra.mxu0 %v600
  %v808 = vpop.f32.mrf.mxu0
  %v809 = vadd.f32 %v566, %v808
  %810 = vmatmul.f32.gmra.mxu0 %v603
  %v811 = vpop.f32.mrf.mxu0
  %v812 = vadd.f32 %v566, %v811
  %813 = vmatmul.f32.gmra.mxu0 %v606
  %v814 = vpop.f32.mrf.mxu0
  %v815 = vadd.f32 %v566, %v814
  %816 = vmatmul.f32.gmra.mxu0 %v609
  %v817 = vpop.f32.mrf.mxu0
  %v818 = vadd.f32 %v566, %v817
  %819 = vmatmul.f32.gmra.mxu0 %v612
  %v820 = vpop.f32.mrf.mxu0
  %v821 = vadd.f32 %v566, %v820
  %822 = vmatmul.f32.gmra.mxu0 %v615
  %v823 = vpop.f32.mrf.mxu0
  %v824 = vadd.f32 %v566, %v823
  %825 = vmatmul.f32.gmra.mxu0 %v618
  %v826 = vpop.f32.mrf.mxu0
  %v827 = vadd.f32 %v566, %v826
  %828 = vmatmul.f32.gmra.mxu0 %v621
  %v829 = vpop.f32.mrf.mxu0
  %v830 = vadd.f32 %v566, %v829
  %831 = vmatmul.f32.gmra.mxu0 %v624
  %v832 = vpop.f32.mrf.mxu0
  %v833 = vadd.f32 %v566, %v832
  %834 = vmatmul.f32.gmra.mxu0 %v627
  %v835 = vpop.f32.mrf.mxu0
  %v836 = vadd.f32 %v566, %v835
  %837 = vmatmul.f32.gmra.mxu0 %v630
  %v838 = vpop.f32.mrf.mxu0
  %v839 = vadd.f32 %v566, %v838
  %840 = vmatmul.f32.gmra.mxu0 %v633
  %v841 = vpop.f32.mrf.mxu0
  %v842 = vadd.f32 %v566, %v841
  %843 = vmatmul.f32.gmra.mxu0 %v636
  %v844 = vpop.f32.mrf.mxu0
  %v845 = vadd.f32 %v566, %v844
  %846 = vmatmul.f32.gmra.mxu0 %v639
  %v847 = vpop.f32.mrf.mxu0
  %v848 = vadd.f32 %v566, %v847
  %849 = vmatmul.f32.gmra.mxu0 %v642
  %v850 = vpop.f32.mrf.mxu0
  %v851 = vadd.f32 %v566, %v850
  %852 = vmatmul.f32.gmra.mxu0 %v645
  %v853 = vpop.f32.mrf.mxu0
  %v854 = vadd.f32 %v566, %v853
  %855 = vmatmul.f32.gmra.mxu0 %v648
  %v856 = vpop.f32.mrf.mxu0
  %v857 = vadd.f32 %v566, %v856
  %858 = vmatmul.f32.gmra.mxu0 %v651
  %v859 = vpop.f32.mrf.mxu0
  %v860 = vadd.f32 %v566, %v859
  %861 = vmatmul.f32.gmra.mxu0 %v654
  %v862 = vpop.f32.mrf.mxu0
  %v863 = vadd.f32 %v566, %v862
  %864 = vmatmul.f32.gmra.mxu0 %v657
  %v865 = vpop.f32.mrf.mxu0
  %v866 = vadd.f32 %v566, %v865
  %867 = vmatmul.f32.gmra.mxu0 %v660
  %v868 = vpop.f32.mrf.mxu0
  %v869 = vadd.f32 %v566, %v868
  %870 = vmatmul.f32.gmra.mxu0 %v663
  %v871 = vpop.f32.mrf.mxu0
  %v872 = vadd.f32 %v566, %v871
  %873 = vmatmul.f32.gmra.mxu0 %v666
  %v874 = vpop.f32.mrf.mxu0
  %v875 = vadd.f32 %v566, %v874
  %876 = vmatmul.f32.gmra.mxu0 %v669
  %v877 = vpop.f32.mrf.mxu0
  %v878 = vadd.f32 %v566, %v877
  %879 = vmatmul.f32.gmra.mxu0 %v672
  %v880 = vpop.f32.mrf.mxu0
  %v881 = vadd.f32 %v566, %v880
  %882 = vmatmul.f32.gmra.mxu0 %v675
  %v883 = vpop.f32.mrf.mxu0
  %v884 = vadd.f32 %v566, %v883
  %885 = vmatmul.f32.gmra.mxu0 %v678
  %v886 = vpop.f32.mrf.mxu0
  %v887 = vadd.f32 %v566, %v886
  %888 = vmatmul.f32.gmra.mxu0 %v681
  %v889 = vpop.f32.mrf.mxu0
  %v890 = vadd.f32 %v566, %v889
  %891 = vmatmul.f32.gmra.mxu0 %v684
  %v892 = vpop.f32.mrf.mxu0
  %v893 = vadd.f32 %v566, %v892
  %894 = vmatmul.f32.gmra.mxu0 %v687
  %v895 = vpop.f32.mrf.mxu0
  %v896 = vadd.f32 %v566, %v895
  %897 = vmatmul.f32.gmra.mxu0 %v690
  %v898 = vpop.f32.mrf.mxu0
  %v899 = vadd.f32 %v566, %v898
  %900 = vmatmul.f32.gmra.mxu0 %v693
  %v901 = vpop.f32.mrf.mxu0
  %v902 = vadd.f32 %v566, %v901
  %903 = vmatmul.f32.gmra.mxu0 %v696
  %v904 = vpop.f32.mrf.mxu0
  %v905 = vadd.f32 %v566, %v904
  %906 = vmatmul.f32.gmra.mxu0 %v699
  %v907 = vpop.f32.mrf.mxu0
  %v908 = vadd.f32 %v566, %v907
  %909 = vmatmul.f32.gmra.mxu0 %v702
  %v910 = vpop.f32.mrf.mxu0
  %v911 = vadd.f32 %v566, %v910
  %912 = vmatmul.f32.gmra.mxu0 %v705
  %v913 = vpop.f32.mrf.mxu0
  %v914 = vadd.f32 %v566, %v913
  %915 = vmatmul.f32.gmra.mxu0 %v708
  %v916 = vpop.f32.mrf.mxu0
  %v917 = vadd.f32 %v566, %v916
  %918 = vmatmul.f32.gmra.mxu0 %v711
  %v919 = vpop.f32.mrf.mxu0
  %v920 = vadd.f32 %v566, %v919
  %921 = vmatmul.f32.gmra.mxu0 %v714
  %v922 = vpop.f32.mrf.mxu0
  %v923 = vadd.f32 %v566, %v922
  %924 = vmatmul.f32.gmra.mxu0 %v717
  %v925 = vpop.f32.mrf.mxu0
  %v926 = vadd.f32 %v566, %v925
  %927 = vmatmul.f32.gmra.mxu0 %v720
  %v928 = vpop.f32.mrf.mxu0
  %v929 = vadd.f32 %v566, %v928
  %930 = vmatmul.f32.gmra.mxu0 %v723
  %v931 = vpop.f32.mrf.mxu0
  %v932 = vadd.f32 %v566, %v931
  %933 = vmatmul.f32.gmra.mxu0 %v726
  %v934 = vpop.f32.mrf.mxu0
  %v935 = vadd.f32 %v566, %v934
  %936 = vmatmul.f32.gmra.mxu0 %v729
  %v937 = vpop.f32.mrf.mxu0
  %v938 = vadd.f32 %v566, %v937
  %939 = vmatmul.f32.gmra.mxu0 %v732
  %v940 = vpop.f32.mrf.mxu0
  %v941 = vadd.f32 %v566, %v940
  %942 = vmatmul.f32.gmra.mxu0 %v735
  %v943 = vpop.f32.mrf.mxu0
  %v944 = vadd.f32 %v566, %v943
  %945 = vmatmul.f32.gmra.mxu0 %v738
  %v946 = vpop.f32.mrf.mxu0
  %v947 = vadd.f32 %v566, %v946
  %948 = vmatmul.f32.gmra.mxu0 %v741
  %v949 = vpop.f32.mrf.mxu0
  %v950 = vadd.f32 %v566, %v949
  %951 = vmatmul.f32.gmra.mxu0 %v744
  %v952 = vpop.f32.mrf.mxu0
  %v953 = vadd.f32 %v566, %v952
  %954 = vmatmul.f32.gmra.mxu0 %v747
  %v955 = vpop.f32.mrf.mxu0
  %v956 = vadd.f32 %v566, %v955
  %957 = vmatmul.f32.gmra.mxu0 %v750
  %v958 = vpop.f32.mrf.mxu0
  %v959 = vadd.f32 %v566, %v958
  %960 = vmatmul.f32.gmra.mxu0 %v753
  %v961 = vpop.f32.mrf.mxu0
  %v962 = vadd.f32 %v566, %v961
  %963 = vmatmul.f32.gmra.mxu0 %v756
  %v964 = vpop.f32.mrf.mxu0
  %v965 = vadd.f32 %v566, %v964
  %966 = vmatmul.f32.gmra.mxu0 %v759
  %v967 = vpop.f32.mrf.mxu0
  %v968 = vadd.f32 %v566, %v967
  %969 = vdwg.mxu0
  %vm970 = vcmask 310272
  %971 = vst.msk [vmem:[%s5] sm:$0xff] %vm970, %v779
  %972 = vst.msk [vmem:[%s5 + $0x8] sm:$0xff] %vm970, %v782
  %973 = vst.msk [vmem:[%s5 + $0x10] sm:$0xff] %vm970, %v785
  %974 = vst.msk [vmem:[%s5 + $0x18] sm:$0xff] %vm970, %v788
  %975 = vst.msk [vmem:[%s5 + $0x20] sm:$0xff] %vm970, %v791
  %976 = vst.msk [vmem:[%s5 + $0x28] sm:$0xff] %vm970, %v794
  %977 = vst.msk [vmem:[%s5 + $0x30] sm:$0xff] %vm970, %v797
  %978 = vst.msk [vmem:[%s5 + $0x38] sm:$0xff] %vm970, %v800
  %979 = vst.msk [vmem:[%s5 + $0x40] sm:$0xff] %vm970, %v803
  %980 = vst.msk [vmem:[%s5 + $0x48] sm:$0xff] %vm970, %v806
  %981 = vst.msk [vmem:[%s5 + $0x50] sm:$0xff] %vm970, %v809
  %982 = vst.msk [vmem:[%s5 + $0x58] sm:$0xff] %vm970, %v812
  %983 = vst.msk [vmem:[%s5 + $0x60] sm:$0xff] %vm970, %v815
  %984 = vst.msk [vmem:[%s5 + $0x68] sm:$0xff] %vm970, %v818
  %985 = vst.msk [vmem:[%s5 + $0x70] sm:$0xff] %vm970, %v821
  %986 = vst.msk [vmem:[%s5 + $0x78] sm:$0xff] %vm970, %v824
  %987 = vst.msk [vmem:[%s5 + $0x80] sm:$0xff] %vm970, %v827
  %988 = vst.msk [vmem:[%s5 + $0x88] sm:$0xff] %vm970, %v830
  %989 = vst.msk [vmem:[%s5 + $0x90] sm:$0xff] %vm970, %v833
  %990 = vst.msk [vmem:[%s5 + $0x98] sm:$0xff] %vm970, %v836
  %991 = vst.msk [vmem:[%s5 + $0xa0] sm:$0xff] %vm970, %v839
  %992 = vst.msk [vmem:[%s5 + $0xa8] sm:$0xff] %vm970, %v842
  %993 = vst.msk [vmem:[%s5 + $0xb0] sm:$0xff] %vm970, %v845
  %994 = vst.msk [vmem:[%s5 + $0xb8] sm:$0xff] %vm970, %v848
  %995 = vst.msk [vmem:[%s5 + $0xc0] sm:$0xff] %vm970, %v851
  %996 = vst.msk [vmem:[%s5 + $0xc8] sm:$0xff] %vm970, %v854
  %997 = vst.msk [vmem:[%s5 + $0xd0] sm:$0xff] %vm970, %v857
  %998 = vst.msk [vmem:[%s5 + $0xd8] sm:$0xff] %vm970, %v860
  %999 = vst.msk [vmem:[%s5 + $0xe0] sm:$0xff] %vm970, %v863
  %1000 = vst.msk [vmem:[%s5 + $0xe8] sm:$0xff] %vm970, %v866
  %1001 = vst.msk [vmem:[%s5 + $0xf0] sm:$0xff] %vm970, %v869
  %1002 = vst.msk [vmem:[%s5 + $0xf8] sm:$0xff] %vm970, %v872
  %1003 = vst.msk [vmem:[%s5 + $0x100] sm:$0xff] %vm970, %v875
  %1004 = vst.msk [vmem:[%s5 + $0x108] sm:$0xff] %vm970, %v878
  %1005 = vst.msk [vmem:[%s5 + $0x110] sm:$0xff] %vm970, %v881
  %1006 = vst.msk [vmem:[%s5 + $0x118] sm:$0xff] %vm970, %v884
  %1007 = vst.msk [vmem:[%s5 + $0x120] sm:$0xff] %vm970, %v887
  %1008 = vst.msk [vmem:[%s5 + $0x128] sm:$0xff] %vm970, %v890
  %1009 = vst.msk [vmem:[%s5 + $0x130] sm:$0xff] %vm970, %v893
  %1010 = vst.msk [vmem:[%s5 + $0x138] sm:$0xff] %vm970, %v896
  %1011 = vst.msk [vmem:[%s5 + $0x140] sm:$0xff] %vm970, %v899
  %1012 = vst.msk [vmem:[%s5 + $0x148] sm:$0xff] %vm970, %v902
  %1013 = vst.msk [vmem:[%s5 + $0x150] sm:$0xff] %vm970, %v905
  %1014 = vst.msk [vmem:[%s5 + $0x158] sm:$0xff] %vm970, %v908
  %1015 = vst.msk [vmem:[%s5 + $0x160] sm:$0xff] %vm970, %v911
  %1016 = vst.msk [vmem:[%s5 + $0x168] sm:$0xff] %vm970, %v914
  %1017 = vst.msk [vmem:[%s5 + $0x170] sm:$0xff] %vm970, %v917
  %1018 = vst.msk [vmem:[%s5 + $0x178] sm:$0xff] %vm970, %v920
  %1019 = vst.msk [vmem:[%s5 + $0x180] sm:$0xff] %vm970, %v923
  %1020 = vst.msk [vmem:[%s5 + $0x188] sm:$0xff] %vm970, %v926
  %1021 = vst.msk [vmem:[%s5 + $0x190] sm:$0xff] %vm970, %v929
  %1022 = vst.msk [vmem:[%s5 + $0x198] sm:$0xff] %vm970, %v932
  %1023 = vst.msk [vmem:[%s5 + $0x1a0] sm:$0xff] %vm970, %v935
  %1024 = vst.msk [vmem:[%s5 + $0x1a8] sm:$0xff] %vm970, %v938
  %1025 = vst.msk [vmem:[%s5 + $0x1b0] sm:$0xff] %vm970, %v941
  %1026 = vst.msk [vmem:[%s5 + $0x1b8] sm:$0xff] %vm970, %v944
  %1027 = vst.msk [vmem:[%s5 + $0x1c0] sm:$0xff] %vm970, %v947
  %1028 = vst.msk [vmem:[%s5 + $0x1c8] sm:$0xff] %vm970, %v950
  %1029 = vst.msk [vmem:[%s5 + $0x1d0] sm:$0xff] %vm970, %v953
  %1030 = vst.msk [vmem:[%s5 + $0x1d8] sm:$0xff] %vm970, %v956
  %1031 = vst.msk [vmem:[%s5 + $0x1e0] sm:$0xff] %vm970, %v959
  %1032 = vst.msk [vmem:[%s5 + $0x1e8] sm:$0xff] %vm970, %v962
  %1033 = vst.msk [vmem:[%s5 + $0x1f0] sm:$0xff] %vm970, %v965
  %1034 = vst.msk [vmem:[%s5 + $0x1f8] sm:$0xff] %vm970, %v968
  // Predicated region
  $region22: #{conv_transformer_forward.5} parent=0 // pred_check
    _
  $region23: #{conv_transformer_forward.5} parent=0 // pred_check_branch
    %1036 = sbr.rel (0) target = $region25
  $region24: #{conv_transformer_forward.5} parent=0 // pred_region
    _
  $region25: #{conv_transformer_forward.5} parent=0 // pred_fallthru
    _
  // Predicated region
  $region26: #{conv_transformer_forward.5} parent=0 // pred_check
    _
  $region27: #{conv_transformer_forward.5} parent=0 // pred_check_branch
    %1038 = sbr.rel (0) target = $region29
  $region28: #{conv_transformer_forward.5} parent=0 // pred_region
    _
  $region29: #{conv_transformer_forward.5} parent=0 // pred_fallthru
    _

// kernel: conv_transformer_forward.6
$region0: #{conv_transformer_forward.6}
  #allocation0 [shape = 'u32[]', space=smem, size = 0x4, offset = 0x4, fixed_abs, tag = 'smem constant byte address 0x4 - core index']
  #allocation1 [shape = 'u32[72,128]{1,0:T(1,128)}', space=vmem, size = 0x9000, scoped, tag = 'internal scratch']
  %s0 = inlined_call_operand.vmem [shape: f32[100,16], index: 0, kind: input, shape index: {}]
  %s1 = inlined_call_operand.vmem [shape: f32[2,16,608], index: 1, kind: input, shape index: {}]
  %s2 = inlined_call_operand.vmem [shape: f32[2,100,608], index: 2, kind: output, shape index: {}]
  %s3 = sld [smem:[#allocation0]]
  $region41: #{conv_transformer_forward.6} parent=0
    _
  %s5 = ssub.s32 1, %s3
  %s6 = scalar_select 0, %s5, %s3
  loop: start=0, step=1, limit=4
  $region2: #{conv_transformer_forward.6} parent=0 // loop_pre_header
    _
  $region3: #{conv_transformer_forward.6} parent=0 // loop_header
    %s8 = sphi 0, %s12
    %p9 = scmp.ge.s32.totalorder %s8, 4
    %s16 = sphi 0, %s16
    %s18 = sphi 0, %s16
    %s19 = sphi 0, %s18
    %s33 = sphi 0, %s19
    %s39 = sphi 0, %s41
    %s42 = sphi 0, %s39
    %s43 = sphi 0, %s42
    %s59 = sphi 0, %s43
    %s65 = sphi 0, %s67
    %s68 = sphi 0, %s65
    %s69 = sphi 0, %s68
    %s85 = sphi 0, %s69
  $region4: #{conv_transformer_forward.6} parent=0 // loop_header_branch
    %11 = sbr.rel (%p9) target = $region8
  $region5: #{conv_transformer_forward.6} parent=0 // loop_body
    %s13 = ssub.s32 %s8, 1
    %s14 = ssub.s32 %s8, 2
    %s15 = sadd.s32 %s8, 1
    %s17 = sadd.s32 %s16, 1
    %p20 = scmp.eq.s32.totalorder %s8, 1
    %p21 = scmp.ne.s32.totalorder %s16, %s18
    %p22 = scmp.eq.s32.totalorder %s8, 0
    %p23 = por %p21, %p22
    %p24 = scmp.ne.s32.totalorder %s16, %s18
    %p25 = scmp.eq.s32.totalorder %s13, 1
    %p26 = por %p24, %p25
    %p27 = scmp.ne.s32.totalorder %s18, %s19
    %p28 = scmp.eq.s32.totalorder %s13, 0
    %p29 = por %p27, %p28
    %p30 = scmp.ne.s32.totalorder %s18, %s19
    %p31 = scmp.eq.s32.totalorder %s14, 1
    %p32 = por %p30, %p31
    %p34 = scmp.ne.s32.totalorder %s19, %s33
    %p35 = scmp.eq.s32.totalorder %s14, 0
    %p36 = por %p34, %p35
    %s37 = ssub.s32 %s8, %s15
    %p38 = scmp.eq.s32.totalorder %s37, 0
    %s40 = sadd.s32 %s39, 1
    %s41 = scalar_select %p38, %s39, %s40
    %p44 = pneg %p38
    %p45 = scmp.eq.s32.totalorder %s8, 1
    %p46 = por %p44, %p45
    %p47 = scmp.ne.s32.totalorder %s39, %s42
    %p48 = scmp.eq.s32.totalorder %s8, 0
    %p49 = por %p47, %p48
    %p50 = scmp.ne.s32.totalorder %s39, %s42
    %p51 = scmp.eq.s32.totalorder %s13, 1
    %p52 = por %p50, %p51
    %p53 = scmp.ne.s32.totalorder %s42, %s43
    %p54 = scmp.eq.s32.totalorder %s13, 0
    %p55 = por %p53, %p54
    %p56 = scmp.ne.s32.totalorder %s42, %s43
    %p57 = scmp.eq.s32.totalorder %s14, 1
    %p58 = por %p56, %p57
    %p60 = scmp.ne.s32.totalorder %s43, %s59
    %p61 = scmp.eq.s32.totalorder %s14, 0
    %p62 = por %p60, %p61
    %s63 = ssub.s32 %s8, %s15
    %p64 = scmp.eq.s32.totalorder %s63, 0
    %s66 = sadd.s32 %s65, 1
    %s67 = scalar_select %p64, %s65, %s66
    %p70 = pneg %p64
    %p71 = scmp.eq.s32.totalorder %s8, 1
    %p72 = por %p70, %p71
    %p73 = scmp.ne.s32.totalorder %s65, %s68
    %p74 = scmp.eq.s32.totalorder %s8, 0
    %p75 = por %p73, %p74
    %p76 = scmp.ne.s32.totalorder %s65, %s68
    %p77 = scmp.eq.s32.totalorder %s13, 1
    %p78 = por %p76, %p77
    %p79 = scmp.ne.s32.totalorder %s68, %s69
    %p80 = scmp.eq.s32.totalorder %s13, 0
    %p81 = por %p79, %p80
    %p82 = scmp.ne.s32.totalorder %s68, %s69
    %p83 = scmp.eq.s32.totalorder %s14, 1
    %p84 = por %p82, %p83
    %p86 = scmp.ne.s32.totalorder %s69, %s85
    %p87 = scmp.eq.s32.totalorder %s14, 0
    %p88 = por %p86, %p87
    %p89 = scmp.le.s32.totalorder 1, %s8
    %p90 = scmp.lt.s32.totalorder %s8, 3
    %p91 = pnand %p89, %p90
    %p92 = pneg %p91
    // Predicated region
    $region9: #{conv_transformer_forward.6} parent=5 // pred_check
      _
    $region10: #{conv_transformer_forward.6} parent=5 // pred_check_branch
      %94 = sbr.rel (%p91) target = $region12
    $region11: #{conv_transformer_forward.6} parent=5 // pred_region
      %s95 = ssub.s32 %s8, 1
      // Predicated region
      $region13: #{conv_transformer_forward.6} parent=11 // pred_check
        %p96 = pneg %p29
      $region14: #{conv_transformer_forward.6} parent=11 // pred_check_branch
        %98 = sbr.rel (%p96) target = $region16
      $region15: #{conv_transformer_forward.6} parent=11 // pred_region
        _
      $region16: #{conv_transformer_forward.6} parent=11 // pred_fallthru
        _
    $region12: #{conv_transformer_forward.6} parent=5 // pred_fallthru
      _
    %p99 = scmp.lt.s32.totalorder %s8, 2
    // Predicated region
    $region17: #{conv_transformer_forward.6} parent=5 // pred_check
      %p100 = pneg %p99
    $region18: #{conv_transformer_forward.6} parent=5 // pred_check_branch
      %102 = sbr.rel (%p100) target = $region20
    $region19: #{conv_transformer_forward.6} parent=5 // pred_region
      // Predicated region
      $region21: #{conv_transformer_forward.6} parent=19 // pred_check
        %p103 = pneg %p49
      $region22: #{conv_transformer_forward.6} parent=19 // pred_check_branch
        %105 = sbr.rel (%p103) target = $region24
      $region23: #{conv_transformer_forward.6} parent=19 // pred_region
        %p106 = scmp.lt.s32.totalorder %s8, 1
        %s107 = scalar_select %p106, %s8, 1
        %s108 = smul.addr %s107, 10
        %s109 = smul.addr %s108, 8
        %s110 = scalar_lea.vmem %s1, %s109
      $region24: #{conv_transformer_forward.6} parent=19 // pred_fallthru
        _
    $region20: #{conv_transformer_forward.6} parent=5 // pred_fallthru
      _
    %p111 = scmp.le.s32.totalorder 1, %s8
    %p112 = scmp.lt.s32.totalorder %s8, 3
    %p113 = pnand %p111, %p112
    %p114 = pneg %p113
    // Predicated region
    $region25: #{conv_transformer_forward.6} parent=5 // pred_check
      _
    $region26: #{conv_transformer_forward.6} parent=5 // pred_check_branch
      %116 = sbr.rel (%p113) target = $region28
    $region27: #{conv_transformer_forward.6} parent=5 // pred_region
      %s117 = ssub.s32 %s8, 1
      %p118 = pneg %p29
      %p119 = pneg %p26
      %p120 = scmp.lt.s32.totalorder %s13, 1
      %s121 = scalar_select %p120, %s13, 1
      %s122 = smul.addr %s121, 10
      %s123 = smul.addr %s122, 8
      %s124 = scalar_lea.vmem %s1, %s123
      %p125 = pneg %p55
      %p126 = pneg %p52
      %p127 = pneg %p81
      %p128 = pneg %p78
      %p129 = scmp.lt.s32.totalorder %s13, 1
      %s130 = scalar_select %p129, %s13, 1
      %s131 = smul.addr %s130, 65
      %s132 = smul.addr %s131, 8
      %s133 = scalar_lea.vmem %s2, %s132
      %p134 = scmp.lt.s32.totalorder %s13, 1
      %s135 = scalar_select %p134, %s13, 1
      %s136 = smul.addr %s135, 10
      %s137 = smul.addr %s136, 8
      %s138 = scalar_lea.vmem %s1, %s137
      %p139 = scmp.lt.s32.totalorder %s13, 1
      %s140 = scalar_select %p139, %s13, 1
      %s141 = smul.addr %s140, 65
      %s142 = smul.addr %s141, 8
      %s143 = scalar_lea.vmem %s2, %s142
      %v144 = vld [vmem:[%s0] sm:$0xff]
      %v145 = vld [vmem:[%s0 + $0x8] sm:$0xff]
      %v146 = vld [vmem:[%s0 + $0x10] sm:$0xff]
      %v147 = vld [vmem:[%s0 + $0x18] sm:$0xff]
      %v148 = vld [vmem:[%s0 + $0x20] sm:$0xff]
      %v149 = vld [vmem:[%s0 + $0x28] sm:$0xff]
      %v150 = vld [vmem:[%s0 + $0x30] sm:$0xff]
      %v151 = vld [vmem:[%s0 + $0x38] sm:$0xff]
      %v152 = vld [vmem:[%s0 + $0x40] sm:$0xff]
      %v153 = vld [vmem:[%s0 + $0x48] sm:$0xff]
      %v154 = vld [vmem:[%s0 + $0x50] sm:$0xff]
      %v155 = vld [vmem:[%s0 + $0x58] sm:$0xff]
      %v156 = vld [vmem:[%s0 + $0x60] sm:$0xf]
      %v157 = vld [vmem:[%s138] sm:$0xff]
      %v158 = vld [vmem:[%s138 + $0x8] sm:$0xff]
      %v159 = vld [vmem:[%s138 + $0x10] sm:$0xff]
      %v160 = vld [vmem:[%s138 + $0x18] sm:$0xff]
      %v161 = vld [vmem:[%s138 + $0x20] sm:$0xff]
      %v162 = vld [vmem:[%s138 + $0x28] sm:$0xff]
      %v163 = vld [vmem:[%s138 + $0x30] sm:$0xff]
      %v164 = vld [vmem:[%s138 + $0x38] sm:$0xff]
      %v165 = vld [vmem:[%s138 + $0x40] sm:$0xff]
      %v166 = vld [vmem:[%s138 + $0x48] sm:$0xff]
      %vm167 = vcmask 130048
      %v169 = vsel %vm167, %v144, 0
      %v172 = vsel %vm167, %v145, 0
      %v175 = vsel %vm167, %v146, 0
      %v178 = vsel %vm167, %v147, 0
      %v181 = vsel %vm167, %v148, 0
      %v184 = vsel %vm167, %v149, 0
      %v187 = vsel %vm167, %v150, 0
      %v190 = vsel %vm167, %v151, 0
      %v193 = vsel %vm167, %v152, 0
      %v196 = vsel %vm167, %v153, 0
      %v199 = vsel %vm167, %v154, 0
      %v202 = vsel %vm167, %v155, 0
      %v205 = vsel %vm167, %v156, 0
      %207 = vmatpush.msra.mxu0 0.0
      %208 = vmatpush.msra.mxu0 0.0
      %209 = vmatpush.msra.mxu0 0.0
      %210 = vmatpush.msra.mxu0 0.0
      %211 = vmatpush.msra.mxu0 0.0
      %212 = vmatpush.msra.mxu0 0.0
      %213 = vmatpush.msra.mxu0 0.0
      %214 = vmatpush.msra.mxu0 0.0
      %215 = vmatpush.msra.mxu0 0.0
      %216 = vmatpush.msra.mxu0 0.0
      %217 = vmatpush.msra.mxu0 0.0
      %218 = vmatpush.msra.mxu0 0.0
      %219 = vmatpush.msra.mxu0 0.0
      %220 = vmatpush.msra.mxu0 0.0
      %221 = vmatpush.msra.mxu0 %v162
      %222 = vmatpush.msra.mxu0 %v157
      %223 = vmatmul.f32.gmra.mxu0 %v169
      %v224 = vpop.f32.mrf.mxu0
      %v225 = vadd.f32 0.0, %v224
      %226 = vmatmul.f32.gmra.mxu0 %v172
      %v227 = vpop.f32.mrf.mxu0
      %v228 = vadd.f32 0.0, %v227
      %229 = vmatmul.f32.gmra.mxu0 %v175
      %v230 = vpop.f32.mrf.mxu0
      %v231 = vadd.f32 0.0, %v230
      %232 = vmatmul.f32.gmra.mxu0 %v178
      %v233 = vpop.f32.mrf.mxu0
      %v234 = vadd.f32 0.0, %v233
      %235 = vmatmul.f32.gmra.mxu0 %v181
      %v236 = vpop.f32.mrf.mxu0
      %v237 = vadd.f32 0.0, %v236
      %238 = vmatmul.f32.gmra.mxu0 %v184
      %v239 = vpop.f32.mrf.mxu0
      %v240 = vadd.f32 0.0, %v239
      %241 = vmatmul.f32.gmra.mxu0 %v187
      %v242 = vpop.f32.mrf.mxu0
      %v243 = vadd.f32 0.0, %v242
      %244 = vmatmul.f32.gmra.mxu0 %v190
      %v245 = vpop.f32.mrf.mxu0
      %v246 = vadd.f32 0.0, %v245
      %247 = vmatmul.f32.gmra.mxu0 %v193
      %v248 = vpop.f32.mrf.mxu0
      %v249 = vadd.f32 0.0, %v248
      %250 = vmatmul.f32.gmra.mxu0 %v196
      %v251 = vpop.f32.mrf.mxu0
      %v252 = vadd.f32 0.0, %v251
      %253 = vmatmul.f32.gmra.mxu0 %v199
      %v254 = vpop.f32.mrf.mxu0
      %v255 = vadd.f32 0.0, %v254
      %256 = vmatmul.f32.gmra.mxu0 %v202
      %v257 = vpop.f32.mrf.mxu0
      %v258 = vadd.f32 0.0, %v257
      %259 = vmatmul.f32.gmra.mxu0 %v205
      %v260 = vpop.f32.mrf.mxu0
      %v261 = vadd.f32 0.0, %v260
      %262 = vdwg.mxu0
      %263 = vmatpush.msra.mxu0 0.0
      %264 = vmatpush.msra.mxu0 0.0
      %265 = vmatpush.msra.mxu0 0.0
      %266 = vmatpush.msra.mxu0 0.0
      %267 = vmatpush.msra.mxu0 0.0
      %268 = vmatpush.msra.mxu0 0.0
      %269 = vmatpush.msra.mxu0 0.0
      %270 = vmatpush.msra.mxu0 0.0
      %271 = vmatpush.msra.mxu0 0.0
      %272 = vmatpush.msra.mxu0 0.0
      %273 = vmatpush.msra.mxu0 0.0
      %274 = vmatpush.msra.mxu0 0.0
      %275 = vmatpush.msra.mxu0 0.0
      %276 = vmatpush.msra.mxu0 0.0
      %277 = vmatpush.msra.mxu0 %v163
      %278 = vmatpush.msra.mxu0 %v158
      %279 = vmatmul.f32.gmra.mxu0 %v169
      %v280 = vpop.f32.mrf.mxu0
      %v281 = vadd.f32 0.0, %v280
      %282 = vmatmul.f32.gmra.mxu0 %v172
      %v283 = vpop.f32.mrf.mxu0
      %v284 = vadd.f32 0.0, %v283
      %285 = vmatmul.f32.gmra.mxu0 %v175
      %v286 = vpop.f32.mrf.mxu0
      %v287 = vadd.f32 0.0, %v286
      %288 = vmatmul.f32.gmra.mxu0 %v178
      %v289 = vpop.f32.mrf.mxu0
      %v290 = vadd.f32 0.0, %v289
      %291 = vmatmul.f32.gmra.mxu0 %v181
      %v292 = vpop.f32.mrf.mxu0
      %v293 = vadd.f32 0.0, %v292
      %294 = vmatmul.f32.gmra.mxu0 %v184
      %v295 = vpop.f32.mrf.mxu0
      %v296 = vadd.f32 0.0, %v295
      %297 = vmatmul.f32.gmra.mxu0 %v187
      %v298 = vpop.f32.mrf.mxu0
      %v299 = vadd.f32 0.0, %v298
      %300 = vmatmul.f32.gmra.mxu0 %v190
      %v301 = vpop.f32.mrf.mxu0
      %v302 = vadd.f32 0.0, %v301
      %303 = vmatmul.f32.gmra.mxu0 %v193
      %v304 = vpop.f32.mrf.mxu0
      %v305 = vadd.f32 0.0, %v304
      %306 = vmatmul.f32.gmra.mxu0 %v196
      %v307 = vpop.f32.mrf.mxu0
      %v308 = vadd.f32 0.0, %v307
      %309 = vmatmul.f32.gmra.mxu0 %v199
      %v310 = vpop.f32.mrf.mxu0
      %v311 = vadd.f32 0.0, %v310
      %312 = vmatmul.f32.gmra.mxu0 %v202
      %v313 = vpop.f32.mrf.mxu0
      %v314 = vadd.f32 0.0, %v313
      %315 = vmatmul.f32.gmra.mxu0 %v205
      %v316 = vpop.f32.mrf.mxu0
      %v317 = vadd.f32 0.0, %v316
      %318 = vdwg.mxu0
      %319 = vmatpush.msra.mxu0 0.0
      %320 = vmatpush.msra.mxu0 0.0
      %321 = vmatpush.msra.mxu0 0.0
      %322 = vmatpush.msra.mxu0 0.0
      %323 = vmatpush.msra.mxu0 0.0
      %324 = vmatpush.msra.mxu0 0.0
      %325 = vmatpush.msra.mxu0 0.0
      %326 = vmatpush.msra.mxu0 0.0
      %327 = vmatpush.msra.mxu0 0.0
      %328 = vmatpush.msra.mxu0 0.0
      %329 = vmatpush.msra.mxu0 0.0
      %330 = vmatpush.msra.mxu0 0.0
      %331 = vmatpush.msra.mxu0 0.0
      %332 = vmatpush.msra.mxu0 0.0
      %333 = vmatpush.msra.mxu0 %v164
      %334 = vmatpush.msra.mxu0 %v159
      %335 = vmatmul.f32.gmra.mxu0 %v169
      %v336 = vpop.f32.mrf.mxu0
      %v337 = vadd.f32 0.0, %v336
      %338 = vmatmul.f32.gmra.mxu0 %v172
      %v339 = vpop.f32.mrf.mxu0
      %v340 = vadd.f32 0.0, %v339
      %341 = vmatmul.f32.gmra.mxu0 %v175
      %v342 = vpop.f32.mrf.mxu0
      %v343 = vadd.f32 0.0, %v342
      %344 = vmatmul.f32.gmra.mxu0 %v178
      %v345 = vpop.f32.mrf.mxu0
      %v346 = vadd.f32 0.0, %v345
      %347 = vmatmul.f32.gmra.mxu0 %v181
      %v348 = vpop.f32.mrf.mxu0
      %v349 = vadd.f32 0.0, %v348
      %350 = vmatmul.f32.gmra.mxu0 %v184
      %v351 = vpop.f32.mrf.mxu0
      %v352 = vadd.f32 0.0, %v351
      %353 = vmatmul.f32.gmra.mxu0 %v187
      %v354 = vpop.f32.mrf.mxu0
      %v355 = vadd.f32 0.0, %v354
      %356 = vmatmul.f32.gmra.mxu0 %v190
      %v357 = vpop.f32.mrf.mxu0
      %v358 = vadd.f32 0.0, %v357
      %359 = vmatmul.f32.gmra.mxu0 %v193
      %v360 = vpop.f32.mrf.mxu0
      %v361 = vadd.f32 0.0, %v360
      %362 = vmatmul.f32.gmra.mxu0 %v196
      %v363 = vpop.f32.mrf.mxu0
      %v364 = vadd.f32 0.0, %v363
      %365 = vmatmul.f32.gmra.mxu0 %v199
      %v366 = vpop.f32.mrf.mxu0
      %v367 = vadd.f32 0.0, %v366
      %368 = vmatmul.f32.gmra.mxu0 %v202
      %v369 = vpop.f32.mrf.mxu0
      %v370 = vadd.f32 0.0, %v369
      %371 = vmatmul.f32.gmra.mxu0 %v205
      %v372 = vpop.f32.mrf.mxu0
      %v373 = vadd.f32 0.0, %v372
      %374 = vdwg.mxu0
      %375 = vmatpush.msra.mxu0 0.0
      %376 = vmatpush.msra.mxu0 0.0
      %377 = vmatpush.msra.mxu0 0.0
      %378 = vmatpush.msra.mxu0 0.0
      %379 = vmatpush.msra.mxu0 0.0
      %380 = vmatpush.msra.mxu0 0.0
      %381 = vmatpush.msra.mxu0 0.0
      %382 = vmatpush.msra.mxu0 0.0
      %383 = vmatpush.msra.mxu0 0.0
      %384 = vmatpush.msra.mxu0 0.0
      %385 = vmatpush.msra.mxu0 0.0
      %386 = vmatpush.msra.mxu0 0.0
      %387 = vmatpush.msra.mxu0 0.0
      %388 = vmatpush.msra.mxu0 0.0
      %389 = vmatpush.msra.mxu0 %v165
      %390 = vmatpush.msra.mxu0 %v160
      %391 = vmatmul.f32.gmra.mxu0 %v169
      %v392 = vpop.f32.mrf.mxu0
      %v393 = vadd.f32 0.0, %v392
      %394 = vmatmul.f32.gmra.mxu0 %v172
      %v395 = vpop.f32.mrf.mxu0
      %v396 = vadd.f32 0.0, %v395
      %397 = vmatmul.f32.gmra.mxu0 %v175
      %v398 = vpop.f32.mrf.mxu0
      %v399 = vadd.f32 0.0, %v398
      %400 = vmatmul.f32.gmra.mxu0 %v178
      %v401 = vpop.f32.mrf.mxu0
      %v402 = vadd.f32 0.0, %v401
      %403 = vmatmul.f32.gmra.mxu0 %v181
      %v404 = vpop.f32.mrf.mxu0
      %v405 = vadd.f32 0.0, %v404
      %406 = vmatmul.f32.gmra.mxu0 %v184
      %v407 = vpop.f32.mrf.mxu0
      %v408 = vadd.f32 0.0, %v407
      %409 = vmatmul.f32.gmra.mxu0 %v187
      %v410 = vpop.f32.mrf.mxu0
      %v411 = vadd.f32 0.0, %v410
      %412 = vmatmul.f32.gmra.mxu0 %v190
      %v413 = vpop.f32.mrf.mxu0
      %v414 = vadd.f32 0.0, %v413
      %415 = vmatmul.f32.gmra.mxu0 %v193
      %v416 = vpop.f32.mrf.mxu0
      %v417 = vadd.f32 0.0, %v416
      %418 = vmatmul.f32.gmra.mxu0 %v196
      %v419 = vpop.f32.mrf.mxu0
      %v420 = vadd.f32 0.0, %v419
      %421 = vmatmul.f32.gmra.mxu0 %v199
      %v422 = vpop.f32.mrf.mxu0
      %v423 = vadd.f32 0.0, %v422
      %424 = vmatmul.f32.gmra.mxu0 %v202
      %v425 = vpop.f32.mrf.mxu0
      %v426 = vadd.f32 0.0, %v425
      %427 = vmatmul.f32.gmra.mxu0 %v205
      %v428 = vpop.f32.mrf.mxu0
      %v429 = vadd.f32 0.0, %v428
      %430 = vdwg.mxu0
      %431 = vmatpush.msra.mxu0 0.0
      %432 = vmatpush.msra.mxu0 0.0
      %433 = vmatpush.msra.mxu0 0.0
      %434 = vmatpush.msra.mxu0 0.0
      %435 = vmatpush.msra.mxu0 0.0
      %436 = vmatpush.msra.mxu0 0.0
      %437 = vmatpush.msra.mxu0 0.0
      %438 = vmatpush.msra.mxu0 0.0
      %439 = vmatpush.msra.mxu0 0.0
      %440 = vmatpush.msra.mxu0 0.0
      %441 = vmatpush.msra.mxu0 0.0
      %442 = vmatpush.msra.mxu0 0.0
      %443 = vmatpush.msra.mxu0 0.0
      %444 = vmatpush.msra.mxu0 0.0
      %445 = vmatpush.msra.mxu0 %v166
      %446 = vmatpush.msra.mxu0 %v161
      %447 = vmatmul.f32.gmra.mxu0 %v169
      %v448 = vpop.f32.mrf.mxu0
      %v449 = vadd.f32 0.0, %v448
      %450 = vmatmul.f32.gmra.mxu0 %v172
      %v451 = vpop.f32.mrf.mxu0
      %v452 = vadd.f32 0.0, %v451
      %453 = vmatmul.f32.gmra.mxu0 %v175
      %v454 = vpop.f32.mrf.mxu0
      %v455 = vadd.f32 0.0, %v454
      %456 = vmatmul.f32.gmra.mxu0 %v178
      %v457 = vpop.f32.mrf.mxu0
      %v458 = vadd.f32 0.0, %v457
      %459 = vmatmul.f32.gmra.mxu0 %v181
      %v460 = vpop.f32.mrf.mxu0
      %v461 = vadd.f32 0.0, %v460
      %462 = vmatmul.f32.gmra.mxu0 %v184
      %v463 = vpop.f32.mrf.mxu0
      %v464 = vadd.f32 0.0, %v463
      %465 = vmatmul.f32.gmra.mxu0 %v187
      %v466 = vpop.f32.mrf.mxu0
      %v467 = vadd.f32 0.0, %v466
      %468 = vmatmul.f32.gmra.mxu0 %v190
      %v469 = vpop.f32.mrf.mxu0
      %v470 = vadd.f32 0.0, %v469
      %471 = vmatmul.f32.gmra.mxu0 %v193
      %v472 = vpop.f32.mrf.mxu0
      %v473 = vadd.f32 0.0, %v472
      %474 = vmatmul.f32.gmra.mxu0 %v196
      %v475 = vpop.f32.mrf.mxu0
      %v476 = vadd.f32 0.0, %v475
      %477 = vmatmul.f32.gmra.mxu0 %v199
      %v478 = vpop.f32.mrf.mxu0
      %v479 = vadd.f32 0.0, %v478
      %480 = vmatmul.f32.gmra.mxu0 %v202
      %v481 = vpop.f32.mrf.mxu0
      %v482 = vadd.f32 0.0, %v481
      %483 = vmatmul.f32.gmra.mxu0 %v205
      %v484 = vpop.f32.mrf.mxu0
      %v485 = vadd.f32 0.0, %v484
      %486 = vdwg.mxu0
      %487 = vst [vmem:[%s143] sm:$0xff] %v225
      %488 = vst [vmem:[%s143 + $0x8] sm:$0xff] %v281
      %489 = vst [vmem:[%s143 + $0x10] sm:$0xff] %v337
      %490 = vst [vmem:[%s143 + $0x18] sm:$0xff] %v393
      %vm491 = vcmask 785408
      %492 = vst.msk [vmem:[%s143 + $0x20] sm:$0xff] %vm491, %v449
      %493 = vst [vmem:[%s143 + $0x28] sm:$0xff] %v228
      %494 = vst [vmem:[%s143 + $0x30] sm:$0xff] %v284
      %495 = vst [vmem:[%s143 + $0x38] sm:$0xff] %v340
      %496 = vst [vmem:[%s143 + $0x40] sm:$0xff] %v396
      %497 = vst.msk [vmem:[%s143 + $0x48] sm:$0xff] %vm491, %v452
      %498 = vst [vmem:[%s143 + $0x50] sm:$0xff] %v231
      %499 = vst [vmem:[%s143 + $0x58] sm:$0xff] %v287
      %500 = vst [vmem:[%s143 + $0x60] sm:$0xff] %v343
      %501 = vst [vmem:[%s143 + $0x68] sm:$0xff] %v399
      %502 = vst.msk [vmem:[%s143 + $0x70] sm:$0xff] %vm491, %v455
      %503 = vst [vmem:[%s143 + $0x78] sm:$0xff] %v234
      %504 = vst [vmem:[%s143 + $0x80] sm:$0xff] %v290
      %505 = vst [vmem:[%s143 + $0x88] sm:$0xff] %v346
      %506 = vst [vmem:[%s143 + $0x90] sm:$0xff] %v402
      %507 = vst.msk [vmem:[%s143 + $0x98] sm:$0xff] %vm491, %v458
      %508 = vst [vmem:[%s143 + $0xa0] sm:$0xff] %v237
      %509 = vst [vmem:[%s143 + $0xa8] sm:$0xff] %v293
      %510 = vst [vmem:[%s143 + $0xb0] sm:$0xff] %v349
      %511 = vst [vmem:[%s143 + $0xb8] sm:$0xff] %v405
      %512 = vst.msk [vmem:[%s143 + $0xc0] sm:$0xff] %vm491, %v461
      %513 = vst [vmem:[%s143 + $0xc8] sm:$0xff] %v240
      %514 = vst [vmem:[%s143 + $0xd0] sm:$0xff] %v296
      %515 = vst [vmem:[%s143 + $0xd8] sm:$0xff] %v352
      %516 = vst [vmem:[%s143 + $0xe0] sm:$0xff] %v408
      %517 = vst.msk [vmem:[%s143 + $0xe8] sm:$0xff] %vm491, %v464
      %518 = vst [vmem:[%s143 + $0xf0] sm:$0xff] %v243
      %519 = vst [vmem:[%s143 + $0xf8] sm:$0xff] %v299
      %520 = vst [vmem:[%s143 + $0x100] sm:$0xff] %v355
      %521 = vst [vmem:[%s143 + $0x108] sm:$0xff] %v411
      %522 = vst.msk [vmem:[%s143 + $0x110] sm:$0xff] %vm491, %v467
      %523 = vst [vmem:[%s143 + $0x118] sm:$0xff] %v246
      %524 = vst [vmem:[%s143 + $0x120] sm:$0xff] %v302
      %525 = vst [vmem:[%s143 + $0x128] sm:$0xff] %v358
      %526 = vst [vmem:[%s143 + $0x130] sm:$0xff] %v414
      %527 = vst.msk [vmem:[%s143 + $0x138] sm:$0xff] %vm491, %v470
      %528 = vst [vmem:[%s143 + $0x140] sm:$0xff] %v249
      %529 = vst [vmem:[%s143 + $0x148] sm:$0xff] %v305
      %530 = vst [vmem:[%s143 + $0x150] sm:$0xff] %v361
      %531 = vst [vmem:[%s143 + $0x158] sm:$0xff] %v417
      %532 = vst.msk [vmem:[%s143 + $0x160] sm:$0xff] %vm491, %v473
      %533 = vst [vmem:[%s143 + $0x168] sm:$0xff] %v252
      %534 = vst [vmem:[%s143 + $0x170] sm:$0xff] %v308
      %535 = vst [vmem:[%s143 + $0x178] sm:$0xff] %v364
      %536 = vst [vmem:[%s143 + $0x180] sm:$0xff] %v420
      %537 = vst.msk [vmem:[%s143 + $0x188] sm:$0xff] %vm491, %v476
      %538 = vst [vmem:[%s143 + $0x190] sm:$0xff] %v255
      %539 = vst [vmem:[%s143 + $0x198] sm:$0xff] %v311
      %540 = vst [vmem:[%s143 + $0x1a0] sm:$0xff] %v367
      %541 = vst [vmem:[%s143 + $0x1a8] sm:$0xff] %v423
      %542 = vst.msk [vmem:[%s143 + $0x1b0] sm:$0xff] %vm491, %v479
      %543 = vst [vmem:[%s143 + $0x1b8] sm:$0xff] %v258
      %544 = vst [vmem:[%s143 + $0x1c0] sm:$0xff] %v314
      %545 = vst [vmem:[%s143 + $0x1c8] sm:$0xff] %v370
      %546 = vst [vmem:[%s143 + $0x1d0] sm:$0xff] %v426
      %547 = vst.msk [vmem:[%s143 + $0x1d8] sm:$0xff] %vm491, %v482
      %548 = vst [vmem:[%s143 + $0x1e0] sm:$0xf] %v261
      %549 = vst [vmem:[%s143 + $0x1e8] sm:$0xf] %v317
      %550 = vst [vmem:[%s143 + $0x1f0] sm:$0xf] %v373
      %551 = vst [vmem:[%s143 + $0x1f8] sm:$0xf] %v429
      %vm552 = vcmask 781312
      %553 = vst.msk [vmem:[%s143 + $0x200] sm:$0xf] %vm552, %v485
      %p554 = scmp.lt.s32.totalorder %s13, 1
      %s555 = scalar_select %p554, %s13, 1
      %s556 = smul.addr %s555, 65
      %s557 = smul.addr %s556, 8
      %s558 = scalar_lea.vmem %s2, %s557
      // Predicated region
      $region29: #{conv_transformer_forward.6} parent=27 // pred_check
        %p559 = pneg %p78
      $region30: #{conv_transformer_forward.6} parent=27 // pred_check_branch
        %561 = sbr.rel (%p559) target = $region32
      $region31: #{conv_transformer_forward.6} parent=27 // pred_region
        _
      $region32: #{conv_transformer_forward.6} parent=27 // pred_fallthru
        _
    $region28: #{conv_transformer_forward.6} parent=5 // pred_fallthru
      _
    %p562 = scmp.le.s32.totalorder 2, %s8
    // Predicated region
    $region33: #{conv_transformer_forward.6} parent=5 // pred_check
      %p563 = pneg %p562
    $region34: #{conv_transformer_forward.6} parent=5 // pred_check_branch
      %565 = sbr.rel (%p563) target = $region36
    $region35: #{conv_transformer_forward.6} parent=5 // pred_region
      %s566 = ssub.s32 %s8, 2
      // Predicated region
      $region37: #{conv_transformer_forward.6} parent=35 // pred_check
        %p567 = pneg %p84
      $region38: #{conv_transformer_forward.6} parent=35 // pred_check_branch
        %569 = sbr.rel (%p567) target = $region40
      $region39: #{conv_transformer_forward.6} parent=35 // pred_region
        %p570 = scmp.lt.s32.totalorder %s14, 1
        %s571 = scalar_select %p570, %s14, 1
        %s572 = smul.addr %s571, 65
        %s573 = smul.addr %s572, 8
        %s574 = scalar_lea.vmem %s2, %s573
      $region40: #{conv_transformer_forward.6} parent=35 // pred_fallthru
        _
    $region36: #{conv_transformer_forward.6} parent=5 // pred_fallthru
      _
  $region6: #{conv_transformer_forward.6} parent=0 // loop_footer
    %s12 = sadd.s32 1, %s8
  $region7: #{conv_transformer_forward.6} parent=0 // loop_footer_branch
    %7 = sbr.rel target = $region3
  $region8: #{conv_transformer_forward.6} parent=0 // loop_exit
    _

// kernel: conv_transformer_forward.7
$region0: #{conv_transformer_forward.7}
  #allocation0 [shape = 'u32[]', space=smem, size = 0x4, offset = 0x4, fixed_abs, tag = 'smem constant byte address 0x4 - core index']
  #allocation1 [shape = 'u32[72,128]{1,0:T(1,128)}', space=vmem, size = 0x9000, scoped, tag = 'internal scratch']
  %s0 = inlined_call_operand.vmem [shape: f32[256,16], index: 0, kind: input, shape index: {}]
  %s1 = inlined_call_operand.vmem [shape: f32[2,16,3800], index: 1, kind: input, shape index: {}]
  %s2 = inlined_call_operand.vmem [shape: f32[2,256,3800], index: 2, kind: output, shape index: {}]
  %s3 = sld [smem:[#allocation0]]
  $region41: #{conv_transformer_forward.7} parent=0
    _
  %s5 = ssub.s32 1, %s3
  %s6 = scalar_select 0, %s5, %s3
  loop: start=0, step=1, limit=4
  $region2: #{conv_transformer_forward.7} parent=0 // loop_pre_header
    _
  $region3: #{conv_transformer_forward.7} parent=0 // loop_header
    %s8 = sphi 0, %s12
    %p9 = scmp.ge.s32.totalorder %s8, 4
    %s16 = sphi 0, %s16
    %s18 = sphi 0, %s16
    %s19 = sphi 0, %s18
    %s33 = sphi 0, %s19
    %s39 = sphi 0, %s41
    %s42 = sphi 0, %s39
    %s43 = sphi 0, %s42
    %s59 = sphi 0, %s43
    %s65 = sphi 0, %s67
    %s68 = sphi 0, %s65
    %s69 = sphi 0, %s68
    %s85 = sphi 0, %s69
  $region4: #{conv_transformer_forward.7} parent=0 // loop_header_branch
    %11 = sbr.rel (%p9) target = $region8
  $region5: #{conv_transformer_forward.7} parent=0 // loop_body
    %s13 = ssub.s32 %s8, 1
    %s14 = ssub.s32 %s8, 2
    %s15 = sadd.s32 %s8, 1
    %s17 = sadd.s32 %s16, 1
    %p20 = scmp.eq.s32.totalorder %s8, 1
    %p21 = scmp.ne.s32.totalorder %s16, %s18
    %p22 = scmp.eq.s32.totalorder %s8, 0
    %p23 = por %p21, %p22
    %p24 = scmp.ne.s32.totalorder %s16, %s18
    %p25 = scmp.eq.s32.totalorder %s13, 1
    %p26 = por %p24, %p25
    %p27 = scmp.ne.s32.totalorder %s18, %s19
    %p28 = scmp.eq.s32.totalorder %s13, 0
    %p29 = por %p27, %p28
    %p30 = scmp.ne.s32.totalorder %s18, %s19
    %p31 = scmp.eq.s32.totalorder %s14, 1
    %p32 = por %p30, %p31
    %p34 = scmp.ne.s32.totalorder %s19, %s33
    %p35 = scmp.eq.s32.totalorder %s14, 0
    %p36 = por %p34, %p35
    %s37 = ssub.s32 %s8, %s15
    %p38 = scmp.eq.s32.totalorder %s37, 0
    %s40 = sadd.s32 %s39, 1
    %s41 = scalar_select %p38, %s39, %s40
    %p44 = pneg %p38
    %p45 = scmp.eq.s32.totalorder %s8, 1
    %p46 = por %p44, %p45
    %p47 = scmp.ne.s32.totalorder %s39, %s42
    %p48 = scmp.eq.s32.totalorder %s8, 0
    %p49 = por %p47, %p48
    %p50 = scmp.ne.s32.totalorder %s39, %s42
    %p51 = scmp.eq.s32.totalorder %s13, 1
    %p52 = por %p50, %p51
    %p53 = scmp.ne.s32.totalorder %s42, %s43
    %p54 = scmp.eq.s32.totalorder %s13, 0
    %p55 = por %p53, %p54
    %p56 = scmp.ne.s32.totalorder %s42, %s43
    %p57 = scmp.eq.s32.totalorder %s14, 1
    %p58 = por %p56, %p57
    %p60 = scmp.ne.s32.totalorder %s43, %s59
    %p61 = scmp.eq.s32.totalorder %s14, 0
    %p62 = por %p60, %p61
    %s63 = ssub.s32 %s8, %s15
    %p64 = scmp.eq.s32.totalorder %s63, 0
    %s66 = sadd.s32 %s65, 1
    %s67 = scalar_select %p64, %s65, %s66
    %p70 = pneg %p64
    %p71 = scmp.eq.s32.totalorder %s8, 1
    %p72 = por %p70, %p71
    %p73 = scmp.ne.s32.totalorder %s65, %s68
    %p74 = scmp.eq.s32.totalorder %s8, 0
    %p75 = por %p73, %p74
    %p76 = scmp.ne.s32.totalorder %s65, %s68
    %p77 = scmp.eq.s32.totalorder %s13, 1
    %p78 = por %p76, %p77
    %p79 = scmp.ne.s32.totalorder %s68, %s69
    %p80 = scmp.eq.s32.totalorder %s13, 0
    %p81 = por %p79, %p80
    %p82 = scmp.ne.s32.totalorder %s68, %s69
    %p83 = scmp.eq.s32.totalorder %s14, 1
    %p84 = por %p82, %p83
    %p86 = scmp.ne.s32.totalorder %s69, %s85
    %p87 = scmp.eq.s32.totalorder %s14, 0
    %p88 = por %p86, %p87
    %p89 = scmp.le.s32.totalorder 1, %s8
    %p90 = scmp.lt.s32.totalorder %s8, 3
    %p91 = pnand %p89, %p90
    %p92 = pneg %p91
    // Predicated region
    $region9: #{conv_transformer_forward.7} parent=5 // pred_check
      _
    $region10: #{conv_transformer_forward.7} parent=5 // pred_check_branch
      %94 = sbr.rel (%p91) target = $region12
    $region11: #{conv_transformer_forward.7} parent=5 // pred_region
      %s95 = ssub.s32 %s8, 1
      // Predicated region
      $region13: #{conv_transformer_forward.7} parent=11 // pred_check
        %p96 = pneg %p29
      $region14: #{conv_transformer_forward.7} parent=11 // pred_check_branch
        %98 = sbr.rel (%p96) target = $region16
      $region15: #{conv_transformer_forward.7} parent=11 // pred_region
        _
      $region16: #{conv_transformer_forward.7} parent=11 // pred_fallthru
        _
    $region12: #{conv_transformer_forward.7} parent=5 // pred_fallthru
      _
    %p99 = scmp.lt.s32.totalorder %s8, 2
    // Predicated region
    $region17: #{conv_transformer_forward.7} parent=5 // pred_check
      %p100 = pneg %p99
    $region18: #{conv_transformer_forward.7} parent=5 // pred_check_branch
      %102 = sbr.rel (%p100) target = $region20
    $region19: #{conv_transformer_forward.7} parent=5 // pred_region
      // Predicated region
      $region21: #{conv_transformer_forward.7} parent=19 // pred_check
        %p103 = pneg %p49
      $region22: #{conv_transformer_forward.7} parent=19 // pred_check_branch
        %105 = sbr.rel (%p103) target = $region24
      $region23: #{conv_transformer_forward.7} parent=19 // pred_region
        %p106 = scmp.lt.s32.totalorder %s8, 1
        %s107 = scalar_select %p106, %s8, 1
        %s108 = smul.addr %s107, 60
        %s109 = smul.addr %s108, 8
        %s110 = scalar_lea.vmem %s1, %s109
      $region24: #{conv_transformer_forward.7} parent=19 // pred_fallthru
        _
    $region20: #{conv_transformer_forward.7} parent=5 // pred_fallthru
      _
    %p111 = scmp.le.s32.totalorder 1, %s8
    %p112 = scmp.lt.s32.totalorder %s8, 3
    %p113 = pnand %p111, %p112
    %p114 = pneg %p113
    // Predicated region
    $region25: #{conv_transformer_forward.7} parent=5 // pred_check
      _
    $region26: #{conv_transformer_forward.7} parent=5 // pred_check_branch
      %116 = sbr.rel (%p113) target = $region28
    $region27: #{conv_transformer_forward.7} parent=5 // pred_region
      %s117 = ssub.s32 %s8, 1
      %p118 = pneg %p29
      %p119 = pneg %p26
      %p120 = scmp.lt.s32.totalorder %s13, 1
      %s121 = scalar_select %p120, %s13, 1
      %s122 = smul.addr %s121, 60
      %s123 = smul.addr %s122, 8
      %s124 = scalar_lea.vmem %s1, %s123
      %p125 = pneg %p55
      %p126 = pneg %p52
      %p127 = pneg %p81
      %p128 = pneg %p78
      %p129 = scmp.lt.s32.totalorder %s13, 1
      %s130 = scalar_select %p129, %s13, 1
      %s131 = smul.addr %s130, 960
      %s132 = smul.addr %s131, 8
      %s133 = scalar_lea.vmem %s2, %s132
      %p134 = scmp.lt.s32.totalorder %s13, 1
      %s135 = scalar_select %p134, %s13, 1
      %s136 = smul.addr %s135, 60
      %s137 = smul.addr %s136, 8
      %s138 = scalar_lea.vmem %s1, %s137
      %p139 = scmp.lt.s32.totalorder %s13, 1
      %s140 = scalar_select %p139, %s13, 1
      %s141 = smul.addr %s140, 960
      %s142 = smul.addr %s141, 8
      %s143 = scalar_lea.vmem %s2, %s142
      %v144 = vld [vmem:[%s0] sm:$0xff]
      %v145 = vld [vmem:[%s0 + $0x8] sm:$0xff]
      %v146 = vld [vmem:[%s0 + $0x10] sm:$0xff]
      %v147 = vld [vmem:[%s0 + $0x18] sm:$0xff]
      %v148 = vld [vmem:[%s0 + $0x20] sm:$0xff]
      %v149 = vld [vmem:[%s0 + $0x28] sm:$0xff]
      %v150 = vld [vmem:[%s0 + $0x30] sm:$0xff]
      %v151 = vld [vmem:[%s0 + $0x38] sm:$0xff]
      %v152 = vld [vmem:[%s0 + $0x40] sm:$0xff]
      %v153 = vld [vmem:[%s0 + $0x48] sm:$0xff]
      %v154 = vld [vmem:[%s0 + $0x50] sm:$0xff]
      %v155 = vld [vmem:[%s0 + $0x58] sm:$0xff]
      %v156 = vld [vmem:[%s0 + $0x60] sm:$0xff]
      %v157 = vld [vmem:[%s0 + $0x68] sm:$0xff]
      %v158 = vld [vmem:[%s0 + $0x70] sm:$0xff]
      %v159 = vld [vmem:[%s0 + $0x78] sm:$0xff]
      %v160 = vld [vmem:[%s0 + $0x80] sm:$0xff]
      %v161 = vld [vmem:[%s0 + $0x88] sm:$0xff]
      %v162 = vld [vmem:[%s0 + $0x90] sm:$0xff]
      %v163 = vld [vmem:[%s0 + $0x98] sm:$0xff]
      %v164 = vld [vmem:[%s0 + $0xa0] sm:$0xff]
      %v165 = vld [vmem:[%s0 + $0xa8] sm:$0xff]
      %v166 = vld [vmem:[%s0 + $0xb0] sm:$0xff]
      %v167 = vld [vmem:[%s0 + $0xb8] sm:$0xff]
      %v168 = vld [vmem:[%s0 + $0xc0] sm:$0xff]
      %v169 = vld [vmem:[%s0 + $0xc8] sm:$0xff]
      %v170 = vld [vmem:[%s0 + $0xd0] sm:$0xff]
      %v171 = vld [vmem:[%s0 + $0xd8] sm:$0xff]
      %v172 = vld [vmem:[%s0 + $0xe0] sm:$0xff]
      %v173 = vld [vmem:[%s0 + $0xe8] sm:$0xff]
      %v174 = vld [vmem:[%s0 + $0xf0] sm:$0xff]
      %v175 = vld [vmem:[%s0 + $0xf8] sm:$0xff]
      %v176 = vld [vmem:[%s138] sm:$0xff]
      %v177 = vld [vmem:[%s138 + $0x8] sm:$0xff]
      %v178 = vld [vmem:[%s138 + $0x10] sm:$0xff]
      %v179 = vld [vmem:[%s138 + $0x18] sm:$0xff]
      %v180 = vld [vmem:[%s138 + $0x20] sm:$0xff]
      %v181 = vld [vmem:[%s138 + $0x28] sm:$0xff]
      %v182 = vld [vmem:[%s138 + $0x30] sm:$0xff]
      %v183 = vld [vmem:[%s138 + $0x38] sm:$0xff]
      %v184 = vld [vmem:[%s138 + $0x40] sm:$0xff]
      %v185 = vld [vmem:[%s138 + $0x48] sm:$0xff]
      %v186 = vld [vmem:[%s138 + $0x50] sm:$0xff]
      %v187 = vld [vmem:[%s138 + $0x58] sm:$0xff]
      %v188 = vld [vmem:[%s138 + $0x60] sm:$0xff]
      %v189 = vld [vmem:[%s138 + $0x68] sm:$0xff]
      %v190 = vld [vmem:[%s138 + $0x70] sm:$0xff]
      %v191 = vld [vmem:[%s138 + $0x78] sm:$0xff]
      %v192 = vld [vmem:[%s138 + $0x80] sm:$0xff]
      %v193 = vld [vmem:[%s138 + $0x88] sm:$0xff]
      %v194 = vld [vmem:[%s138 + $0x90] sm:$0xff]
      %v195 = vld [vmem:[%s138 + $0x98] sm:$0xff]
      %v196 = vld [vmem:[%s138 + $0xa0] sm:$0xff]
      %v197 = vld [vmem:[%s138 + $0xa8] sm:$0xff]
      %v198 = vld [vmem:[%s138 + $0xb0] sm:$0xff]
      %v199 = vld [vmem:[%s138 + $0xb8] sm:$0xff]
      %v200 = vld [vmem:[%s138 + $0xc0] sm:$0xff]
      %v201 = vld [vmem:[%s138 + $0xc8] sm:$0xff]
      %v202 = vld [vmem:[%s138 + $0xd0] sm:$0xff]
      %v203 = vld [vmem:[%s138 + $0xd8] sm:$0xff]
      %v204 = vld [vmem:[%s138 + $0xe0] sm:$0xff]
      %v205 = vld [vmem:[%s138 + $0xe8] sm:$0xff]
      %v206 = vld [vmem:[%s138 + $0xf0] sm:$0xff]
      %v207 = vld [vmem:[%s138 + $0xf8] sm:$0xff]
      %v208 = vld [vmem:[%s138 + $0x100] sm:$0xff]
      %v209 = vld [vmem:[%s138 + $0x108] sm:$0xff]
      %v210 = vld [vmem:[%s138 + $0x110] sm:$0xff]
      %v211 = vld [vmem:[%s138 + $0x118] sm:$0xff]
      %v212 = vld [vmem:[%s138 + $0x120] sm:$0xff]
      %v213 = vld [vmem:[%s138 + $0x128] sm:$0xff]
      %v214 = vld [vmem:[%s138 + $0x130] sm:$0xff]
      %v215 = vld [vmem:[%s138 + $0x138] sm:$0xff]
      %v216 = vld [vmem:[%s138 + $0x140] sm:$0xff]
      %v217 = vld [vmem:[%s138 + $0x148] sm:$0xff]
      %v218 = vld [vmem:[%s138 + $0x150] sm:$0xff]
      %v219 = vld [vmem:[%s138 + $0x158] sm:$0xff]
      %v220 = vld [vmem:[%s138 + $0x160] sm:$0xff]
      %v221 = vld [vmem:[%s138 + $0x168] sm:$0xff]
      %v222 = vld [vmem:[%s138 + $0x170] sm:$0xff]
      %v223 = vld [vmem:[%s138 + $0x178] sm:$0xff]
      %v224 = vld [vmem:[%s138 + $0x180] sm:$0xff]
      %v225 = vld [vmem:[%s138 + $0x188] sm:$0xff]
      %v226 = vld [vmem:[%s138 + $0x190] sm:$0xff]
      %v227 = vld [vmem:[%s138 + $0x198] sm:$0xff]
      %v228 = vld [vmem:[%s138 + $0x1a0] sm:$0xff]
      %v229 = vld [vmem:[%s138 + $0x1a8] sm:$0xff]
      %v230 = vld [vmem:[%s138 + $0x1b0] sm:$0xff]
      %v231 = vld [vmem:[%s138 + $0x1b8] sm:$0xff]
      %v232 = vld [vmem:[%s138 + $0x1c0] sm:$0xff]
      %v233 = vld [vmem:[%s138 + $0x1c8] sm:$0xff]
      %v234 = vld [vmem:[%s138 + $0x1d0] sm:$0xff]
      %v235 = vld [vmem:[%s138 + $0x1d8] sm:$0xff]
      %vm236 = vcmask 130048
      %v238 = vsel %vm236, %v144, 0
      %v241 = vsel %vm236, %v145, 0
      %v244 = vsel %vm236, %v146, 0
      %v247 = vsel %vm236, %v147, 0
      %v250 = vsel %vm236, %v148, 0
      %v253 = vsel %vm236, %v149, 0
      %v256 = vsel %vm236, %v150, 0
      %v259 = vsel %vm236, %v151, 0
      %v262 = vsel %vm236, %v152, 0
      %v265 = vsel %vm236, %v153, 0
      %v268 = vsel %vm236, %v154, 0
      %v271 = vsel %vm236, %v155, 0
      %v274 = vsel %vm236, %v156, 0
      %v277 = vsel %vm236, %v157, 0
      %v280 = vsel %vm236, %v158, 0
      %v283 = vsel %vm236, %v159, 0
      %v286 = vsel %vm236, %v160, 0
      %v289 = vsel %vm236, %v161, 0
      %v292 = vsel %vm236, %v162, 0
      %v295 = vsel %vm236, %v163, 0
      %v298 = vsel %vm236, %v164, 0
      %v301 = vsel %vm236, %v165, 0
      %v304 = vsel %vm236, %v166, 0
      %v307 = vsel %vm236, %v167, 0
      %v310 = vsel %vm236, %v168, 0
      %v313 = vsel %vm236, %v169, 0
      %v316 = vsel %vm236, %v170, 0
      %v319 = vsel %vm236, %v171, 0
      %v322 = vsel %vm236, %v172, 0
      %v325 = vsel %vm236, %v173, 0
      %v328 = vsel %vm236, %v174, 0
      %v331 = vsel %vm236, %v175, 0
      %333 = vmatpush.msra.mxu0 0.0
      %334 = vmatpush.msra.mxu0 0.0
      %335 = vmatpush.msra.mxu0 0.0
      %336 = vmatpush.msra.mxu0 0.0
      %337 = vmatpush.msra.mxu0 0.0
      %338 = vmatpush.msra.mxu0 0.0
      %339 = vmatpush.msra.mxu0 0.0
      %340 = vmatpush.msra.mxu0 0.0
      %341 = vmatpush.msra.mxu0 0.0
      %342 = vmatpush.msra.mxu0 0.0
      %343 = vmatpush.msra.mxu0 0.0
      %344 = vmatpush.msra.mxu0 0.0
      %345 = vmatpush.msra.mxu0 0.0
      %346 = vmatpush.msra.mxu0 0.0
      %347 = vmatpush.msra.mxu0 %v206
      %348 = vmatpush.msra.mxu0 %v176
      %349 = vmatmul.f32.gmra.mxu0 %v238
      %v350 = vpop.f32.mrf.mxu0
      %v351 = vadd.f32 0.0, %v350
      %352 = vmatmul.f32.gmra.mxu0 %v241
      %v353 = vpop.f32.mrf.mxu0
      %v354 = vadd.f32 0.0, %v353
      %355 = vmatmul.f32.gmra.mxu0 %v244
      %v356 = vpop.f32.mrf.mxu0
      %v357 = vadd.f32 0.0, %v356
      %358 = vmatmul.f32.gmra.mxu0 %v247
      %v359 = vpop.f32.mrf.mxu0
      %v360 = vadd.f32 0.0, %v359
      %361 = vmatmul.f32.gmra.mxu0 %v250
      %v362 = vpop.f32.mrf.mxu0
      %v363 = vadd.f32 0.0, %v362
      %364 = vmatmul.f32.gmra.mxu0 %v253
      %v365 = vpop.f32.mrf.mxu0
      %v366 = vadd.f32 0.0, %v365
      %367 = vmatmul.f32.gmra.mxu0 %v256
      %v368 = vpop.f32.mrf.mxu0
      %v369 = vadd.f32 0.0, %v368
      %370 = vmatmul.f32.gmra.mxu0 %v259
      %v371 = vpop.f32.mrf.mxu0
      %v372 = vadd.f32 0.0, %v371
      %373 = vmatmul.f32.gmra.mxu0 %v262
      %v374 = vpop.f32.mrf.mxu0
      %v375 = vadd.f32 0.0, %v374
      %376 = vmatmul.f32.gmra.mxu0 %v265
      %v377 = vpop.f32.mrf.mxu0
      %v378 = vadd.f32 0.0, %v377
      %379 = vmatmul.f32.gmra.mxu0 %v268
      %v380 = vpop.f32.mrf.mxu0
      %v381 = vadd.f32 0.0, %v380
      %382 = vmatmul.f32.gmra.mxu0 %v271
      %v383 = vpop.f32.mrf.mxu0
      %v384 = vadd.f32 0.0, %v383
      %385 = vmatmul.f32.gmra.mxu0 %v274
      %v386 = vpop.f32.mrf.mxu0
      %v387 = vadd.f32 0.0, %v386
      %388 = vmatmul.f32.gmra.mxu0 %v277
      %v389 = vpop.f32.mrf.mxu0
      %v390 = vadd.f32 0.0, %v389
      %391 = vmatmul.f32.gmra.mxu0 %v280
      %v392 = vpop.f32.mrf.mxu0
      %v393 = vadd.f32 0.0, %v392
      %394 = vmatmul.f32.gmra.mxu0 %v283
      %v395 = vpop.f32.mrf.mxu0
      %v396 = vadd.f32 0.0, %v395
      %397 = vmatmul.f32.gmra.mxu0 %v286
      %v398 = vpop.f32.mrf.mxu0
      %v399 = vadd.f32 0.0, %v398
      %400 = vmatmul.f32.gmra.mxu0 %v289
      %v401 = vpop.f32.mrf.mxu0
      %v402 = vadd.f32 0.0, %v401
      %403 = vmatmul.f32.gmra.mxu0 %v292
      %v404 = vpop.f32.mrf.mxu0
      %v405 = vadd.f32 0.0, %v404
      %406 = vmatmul.f32.gmra.mxu0 %v295
      %v407 = vpop.f32.mrf.mxu0
      %v408 = vadd.f32 0.0, %v407
      %409 = vmatmul.f32.gmra.mxu0 %v298
      %v410 = vpop.f32.mrf.mxu0
      %v411 = vadd.f32 0.0, %v410
      %412 = vmatmul.f32.gmra.mxu0 %v301
      %v413 = vpop.f32.mrf.mxu0
      %v414 = vadd.f32 0.0, %v413
      %415 = vmatmul.f32.gmra.mxu0 %v304
      %v416 = vpop.f32.mrf.mxu0
      %v417 = vadd.f32 0.0, %v416
      %418 = vmatmul.f32.gmra.mxu0 %v307
      %v419 = vpop.f32.mrf.mxu0
      %v420 = vadd.f32 0.0, %v419
      %421 = vmatmul.f32.gmra.mxu0 %v310
      %v422 = vpop.f32.mrf.mxu0
      %v423 = vadd.f32 0.0, %v422
      %424 = vmatmul.f32.gmra.mxu0 %v313
      %v425 = vpop.f32.mrf.mxu0
      %v426 = vadd.f32 0.0, %v425
      %427 = vmatmul.f32.gmra.mxu0 %v316
      %v428 = vpop.f32.mrf.mxu0
      %v429 = vadd.f32 0.0, %v428
      %430 = vmatmul.f32.gmra.mxu0 %v319
      %v431 = vpop.f32.mrf.mxu0
      %v432 = vadd.f32 0.0, %v431
      %433 = vmatmul.f32.gmra.mxu0 %v322
      %v434 = vpop.f32.mrf.mxu0
      %v435 = vadd.f32 0.0, %v434
      %436 = vmatmul.f32.gmra.mxu0 %v325
      %v437 = vpop.f32.mrf.mxu0
      %v438 = vadd.f32 0.0, %v437
      %439 = vmatmul.f32.gmra.mxu0 %v328
      %v440 = vpop.f32.mrf.mxu0
      %v441 = vadd.f32 0.0, %v440
      %442 = vmatmul.f32.gmra.mxu0 %v331
      %v443 = vpop.f32.mrf.mxu0
      %v444 = vadd.f32 0.0, %v443
      %445 = vdwg.mxu0
      %446 = vmatpush.msra.mxu0 0.0
      %447 = vmatpush.msra.mxu0 0.0
      %448 = vmatpush.msra.mxu0 0.0
      %449 = vmatpush.msra.mxu0 0.0
      %450 = vmatpush.msra.mxu0 0.0
      %451 = vmatpush.msra.mxu0 0.0
      %452 = vmatpush.msra.mxu0 0.0
      %453 = vmatpush.msra.mxu0 0.0
      %454 = vmatpush.msra.mxu0 0.0
      %455 = vmatpush.msra.mxu0 0.0
      %456 = vmatpush.msra.mxu0 0.0
      %457 = vmatpush.msra.mxu0 0.0
      %458 = vmatpush.msra.mxu0 0.0
      %459 = vmatpush.msra.mxu0 0.0
      %460 = vmatpush.msra.mxu0 %v207
      %461 = vmatpush.msra.mxu0 %v177
      %462 = vmatmul.f32.gmra.mxu0 %v238
      %v463 = vpop.f32.mrf.mxu0
      %v464 = vadd.f32 0.0, %v463
      %465 = vmatmul.f32.gmra.mxu0 %v241
      %v466 = vpop.f32.mrf.mxu0
      %v467 = vadd.f32 0.0, %v466
      %468 = vmatmul.f32.gmra.mxu0 %v244
      %v469 = vpop.f32.mrf.mxu0
      %v470 = vadd.f32 0.0, %v469
      %471 = vmatmul.f32.gmra.mxu0 %v247
      %v472 = vpop.f32.mrf.mxu0
      %v473 = vadd.f32 0.0, %v472
      %474 = vmatmul.f32.gmra.mxu0 %v250
      %v475 = vpop.f32.mrf.mxu0
      %v476 = vadd.f32 0.0, %v475
      %477 = vmatmul.f32.gmra.mxu0 %v253
      %v478 = vpop.f32.mrf.mxu0
      %v479 = vadd.f32 0.0, %v478
      %480 = vmatmul.f32.gmra.mxu0 %v256
      %v481 = vpop.f32.mrf.mxu0
      %v482 = vadd.f32 0.0, %v481
      %483 = vmatmul.f32.gmra.mxu0 %v259
      %v484 = vpop.f32.mrf.mxu0
      %v485 = vadd.f32 0.0, %v484
      %486 = vmatmul.f32.gmra.mxu0 %v262
      %v487 = vpop.f32.mrf.mxu0
      %v488 = vadd.f32 0.0, %v487
      %489 = vmatmul.f32.gmra.mxu0 %v265
      %v490 = vpop.f32.mrf.mxu0
      %v491 = vadd.f32 0.0, %v490
      %492 = vmatmul.f32.gmra.mxu0 %v268
      %v493 = vpop.f32.mrf.mxu0
      %v494 = vadd.f32 0.0, %v493
      %495 = vmatmul.f32.gmra.mxu0 %v271
      %v496 = vpop.f32.mrf.mxu0
      %v497 = vadd.f32 0.0, %v496
      %498 = vmatmul.f32.gmra.mxu0 %v274
      %v499 = vpop.f32.mrf.mxu0
      %v500 = vadd.f32 0.0, %v499
      %501 = vmatmul.f32.gmra.mxu0 %v277
      %v502 = vpop.f32.mrf.mxu0
      %v503 = vadd.f32 0.0, %v502
      %504 = vmatmul.f32.gmra.mxu0 %v280
      %v505 = vpop.f32.mrf.mxu0
      %v506 = vadd.f32 0.0, %v505
      %507 = vmatmul.f32.gmra.mxu0 %v283
      %v508 = vpop.f32.mrf.mxu0
      %v509 = vadd.f32 0.0, %v508
      %510 = vmatmul.f32.gmra.mxu0 %v286
      %v511 = vpop.f32.mrf.mxu0
      %v512 = vadd.f32 0.0, %v511
      %513 = vmatmul.f32.gmra.mxu0 %v289
      %v514 = vpop.f32.mrf.mxu0
      %v515 = vadd.f32 0.0, %v514
      %516 = vmatmul.f32.gmra.mxu0 %v292
      %v517 = vpop.f32.mrf.mxu0
      %v518 = vadd.f32 0.0, %v517
      %519 = vmatmul.f32.gmra.mxu0 %v295
      %v520 = vpop.f32.mrf.mxu0
      %v521 = vadd.f32 0.0, %v520
      %522 = vmatmul.f32.gmra.mxu0 %v298
      %v523 = vpop.f32.mrf.mxu0
      %v524 = vadd.f32 0.0, %v523
      %525 = vmatmul.f32.gmra.mxu0 %v301
      %v526 = vpop.f32.mrf.mxu0
      %v527 = vadd.f32 0.0, %v526
      %528 = vmatmul.f32.gmra.mxu0 %v304
      %v529 = vpop.f32.mrf.mxu0
      %v530 = vadd.f32 0.0, %v529
      %531 = vmatmul.f32.gmra.mxu0 %v307
      %v532 = vpop.f32.mrf.mxu0
      %v533 = vadd.f32 0.0, %v532
      %534 = vmatmul.f32.gmra.mxu0 %v310
      %v535 = vpop.f32.mrf.mxu0
      %v536 = vadd.f32 0.0, %v535
      %537 = vmatmul.f32.gmra.mxu0 %v313
      %v538 = vpop.f32.mrf.mxu0
      %v539 = vadd.f32 0.0, %v538
      %540 = vmatmul.f32.gmra.mxu0 %v316
      %v541 = vpop.f32.mrf.mxu0
      %v542 = vadd.f32 0.0, %v541
      %543 = vmatmul.f32.gmra.mxu0 %v319
      %v544 = vpop.f32.mrf.mxu0
      %v545 = vadd.f32 0.0, %v544
      %546 = vmatmul.f32.gmra.mxu0 %v322
      %v547 = vpop.f32.mrf.mxu0
      %v548 = vadd.f32 0.0, %v547
      %549 = vmatmul.f32.gmra.mxu0 %v325
      %v550 = vpop.f32.mrf.mxu0
      %v551 = vadd.f32 0.0, %v550
      %552 = vmatmul.f32.gmra.mxu0 %v328
      %v553 = vpop.f32.mrf.mxu0
      %v554 = vadd.f32 0.0, %v553
      %555 = vmatmul.f32.gmra.mxu0 %v331
      %v556 = vpop.f32.mrf.mxu0
      %v557 = vadd.f32 0.0, %v556
      %558 = vdwg.mxu0
      %559 = vmatpush.msra.mxu0 0.0
      %560 = vmatpush.msra.mxu0 0.0
      %561 = vmatpush.msra.mxu0 0.0
      %562 = vmatpush.msra.mxu0 0.0
      %563 = vmatpush.msra.mxu0 0.0
      %564 = vmatpush.msra.mxu0 0.0
      %565 = vmatpush.msra.mxu0 0.0
      %566 = vmatpush.msra.mxu0 0.0
      %567 = vmatpush.msra.mxu0 0.0
      %568 = vmatpush.msra.mxu0 0.0
      %569 = vmatpush.msra.mxu0 0.0
      %570 = vmatpush.msra.mxu0 0.0
      %571 = vmatpush.msra.mxu0 0.0
      %572 = vmatpush.msra.mxu0 0.0
      %573 = vmatpush.msra.mxu0 %v208
      %574 = vmatpush.msra.mxu0 %v178
      %575 = vmatmul.f32.gmra.mxu0 %v238
      %v576 = vpop.f32.mrf.mxu0
      %v577 = vadd.f32 0.0, %v576
      %578 = vmatmul.f32.gmra.mxu0 %v241
      %v579 = vpop.f32.mrf.mxu0
      %v580 = vadd.f32 0.0, %v579
      %581 = vmatmul.f32.gmra.mxu0 %v244
      %v582 = vpop.f32.mrf.mxu0
      %v583 = vadd.f32 0.0, %v582
      %584 = vmatmul.f32.gmra.mxu0 %v247
      %v585 = vpop.f32.mrf.mxu0
      %v586 = vadd.f32 0.0, %v585
      %587 = vmatmul.f32.gmra.mxu0 %v250
      %v588 = vpop.f32.mrf.mxu0
      %v589 = vadd.f32 0.0, %v588
      %590 = vmatmul.f32.gmra.mxu0 %v253
      %v591 = vpop.f32.mrf.mxu0
      %v592 = vadd.f32 0.0, %v591
      %593 = vmatmul.f32.gmra.mxu0 %v256
      %v594 = vpop.f32.mrf.mxu0
      %v595 = vadd.f32 0.0, %v594
      %596 = vmatmul.f32.gmra.mxu0 %v259
      %v597 = vpop.f32.mrf.mxu0
      %v598 = vadd.f32 0.0, %v597
      %599 = vmatmul.f32.gmra.mxu0 %v262
      %v600 = vpop.f32.mrf.mxu0
      %v601 = vadd.f32 0.0, %v600
      %602 = vmatmul.f32.gmra.mxu0 %v265
      %v603 = vpop.f32.mrf.mxu0
      %v604 = vadd.f32 0.0, %v603
      %605 = vmatmul.f32.gmra.mxu0 %v268
      %v606 = vpop.f32.mrf.mxu0
      %v607 = vadd.f32 0.0, %v606
      %608 = vmatmul.f32.gmra.mxu0 %v271
      %v609 = vpop.f32.mrf.mxu0
      %v610 = vadd.f32 0.0, %v609
      %611 = vmatmul.f32.gmra.mxu0 %v274
      %v612 = vpop.f32.mrf.mxu0
      %v613 = vadd.f32 0.0, %v612
      %614 = vmatmul.f32.gmra.mxu0 %v277
      %v615 = vpop.f32.mrf.mxu0
      %v616 = vadd.f32 0.0, %v615
      %617 = vmatmul.f32.gmra.mxu0 %v280
      %v618 = vpop.f32.mrf.mxu0
      %v619 = vadd.f32 0.0, %v618
      %620 = vmatmul.f32.gmra.mxu0 %v283
      %v621 = vpop.f32.mrf.mxu0
      %v622 = vadd.f32 0.0, %v621
      %623 = vmatmul.f32.gmra.mxu0 %v286
      %v624 = vpop.f32.mrf.mxu0
      %v625 = vadd.f32 0.0, %v624
      %626 = vmatmul.f32.gmra.mxu0 %v289
      %v627 = vpop.f32.mrf.mxu0
      %v628 = vadd.f32 0.0, %v627
      %629 = vmatmul.f32.gmra.mxu0 %v292
      %v630 = vpop.f32.mrf.mxu0
      %v631 = vadd.f32 0.0, %v630
      %632 = vmatmul.f32.gmra.mxu0 %v295
      %v633 = vpop.f32.mrf.mxu0
      %v634 = vadd.f32 0.0, %v633
      %635 = vmatmul.f32.gmra.mxu0 %v298
      %v636 = vpop.f32.mrf.mxu0
      %v637 = vadd.f32 0.0, %v636
      %638 = vmatmul.f32.gmra.mxu0 %v301
      %v639 = vpop.f32.mrf.mxu0
      %v640 = vadd.f32 0.0, %v639
      %641 = vmatmul.f32.gmra.mxu0 %v304
      %v642 = vpop.f32.mrf.mxu0
      %v643 = vadd.f32 0.0, %v642
      %644 = vmatmul.f32.gmra.mxu0 %v307
      %v645 = vpop.f32.mrf.mxu0
      %v646 = vadd.f32 0.0, %v645
      %647 = vmatmul.f32.gmra.mxu0 %v310
      %v648 = vpop.f32.mrf.mxu0
      %v649 = vadd.f32 0.0, %v648
      %650 = vmatmul.f32.gmra.mxu0 %v313
      %v651 = vpop.f32.mrf.mxu0
      %v652 = vadd.f32 0.0, %v651
      %653 = vmatmul.f32.gmra.mxu0 %v316
      %v654 = vpop.f32.mrf.mxu0
      %v655 = vadd.f32 0.0, %v654
      %656 = vmatmul.f32.gmra.mxu0 %v319
      %v657 = vpop.f32.mrf.mxu0
      %v658 = vadd.f32 0.0, %v657
      %659 = vmatmul.f32.gmra.mxu0 %v322
      %v660 = vpop.f32.mrf.mxu0
      %v661 = vadd.f32 0.0, %v660
      %662 = vmatmul.f32.gmra.mxu0 %v325
      %v663 = vpop.f32.mrf.mxu0
      %v664 = vadd.f32 0.0, %v663
      %665 = vmatmul.f32.gmra.mxu0 %v328
      %v666 = vpop.f32.mrf.mxu0
      %v667 = vadd.f32 0.0, %v666
      %668 = vmatmul.f32.gmra.mxu0 %v331
      %v669 = vpop.f32.mrf.mxu0
      %v670 = vadd.f32 0.0, %v669
      %671 = vdwg.mxu0
      %672 = vmatpush.msra.mxu0 0.0
      %673 = vmatpush.msra.mxu0 0.0
      %674 = vmatpush.msra.mxu0 0.0
      %675 = vmatpush.msra.mxu0 0.0
      %676 = vmatpush.msra.mxu0 0.0
      %677 = vmatpush.msra.mxu0 0.0
      %678 = vmatpush.msra.mxu0 0.0
      %679 = vmatpush.msra.mxu0 0.0
      %680 = vmatpush.msra.mxu0 0.0
      %681 = vmatpush.msra.mxu0 0.0
      %682 = vmatpush.msra.mxu0 0.0
      %683 = vmatpush.msra.mxu0 0.0
      %684 = vmatpush.msra.mxu0 0.0
      %685 = vmatpush.msra.mxu0 0.0
      %686 = vmatpush.msra.mxu0 %v209
      %687 = vmatpush.msra.mxu0 %v179
      %688 = vmatmul.f32.gmra.mxu0 %v238
      %v689 = vpop.f32.mrf.mxu0
      %v690 = vadd.f32 0.0, %v689
      %691 = vmatmul.f32.gmra.mxu0 %v241
      %v692 = vpop.f32.mrf.mxu0
      %v693 = vadd.f32 0.0, %v692
      %694 = vmatmul.f32.gmra.mxu0 %v244
      %v695 = vpop.f32.mrf.mxu0
      %v696 = vadd.f32 0.0, %v695
      %697 = vmatmul.f32.gmra.mxu0 %v247
      %v698 = vpop.f32.mrf.mxu0
      %v699 = vadd.f32 0.0, %v698
      %700 = vmatmul.f32.gmra.mxu0 %v250
      %v701 = vpop.f32.mrf.mxu0
      %v702 = vadd.f32 0.0, %v701
      %703 = vmatmul.f32.gmra.mxu0 %v253
      %v704 = vpop.f32.mrf.mxu0
      %v705 = vadd.f32 0.0, %v704
      %706 = vmatmul.f32.gmra.mxu0 %v256
      %v707 = vpop.f32.mrf.mxu0
      %v708 = vadd.f32 0.0, %v707
      %709 = vmatmul.f32.gmra.mxu0 %v259
      %v710 = vpop.f32.mrf.mxu0
      %v711 = vadd.f32 0.0, %v710
      %712 = vmatmul.f32.gmra.mxu0 %v262
      %v713 = vpop.f32.mrf.mxu0
      %v714 = vadd.f32 0.0, %v713
      %715 = vmatmul.f32.gmra.mxu0 %v265
      %v716 = vpop.f32.mrf.mxu0
      %v717 = vadd.f32 0.0, %v716
      %718 = vmatmul.f32.gmra.mxu0 %v268
      %v719 = vpop.f32.mrf.mxu0
      %v720 = vadd.f32 0.0, %v719
      %721 = vmatmul.f32.gmra.mxu0 %v271
      %v722 = vpop.f32.mrf.mxu0
      %v723 = vadd.f32 0.0, %v722
      %724 = vmatmul.f32.gmra.mxu0 %v274
      %v725 = vpop.f32.mrf.mxu0
      %v726 = vadd.f32 0.0, %v725
      %727 = vmatmul.f32.gmra.mxu0 %v277
      %v728 = vpop.f32.mrf.mxu0
      %v729 = vadd.f32 0.0, %v728
      %730 = vmatmul.f32.gmra.mxu0 %v280
      %v731 = vpop.f32.mrf.mxu0
      %v732 = vadd.f32 0.0, %v731
      %733 = vmatmul.f32.gmra.mxu0 %v283
      %v734 = vpop.f32.mrf.mxu0
      %v735 = vadd.f32 0.0, %v734
      %736 = vmatmul.f32.gmra.mxu0 %v286
      %v737 = vpop.f32.mrf.mxu0
      %v738 = vadd.f32 0.0, %v737
      %739 = vmatmul.f32.gmra.mxu0 %v289
      %v740 = vpop.f32.mrf.mxu0
      %v741 = vadd.f32 0.0, %v740
      %742 = vmatmul.f32.gmra.mxu0 %v292
      %v743 = vpop.f32.mrf.mxu0
      %v744 = vadd.f32 0.0, %v743
      %745 = vmatmul.f32.gmra.mxu0 %v295
      %v746 = vpop.f32.mrf.mxu0
      %v747 = vadd.f32 0.0, %v746
      %748 = vmatmul.f32.gmra.mxu0 %v298
      %v749 = vpop.f32.mrf.mxu0
      %v750 = vadd.f32 0.0, %v749
      %751 = vmatmul.f32.gmra.mxu0 %v301
      %v752 = vpop.f32.mrf.mxu0
      %v753 = vadd.f32 0.0, %v752
      %754 = vmatmul.f32.gmra.mxu0 %v304
      %v755 = vpop.f32.mrf.mxu0
      %v756 = vadd.f32 0.0, %v755
      %757 = vmatmul.f32.gmra.mxu0 %v307
      %v758 = vpop.f32.mrf.mxu0
      %v759 = vadd.f32 0.0, %v758
      %760 = vmatmul.f32.gmra.mxu0 %v310
      %v761 = vpop.f32.mrf.mxu0
      %v762 = vadd.f32 0.0, %v761
      %763 = vmatmul.f32.gmra.mxu0 %v313
      %v764 = vpop.f32.mrf.mxu0
      %v765 = vadd.f32 0.0, %v764
      %766 = vmatmul.f32.gmra.mxu0 %v316
      %v767 = vpop.f32.mrf.mxu0
      %v768 = vadd.f32 0.0, %v767
      %769 = vmatmul.f32.gmra.mxu0 %v319
      %v770 = vpop.f32.mrf.mxu0
      %v771 = vadd.f32 0.0, %v770
      %772 = vmatmul.f32.gmra.mxu0 %v322
      %v773 = vpop.f32.mrf.mxu0
      %v774 = vadd.f32 0.0, %v773
      %775 = vmatmul.f32.gmra.mxu0 %v325
      %v776 = vpop.f32.mrf.mxu0
      %v777 = vadd.f32 0.0, %v776
      %778 = vmatmul.f32.gmra.mxu0 %v328
      %v779 = vpop.f32.mrf.mxu0
      %v780 = vadd.f32 0.0, %v779
      %781 = vmatmul.f32.gmra.mxu0 %v331
      %v782 = vpop.f32.mrf.mxu0
      %v783 = vadd.f32 0.0, %v782
      %784 = vdwg.mxu0
      %785 = vmatpush.msra.mxu0 0.0
      %786 = vmatpush.msra.mxu0 0.0
      %787 = vmatpush.msra.mxu0 0.0
      %788 = vmatpush.msra.mxu0 0.0
      %789 = vmatpush.msra.mxu0 0.0
      %790 = vmatpush.msra.mxu0 0.0
      %791 = vmatpush.msra.mxu0 0.0
      %792 = vmatpush.msra.mxu0 0.0
      %793 = vmatpush.msra.mxu0 0.0
      %794 = vmatpush.msra.mxu0 0.0
      %795 = vmatpush.msra.mxu0 0.0
      %796 = vmatpush.msra.mxu0 0.0
      %797 = vmatpush.msra.mxu0 0.0
      %798 = vmatpush.msra.mxu0 0.0
      %799 = vmatpush.msra.mxu0 %v210
      %800 = vmatpush.msra.mxu0 %v180
      %801 = vmatmul.f32.gmra.mxu0 %v238
      %v802 = vpop.f32.mrf.mxu0
      %v803 = vadd.f32 0.0, %v802
      %804 = vmatmul.f32.gmra.mxu0 %v241
      %v805 = vpop.f32.mrf.mxu0
      %v806 = vadd.f32 0.0, %v805
      %807 = vmatmul.f32.gmra.mxu0 %v244
      %v808 = vpop.f32.mrf.mxu0
      %v809 = vadd.f32 0.0, %v808
      %810 = vmatmul.f32.gmra.mxu0 %v247
      %v811 = vpop.f32.mrf.mxu0
      %v812 = vadd.f32 0.0, %v811
      %813 = vmatmul.f32.gmra.mxu0 %v250
      %v814 = vpop.f32.mrf.mxu0
      %v815 = vadd.f32 0.0, %v814
      %816 = vmatmul.f32.gmra.mxu0 %v253
      %v817 = vpop.f32.mrf.mxu0
      %v818 = vadd.f32 0.0, %v817
      %819 = vmatmul.f32.gmra.mxu0 %v256
      %v820 = vpop.f32.mrf.mxu0
      %v821 = vadd.f32 0.0, %v820
      %822 = vmatmul.f32.gmra.mxu0 %v259
      %v823 = vpop.f32.mrf.mxu0
      %v824 = vadd.f32 0.0, %v823
      %825 = vmatmul.f32.gmra.mxu0 %v262
      %v826 = vpop.f32.mrf.mxu0
      %v827 = vadd.f32 0.0, %v826
      %828 = vmatmul.f32.gmra.mxu0 %v265
      %v829 = vpop.f32.mrf.mxu0
      %v830 = vadd.f32 0.0, %v829
      %831 = vmatmul.f32.gmra.mxu0 %v268
      %v832 = vpop.f32.mrf.mxu0
      %v833 = vadd.f32 0.0, %v832
      %834 = vmatmul.f32.gmra.mxu0 %v271
      %v835 = vpop.f32.mrf.mxu0
      %v836 = vadd.f32 0.0, %v835
      %837 = vmatmul.f32.gmra.mxu0 %v274
      %v838 = vpop.f32.mrf.mxu0
      %v839 = vadd.f32 0.0, %v838
      %840 = vmatmul.f32.gmra.mxu0 %v277
      %v841 = vpop.f32.mrf.mxu0
      %v842 = vadd.f32 0.0, %v841
      %843 = vmatmul.f32.gmra.mxu0 %v280
      %v844 = vpop.f32.mrf.mxu0
      %v845 = vadd.f32 0.0, %v844
      %846 = vmatmul.f32.gmra.mxu0 %v283
      %v847 = vpop.f32.mrf.mxu0
      %v848 = vadd.f32 0.0, %v847
      %849 = vmatmul.f32.gmra.mxu0 %v286
      %v850 = vpop.f32.mrf.mxu0
      %v851 = vadd.f32 0.0, %v850
      %852 = vmatmul.f32.gmra.mxu0 %v289
      %v853 = vpop.f32.mrf.mxu0
      %v854 = vadd.f32 0.0, %v853
      %855 = vmatmul.f32.gmra.mxu0 %v292
      %v856 = vpop.f32.mrf.mxu0
      %v857 = vadd.f32 0.0, %v856
      %858 = vmatmul.f32.gmra.mxu0 %v295
      %v859 = vpop.f32.mrf.mxu0
      %v860 = vadd.f32 0.0, %v859
      %861 = vmatmul.f32.gmra.mxu0 %v298
      %v862 = vpop.f32.mrf.mxu0
      %v863 = vadd.f32 0.0, %v862
      %864 = vmatmul.f32.gmra.mxu0 %v301
      %v865 = vpop.f32.mrf.mxu0
      %v866 = vadd.f32 0.0, %v865
      %867 = vmatmul.f32.gmra.mxu0 %v304
      %v868 = vpop.f32.mrf.mxu0
      %v869 = vadd.f32 0.0, %v868
      %870 = vmatmul.f32.gmra.mxu0 %v307
      %v871 = vpop.f32.mrf.mxu0
      %v872 = vadd.f32 0.0, %v871
      %873 = vmatmul.f32.gmra.mxu0 %v310
      %v874 = vpop.f32.mrf.mxu0
      %v875 = vadd.f32 0.0, %v874
      %876 = vmatmul.f32.gmra.mxu0 %v313
      %v877 = vpop.f32.mrf.mxu0
      %v878 = vadd.f32 0.0, %v877
      %879 = vmatmul.f32.gmra.mxu0 %v316
      %v880 = vpop.f32.mrf.mxu0
      %v881 = vadd.f32 0.0, %v880
      %882 = vmatmul.f32.gmra.mxu0 %v319
      %v883 = vpop.f32.mrf.mxu0
      %v884 = vadd.f32 0.0, %v883
      %885 = vmatmul.f32.gmra.mxu0 %v322
      %v886 = vpop.f32.mrf.mxu0
      %v887 = vadd.f32 0.0, %v886
      %888 = vmatmul.f32.gmra.mxu0 %v325
      %v889 = vpop.f32.mrf.mxu0
      %v890 = vadd.f32 0.0, %v889
      %891 = vmatmul.f32.gmra.mxu0 %v328
      %v892 = vpop.f32.mrf.mxu0
      %v893 = vadd.f32 0.0, %v892
      %894 = vmatmul.f32.gmra.mxu0 %v331
      %v895 = vpop.f32.mrf.mxu0
      %v896 = vadd.f32 0.0, %v895
      %897 = vdwg.mxu0
      %898 = vmatpush.msra.mxu0 0.0
      %899 = vmatpush.msra.mxu0 0.0
      %900 = vmatpush.msra.mxu0 0.0
      %901 = vmatpush.msra.mxu0 0.0
      %902 = vmatpush.msra.mxu0 0.0
      %903 = vmatpush.msra.mxu0 0.0
      %904 = vmatpush.msra.mxu0 0.0
      %905 = vmatpush.msra.mxu0 0.0
      %906 = vmatpush.msra.mxu0 0.0
      %907 = vmatpush.msra.mxu0 0.0
      %908 = vmatpush.msra.mxu0 0.0
      %909 = vmatpush.msra.mxu0 0.0
      %910 = vmatpush.msra.mxu0 0.0
      %911 = vmatpush.msra.mxu0 0.0
      %912 = vmatpush.msra.mxu0 %v211
      %913 = vmatpush.msra.mxu0 %v181
      %914 = vmatmul.f32.gmra.mxu0 %v238
      %v915 = vpop.f32.mrf.mxu0
      %v916 = vadd.f32 0.0, %v915
      %917 = vmatmul.f32.gmra.mxu0 %v241
      %v918 = vpop.f32.mrf.mxu0
      %v919 = vadd.f32 0.0, %v918
      %920 = vmatmul.f32.gmra.mxu0 %v244
      %v921 = vpop.f32.mrf.mxu0
      %v922 = vadd.f32 0.0, %v921
      %923 = vmatmul.f32.gmra.mxu0 %v247
      %v924 = vpop.f32.mrf.mxu0
      %v925 = vadd.f32 0.0, %v924
      %926 = vmatmul.f32.gmra.mxu0 %v250
      %v927 = vpop.f32.mrf.mxu0
      %v928 = vadd.f32 0.0, %v927
      %929 = vmatmul.f32.gmra.mxu0 %v253
      %v930 = vpop.f32.mrf.mxu0
      %v931 = vadd.f32 0.0, %v930
      %932 = vmatmul.f32.gmra.mxu0 %v256
      %v933 = vpop.f32.mrf.mxu0
      %v934 = vadd.f32 0.0, %v933
      %935 = vmatmul.f32.gmra.mxu0 %v259
      %v936 = vpop.f32.mrf.mxu0
      %v937 = vadd.f32 0.0, %v936
      %938 = vmatmul.f32.gmra.mxu0 %v262
      %v939 = vpop.f32.mrf.mxu0
      %v940 = vadd.f32 0.0, %v939
      %941 = vmatmul.f32.gmra.mxu0 %v265
      %v942 = vpop.f32.mrf.mxu0
      %v943 = vadd.f32 0.0, %v942
      %944 = vmatmul.f32.gmra.mxu0 %v268
      %v945 = vpop.f32.mrf.mxu0
      %v946 = vadd.f32 0.0, %v945
      %947 = vmatmul.f32.gmra.mxu0 %v271
      %v948 = vpop.f32.mrf.mxu0
      %v949 = vadd.f32 0.0, %v948
      %950 = vmatmul.f32.gmra.mxu0 %v274
      %v951 = vpop.f32.mrf.mxu0
      %v952 = vadd.f32 0.0, %v951
      %953 = vmatmul.f32.gmra.mxu0 %v277
      %v954 = vpop.f32.mrf.mxu0
      %v955 = vadd.f32 0.0, %v954
      %956 = vmatmul.f32.gmra.mxu0 %v280
      %v957 = vpop.f32.mrf.mxu0
      %v958 = vadd.f32 0.0, %v957
      %959 = vmatmul.f32.gmra.mxu0 %v283
      %v960 = vpop.f32.mrf.mxu0
      %v961 = vadd.f32 0.0, %v960
      %962 = vmatmul.f32.gmra.mxu0 %v286
      %v963 = vpop.f32.mrf.mxu0
      %v964 = vadd.f32 0.0, %v963
      %965 = vmatmul.f32.gmra.mxu0 %v289
      %v966 = vpop.f32.mrf.mxu0
      %v967 = vadd.f32 0.0, %v966
      %968 = vmatmul.f32.gmra.mxu0 %v292
      %v969 = vpop.f32.mrf.mxu0
      %v970 = vadd.f32 0.0, %v969
      %971 = vmatmul.f32.gmra.mxu0 %v295
      %v972 = vpop.f32.mrf.mxu0
      %v973 = vadd.f32 0.0, %v972
      %974 = vmatmul.f32.gmra.mxu0 %v298
      %v975 = vpop.f32.mrf.mxu0
      %v976 = vadd.f32 0.0, %v975
      %977 = vmatmul.f32.gmra.mxu0 %v301
      %v978 = vpop.f32.mrf.mxu0
      %v979 = vadd.f32 0.0, %v978
      %980 = vmatmul.f32.gmra.mxu0 %v304
      %v981 = vpop.f32.mrf.mxu0
      %v982 = vadd.f32 0.0, %v981
      %983 = vmatmul.f32.gmra.mxu0 %v307
      %v984 = vpop.f32.mrf.mxu0
      %v985 = vadd.f32 0.0, %v984
      %986 = vmatmul.f32.gmra.mxu0 %v310
      %v987 = vpop.f32.mrf.mxu0
      %v988 = vadd.f32 0.0, %v987
      %989 = vmatmul.f32.gmra.mxu0 %v313
      %v990 = vpop.f32.mrf.mxu0
      %v991 = vadd.f32 0.0, %v990
      %992 = vmatmul.f32.gmra.mxu0 %v316
      %v993 = vpop.f32.mrf.mxu0
      %v994 = vadd.f32 0.0, %v993
      %995 = vmatmul.f32.gmra.mxu0 %v319
      %v996 = vpop.f32.mrf.mxu0
      %v997 = vadd.f32 0.0, %v996
      %998 = vmatmul.f32.gmra.mxu0 %v322
      %v999 = vpop.f32.mrf.mxu0
      %v1000 = vadd.f32 0.0, %v999
      %1001 = vmatmul.f32.gmra.mxu0 %v325
      %v1002 = vpop.f32.mrf.mxu0
      %v1003 = vadd.f32 0.0, %v1002
      %1004 = vmatmul.f32.gmra.mxu0 %v328
      %v1005 = vpop.f32.mrf.mxu0
      %v1006 = vadd.f32 0.0, %v1005
      %1007 = vmatmul.f32.gmra.mxu0 %v331
      %v1008 = vpop.f32.mrf.mxu0
      %v1009 = vadd.f32 0.0, %v1008
      %1010 = vdwg.mxu0
      %1011 = vmatpush.msra.mxu0 0.0
      %1012 = vmatpush.msra.mxu0 0.0
      %1013 = vmatpush.msra.mxu0 0.0
      %1014 = vmatpush.msra.mxu0 0.0
      %1015 = vmatpush.msra.mxu0 0.0
      %1016 = vmatpush.msra.mxu0 0.0
      %1017 = vmatpush.msra.mxu0 0.0
      %1018 = vmatpush.msra.mxu0 0.0
      %1019 = vmatpush.msra.mxu0 0.0
      %1020 = vmatpush.msra.mxu0 0.0
      %1021 = vmatpush.msra.mxu0 0.0
      %1022 = vmatpush.msra.mxu0 0.0
      %1023 = vmatpush.msra.mxu0 0.0
      %1024 = vmatpush.msra.mxu0 0.0
      %1025 = vmatpush.msra.mxu0 %v212
      %1026 = vmatpush.msra.mxu0 %v182
      %1027 = vmatmul.f32.gmra.mxu0 %v238
      %v1028 = vpop.f32.mrf.mxu0
      %v1029 = vadd.f32 0.0, %v1028
      %1030 = vmatmul.f32.gmra.mxu0 %v241
      %v1031 = vpop.f32.mrf.mxu0
      %v1032 = vadd.f32 0.0, %v1031
      %1033 = vmatmul.f32.gmra.mxu0 %v244
      %v1034 = vpop.f32.mrf.mxu0
      %v1035 = vadd.f32 0.0, %v1034
      %1036 = vmatmul.f32.gmra.mxu0 %v247
      %v1037 = vpop.f32.mrf.mxu0
      %v1038 = vadd.f32 0.0, %v1037
      %1039 = vmatmul.f32.gmra.mxu0 %v250
      %v1040 = vpop.f32.mrf.mxu0
      %v1041 = vadd.f32 0.0, %v1040
      %1042 = vmatmul.f32.gmra.mxu0 %v253
      %v1043 = vpop.f32.mrf.mxu0
      %v1044 = vadd.f32 0.0, %v1043
      %1045 = vmatmul.f32.gmra.mxu0 %v256
      %v1046 = vpop.f32.mrf.mxu0
      %v1047 = vadd.f32 0.0, %v1046
      %1048 = vmatmul.f32.gmra.mxu0 %v259
      %v1049 = vpop.f32.mrf.mxu0
      %v1050 = vadd.f32 0.0, %v1049
      %1051 = vmatmul.f32.gmra.mxu0 %v262
      %v1052 = vpop.f32.mrf.mxu0
      %v1053 = vadd.f32 0.0, %v1052
      %1054 = vmatmul.f32.gmra.mxu0 %v265
      %v1055 = vpop.f32.mrf.mxu0
      %v1056 = vadd.f32 0.0, %v1055
      %1057 = vmatmul.f32.gmra.mxu0 %v268
      %v1058 = vpop.f32.mrf.mxu0
      %v1059 = vadd.f32 0.0, %v1058
      %1060 = vmatmul.f32.gmra.mxu0 %v271
      %v1061 = vpop.f32.mrf.mxu0
      %v1062 = vadd.f32 0.0, %v1061
      %1063 = vmatmul.f32.gmra.mxu0 %v274
      %v1064 = vpop.f32.mrf.mxu0
      %v1065 = vadd.f32 0.0, %v1064
      %1066 = vmatmul.f32.gmra.mxu0 %v277
      %v1067 = vpop.f32.mrf.mxu0
      %v1068 = vadd.f32 0.0, %v1067
      %1069 = vmatmul.f32.gmra.mxu0 %v280
      %v1070 = vpop.f32.mrf.mxu0
      %v1071 = vadd.f32 0.0, %v1070
      %1072 = vmatmul.f32.gmra.mxu0 %v283
      %v1073 = vpop.f32.mrf.mxu0
      %v1074 = vadd.f32 0.0, %v1073
      %1075 = vmatmul.f32.gmra.mxu0 %v286
      %v1076 = vpop.f32.mrf.mxu0
      %v1077 = vadd.f32 0.0, %v1076
      %1078 = vmatmul.f32.gmra.mxu0 %v289
      %v1079 = vpop.f32.mrf.mxu0
      %v1080 = vadd.f32 0.0, %v1079
      %1081 = vmatmul.f32.gmra.mxu0 %v292
      %v1082 = vpop.f32.mrf.mxu0
      %v1083 = vadd.f32 0.0, %v1082
      %1084 = vmatmul.f32.gmra.mxu0 %v295
      %v1085 = vpop.f32.mrf.mxu0
      %v1086 = vadd.f32 0.0, %v1085
      %1087 = vmatmul.f32.gmra.mxu0 %v298
      %v1088 = vpop.f32.mrf.mxu0
      %v1089 = vadd.f32 0.0, %v1088
      %1090 = vmatmul.f32.gmra.mxu0 %v301
      %v1091 = vpop.f32.mrf.mxu0
      %v1092 = vadd.f32 0.0, %v1091
      %1093 = vmatmul.f32.gmra.mxu0 %v304
      %v1094 = vpop.f32.mrf.mxu0
      %v1095 = vadd.f32 0.0, %v1094
      %1096 = vmatmul.f32.gmra.mxu0 %v307
      %v1097 = vpop.f32.mrf.mxu0
      %v1098 = vadd.f32 0.0, %v1097
      %1099 = vmatmul.f32.gmra.mxu0 %v310
      %v1100 = vpop.f32.mrf.mxu0
      %v1101 = vadd.f32 0.0, %v1100
      %1102 = vmatmul.f32.gmra.mxu0 %v313
      %v1103 = vpop.f32.mrf.mxu0
      %v1104 = vadd.f32 0.0, %v1103
      %1105 = vmatmul.f32.gmra.mxu0 %v316
      %v1106 = vpop.f32.mrf.mxu0
      %v1107 = vadd.f32 0.0, %v1106
      %1108 = vmatmul.f32.gmra.mxu0 %v319
      %v1109 = vpop.f32.mrf.mxu0
      %v1110 = vadd.f32 0.0, %v1109
      %1111 = vmatmul.f32.gmra.mxu0 %v322
      %v1112 = vpop.f32.mrf.mxu0
      %v1113 = vadd.f32 0.0, %v1112
      %1114 = vmatmul.f32.gmra.mxu0 %v325
      %v1115 = vpop.f32.mrf.mxu0
      %v1116 = vadd.f32 0.0, %v1115
      %1117 = vmatmul.f32.gmra.mxu0 %v328
      %v1118 = vpop.f32.mrf.mxu0
      %v1119 = vadd.f32 0.0, %v1118
      %1120 = vmatmul.f32.gmra.mxu0 %v331
      %v1121 = vpop.f32.mrf.mxu0
      %v1122 = vadd.f32 0.0, %v1121
      %1123 = vdwg.mxu0
      %1124 = vmatpush.msra.mxu0 0.0
      %1125 = vmatpush.msra.mxu0 0.0
      %1126 = vmatpush.msra.mxu0 0.0
      %1127 = vmatpush.msra.mxu0 0.0
      %1128 = vmatpush.msra.mxu0 0.0
      %1129 = vmatpush.msra.mxu0 0.0
      %1130 = vmatpush.msra.mxu0 0.0
      %1131 = vmatpush.msra.mxu0 0.0
      %1132 = vmatpush.msra.mxu0 0.0
      %1133 = vmatpush.msra.mxu0 0.0
      %1134 = vmatpush.msra.mxu0 0.0
      %1135 = vmatpush.msra.mxu0 0.0
      %1136 = vmatpush.msra.mxu0 0.0
      %1137 = vmatpush.msra.mxu0 0.0
      %1138 = vmatpush.msra.mxu0 %v213
      %1139 = vmatpush.msra.mxu0 %v183
      %1140 = vmatmul.f32.gmra.mxu0 %v238
      %v1141 = vpop.f32.mrf.mxu0
      %v1142 = vadd.f32 0.0, %v1141
      %1143 = vmatmul.f32.gmra.mxu0 %v241
      %v1144 = vpop.f32.mrf.mxu0
      %v1145 = vadd.f32 0.0, %v1144
      %1146 = vmatmul.f32.gmra.mxu0 %v244
      %v1147 = vpop.f32.mrf.mxu0
      %v1148 = vadd.f32 0.0, %v1147
      %1149 = vmatmul.f32.gmra.mxu0 %v247
      %v1150 = vpop.f32.mrf.mxu0
      %v1151 = vadd.f32 0.0, %v1150
      %1152 = vmatmul.f32.gmra.mxu0 %v250
      %v1153 = vpop.f32.mrf.mxu0
      %v1154 = vadd.f32 0.0, %v1153
      %1155 = vmatmul.f32.gmra.mxu0 %v253
      %v1156 = vpop.f32.mrf.mxu0
      %v1157 = vadd.f32 0.0, %v1156
      %1158 = vmatmul.f32.gmra.mxu0 %v256
      %v1159 = vpop.f32.mrf.mxu0
      %v1160 = vadd.f32 0.0, %v1159
      %1161 = vmatmul.f32.gmra.mxu0 %v259
      %v1162 = vpop.f32.mrf.mxu0
      %v1163 = vadd.f32 0.0, %v1162
      %1164 = vmatmul.f32.gmra.mxu0 %v262
      %v1165 = vpop.f32.mrf.mxu0
      %v1166 = vadd.f32 0.0, %v1165
      %1167 = vmatmul.f32.gmra.mxu0 %v265
      %v1168 = vpop.f32.mrf.mxu0
      %v1169 = vadd.f32 0.0, %v1168
      %1170 = vmatmul.f32.gmra.mxu0 %v268
      %v1171 = vpop.f32.mrf.mxu0
      %v1172 = vadd.f32 0.0, %v1171
      %1173 = vmatmul.f32.gmra.mxu0 %v271
      %v1174 = vpop.f32.mrf.mxu0
      %v1175 = vadd.f32 0.0, %v1174
      %1176 = vmatmul.f32.gmra.mxu0 %v274
      %v1177 = vpop.f32.mrf.mxu0
      %v1178 = vadd.f32 0.0, %v1177
      %1179 = vmatmul.f32.gmra.mxu0 %v277
      %v1180 = vpop.f32.mrf.mxu0
      %v1181 = vadd.f32 0.0, %v1180
      %1182 = vmatmul.f32.gmra.mxu0 %v280
      %v1183 = vpop.f32.mrf.mxu0
      %v1184 = vadd.f32 0.0, %v1183
      %1185 = vmatmul.f32.gmra.mxu0 %v283
      %v1186 = vpop.f32.mrf.mxu0
      %v1187 = vadd.f32 0.0, %v1186
      %1188 = vmatmul.f32.gmra.mxu0 %v286
      %v1189 = vpop.f32.mrf.mxu0
      %v1190 = vadd.f32 0.0, %v1189
      %1191 = vmatmul.f32.gmra.mxu0 %v289
      %v1192 = vpop.f32.mrf.mxu0
      %v1193 = vadd.f32 0.0, %v1192
      %1194 = vmatmul.f32.gmra.mxu0 %v292
      %v1195 = vpop.f32.mrf.mxu0
      %v1196 = vadd.f32 0.0, %v1195
      %1197 = vmatmul.f32.gmra.mxu0 %v295
      %v1198 = vpop.f32.mrf.mxu0
      %v1199 = vadd.f32 0.0, %v1198
      %1200 = vmatmul.f32.gmra.mxu0 %v298
      %v1201 = vpop.f32.mrf.mxu0
      %v1202 = vadd.f32 0.0, %v1201
      %1203 = vmatmul.f32.gmra.mxu0 %v301
      %v1204 = vpop.f32.mrf.mxu0
      %v1205 = vadd.f32 0.0, %v1204
      %1206 = vmatmul.f32.gmra.mxu0 %v304
      %v1207 = vpop.f32.mrf.mxu0
      %v1208 = vadd.f32 0.0, %v1207
      %1209 = vmatmul.f32.gmra.mxu0 %v307
      %v1210 = vpop.f32.mrf.mxu0
      %v1211 = vadd.f32 0.0, %v1210
      %1212 = vmatmul.f32.gmra.mxu0 %v310
      %v1213 = vpop.f32.mrf.mxu0
      %v1214 = vadd.f32 0.0, %v1213
      %1215 = vmatmul.f32.gmra.mxu0 %v313
      %v1216 = vpop.f32.mrf.mxu0
      %v1217 = vadd.f32 0.0, %v1216
      %1218 = vmatmul.f32.gmra.mxu0 %v316
      %v1219 = vpop.f32.mrf.mxu0
      %v1220 = vadd.f32 0.0, %v1219
      %1221 = vmatmul.f32.gmra.mxu0 %v319
      %v1222 = vpop.f32.mrf.mxu0
      %v1223 = vadd.f32 0.0, %v1222
      %1224 = vmatmul.f32.gmra.mxu0 %v322
      %v1225 = vpop.f32.mrf.mxu0
      %v1226 = vadd.f32 0.0, %v1225
      %1227 = vmatmul.f32.gmra.mxu0 %v325
      %v1228 = vpop.f32.mrf.mxu0
      %v1229 = vadd.f32 0.0, %v1228
      %1230 = vmatmul.f32.gmra.mxu0 %v328
      %v1231 = vpop.f32.mrf.mxu0
      %v1232 = vadd.f32 0.0, %v1231
      %1233 = vmatmul.f32.gmra.mxu0 %v331
      %v1234 = vpop.f32.mrf.mxu0
      %v1235 = vadd.f32 0.0, %v1234
      %1236 = vdwg.mxu0
      %1237 = vmatpush.msra.mxu0 0.0
      %1238 = vmatpush.msra.mxu0 0.0
      %1239 = vmatpush.msra.mxu0 0.0
      %1240 = vmatpush.msra.mxu0 0.0
      %1241 = vmatpush.msra.mxu0 0.0
      %1242 = vmatpush.msra.mxu0 0.0
      %1243 = vmatpush.msra.mxu0 0.0
      %1244 = vmatpush.msra.mxu0 0.0
      %1245 = vmatpush.msra.mxu0 0.0
      %1246 = vmatpush.msra.mxu0 0.0
      %1247 = vmatpush.msra.mxu0 0.0
      %1248 = vmatpush.msra.mxu0 0.0
      %1249 = vmatpush.msra.mxu0 0.0
      %1250 = vmatpush.msra.mxu0 0.0
      %1251 = vmatpush.msra.mxu0 %v214
      %1252 = vmatpush.msra.mxu0 %v184
      %1253 = vmatmul.f32.gmra.mxu0 %v238
      %v1254 = vpop.f32.mrf.mxu0
      %v1255 = vadd.f32 0.0, %v1254
      %1256 = vmatmul.f32.gmra.mxu0 %v241
      %v1257 = vpop.f32.mrf.mxu0
      %v1258 = vadd.f32 0.0, %v1257
      %1259 = vmatmul.f32.gmra.mxu0 %v244
      %v1260 = vpop.f32.mrf.mxu0
      %v1261 = vadd.f32 0.0, %v1260
      %1262 = vmatmul.f32.gmra.mxu0 %v247
      %v1263 = vpop.f32.mrf.mxu0
      %v1264 = vadd.f32 0.0, %v1263
      %1265 = vmatmul.f32.gmra.mxu0 %v250
      %v1266 = vpop.f32.mrf.mxu0
      %v1267 = vadd.f32 0.0, %v1266
      %1268 = vmatmul.f32.gmra.mxu0 %v253
      %v1269 = vpop.f32.mrf.mxu0
      %v1270 = vadd.f32 0.0, %v1269
      %1271 = vmatmul.f32.gmra.mxu0 %v256
      %v1272 = vpop.f32.mrf.mxu0
      %v1273 = vadd.f32 0.0, %v1272
      %1274 = vmatmul.f32.gmra.mxu0 %v259
      %v1275 = vpop.f32.mrf.mxu0
      %v1276 = vadd.f32 0.0, %v1275
      %1277 = vmatmul.f32.gmra.mxu0 %v262
      %v1278 = vpop.f32.mrf.mxu0
      %v1279 = vadd.f32 0.0, %v1278
      %1280 = vmatmul.f32.gmra.mxu0 %v265
      %v1281 = vpop.f32.mrf.mxu0
      %v1282 = vadd.f32 0.0, %v1281
      %1283 = vmatmul.f32.gmra.mxu0 %v268
      %v1284 = vpop.f32.mrf.mxu0
      %v1285 = vadd.f32 0.0, %v1284
      %1286 = vmatmul.f32.gmra.mxu0 %v271
      %v1287 = vpop.f32.mrf.mxu0
      %v1288 = vadd.f32 0.0, %v1287
      %1289 = vmatmul.f32.gmra.mxu0 %v274
      %v1290 = vpop.f32.mrf.mxu0
      %v1291 = vadd.f32 0.0, %v1290
      %1292 = vmatmul.f32.gmra.mxu0 %v277
      %v1293 = vpop.f32.mrf.mxu0
      %v1294 = vadd.f32 0.0, %v1293
      %1295 = vmatmul.f32.gmra.mxu0 %v280
      %v1296 = vpop.f32.mrf.mxu0
      %v1297 = vadd.f32 0.0, %v1296
      %1298 = vmatmul.f32.gmra.mxu0 %v283
      %v1299 = vpop.f32.mrf.mxu0
      %v1300 = vadd.f32 0.0, %v1299
      %1301 = vmatmul.f32.gmra.mxu0 %v286
      %v1302 = vpop.f32.mrf.mxu0
      %v1303 = vadd.f32 0.0, %v1302
      %1304 = vmatmul.f32.gmra.mxu0 %v289
      %v1305 = vpop.f32.mrf.mxu0
      %v1306 = vadd.f32 0.0, %v1305
      %1307 = vmatmul.f32.gmra.mxu0 %v292
      %v1308 = vpop.f32.mrf.mxu0
      %v1309 = vadd.f32 0.0, %v1308
      %1310 = vmatmul.f32.gmra.mxu0 %v295
      %v1311 = vpop.f32.mrf.mxu0
      %v1312 = vadd.f32 0.0, %v1311
      %1313 = vmatmul.f32.gmra.mxu0 %v298
      %v1314 = vpop.f32.mrf.mxu0
      %v1315 = vadd.f32 0.0, %v1314
      %1316 = vmatmul.f32.gmra.mxu0 %v301
      %v1317 = vpop.f32.mrf.mxu0
      %v1318 = vadd.f32 0.0, %v1317
      %1319 = vmatmul.f32.gmra.mxu0 %v304
      %v1320 = vpop.f32.mrf.mxu0
      %v1321 = vadd.f32 0.0, %v1320
      %1322 = vmatmul.f32.gmra.mxu0 %v307
      %v1323 = vpop.f32.mrf.mxu0
      %v1324 = vadd.f32 0.0, %v1323
      %1325 = vmatmul.f32.gmra.mxu0 %v310
      %v1326 = vpop.f32.mrf.mxu0
      %v1327 = vadd.f32 0.0, %v1326
      %1328 = vmatmul.f32.gmra.mxu0 %v313
      %v1329 = vpop.f32.mrf.mxu0
      %v1330 = vadd.f32 0.0, %v1329
      %1331 = vmatmul.f32.gmra.mxu0 %v316
      %v1332 = vpop.f32.mrf.mxu0
      %v1333 = vadd.f32 0.0, %v1332
      %1334 = vmatmul.f32.gmra.mxu0 %v319
      %v1335 = vpop.f32.mrf.mxu0
      %v1336 = vadd.f32 0.0, %v1335
      %1337 = vmatmul.f32.gmra.mxu0 %v322
      %v1338 = vpop.f32.mrf.mxu0
      %v1339 = vadd.f32 0.0, %v1338
      %1340 = vmatmul.f32.gmra.mxu0 %v325
      %v1341 = vpop.f32.mrf.mxu0
      %v1342 = vadd.f32 0.0, %v1341
      %1343 = vmatmul.f32.gmra.mxu0 %v328
      %v1344 = vpop.f32.mrf.mxu0
      %v1345 = vadd.f32 0.0, %v1344
      %1346 = vmatmul.f32.gmra.mxu0 %v331
      %v1347 = vpop.f32.mrf.mxu0
      %v1348 = vadd.f32 0.0, %v1347
      %1349 = vdwg.mxu0
      %1350 = vmatpush.msra.mxu0 0.0
      %1351 = vmatpush.msra.mxu0 0.0
      %1352 = vmatpush.msra.mxu0 0.0
      %1353 = vmatpush.msra.mxu0 0.0
      %1354 = vmatpush.msra.mxu0 0.0
      %1355 = vmatpush.msra.mxu0 0.0
      %1356 = vmatpush.msra.mxu0 0.0
      %1357 = vmatpush.msra.mxu0 0.0
      %1358 = vmatpush.msra.mxu0 0.0
      %1359 = vmatpush.msra.mxu0 0.0
      %1360 = vmatpush.msra.mxu0 0.0
      %1361 = vmatpush.msra.mxu0 0.0
      %1362 = vmatpush.msra.mxu0 0.0
      %1363 = vmatpush.msra.mxu0 0.0
      %1364 = vmatpush.msra.mxu0 %v215
      %1365 = vmatpush.msra.mxu0 %v185
      %1366 = vmatmul.f32.gmra.mxu0 %v238
      %v1367 = vpop.f32.mrf.mxu0
      %v1368 = vadd.f32 0.0, %v1367
      %1369 = vmatmul.f32.gmra.mxu0 %v241
      %v1370 = vpop.f32.mrf.mxu0
      %v1371 = vadd.f32 0.0, %v1370
      %1372 = vmatmul.f32.gmra.mxu0 %v244
      %v1373 = vpop.f32.mrf.mxu0
      %v1374 = vadd.f32 0.0, %v1373
      %1375 = vmatmul.f32.gmra.mxu0 %v247
      %v1376 = vpop.f32.mrf.mxu0
      %v1377 = vadd.f32 0.0, %v1376
      %1378 = vmatmul.f32.gmra.mxu0 %v250
      %v1379 = vpop.f32.mrf.mxu0
      %v1380 = vadd.f32 0.0, %v1379
      %1381 = vmatmul.f32.gmra.mxu0 %v253
      %v1382 = vpop.f32.mrf.mxu0
      %v1383 = vadd.f32 0.0, %v1382
      %1384 = vmatmul.f32.gmra.mxu0 %v256
      %v1385 = vpop.f32.mrf.mxu0
      %v1386 = vadd.f32 0.0, %v1385
      %1387 = vmatmul.f32.gmra.mxu0 %v259
      %v1388 = vpop.f32.mrf.mxu0
      %v1389 = vadd.f32 0.0, %v1388
      %1390 = vmatmul.f32.gmra.mxu0 %v262
      %v1391 = vpop.f32.mrf.mxu0
      %v1392 = vadd.f32 0.0, %v1391
      %1393 = vmatmul.f32.gmra.mxu0 %v265
      %v1394 = vpop.f32.mrf.mxu0
      %v1395 = vadd.f32 0.0, %v1394
      %1396 = vmatmul.f32.gmra.mxu0 %v268
      %v1397 = vpop.f32.mrf.mxu0
      %v1398 = vadd.f32 0.0, %v1397
      %1399 = vmatmul.f32.gmra.mxu0 %v271
      %v1400 = vpop.f32.mrf.mxu0
      %v1401 = vadd.f32 0.0, %v1400
      %1402 = vmatmul.f32.gmra.mxu0 %v274
      %v1403 = vpop.f32.mrf.mxu0
      %v1404 = vadd.f32 0.0, %v1403
      %1405 = vmatmul.f32.gmra.mxu0 %v277
      %v1406 = vpop.f32.mrf.mxu0
      %v1407 = vadd.f32 0.0, %v1406
      %1408 = vmatmul.f32.gmra.mxu0 %v280
      %v1409 = vpop.f32.mrf.mxu0
      %v1410 = vadd.f32 0.0, %v1409
      %1411 = vmatmul.f32.gmra.mxu0 %v283
      %v1412 = vpop.f32.mrf.mxu0
      %v1413 = vadd.f32 0.0, %v1412
      %1414 = vmatmul.f32.gmra.mxu0 %v286
      %v1415 = vpop.f32.mrf.mxu0
      %v1416 = vadd.f32 0.0, %v1415
      %1417 = vmatmul.f32.gmra.mxu0 %v289
      %v1418 = vpop.f32.mrf.mxu0
      %v1419 = vadd.f32 0.0, %v1418
      %1420 = vmatmul.f32.gmra.mxu0 %v292
      %v1421 = vpop.f32.mrf.mxu0
      %v1422 = vadd.f32 0.0, %v1421
      %1423 = vmatmul.f32.gmra.mxu0 %v295
      %v1424 = vpop.f32.mrf.mxu0
      %v1425 = vadd.f32 0.0, %v1424
      %1426 = vmatmul.f32.gmra.mxu0 %v298
      %v1427 = vpop.f32.mrf.mxu0
      %v1428 = vadd.f32 0.0, %v1427
      %1429 = vmatmul.f32.gmra.mxu0 %v301
      %v1430 = vpop.f32.mrf.mxu0
      %v1431 = vadd.f32 0.0, %v1430
      %1432 = vmatmul.f32.gmra.mxu0 %v304
      %v1433 = vpop.f32.mrf.mxu0
      %v1434 = vadd.f32 0.0, %v1433
      %1435 = vmatmul.f32.gmra.mxu0 %v307
      %v1436 = vpop.f32.mrf.mxu0
      %v1437 = vadd.f32 0.0, %v1436
      %1438 = vmatmul.f32.gmra.mxu0 %v310
      %v1439 = vpop.f32.mrf.mxu0
      %v1440 = vadd.f32 0.0, %v1439
      %1441 = vmatmul.f32.gmra.mxu0 %v313
      %v1442 = vpop.f32.mrf.mxu0
      %v1443 = vadd.f32 0.0, %v1442
      %1444 = vmatmul.f32.gmra.mxu0 %v316
      %v1445 = vpop.f32.mrf.mxu0
      %v1446 = vadd.f32 0.0, %v1445
      %1447 = vmatmul.f32.gmra.mxu0 %v319
      %v1448 = vpop.f32.mrf.mxu0
      %v1449 = vadd.f32 0.0, %v1448
      %1450 = vmatmul.f32.gmra.mxu0 %v322
      %v1451 = vpop.f32.mrf.mxu0
      %v1452 = vadd.f32 0.0, %v1451
      %1453 = vmatmul.f32.gmra.mxu0 %v325
      %v1454 = vpop.f32.mrf.mxu0
      %v1455 = vadd.f32 0.0, %v1454
      %1456 = vmatmul.f32.gmra.mxu0 %v328
      %v1457 = vpop.f32.mrf.mxu0
      %v1458 = vadd.f32 0.0, %v1457
      %1459 = vmatmul.f32.gmra.mxu0 %v331
      %v1460 = vpop.f32.mrf.mxu0
      %v1461 = vadd.f32 0.0, %v1460
      %1462 = vdwg.mxu0
      %1463 = vmatpush.msra.mxu0 0.0
      %1464 = vmatpush.msra.mxu0 0.0
      %1465 = vmatpush.msra.mxu0 0.0
      %1466 = vmatpush.msra.mxu0 0.0
      %1467 = vmatpush.msra.mxu0 0.0
      %1468 = vmatpush.msra.mxu0 0.0
      %1469 = vmatpush.msra.mxu0 0.0
      %1470 = vmatpush.msra.mxu0 0.0
      %1471 = vmatpush.msra.mxu0 0.0
      %1472 = vmatpush.msra.mxu0 0.0
      %1473 = vmatpush.msra.mxu0 0.0
      %1474 = vmatpush.msra.mxu0 0.0
      %1475 = vmatpush.msra.mxu0 0.0
      %1476 = vmatpush.msra.mxu0 0.0
      %1477 = vmatpush.msra.mxu0 %v216
      %1478 = vmatpush.msra.mxu0 %v186
      %1479 = vmatmul.f32.gmra.mxu0 %v238
      %v1480 = vpop.f32.mrf.mxu0
      %v1481 = vadd.f32 0.0, %v1480
      %1482 = vmatmul.f32.gmra.mxu0 %v241
      %v1483 = vpop.f32.mrf.mxu0
      %v1484 = vadd.f32 0.0, %v1483
      %1485 = vmatmul.f32.gmra.mxu0 %v244
      %v1486 = vpop.f32.mrf.mxu0
      %v1487 = vadd.f32 0.0, %v1486
      %1488 = vmatmul.f32.gmra.mxu0 %v247
      %v1489 = vpop.f32.mrf.mxu0
      %v1490 = vadd.f32 0.0, %v1489
      %1491 = vmatmul.f32.gmra.mxu0 %v250
      %v1492 = vpop.f32.mrf.mxu0
      %v1493 = vadd.f32 0.0, %v1492
      %1494 = vmatmul.f32.gmra.mxu0 %v253
      %v1495 = vpop.f32.mrf.mxu0
      %v1496 = vadd.f32 0.0, %v1495
      %1497 = vmatmul.f32.gmra.mxu0 %v256
      %v1498 = vpop.f32.mrf.mxu0
      %v1499 = vadd.f32 0.0, %v1498
      %1500 = vmatmul.f32.gmra.mxu0 %v259
      %v1501 = vpop.f32.mrf.mxu0
      %v1502 = vadd.f32 0.0, %v1501
      %1503 = vmatmul.f32.gmra.mxu0 %v262
      %v1504 = vpop.f32.mrf.mxu0
      %v1505 = vadd.f32 0.0, %v1504
      %1506 = vmatmul.f32.gmra.mxu0 %v265
      %v1507 = vpop.f32.mrf.mxu0
      %v1508 = vadd.f32 0.0, %v1507
      %1509 = vmatmul.f32.gmra.mxu0 %v268
      %v1510 = vpop.f32.mrf.mxu0
      %v1511 = vadd.f32 0.0, %v1510
      %1512 = vmatmul.f32.gmra.mxu0 %v271
      %v1513 = vpop.f32.mrf.mxu0
      %v1514 = vadd.f32 0.0, %v1513
      %1515 = vmatmul.f32.gmra.mxu0 %v274
      %v1516 = vpop.f32.mrf.mxu0
      %v1517 = vadd.f32 0.0, %v1516
      %1518 = vmatmul.f32.gmra.mxu0 %v277
      %v1519 = vpop.f32.mrf.mxu0
      %v1520 = vadd.f32 0.0, %v1519
      %1521 = vmatmul.f32.gmra.mxu0 %v280
      %v1522 = vpop.f32.mrf.mxu0
      %v1523 = vadd.f32 0.0, %v1522
      %1524 = vmatmul.f32.gmra.mxu0 %v283
      %v1525 = vpop.f32.mrf.mxu0
      %v1526 = vadd.f32 0.0, %v1525
      %1527 = vmatmul.f32.gmra.mxu0 %v286
      %v1528 = vpop.f32.mrf.mxu0
      %v1529 = vadd.f32 0.0, %v1528
      %1530 = vmatmul.f32.gmra.mxu0 %v289
      %v1531 = vpop.f32.mrf.mxu0
      %v1532 = vadd.f32 0.0, %v1531
      %1533 = vmatmul.f32.gmra.mxu0 %v292
      %v1534 = vpop.f32.mrf.mxu0
      %v1535 = vadd.f32 0.0, %v1534
      %1536 = vmatmul.f32.gmra.mxu0 %v295
      %v1537 = vpop.f32.mrf.mxu0
      %v1538 = vadd.f32 0.0, %v1537
      %1539 = vmatmul.f32.gmra.mxu0 %v298
      %v1540 = vpop.f32.mrf.mxu0
      %v1541 = vadd.f32 0.0, %v1540
      %1542 = vmatmul.f32.gmra.mxu0 %v301
      %v1543 = vpop.f32.mrf.mxu0
      %v1544 = vadd.f32 0.0, %v1543
      %1545 = vmatmul.f32.gmra.mxu0 %v304
      %v1546 = vpop.f32.mrf.mxu0
      %v1547 = vadd.f32 0.0, %v1546
      %1548 = vmatmul.f32.gmra.mxu0 %v307
      %v1549 = vpop.f32.mrf.mxu0
      %v1550 = vadd.f32 0.0, %v1549
      %1551 = vmatmul.f32.gmra.mxu0 %v310
      %v1552 = vpop.f32.mrf.mxu0
      %v1553 = vadd.f32 0.0, %v1552
      %1554 = vmatmul.f32.gmra.mxu0 %v313
      %v1555 = vpop.f32.mrf.mxu0
      %v1556 = vadd.f32 0.0, %v1555
      %1557 = vmatmul.f32.gmra.mxu0 %v316
      %v1558 = vpop.f32.mrf.mxu0
      %v1559 = vadd.f32 0.0, %v1558
      %1560 = vmatmul.f32.gmra.mxu0 %v319
      %v1561 = vpop.f32.mrf.mxu0
      %v1562 = vadd.f32 0.0, %v1561
      %1563 = vmatmul.f32.gmra.mxu0 %v322
      %v1564 = vpop.f32.mrf.mxu0
      %v1565 = vadd.f32 0.0, %v1564
      %1566 = vmatmul.f32.gmra.mxu0 %v325
      %v1567 = vpop.f32.mrf.mxu0
      %v1568 = vadd.f32 0.0, %v1567
      %1569 = vmatmul.f32.gmra.mxu0 %v328
      %v1570 = vpop.f32.mrf.mxu0
      %v1571 = vadd.f32 0.0, %v1570
      %1572 = vmatmul.f32.gmra.mxu0 %v331
      %v1573 = vpop.f32.mrf.mxu0
      %v1574 = vadd.f32 0.0, %v1573
      %1575 = vdwg.mxu0
      %1576 = vmatpush.msra.mxu0 0.0
      %1577 = vmatpush.msra.mxu0 0.0
      %1578 = vmatpush.msra.mxu0 0.0
      %1579 = vmatpush.msra.mxu0 0.0
      %1580 = vmatpush.msra.mxu0 0.0
      %1581 = vmatpush.msra.mxu0 0.0
      %1582 = vmatpush.msra.mxu0 0.0
      %1583 = vmatpush.msra.mxu0 0.0
      %1584 = vmatpush.msra.mxu0 0.0
      %1585 = vmatpush.msra.mxu0 0.0
      %1586 = vmatpush.msra.mxu0 0.0
      %1587 = vmatpush.msra.mxu0 0.0
      %1588 = vmatpush.msra.mxu0 0.0
      %1589 = vmatpush.msra.mxu0 0.0
      %1590 = vmatpush.msra.mxu0 %v217
      %1591 = vmatpush.msra.mxu0 %v187
      %1592 = vmatmul.f32.gmra.mxu0 %v238
      %v1593 = vpop.f32.mrf.mxu0
      %v1594 = vadd.f32 0.0, %v1593
      %1595 = vmatmul.f32.gmra.mxu0 %v241
      %v1596 = vpop.f32.mrf.mxu0
      %v1597 = vadd.f32 0.0, %v1596
      %1598 = vmatmul.f32.gmra.mxu0 %v244
      %v1599 = vpop.f32.mrf.mxu0
      %v1600 = vadd.f32 0.0, %v1599
      %1601 = vmatmul.f32.gmra.mxu0 %v247
      %v1602 = vpop.f32.mrf.mxu0
      %v1603 = vadd.f32 0.0, %v1602
      %1604 = vmatmul.f32.gmra.mxu0 %v250
      %v1605 = vpop.f32.mrf.mxu0
      %v1606 = vadd.f32 0.0, %v1605
      %1607 = vmatmul.f32.gmra.mxu0 %v253
      %v1608 = vpop.f32.mrf.mxu0
      %v1609 = vadd.f32 0.0, %v1608
      %1610 = vmatmul.f32.gmra.mxu0 %v256
      %v1611 = vpop.f32.mrf.mxu0
      %v1612 = vadd.f32 0.0, %v1611
      %1613 = vmatmul.f32.gmra.mxu0 %v259
      %v1614 = vpop.f32.mrf.mxu0
      %v1615 = vadd.f32 0.0, %v1614
      %1616 = vmatmul.f32.gmra.mxu0 %v262
      %v1617 = vpop.f32.mrf.mxu0
      %v1618 = vadd.f32 0.0, %v1617
      %1619 = vmatmul.f32.gmra.mxu0 %v265
      %v1620 = vpop.f32.mrf.mxu0
      %v1621 = vadd.f32 0.0, %v1620
      %1622 = vmatmul.f32.gmra.mxu0 %v268
      %v1623 = vpop.f32.mrf.mxu0
      %v1624 = vadd.f32 0.0, %v1623
      %1625 = vmatmul.f32.gmra.mxu0 %v271
      %v1626 = vpop.f32.mrf.mxu0
      %v1627 = vadd.f32 0.0, %v1626
      %1628 = vmatmul.f32.gmra.mxu0 %v274
      %v1629 = vpop.f32.mrf.mxu0
      %v1630 = vadd.f32 0.0, %v1629
      %1631 = vmatmul.f32.gmra.mxu0 %v277
      %v1632 = vpop.f32.mrf.mxu0
      %v1633 = vadd.f32 0.0, %v1632
      %1634 = vmatmul.f32.gmra.mxu0 %v280
      %v1635 = vpop.f32.mrf.mxu0
      %v1636 = vadd.f32 0.0, %v1635
      %1637 = vmatmul.f32.gmra.mxu0 %v283
      %v1638 = vpop.f32.mrf.mxu0
      %v1639 = vadd.f32 0.0, %v1638
      %1640 = vmatmul.f32.gmra.mxu0 %v286
      %v1641 = vpop.f32.mrf.mxu0
      %v1642 = vadd.f32 0.0, %v1641
      %1643 = vmatmul.f32.gmra.mxu0 %v289
      %v1644 = vpop.f32.mrf.mxu0
      %v1645 = vadd.f32 0.0, %v1644
      %1646 = vmatmul.f32.gmra.mxu0 %v292
      %v1647 = vpop.f32.mrf.mxu0
      %v1648 = vadd.f32 0.0, %v1647
      %1649 = vmatmul.f32.gmra.mxu0 %v295
      %v1650 = vpop.f32.mrf.mxu0
      %v1651 = vadd.f32 0.0, %v1650
      %1652 = vmatmul.f32.gmra.mxu0 %v298
      %v1653 = vpop.f32.mrf.mxu0
      %v1654 = vadd.f32 0.0, %v1653
      %1655 = vmatmul.f32.gmra.mxu0 %v301
      %v1656 = vpop.f32.mrf.mxu0
      %v1657 = vadd.f32 0.0, %v1656
      %1658 = vmatmul.f32.gmra.mxu0 %v304
      %v1659 = vpop.f32.mrf.mxu0
      %v1660 = vadd.f32 0.0, %v1659
      %1661 = vmatmul.f32.gmra.mxu0 %v307
      %v1662 = vpop.f32.mrf.mxu0
      %v1663 = vadd.f32 0.0, %v1662
      %1664 = vmatmul.f32.gmra.mxu0 %v310
      %v1665 = vpop.f32.mrf.mxu0
      %v1666 = vadd.f32 0.0, %v1665
      %1667 = vmatmul.f32.gmra.mxu0 %v313
      %v1668 = vpop.f32.mrf.mxu0
      %v1669 = vadd.f32 0.0, %v1668
      %1670 = vmatmul.f32.gmra.mxu0 %v316
      %v1671 = vpop.f32.mrf.mxu0
      %v1672 = vadd.f32 0.0, %v1671
      %1673 = vmatmul.f32.gmra.mxu0 %v319
      %v1674 = vpop.f32.mrf.mxu0
      %v1675 = vadd.f32 0.0, %v1674
      %1676 = vmatmul.f32.gmra.mxu0 %v322
      %v1677 = vpop.f32.mrf.mxu0
      %v1678 = vadd.f32 0.0, %v1677
      %1679 = vmatmul.f32.gmra.mxu0 %v325
      %v1680 = vpop.f32.mrf.mxu0
      %v1681 = vadd.f32 0.0, %v1680
      %1682 = vmatmul.f32.gmra.mxu0 %v328
      %v1683 = vpop.f32.mrf.mxu0
      %v1684 = vadd.f32 0.0, %v1683
      %1685 = vmatmul.f32.gmra.mxu0 %v331
      %v1686 = vpop.f32.mrf.mxu0
      %v1687 = vadd.f32 0.0, %v1686
      %1688 = vdwg.mxu0
      %1689 = vmatpush.msra.mxu0 0.0
      %1690 = vmatpush.msra.mxu0 0.0
      %1691 = vmatpush.msra.mxu0 0.0
      %1692 = vmatpush.msra.mxu0 0.0
      %1693 = vmatpush.msra.mxu0 0.0
      %1694 = vmatpush.msra.mxu0 0.0
      %1695 = vmatpush.msra.mxu0 0.0
      %1696 = vmatpush.msra.mxu0 0.0
      %1697 = vmatpush.msra.mxu0 0.0
      %1698 = vmatpush.msra.mxu0 0.0
      %1699 = vmatpush.msra.mxu0 0.0
      %1700 = vmatpush.msra.mxu0 0.0
      %1701 = vmatpush.msra.mxu0 0.0
      %1702 = vmatpush.msra.mxu0 0.0
      %1703 = vmatpush.msra.mxu0 %v218
      %1704 = vmatpush.msra.mxu0 %v188
      %1705 = vmatmul.f32.gmra.mxu0 %v238
      %v1706 = vpop.f32.mrf.mxu0
      %v1707 = vadd.f32 0.0, %v1706
      %1708 = vmatmul.f32.gmra.mxu0 %v241
      %v1709 = vpop.f32.mrf.mxu0
      %v1710 = vadd.f32 0.0, %v1709
      %1711 = vmatmul.f32.gmra.mxu0 %v244
      %v1712 = vpop.f32.mrf.mxu0
      %v1713 = vadd.f32 0.0, %v1712
      %1714 = vmatmul.f32.gmra.mxu0 %v247
      %v1715 = vpop.f32.mrf.mxu0
      %v1716 = vadd.f32 0.0, %v1715
      %1717 = vmatmul.f32.gmra.mxu0 %v250
      %v1718 = vpop.f32.mrf.mxu0
      %v1719 = vadd.f32 0.0, %v1718
      %1720 = vmatmul.f32.gmra.mxu0 %v253
      %v1721 = vpop.f32.mrf.mxu0
      %v1722 = vadd.f32 0.0, %v1721
      %1723 = vmatmul.f32.gmra.mxu0 %v256
      %v1724 = vpop.f32.mrf.mxu0
      %v1725 = vadd.f32 0.0, %v1724
      %1726 = vmatmul.f32.gmra.mxu0 %v259
      %v1727 = vpop.f32.mrf.mxu0
      %v1728 = vadd.f32 0.0, %v1727
      %1729 = vmatmul.f32.gmra.mxu0 %v262
      %v1730 = vpop.f32.mrf.mxu0
      %v1731 = vadd.f32 0.0, %v1730
      %1732 = vmatmul.f32.gmra.mxu0 %v265
      %v1733 = vpop.f32.mrf.mxu0
      %v1734 = vadd.f32 0.0, %v1733
      %1735 = vmatmul.f32.gmra.mxu0 %v268
      %v1736 = vpop.f32.mrf.mxu0
      %v1737 = vadd.f32 0.0, %v1736
      %1738 = vmatmul.f32.gmra.mxu0 %v271
      %v1739 = vpop.f32.mrf.mxu0
      %v1740 = vadd.f32 0.0, %v1739
      %1741 = vmatmul.f32.gmra.mxu0 %v274
      %v1742 = vpop.f32.mrf.mxu0
      %v1743 = vadd.f32 0.0, %v1742
      %1744 = vmatmul.f32.gmra.mxu0 %v277
      %v1745 = vpop.f32.mrf.mxu0
      %v1746 = vadd.f32 0.0, %v1745
      %1747 = vmatmul.f32.gmra.mxu0 %v280
      %v1748 = vpop.f32.mrf.mxu0
      %v1749 = vadd.f32 0.0, %v1748
      %1750 = vmatmul.f32.gmra.mxu0 %v283
      %v1751 = vpop.f32.mrf.mxu0
      %v1752 = vadd.f32 0.0, %v1751
      %1753 = vmatmul.f32.gmra.mxu0 %v286
      %v1754 = vpop.f32.mrf.mxu0
      %v1755 = vadd.f32 0.0, %v1754
      %1756 = vmatmul.f32.gmra.mxu0 %v289
      %v1757 = vpop.f32.mrf.mxu0
      %v1758 = vadd.f32 0.0, %v1757
      %1759 = vmatmul.f32.gmra.mxu0 %v292
      %v1760 = vpop.f32.mrf.mxu0
      %v1761 = vadd.f32 0.0, %v1760
      %1762 = vmatmul.f32.gmra.mxu0 %v295
      %v1763 = vpop.f32.mrf.mxu0
      %v1764 = vadd.f32 0.0, %v1763
      %1765 = vmatmul.f32.gmra.mxu0 %v298
      %v1766 = vpop.f32.mrf.mxu0
      %v1767 = vadd.f32 0.0, %v1766
      %1768 = vmatmul.f32.gmra.mxu0 %v301
      %v1769 = vpop.f32.mrf.mxu0
      %v1770 = vadd.f32 0.0, %v1769
      %1771 = vmatmul.f32.gmra.mxu0 %v304
      %v1772 = vpop.f32.mrf.mxu0
      %v1773 = vadd.f32 0.0, %v1772
      %1774 = vmatmul.f32.gmra.mxu0 %v307
      %v1775 = vpop.f32.mrf.mxu0
      %v1776 = vadd.f32 0.0, %v1775
      %1777 = vmatmul.f32.gmra.mxu0 %v310
      %v1778 = vpop.f32.mrf.mxu0
      %v1779 = vadd.f32 0.0, %v1778
      %1780 = vmatmul.f32.gmra.mxu0 %v313
      %v1781 = vpop.f32.mrf.mxu0
      %v1782 = vadd.f32 0.0, %v1781
      %1783 = vmatmul.f32.gmra.mxu0 %v316
      %v1784 = vpop.f32.mrf.mxu0
      %v1785 = vadd.f32 0.0, %v1784
      %1786 = vmatmul.f32.gmra.mxu0 %v319
      %v1787 = vpop.f32.mrf.mxu0
      %v1788 = vadd.f32 0.0, %v1787
      %1789 = vmatmul.f32.gmra.mxu0 %v322
      %v1790 = vpop.f32.mrf.mxu0
      %v1791 = vadd.f32 0.0, %v1790
      %1792 = vmatmul.f32.gmra.mxu0 %v325
      %v1793 = vpop.f32.mrf.mxu0
      %v1794 = vadd.f32 0.0, %v1793
      %1795 = vmatmul.f32.gmra.mxu0 %v328
      %v1796 = vpop.f32.mrf.mxu0
      %v1797 = vadd.f32 0.0, %v1796
      %1798 = vmatmul.f32.gmra.mxu0 %v331
      %v1799 = vpop.f32.mrf.mxu0
      %v1800 = vadd.f32 0.0, %v1799
      %1801 = vdwg.mxu0
      %1802 = vmatpush.msra.mxu0 0.0
      %1803 = vmatpush.msra.mxu0 0.0
      %1804 = vmatpush.msra.mxu0 0.0
      %1805 = vmatpush.msra.mxu0 0.0
      %1806 = vmatpush.msra.mxu0 0.0
      %1807 = vmatpush.msra.mxu0 0.0
      %1808 = vmatpush.msra.mxu0 0.0
      %1809 = vmatpush.msra.mxu0 0.0
      %1810 = vmatpush.msra.mxu0 0.0
      %1811 = vmatpush.msra.mxu0 0.0
      %1812 = vmatpush.msra.mxu0 0.0
      %1813 = vmatpush.msra.mxu0 0.0
      %1814 = vmatpush.msra.mxu0 0.0
      %1815 = vmatpush.msra.mxu0 0.0
      %1816 = vmatpush.msra.mxu0 %v219
      %1817 = vmatpush.msra.mxu0 %v189
      %1818 = vmatmul.f32.gmra.mxu0 %v238
      %v1819 = vpop.f32.mrf.mxu0
      %v1820 = vadd.f32 0.0, %v1819
      %1821 = vmatmul.f32.gmra.mxu0 %v241
      %v1822 = vpop.f32.mrf.mxu0
      %v1823 = vadd.f32 0.0, %v1822
      %1824 = vmatmul.f32.gmra.mxu0 %v244
      %v1825 = vpop.f32.mrf.mxu0
      %v1826 = vadd.f32 0.0, %v1825
      %1827 = vmatmul.f32.gmra.mxu0 %v247
      %v1828 = vpop.f32.mrf.mxu0
      %v1829 = vadd.f32 0.0, %v1828
      %1830 = vmatmul.f32.gmra.mxu0 %v250
      %v1831 = vpop.f32.mrf.mxu0
      %v1832 = vadd.f32 0.0, %v1831
      %1833 = vmatmul.f32.gmra.mxu0 %v253
      %v1834 = vpop.f32.mrf.mxu0
      %v1835 = vadd.f32 0.0, %v1834
      %1836 = vmatmul.f32.gmra.mxu0 %v256
      %v1837 = vpop.f32.mrf.mxu0
      %v1838 = vadd.f32 0.0, %v1837
      %1839 = vmatmul.f32.gmra.mxu0 %v259
      %v1840 = vpop.f32.mrf.mxu0
      %v1841 = vadd.f32 0.0, %v1840
      %1842 = vmatmul.f32.gmra.mxu0 %v262
      %v1843 = vpop.f32.mrf.mxu0
      %v1844 = vadd.f32 0.0, %v1843
      %1845 = vmatmul.f32.gmra.mxu0 %v265
      %v1846 = vpop.f32.mrf.mxu0
      %v1847 = vadd.f32 0.0, %v1846
      %1848 = vmatmul.f32.gmra.mxu0 %v268
      %v1849 = vpop.f32.mrf.mxu0
      %v1850 = vadd.f32 0.0, %v1849
      %1851 = vmatmul.f32.gmra.mxu0 %v271
      %v1852 = vpop.f32.mrf.mxu0
      %v1853 = vadd.f32 0.0, %v1852
      %1854 = vmatmul.f32.gmra.mxu0 %v274
      %v1855 = vpop.f32.mrf.mxu0
      %v1856 = vadd.f32 0.0, %v1855
      %1857 = vmatmul.f32.gmra.mxu0 %v277
      %v1858 = vpop.f32.mrf.mxu0
      %v1859 = vadd.f32 0.0, %v1858
      %1860 = vmatmul.f32.gmra.mxu0 %v280
      %v1861 = vpop.f32.mrf.mxu0
      %v1862 = vadd.f32 0.0, %v1861
      %1863 = vmatmul.f32.gmra.mxu0 %v283
      %v1864 = vpop.f32.mrf.mxu0
      %v1865 = vadd.f32 0.0, %v1864
      %1866 = vmatmul.f32.gmra.mxu0 %v286
      %v1867 = vpop.f32.mrf.mxu0
      %v1868 = vadd.f32 0.0, %v1867
      %1869 = vmatmul.f32.gmra.mxu0 %v289
      %v1870 = vpop.f32.mrf.mxu0
      %v1871 = vadd.f32 0.0, %v1870
      %1872 = vmatmul.f32.gmra.mxu0 %v292
      %v1873 = vpop.f32.mrf.mxu0
      %v1874 = vadd.f32 0.0, %v1873
      %1875 = vmatmul.f32.gmra.mxu0 %v295
      %v1876 = vpop.f32.mrf.mxu0
      %v1877 = vadd.f32 0.0, %v1876
      %1878 = vmatmul.f32.gmra.mxu0 %v298
      %v1879 = vpop.f32.mrf.mxu0
      %v1880 = vadd.f32 0.0, %v1879
      %1881 = vmatmul.f32.gmra.mxu0 %v301
      %v1882 = vpop.f32.mrf.mxu0
      %v1883 = vadd.f32 0.0, %v1882
      %1884 = vmatmul.f32.gmra.mxu0 %v304
      %v1885 = vpop.f32.mrf.mxu0
      %v1886 = vadd.f32 0.0, %v1885
      %1887 = vmatmul.f32.gmra.mxu0 %v307
      %v1888 = vpop.f32.mrf.mxu0
      %v1889 = vadd.f32 0.0, %v1888
      %1890 = vmatmul.f32.gmra.mxu0 %v310
      %v1891 = vpop.f32.mrf.mxu0
      %v1892 = vadd.f32 0.0, %v1891
      %1893 = vmatmul.f32.gmra.mxu0 %v313
      %v1894 = vpop.f32.mrf.mxu0
      %v1895 = vadd.f32 0.0, %v1894
      %1896 = vmatmul.f32.gmra.mxu0 %v316
      %v1897 = vpop.f32.mrf.mxu0
      %v1898 = vadd.f32 0.0, %v1897
      %1899 = vmatmul.f32.gmra.mxu0 %v319
      %v1900 = vpop.f32.mrf.mxu0
      %v1901 = vadd.f32 0.0, %v1900
      %1902 = vmatmul.f32.gmra.mxu0 %v322
      %v1903 = vpop.f32.mrf.mxu0
      %v1904 = vadd.f32 0.0, %v1903
      %1905 = vmatmul.f32.gmra.mxu0 %v325
      %v1906 = vpop.f32.mrf.mxu0
      %v1907 = vadd.f32 0.0, %v1906
      %1908 = vmatmul.f32.gmra.mxu0 %v328
      %v1909 = vpop.f32.mrf.mxu0
      %v1910 = vadd.f32 0.0, %v1909
      %1911 = vmatmul.f32.gmra.mxu0 %v331
      %v1912 = vpop.f32.mrf.mxu0
      %v1913 = vadd.f32 0.0, %v1912
      %1914 = vdwg.mxu0
      %1915 = vmatpush.msra.mxu0 0.0
      %1916 = vmatpush.msra.mxu0 0.0
      %1917 = vmatpush.msra.mxu0 0.0
      %1918 = vmatpush.msra.mxu0 0.0
      %1919 = vmatpush.msra.mxu0 0.0
      %1920 = vmatpush.msra.mxu0 0.0
      %1921 = vmatpush.msra.mxu0 0.0
      %1922 = vmatpush.msra.mxu0 0.0
      %1923 = vmatpush.msra.mxu0 0.0
      %1924 = vmatpush.msra.mxu0 0.0
      %1925 = vmatpush.msra.mxu0 0.0
      %1926 = vmatpush.msra.mxu0 0.0
      %1927 = vmatpush.msra.mxu0 0.0
      %1928 = vmatpush.msra.mxu0 0.0
      %1929 = vmatpush.msra.mxu0 %v220
      %1930 = vmatpush.msra.mxu0 %v190
      %1931 = vmatmul.f32.gmra.mxu0 %v238
      %v1932 = vpop.f32.mrf.mxu0
      %v1933 = vadd.f32 0.0, %v1932
      %1934 = vmatmul.f32.gmra.mxu0 %v241
      %v1935 = vpop.f32.mrf.mxu0
      %v1936 = vadd.f32 0.0, %v1935
      %1937 = vmatmul.f32.gmra.mxu0 %v244
      %v1938 = vpop.f32.mrf.mxu0
      %v1939 = vadd.f32 0.0, %v1938
      %1940 = vmatmul.f32.gmra.mxu0 %v247
      %v1941 = vpop.f32.mrf.mxu0
      %v1942 = vadd.f32 0.0, %v1941
      %1943 = vmatmul.f32.gmra.mxu0 %v250
      %v1944 = vpop.f32.mrf.mxu0
      %v1945 = vadd.f32 0.0, %v1944
      %1946 = vmatmul.f32.gmra.mxu0 %v253
      %v1947 = vpop.f32.mrf.mxu0
      %v1948 = vadd.f32 0.0, %v1947
      %1949 = vmatmul.f32.gmra.mxu0 %v256
      %v1950 = vpop.f32.mrf.mxu0
      %v1951 = vadd.f32 0.0, %v1950
      %1952 = vmatmul.f32.gmra.mxu0 %v259
      %v1953 = vpop.f32.mrf.mxu0
      %v1954 = vadd.f32 0.0, %v1953
      %1955 = vmatmul.f32.gmra.mxu0 %v262
      %v1956 = vpop.f32.mrf.mxu0
      %v1957 = vadd.f32 0.0, %v1956
      %1958 = vmatmul.f32.gmra.mxu0 %v265
      %v1959 = vpop.f32.mrf.mxu0
      %v1960 = vadd.f32 0.0, %v1959
      %1961 = vmatmul.f32.gmra.mxu0 %v268
      %v1962 = vpop.f32.mrf.mxu0
      %v1963 = vadd.f32 0.0, %v1962
      %1964 = vmatmul.f32.gmra.mxu0 %v271
      %v1965 = vpop.f32.mrf.mxu0
      %v1966 = vadd.f32 0.0, %v1965
      %1967 = vmatmul.f32.gmra.mxu0 %v274
      %v1968 = vpop.f32.mrf.mxu0
      %v1969 = vadd.f32 0.0, %v1968
      %1970 = vmatmul.f32.gmra.mxu0 %v277
      %v1971 = vpop.f32.mrf.mxu0
      %v1972 = vadd.f32 0.0, %v1971
      %1973 = vmatmul.f32.gmra.mxu0 %v280
      %v1974 = vpop.f32.mrf.mxu0
      %v1975 = vadd.f32 0.0, %v1974
      %1976 = vmatmul.f32.gmra.mxu0 %v283
      %v1977 = vpop.f32.mrf.mxu0
      %v1978 = vadd.f32 0.0, %v1977
      %1979 = vmatmul.f32.gmra.mxu0 %v286
      %v1980 = vpop.f32.mrf.mxu0
      %v1981 = vadd.f32 0.0, %v1980
      %1982 = vmatmul.f32.gmra.mxu0 %v289
      %v1983 = vpop.f32.mrf.mxu0
      %v1984 = vadd.f32 0.0, %v1983
      %1985 = vmatmul.f32.gmra.mxu0 %v292
      %v1986 = vpop.f32.mrf.mxu0
      %v1987 = vadd.f32 0.0, %v1986
      %1988 = vmatmul.f32.gmra.mxu0 %v295
      %v1989 = vpop.f32.mrf.mxu0
      %v1990 = vadd.f32 0.0, %v1989
      %1991 = vmatmul.f32.gmra.mxu0 %v298
      %v1992 = vpop.f32.mrf.mxu0
      %v1993 = vadd.f32 0.0, %v1992
      %1994 = vmatmul.f32.gmra.mxu0 %v301
      %v1995 = vpop.f32.mrf.mxu0
      %v1996 = vadd.f32 0.0, %v1995
      %1997 = vmatmul.f32.gmra.mxu0 %v304
      %v1998 = vpop.f32.mrf.mxu0
      %v1999 = vadd.f32 0.0, %v1998
      %2000 = vmatmul.f32.gmra.mxu0 %v307
      %v2001 = vpop.f32.mrf.mxu0
      %v2002 = vadd.f32 0.0, %v2001
      %2003 = vmatmul.f32.gmra.mxu0 %v310
      %v2004 = vpop.f32.mrf.mxu0
      %v2005 = vadd.f32 0.0, %v2004
      %2006 = vmatmul.f32.gmra.mxu0 %v313
      %v2007 = vpop.f32.mrf.mxu0
      %v2008 = vadd.f32 0.0, %v2007
      %2009 = vmatmul.f32.gmra.mxu0 %v316
      %v2010 = vpop.f32.mrf.mxu0
      %v2011 = vadd.f32 0.0, %v2010
      %2012 = vmatmul.f32.gmra.mxu0 %v319
      %v2013 = vpop.f32.mrf.mxu0
      %v2014 = vadd.f32 0.0, %v2013
      %2015 = vmatmul.f32.gmra.mxu0 %v322
      %v2016 = vpop.f32.mrf.mxu0
      %v2017 = vadd.f32 0.0, %v2016
      %2018 = vmatmul.f32.gmra.mxu0 %v325
      %v2019 = vpop.f32.mrf.mxu0
      %v2020 = vadd.f32 0.0, %v2019
      %2021 = vmatmul.f32.gmra.mxu0 %v328
      %v2022 = vpop.f32.mrf.mxu0
      %v2023 = vadd.f32 0.0, %v2022
      %2024 = vmatmul.f32.gmra.mxu0 %v331
      %v2025 = vpop.f32.mrf.mxu0
      %v2026 = vadd.f32 0.0, %v2025
      %2027 = vdwg.mxu0
      %2028 = vmatpush.msra.mxu0 0.0
      %2029 = vmatpush.msra.mxu0 0.0
      %2030 = vmatpush.msra.mxu0 0.0
      %2031 = vmatpush.msra.mxu0 0.0
      %2032 = vmatpush.msra.mxu0 0.0
      %2033 = vmatpush.msra.mxu0 0.0
      %2034 = vmatpush.msra.mxu0 0.0
      %2035 = vmatpush.msra.mxu0 0.0
      %2036 = vmatpush.msra.mxu0 0.0
      %2037 = vmatpush.msra.mxu0 0.0
      %2038 = vmatpush.msra.mxu0 0.0
      %2039 = vmatpush.msra.mxu0 0.0
      %2040 = vmatpush.msra.mxu0 0.0
      %2041 = vmatpush.msra.mxu0 0.0
      %2042 = vmatpush.msra.mxu0 %v221
      %2043 = vmatpush.msra.mxu0 %v191
      %2044 = vmatmul.f32.gmra.mxu0 %v238
      %v2045 = vpop.f32.mrf.mxu0
      %v2046 = vadd.f32 0.0, %v2045
      %2047 = vmatmul.f32.gmra.mxu0 %v241
      %v2048 = vpop.f32.mrf.mxu0
      %v2049 = vadd.f32 0.0, %v2048
      %2050 = vmatmul.f32.gmra.mxu0 %v244
      %v2051 = vpop.f32.mrf.mxu0
      %v2052 = vadd.f32 0.0, %v2051
      %2053 = vmatmul.f32.gmra.mxu0 %v247
      %v2054 = vpop.f32.mrf.mxu0
      %v2055 = vadd.f32 0.0, %v2054
      %2056 = vmatmul.f32.gmra.mxu0 %v250
      %v2057 = vpop.f32.mrf.mxu0
      %v2058 = vadd.f32 0.0, %v2057
      %2059 = vmatmul.f32.gmra.mxu0 %v253
      %v2060 = vpop.f32.mrf.mxu0
      %v2061 = vadd.f32 0.0, %v2060
      %2062 = vmatmul.f32.gmra.mxu0 %v256
      %v2063 = vpop.f32.mrf.mxu0
      %v2064 = vadd.f32 0.0, %v2063
      %2065 = vmatmul.f32.gmra.mxu0 %v259
      %v2066 = vpop.f32.mrf.mxu0
      %v2067 = vadd.f32 0.0, %v2066
      %2068 = vmatmul.f32.gmra.mxu0 %v262
      %v2069 = vpop.f32.mrf.mxu0
      %v2070 = vadd.f32 0.0, %v2069
      %2071 = vmatmul.f32.gmra.mxu0 %v265
      %v2072 = vpop.f32.mrf.mxu0
      %v2073 = vadd.f32 0.0, %v2072
      %2074 = vmatmul.f32.gmra.mxu0 %v268
      %v2075 = vpop.f32.mrf.mxu0
      %v2076 = vadd.f32 0.0, %v2075
      %2077 = vmatmul.f32.gmra.mxu0 %v271
      %v2078 = vpop.f32.mrf.mxu0
      %v2079 = vadd.f32 0.0, %v2078
      %2080 = vmatmul.f32.gmra.mxu0 %v274
      %v2081 = vpop.f32.mrf.mxu0
      %v2082 = vadd.f32 0.0, %v2081
      %2083 = vmatmul.f32.gmra.mxu0 %v277
      %v2084 = vpop.f32.mrf.mxu0
      %v2085 = vadd.f32 0.0, %v2084
      %2086 = vmatmul.f32.gmra.mxu0 %v280
      %v2087 = vpop.f32.mrf.mxu0
      %v2088 = vadd.f32 0.0, %v2087
      %2089 = vmatmul.f32.gmra.mxu0 %v283
      %v2090 = vpop.f32.mrf.mxu0
      %v2091 = vadd.f32 0.0, %v2090
      %2092 = vmatmul.f32.gmra.mxu0 %v286
      %v2093 = vpop.f32.mrf.mxu0
      %v2094 = vadd.f32 0.0, %v2093
      %2095 = vmatmul.f32.gmra.mxu0 %v289
      %v2096 = vpop.f32.mrf.mxu0
      %v2097 = vadd.f32 0.0, %v2096
      %2098 = vmatmul.f32.gmra.mxu0 %v292
      %v2099 = vpop.f32.mrf.mxu0
      %v2100 = vadd.f32 0.0, %v2099
      %2101 = vmatmul.f32.gmra.mxu0 %v295
      %v2102 = vpop.f32.mrf.mxu0
      %v2103 = vadd.f32 0.0, %v2102
      %2104 = vmatmul.f32.gmra.mxu0 %v298
      %v2105 = vpop.f32.mrf.mxu0
      %v2106 = vadd.f32 0.0, %v2105
      %2107 = vmatmul.f32.gmra.mxu0 %v301
      %v2108 = vpop.f32.mrf.mxu0
      %v2109 = vadd.f32 0.0, %v2108
      %2110 = vmatmul.f32.gmra.mxu0 %v304
      %v2111 = vpop.f32.mrf.mxu0
      %v2112 = vadd.f32 0.0, %v2111
      %2113 = vmatmul.f32.gmra.mxu0 %v307
      %v2114 = vpop.f32.mrf.mxu0
      %v2115 = vadd.f32 0.0, %v2114
      %2116 = vmatmul.f32.gmra.mxu0 %v310
      %v2117 = vpop.f32.mrf.mxu0
      %v2118 = vadd.f32 0.0, %v2117
      %2119 = vmatmul.f32.gmra.mxu0 %v313
      %v2120 = vpop.f32.mrf.mxu0
      %v2121 = vadd.f32 0.0, %v2120
      %2122 = vmatmul.f32.gmra.mxu0 %v316
      %v2123 = vpop.f32.mrf.mxu0
      %v2124 = vadd.f32 0.0, %v2123
      %2125 = vmatmul.f32.gmra.mxu0 %v319
      %v2126 = vpop.f32.mrf.mxu0
      %v2127 = vadd.f32 0.0, %v2126
      %2128 = vmatmul.f32.gmra.mxu0 %v322
      %v2129 = vpop.f32.mrf.mxu0
      %v2130 = vadd.f32 0.0, %v2129
      %2131 = vmatmul.f32.gmra.mxu0 %v325
      %v2132 = vpop.f32.mrf.mxu0
      %v2133 = vadd.f32 0.0, %v2132
      %2134 = vmatmul.f32.gmra.mxu0 %v328
      %v2135 = vpop.f32.mrf.mxu0
      %v2136 = vadd.f32 0.0, %v2135
      %2137 = vmatmul.f32.gmra.mxu0 %v331
      %v2138 = vpop.f32.mrf.mxu0
      %v2139 = vadd.f32 0.0, %v2138
      %2140 = vdwg.mxu0
      %2141 = vmatpush.msra.mxu0 0.0
      %2142 = vmatpush.msra.mxu0 0.0
      %2143 = vmatpush.msra.mxu0 0.0
      %2144 = vmatpush.msra.mxu0 0.0
      %2145 = vmatpush.msra.mxu0 0.0
      %2146 = vmatpush.msra.mxu0 0.0
      %2147 = vmatpush.msra.mxu0 0.0
      %2148 = vmatpush.msra.mxu0 0.0
      %2149 = vmatpush.msra.mxu0 0.0
      %2150 = vmatpush.msra.mxu0 0.0
      %2151 = vmatpush.msra.mxu0 0.0
      %2152 = vmatpush.msra.mxu0 0.0
      %2153 = vmatpush.msra.mxu0 0.0
      %2154 = vmatpush.msra.mxu0 0.0
      %2155 = vmatpush.msra.mxu0 %v222
      %2156 = vmatpush.msra.mxu0 %v192
      %2157 = vmatmul.f32.gmra.mxu0 %v238
      %v2158 = vpop.f32.mrf.mxu0
      %v2159 = vadd.f32 0.0, %v2158
      %2160 = vmatmul.f32.gmra.mxu0 %v241
      %v2161 = vpop.f32.mrf.mxu0
      %v2162 = vadd.f32 0.0, %v2161
      %2163 = vmatmul.f32.gmra.mxu0 %v244
      %v2164 = vpop.f32.mrf.mxu0
      %v2165 = vadd.f32 0.0, %v2164
      %2166 = vmatmul.f32.gmra.mxu0 %v247
      %v2167 = vpop.f32.mrf.mxu0
      %v2168 = vadd.f32 0.0, %v2167
      %2169 = vmatmul.f32.gmra.mxu0 %v250
      %v2170 = vpop.f32.mrf.mxu0
      %v2171 = vadd.f32 0.0, %v2170
      %2172 = vmatmul.f32.gmra.mxu0 %v253
      %v2173 = vpop.f32.mrf.mxu0
      %v2174 = vadd.f32 0.0, %v2173
      %2175 = vmatmul.f32.gmra.mxu0 %v256
      %v2176 = vpop.f32.mrf.mxu0
      %v2177 = vadd.f32 0.0, %v2176
      %2178 = vmatmul.f32.gmra.mxu0 %v259
      %v2179 = vpop.f32.mrf.mxu0
      %v2180 = vadd.f32 0.0, %v2179
      %2181 = vmatmul.f32.gmra.mxu0 %v262
      %v2182 = vpop.f32.mrf.mxu0
      %v2183 = vadd.f32 0.0, %v2182
      %2184 = vmatmul.f32.gmra.mxu0 %v265
      %v2185 = vpop.f32.mrf.mxu0
      %v2186 = vadd.f32 0.0, %v2185
      %2187 = vmatmul.f32.gmra.mxu0 %v268
      %v2188 = vpop.f32.mrf.mxu0
      %v2189 = vadd.f32 0.0, %v2188
      %2190 = vmatmul.f32.gmra.mxu0 %v271
      %v2191 = vpop.f32.mrf.mxu0
      %v2192 = vadd.f32 0.0, %v2191
      %2193 = vmatmul.f32.gmra.mxu0 %v274
      %v2194 = vpop.f32.mrf.mxu0
      %v2195 = vadd.f32 0.0, %v2194
      %2196 = vmatmul.f32.gmra.mxu0 %v277
      %v2197 = vpop.f32.mrf.mxu0
      %v2198 = vadd.f32 0.0, %v2197
      %2199 = vmatmul.f32.gmra.mxu0 %v280
      %v2200 = vpop.f32.mrf.mxu0
      %v2201 = vadd.f32 0.0, %v2200
      %2202 = vmatmul.f32.gmra.mxu0 %v283
      %v2203 = vpop.f32.mrf.mxu0
      %v2204 = vadd.f32 0.0, %v2203
      %2205 = vmatmul.f32.gmra.mxu0 %v286
      %v2206 = vpop.f32.mrf.mxu0
      %v2207 = vadd.f32 0.0, %v2206
      %2208 = vmatmul.f32.gmra.mxu0 %v289
      %v2209 = vpop.f32.mrf.mxu0
      %v2210 = vadd.f32 0.0, %v2209
      %2211 = vmatmul.f32.gmra.mxu0 %v292
      %v2212 = vpop.f32.mrf.mxu0
      %v2213 = vadd.f32 0.0, %v2212
      %2214 = vmatmul.f32.gmra.mxu0 %v295
      %v2215 = vpop.f32.mrf.mxu0
      %v2216 = vadd.f32 0.0, %v2215
      %2217 = vmatmul.f32.gmra.mxu0 %v298
      %v2218 = vpop.f32.mrf.mxu0
      %v2219 = vadd.f32 0.0, %v2218
      %2220 = vmatmul.f32.gmra.mxu0 %v301
      %v2221 = vpop.f32.mrf.mxu0
      %v2222 = vadd.f32 0.0, %v2221
      %2223 = vmatmul.f32.gmra.mxu0 %v304
      %v2224 = vpop.f32.mrf.mxu0
      %v2225 = vadd.f32 0.0, %v2224
      %2226 = vmatmul.f32.gmra.mxu0 %v307
      %v2227 = vpop.f32.mrf.mxu0
      %v2228 = vadd.f32 0.0, %v2227
      %2229 = vmatmul.f32.gmra.mxu0 %v310
      %v2230 = vpop.f32.mrf.mxu0
      %v2231 = vadd.f32 0.0, %v2230
      %2232 = vmatmul.f32.gmra.mxu0 %v313
      %v2233 = vpop.f32.mrf.mxu0
      %v2234 = vadd.f32 0.0, %v2233
      %2235 = vmatmul.f32.gmra.mxu0 %v316
      %v2236 = vpop.f32.mrf.mxu0
      %v2237 = vadd.f32 0.0, %v2236
      %2238 = vmatmul.f32.gmra.mxu0 %v319
      %v2239 = vpop.f32.mrf.mxu0
      %v2240 = vadd.f32 0.0, %v2239
      %2241 = vmatmul.f32.gmra.mxu0 %v322
      %v2242 = vpop.f32.mrf.mxu0
      %v2243 = vadd.f32 0.0, %v2242
      %2244 = vmatmul.f32.gmra.mxu0 %v325
      %v2245 = vpop.f32.mrf.mxu0
      %v2246 = vadd.f32 0.0, %v2245
      %2247 = vmatmul.f32.gmra.mxu0 %v328
      %v2248 = vpop.f32.mrf.mxu0
      %v2249 = vadd.f32 0.0, %v2248
      %2250 = vmatmul.f32.gmra.mxu0 %v331
      %v2251 = vpop.f32.mrf.mxu0
      %v2252 = vadd.f32 0.0, %v2251
      %2253 = vdwg.mxu0
      %2254 = vmatpush.msra.mxu0 0.0
      %2255 = vmatpush.msra.mxu0 0.0
      %2256 = vmatpush.msra.mxu0 0.0
      %2257 = vmatpush.msra.mxu0 0.0
      %2258 = vmatpush.msra.mxu0 0.0
      %2259 = vmatpush.msra.mxu0 0.0
      %2260 = vmatpush.msra.mxu0 0.0
      %2261 = vmatpush.msra.mxu0 0.0
      %2262 = vmatpush.msra.mxu0 0.0
      %2263 = vmatpush.msra.mxu0 0.0
      %2264 = vmatpush.msra.mxu0 0.0
      %2265 = vmatpush.msra.mxu0 0.0
      %2266 = vmatpush.msra.mxu0 0.0
      %2267 = vmatpush.msra.mxu0 0.0
      %2268 = vmatpush.msra.mxu0 %v223
      %2269 = vmatpush.msra.mxu0 %v193
      %2270 = vmatmul.f32.gmra.mxu0 %v238
      %v2271 = vpop.f32.mrf.mxu0
      %v2272 = vadd.f32 0.0, %v2271
      %2273 = vmatmul.f32.gmra.mxu0 %v241
      %v2274 = vpop.f32.mrf.mxu0
      %v2275 = vadd.f32 0.0, %v2274
      %2276 = vmatmul.f32.gmra.mxu0 %v244
      %v2277 = vpop.f32.mrf.mxu0
      %v2278 = vadd.f32 0.0, %v2277
      %2279 = vmatmul.f32.gmra.mxu0 %v247
      %v2280 = vpop.f32.mrf.mxu0
      %v2281 = vadd.f32 0.0, %v2280
      %2282 = vmatmul.f32.gmra.mxu0 %v250
      %v2283 = vpop.f32.mrf.mxu0
      %v2284 = vadd.f32 0.0, %v2283
      %2285 = vmatmul.f32.gmra.mxu0 %v253
      %v2286 = vpop.f32.mrf.mxu0
      %v2287 = vadd.f32 0.0, %v2286
      %2288 = vmatmul.f32.gmra.mxu0 %v256
      %v2289 = vpop.f32.mrf.mxu0
      %v2290 = vadd.f32 0.0, %v2289
      %2291 = vmatmul.f32.gmra.mxu0 %v259
      %v2292 = vpop.f32.mrf.mxu0
      %v2293 = vadd.f32 0.0, %v2292
      %2294 = vmatmul.f32.gmra.mxu0 %v262
      %v2295 = vpop.f32.mrf.mxu0
      %v2296 = vadd.f32 0.0, %v2295
      %2297 = vmatmul.f32.gmra.mxu0 %v265
      %v2298 = vpop.f32.mrf.mxu0
      %v2299 = vadd.f32 0.0, %v2298
      %2300 = vmatmul.f32.gmra.mxu0 %v268
      %v2301 = vpop.f32.mrf.mxu0
      %v2302 = vadd.f32 0.0, %v2301
      %2303 = vmatmul.f32.gmra.mxu0 %v271
      %v2304 = vpop.f32.mrf.mxu0
      %v2305 = vadd.f32 0.0, %v2304
      %2306 = vmatmul.f32.gmra.mxu0 %v274
      %v2307 = vpop.f32.mrf.mxu0
      %v2308 = vadd.f32 0.0, %v2307
      %2309 = vmatmul.f32.gmra.mxu0 %v277
      %v2310 = vpop.f32.mrf.mxu0
      %v2311 = vadd.f32 0.0, %v2310
      %2312 = vmatmul.f32.gmra.mxu0 %v280
      %v2313 = vpop.f32.mrf.mxu0
      %v2314 = vadd.f32 0.0, %v2313
      %2315 = vmatmul.f32.gmra.mxu0 %v283
      %v2316 = vpop.f32.mrf.mxu0
      %v2317 = vadd.f32 0.0, %v2316
      %2318 = vmatmul.f32.gmra.mxu0 %v286
      %v2319 = vpop.f32.mrf.mxu0
      %v2320 = vadd.f32 0.0, %v2319
      %2321 = vmatmul.f32.gmra.mxu0 %v289
      %v2322 = vpop.f32.mrf.mxu0
      %v2323 = vadd.f32 0.0, %v2322
      %2324 = vmatmul.f32.gmra.mxu0 %v292
      %v2325 = vpop.f32.mrf.mxu0
      %v2326 = vadd.f32 0.0, %v2325
      %2327 = vmatmul.f32.gmra.mxu0 %v295
      %v2328 = vpop.f32.mrf.mxu0
      %v2329 = vadd.f32 0.0, %v2328
      %2330 = vmatmul.f32.gmra.mxu0 %v298
      %v2331 = vpop.f32.mrf.mxu0
      %v2332 = vadd.f32 0.0, %v2331
      %2333 = vmatmul.f32.gmra.mxu0 %v301
      %v2334 = vpop.f32.mrf.mxu0
      %v2335 = vadd.f32 0.0, %v2334
      %2336 = vmatmul.f32.gmra.mxu0 %v304
      %v2337 = vpop.f32.mrf.mxu0
      %v2338 = vadd.f32 0.0, %v2337
      %2339 = vmatmul.f32.gmra.mxu0 %v307
      %v2340 = vpop.f32.mrf.mxu0
      %v2341 = vadd.f32 0.0, %v2340
      %2342 = vmatmul.f32.gmra.mxu0 %v310
      %v2343 = vpop.f32.mrf.mxu0
      %v2344 = vadd.f32 0.0, %v2343
      %2345 = vmatmul.f32.gmra.mxu0 %v313
      %v2346 = vpop.f32.mrf.mxu0
      %v2347 = vadd.f32 0.0, %v2346
      %2348 = vmatmul.f32.gmra.mxu0 %v316
      %v2349 = vpop.f32.mrf.mxu0
      %v2350 = vadd.f32 0.0, %v2349
      %2351 = vmatmul.f32.gmra.mxu0 %v319
      %v2352 = vpop.f32.mrf.mxu0
      %v2353 = vadd.f32 0.0, %v2352
      %2354 = vmatmul.f32.gmra.mxu0 %v322
      %v2355 = vpop.f32.mrf.mxu0
      %v2356 = vadd.f32 0.0, %v2355
      %2357 = vmatmul.f32.gmra.mxu0 %v325
      %v2358 = vpop.f32.mrf.mxu0
      %v2359 = vadd.f32 0.0, %v2358
      %2360 = vmatmul.f32.gmra.mxu0 %v328
      %v2361 = vpop.f32.mrf.mxu0
      %v2362 = vadd.f32 0.0, %v2361
      %2363 = vmatmul.f32.gmra.mxu0 %v331
      %v2364 = vpop.f32.mrf.mxu0
      %v2365 = vadd.f32 0.0, %v2364
      %2366 = vdwg.mxu0
      %2367 = vmatpush.msra.mxu0 0.0
      %2368 = vmatpush.msra.mxu0 0.0
      %2369 = vmatpush.msra.mxu0 0.0
      %2370 = vmatpush.msra.mxu0 0.0
      %2371 = vmatpush.msra.mxu0 0.0
      %2372 = vmatpush.msra.mxu0 0.0
      %2373 = vmatpush.msra.mxu0 0.0
      %2374 = vmatpush.msra.mxu0 0.0
      %2375 = vmatpush.msra.mxu0 0.0
      %2376 = vmatpush.msra.mxu0 0.0
      %2377 = vmatpush.msra.mxu0 0.0
      %2378 = vmatpush.msra.mxu0 0.0
      %2379 = vmatpush.msra.mxu0 0.0
      %2380 = vmatpush.msra.mxu0 0.0
      %2381 = vmatpush.msra.mxu0 %v224
      %2382 = vmatpush.msra.mxu0 %v194
      %2383 = vmatmul.f32.gmra.mxu0 %v238
      %v2384 = vpop.f32.mrf.mxu0
      %v2385 = vadd.f32 0.0, %v2384
      %2386 = vmatmul.f32.gmra.mxu0 %v241
      %v2387 = vpop.f32.mrf.mxu0
      %v2388 = vadd.f32 0.0, %v2387
      %2389 = vmatmul.f32.gmra.mxu0 %v244
      %v2390 = vpop.f32.mrf.mxu0
      %v2391 = vadd.f32 0.0, %v2390
      %2392 = vmatmul.f32.gmra.mxu0 %v247
      %v2393 = vpop.f32.mrf.mxu0
      %v2394 = vadd.f32 0.0, %v2393
      %2395 = vmatmul.f32.gmra.mxu0 %v250
      %v2396 = vpop.f32.mrf.mxu0
      %v2397 = vadd.f32 0.0, %v2396
      %2398 = vmatmul.f32.gmra.mxu0 %v253
      %v2399 = vpop.f32.mrf.mxu0
      %v2400 = vadd.f32 0.0, %v2399
      %2401 = vmatmul.f32.gmra.mxu0 %v256
      %v2402 = vpop.f32.mrf.mxu0
      %v2403 = vadd.f32 0.0, %v2402
      %2404 = vmatmul.f32.gmra.mxu0 %v259
      %v2405 = vpop.f32.mrf.mxu0
      %v2406 = vadd.f32 0.0, %v2405
      %2407 = vmatmul.f32.gmra.mxu0 %v262
      %v2408 = vpop.f32.mrf.mxu0
      %v2409 = vadd.f32 0.0, %v2408
      %2410 = vmatmul.f32.gmra.mxu0 %v265
      %v2411 = vpop.f32.mrf.mxu0
      %v2412 = vadd.f32 0.0, %v2411
      %2413 = vmatmul.f32.gmra.mxu0 %v268
      %v2414 = vpop.f32.mrf.mxu0
      %v2415 = vadd.f32 0.0, %v2414
      %2416 = vmatmul.f32.gmra.mxu0 %v271
      %v2417 = vpop.f32.mrf.mxu0
      %v2418 = vadd.f32 0.0, %v2417
      %2419 = vmatmul.f32.gmra.mxu0 %v274
      %v2420 = vpop.f32.mrf.mxu0
      %v2421 = vadd.f32 0.0, %v2420
      %2422 = vmatmul.f32.gmra.mxu0 %v277
      %v2423 = vpop.f32.mrf.mxu0
      %v2424 = vadd.f32 0.0, %v2423
      %2425 = vmatmul.f32.gmra.mxu0 %v280
      %v2426 = vpop.f32.mrf.mxu0
      %v2427 = vadd.f32 0.0, %v2426
      %2428 = vmatmul.f32.gmra.mxu0 %v283
      %v2429 = vpop.f32.mrf.mxu0
      %v2430 = vadd.f32 0.0, %v2429
      %2431 = vmatmul.f32.gmra.mxu0 %v286
      %v2432 = vpop.f32.mrf.mxu0
      %v2433 = vadd.f32 0.0, %v2432
      %2434 = vmatmul.f32.gmra.mxu0 %v289
      %v2435 = vpop.f32.mrf.mxu0
      %v2436 = vadd.f32 0.0, %v2435
      %2437 = vmatmul.f32.gmra.mxu0 %v292
      %v2438 = vpop.f32.mrf.mxu0
      %v2439 = vadd.f32 0.0, %v2438
      %2440 = vmatmul.f32.gmra.mxu0 %v295
      %v2441 = vpop.f32.mrf.mxu0
      %v2442 = vadd.f32 0.0, %v2441
      %2443 = vmatmul.f32.gmra.mxu0 %v298
      %v2444 = vpop.f32.mrf.mxu0
      %v2445 = vadd.f32 0.0, %v2444
      %2446 = vmatmul.f32.gmra.mxu0 %v301
      %v2447 = vpop.f32.mrf.mxu0
      %v2448 = vadd.f32 0.0, %v2447
      %2449 = vmatmul.f32.gmra.mxu0 %v304
      %v2450 = vpop.f32.mrf.mxu0
      %v2451 = vadd.f32 0.0, %v2450
      %2452 = vmatmul.f32.gmra.mxu0 %v307
      %v2453 = vpop.f32.mrf.mxu0
      %v2454 = vadd.f32 0.0, %v2453
      %2455 = vmatmul.f32.gmra.mxu0 %v310
      %v2456 = vpop.f32.mrf.mxu0
      %v2457 = vadd.f32 0.0, %v2456
      %2458 = vmatmul.f32.gmra.mxu0 %v313
      %v2459 = vpop.f32.mrf.mxu0
      %v2460 = vadd.f32 0.0, %v2459
      %2461 = vmatmul.f32.gmra.mxu0 %v316
      %v2462 = vpop.f32.mrf.mxu0
      %v2463 = vadd.f32 0.0, %v2462
      %2464 = vmatmul.f32.gmra.mxu0 %v319
      %v2465 = vpop.f32.mrf.mxu0
      %v2466 = vadd.f32 0.0, %v2465
      %2467 = vmatmul.f32.gmra.mxu0 %v322
      %v2468 = vpop.f32.mrf.mxu0
      %v2469 = vadd.f32 0.0, %v2468
      %2470 = vmatmul.f32.gmra.mxu0 %v325
      %v2471 = vpop.f32.mrf.mxu0
      %v2472 = vadd.f32 0.0, %v2471
      %2473 = vmatmul.f32.gmra.mxu0 %v328
      %v2474 = vpop.f32.mrf.mxu0
      %v2475 = vadd.f32 0.0, %v2474
      %2476 = vmatmul.f32.gmra.mxu0 %v331
      %v2477 = vpop.f32.mrf.mxu0
      %v2478 = vadd.f32 0.0, %v2477
      %2479 = vdwg.mxu0
      %2480 = vmatpush.msra.mxu0 0.0
      %2481 = vmatpush.msra.mxu0 0.0
      %2482 = vmatpush.msra.mxu0 0.0
      %2483 = vmatpush.msra.mxu0 0.0
      %2484 = vmatpush.msra.mxu0 0.0
      %2485 = vmatpush.msra.mxu0 0.0
      %2486 = vmatpush.msra.mxu0 0.0
      %2487 = vmatpush.msra.mxu0 0.0
      %2488 = vmatpush.msra.mxu0 0.0
      %2489 = vmatpush.msra.mxu0 0.0
      %2490 = vmatpush.msra.mxu0 0.0
      %2491 = vmatpush.msra.mxu0 0.0
      %2492 = vmatpush.msra.mxu0 0.0
      %2493 = vmatpush.msra.mxu0 0.0
      %2494 = vmatpush.msra.mxu0 %v225
      %2495 = vmatpush.msra.mxu0 %v195
      %2496 = vmatmul.f32.gmra.mxu0 %v238
      %v2497 = vpop.f32.mrf.mxu0
      %v2498 = vadd.f32 0.0, %v2497
      %2499 = vmatmul.f32.gmra.mxu0 %v241
      %v2500 = vpop.f32.mrf.mxu0
      %v2501 = vadd.f32 0.0, %v2500
      %2502 = vmatmul.f32.gmra.mxu0 %v244
      %v2503 = vpop.f32.mrf.mxu0
      %v2504 = vadd.f32 0.0, %v2503
      %2505 = vmatmul.f32.gmra.mxu0 %v247
      %v2506 = vpop.f32.mrf.mxu0
      %v2507 = vadd.f32 0.0, %v2506
      %2508 = vmatmul.f32.gmra.mxu0 %v250
      %v2509 = vpop.f32.mrf.mxu0
      %v2510 = vadd.f32 0.0, %v2509
      %2511 = vmatmul.f32.gmra.mxu0 %v253
      %v2512 = vpop.f32.mrf.mxu0
      %v2513 = vadd.f32 0.0, %v2512
      %2514 = vmatmul.f32.gmra.mxu0 %v256
      %v2515 = vpop.f32.mrf.mxu0
      %v2516 = vadd.f32 0.0, %v2515
      %2517 = vmatmul.f32.gmra.mxu0 %v259
      %v2518 = vpop.f32.mrf.mxu0
      %v2519 = vadd.f32 0.0, %v2518
      %2520 = vmatmul.f32.gmra.mxu0 %v262
      %v2521 = vpop.f32.mrf.mxu0
      %v2522 = vadd.f32 0.0, %v2521
      %2523 = vmatmul.f32.gmra.mxu0 %v265
      %v2524 = vpop.f32.mrf.mxu0
      %v2525 = vadd.f32 0.0, %v2524
      %2526 = vmatmul.f32.gmra.mxu0 %v268
      %v2527 = vpop.f32.mrf.mxu0
      %v2528 = vadd.f32 0.0, %v2527
      %2529 = vmatmul.f32.gmra.mxu0 %v271
      %v2530 = vpop.f32.mrf.mxu0
      %v2531 = vadd.f32 0.0, %v2530
      %2532 = vmatmul.f32.gmra.mxu0 %v274
      %v2533 = vpop.f32.mrf.mxu0
      %v2534 = vadd.f32 0.0, %v2533
      %2535 = vmatmul.f32.gmra.mxu0 %v277
      %v2536 = vpop.f32.mrf.mxu0
      %v2537 = vadd.f32 0.0, %v2536
      %2538 = vmatmul.f32.gmra.mxu0 %v280
      %v2539 = vpop.f32.mrf.mxu0
      %v2540 = vadd.f32 0.0, %v2539
      %2541 = vmatmul.f32.gmra.mxu0 %v283
      %v2542 = vpop.f32.mrf.mxu0
      %v2543 = vadd.f32 0.0, %v2542
      %2544 = vmatmul.f32.gmra.mxu0 %v286
      %v2545 = vpop.f32.mrf.mxu0
      %v2546 = vadd.f32 0.0, %v2545
      %2547 = vmatmul.f32.gmra.mxu0 %v289
      %v2548 = vpop.f32.mrf.mxu0
      %v2549 = vadd.f32 0.0, %v2548
      %2550 = vmatmul.f32.gmra.mxu0 %v292
      %v2551 = vpop.f32.mrf.mxu0
      %v2552 = vadd.f32 0.0, %v2551
      %2553 = vmatmul.f32.gmra.mxu0 %v295
      %v2554 = vpop.f32.mrf.mxu0
      %v2555 = vadd.f32 0.0, %v2554
      %2556 = vmatmul.f32.gmra.mxu0 %v298
      %v2557 = vpop.f32.mrf.mxu0
      %v2558 = vadd.f32 0.0, %v2557
      %2559 = vmatmul.f32.gmra.mxu0 %v301
      %v2560 = vpop.f32.mrf.mxu0
      %v2561 = vadd.f32 0.0, %v2560
      %2562 = vmatmul.f32.gmra.mxu0 %v304
      %v2563 = vpop.f32.mrf.mxu0
      %v2564 = vadd.f32 0.0, %v2563
      %2565 = vmatmul.f32.gmra.mxu0 %v307
      %v2566 = vpop.f32.mrf.mxu0
      %v2567 = vadd.f32 0.0, %v2566
      %2568 = vmatmul.f32.gmra.mxu0 %v310
      %v2569 = vpop.f32.mrf.mxu0
      %v2570 = vadd.f32 0.0, %v2569
      %2571 = vmatmul.f32.gmra.mxu0 %v313
      %v2572 = vpop.f32.mrf.mxu0
      %v2573 = vadd.f32 0.0, %v2572
      %2574 = vmatmul.f32.gmra.mxu0 %v316
      %v2575 = vpop.f32.mrf.mxu0
      %v2576 = vadd.f32 0.0, %v2575
      %2577 = vmatmul.f32.gmra.mxu0 %v319
      %v2578 = vpop.f32.mrf.mxu0
      %v2579 = vadd.f32 0.0, %v2578
      %2580 = vmatmul.f32.gmra.mxu0 %v322
      %v2581 = vpop.f32.mrf.mxu0
      %v2582 = vadd.f32 0.0, %v2581
      %2583 = vmatmul.f32.gmra.mxu0 %v325
      %v2584 = vpop.f32.mrf.mxu0
      %v2585 = vadd.f32 0.0, %v2584
      %2586 = vmatmul.f32.gmra.mxu0 %v328
      %v2587 = vpop.f32.mrf.mxu0
      %v2588 = vadd.f32 0.0, %v2587
      %2589 = vmatmul.f32.gmra.mxu0 %v331
      %v2590 = vpop.f32.mrf.mxu0
      %v2591 = vadd.f32 0.0, %v2590
      %2592 = vdwg.mxu0
      %2593 = vmatpush.msra.mxu0 0.0
      %2594 = vmatpush.msra.mxu0 0.0
      %2595 = vmatpush.msra.mxu0 0.0
      %2596 = vmatpush.msra.mxu0 0.0
      %2597 = vmatpush.msra.mxu0 0.0
      %2598 = vmatpush.msra.mxu0 0.0
      %2599 = vmatpush.msra.mxu0 0.0
      %2600 = vmatpush.msra.mxu0 0.0
      %2601 = vmatpush.msra.mxu0 0.0
      %2602 = vmatpush.msra.mxu0 0.0
      %2603 = vmatpush.msra.mxu0 0.0
      %2604 = vmatpush.msra.mxu0 0.0
      %2605 = vmatpush.msra.mxu0 0.0
      %2606 = vmatpush.msra.mxu0 0.0
      %2607 = vmatpush.msra.mxu0 %v226
      %2608 = vmatpush.msra.mxu0 %v196
      %2609 = vmatmul.f32.gmra.mxu0 %v238
      %v2610 = vpop.f32.mrf.mxu0
      %v2611 = vadd.f32 0.0, %v2610
      %2612 = vmatmul.f32.gmra.mxu0 %v241
      %v2613 = vpop.f32.mrf.mxu0
      %v2614 = vadd.f32 0.0, %v2613
      %2615 = vmatmul.f32.gmra.mxu0 %v244
      %v2616 = vpop.f32.mrf.mxu0
      %v2617 = vadd.f32 0.0, %v2616
      %2618 = vmatmul.f32.gmra.mxu0 %v247
      %v2619 = vpop.f32.mrf.mxu0
      %v2620 = vadd.f32 0.0, %v2619
      %2621 = vmatmul.f32.gmra.mxu0 %v250
      %v2622 = vpop.f32.mrf.mxu0
      %v2623 = vadd.f32 0.0, %v2622
      %2624 = vmatmul.f32.gmra.mxu0 %v253
      %v2625 = vpop.f32.mrf.mxu0
      %v2626 = vadd.f32 0.0, %v2625
      %2627 = vmatmul.f32.gmra.mxu0 %v256
      %v2628 = vpop.f32.mrf.mxu0
      %v2629 = vadd.f32 0.0, %v2628
      %2630 = vmatmul.f32.gmra.mxu0 %v259
      %v2631 = vpop.f32.mrf.mxu0
      %v2632 = vadd.f32 0.0, %v2631
      %2633 = vmatmul.f32.gmra.mxu0 %v262
      %v2634 = vpop.f32.mrf.mxu0
      %v2635 = vadd.f32 0.0, %v2634
      %2636 = vmatmul.f32.gmra.mxu0 %v265
      %v2637 = vpop.f32.mrf.mxu0
      %v2638 = vadd.f32 0.0, %v2637
      %2639 = vmatmul.f32.gmra.mxu0 %v268
      %v2640 = vpop.f32.mrf.mxu0
      %v2641 = vadd.f32 0.0, %v2640
      %2642 = vmatmul.f32.gmra.mxu0 %v271
      %v2643 = vpop.f32.mrf.mxu0
      %v2644 = vadd.f32 0.0, %v2643
      %2645 = vmatmul.f32.gmra.mxu0 %v274
      %v2646 = vpop.f32.mrf.mxu0
      %v2647 = vadd.f32 0.0, %v2646
      %2648 = vmatmul.f32.gmra.mxu0 %v277
      %v2649 = vpop.f32.mrf.mxu0
      %v2650 = vadd.f32 0.0, %v2649
      %2651 = vmatmul.f32.gmra.mxu0 %v280
      %v2652 = vpop.f32.mrf.mxu0
      %v2653 = vadd.f32 0.0, %v2652
      %2654 = vmatmul.f32.gmra.mxu0 %v283
      %v2655 = vpop.f32.mrf.mxu0
      %v2656 = vadd.f32 0.0, %v2655
      %2657 = vmatmul.f32.gmra.mxu0 %v286
      %v2658 = vpop.f32.mrf.mxu0
      %v2659 = vadd.f32 0.0, %v2658
      %2660 = vmatmul.f32.gmra.mxu0 %v289
      %v2661 = vpop.f32.mrf.mxu0
      %v2662 = vadd.f32 0.0, %v2661
      %2663 = vmatmul.f32.gmra.mxu0 %v292
      %v2664 = vpop.f32.mrf.mxu0
      %v2665 = vadd.f32 0.0, %v2664
      %2666 = vmatmul.f32.gmra.mxu0 %v295
      %v2667 = vpop.f32.mrf.mxu0
      %v2668 = vadd.f32 0.0, %v2667
      %2669 = vmatmul.f32.gmra.mxu0 %v298
      %v2670 = vpop.f32.mrf.mxu0
      %v2671 = vadd.f32 0.0, %v2670
      %2672 = vmatmul.f32.gmra.mxu0 %v301
      %v2673 = vpop.f32.mrf.mxu0
      %v2674 = vadd.f32 0.0, %v2673
      %2675 = vmatmul.f32.gmra.mxu0 %v304
      %v2676 = vpop.f32.mrf.mxu0
      %v2677 = vadd.f32 0.0, %v2676
      %2678 = vmatmul.f32.gmra.mxu0 %v307
      %v2679 = vpop.f32.mrf.mxu0
      %v2680 = vadd.f32 0.0, %v2679
      %2681 = vmatmul.f32.gmra.mxu0 %v310
      %v2682 = vpop.f32.mrf.mxu0
      %v2683 = vadd.f32 0.0, %v2682
      %2684 = vmatmul.f32.gmra.mxu0 %v313
      %v2685 = vpop.f32.mrf.mxu0
      %v2686 = vadd.f32 0.0, %v2685
      %2687 = vmatmul.f32.gmra.mxu0 %v316
      %v2688 = vpop.f32.mrf.mxu0
      %v2689 = vadd.f32 0.0, %v2688
      %2690 = vmatmul.f32.gmra.mxu0 %v319
      %v2691 = vpop.f32.mrf.mxu0
      %v2692 = vadd.f32 0.0, %v2691
      %2693 = vmatmul.f32.gmra.mxu0 %v322
      %v2694 = vpop.f32.mrf.mxu0
      %v2695 = vadd.f32 0.0, %v2694
      %2696 = vmatmul.f32.gmra.mxu0 %v325
      %v2697 = vpop.f32.mrf.mxu0
      %v2698 = vadd.f32 0.0, %v2697
      %2699 = vmatmul.f32.gmra.mxu0 %v328
      %v2700 = vpop.f32.mrf.mxu0
      %v2701 = vadd.f32 0.0, %v2700
      %2702 = vmatmul.f32.gmra.mxu0 %v331
      %v2703 = vpop.f32.mrf.mxu0
      %v2704 = vadd.f32 0.0, %v2703
      %2705 = vdwg.mxu0
      %2706 = vmatpush.msra.mxu0 0.0
      %2707 = vmatpush.msra.mxu0 0.0
      %2708 = vmatpush.msra.mxu0 0.0
      %2709 = vmatpush.msra.mxu0 0.0
      %2710 = vmatpush.msra.mxu0 0.0
      %2711 = vmatpush.msra.mxu0 0.0
      %2712 = vmatpush.msra.mxu0 0.0
      %2713 = vmatpush.msra.mxu0 0.0
      %2714 = vmatpush.msra.mxu0 0.0
      %2715 = vmatpush.msra.mxu0 0.0
      %2716 = vmatpush.msra.mxu0 0.0
      %2717 = vmatpush.msra.mxu0 0.0
      %2718 = vmatpush.msra.mxu0 0.0
      %2719 = vmatpush.msra.mxu0 0.0
      %2720 = vmatpush.msra.mxu0 %v227
      %2721 = vmatpush.msra.mxu0 %v197
      %2722 = vmatmul.f32.gmra.mxu0 %v238
      %v2723 = vpop.f32.mrf.mxu0
      %v2724 = vadd.f32 0.0, %v2723
      %2725 = vmatmul.f32.gmra.mxu0 %v241
      %v2726 = vpop.f32.mrf.mxu0
      %v2727 = vadd.f32 0.0, %v2726
      %2728 = vmatmul.f32.gmra.mxu0 %v244
      %v2729 = vpop.f32.mrf.mxu0
      %v2730 = vadd.f32 0.0, %v2729
      %2731 = vmatmul.f32.gmra.mxu0 %v247
      %v2732 = vpop.f32.mrf.mxu0
      %v2733 = vadd.f32 0.0, %v2732
      %2734 = vmatmul.f32.gmra.mxu0 %v250
      %v2735 = vpop.f32.mrf.mxu0
      %v2736 = vadd.f32 0.0, %v2735
      %2737 = vmatmul.f32.gmra.mxu0 %v253
      %v2738 = vpop.f32.mrf.mxu0
      %v2739 = vadd.f32 0.0, %v2738
      %2740 = vmatmul.f32.gmra.mxu0 %v256
      %v2741 = vpop.f32.mrf.mxu0
      %v2742 = vadd.f32 0.0, %v2741
      %2743 = vmatmul.f32.gmra.mxu0 %v259
      %v2744 = vpop.f32.mrf.mxu0
      %v2745 = vadd.f32 0.0, %v2744
      %2746 = vmatmul.f32.gmra.mxu0 %v262
      %v2747 = vpop.f32.mrf.mxu0
      %v2748 = vadd.f32 0.0, %v2747
      %2749 = vmatmul.f32.gmra.mxu0 %v265
      %v2750 = vpop.f32.mrf.mxu0
      %v2751 = vadd.f32 0.0, %v2750
      %2752 = vmatmul.f32.gmra.mxu0 %v268
      %v2753 = vpop.f32.mrf.mxu0
      %v2754 = vadd.f32 0.0, %v2753
      %2755 = vmatmul.f32.gmra.mxu0 %v271
      %v2756 = vpop.f32.mrf.mxu0
      %v2757 = vadd.f32 0.0, %v2756
      %2758 = vmatmul.f32.gmra.mxu0 %v274
      %v2759 = vpop.f32.mrf.mxu0
      %v2760 = vadd.f32 0.0, %v2759
      %2761 = vmatmul.f32.gmra.mxu0 %v277
      %v2762 = vpop.f32.mrf.mxu0
      %v2763 = vadd.f32 0.0, %v2762
      %2764 = vmatmul.f32.gmra.mxu0 %v280
      %v2765 = vpop.f32.mrf.mxu0
      %v2766 = vadd.f32 0.0, %v2765
      %2767 = vmatmul.f32.gmra.mxu0 %v283
      %v2768 = vpop.f32.mrf.mxu0
      %v2769 = vadd.f32 0.0, %v2768
      %2770 = vmatmul.f32.gmra.mxu0 %v286
      %v2771 = vpop.f32.mrf.mxu0
      %v2772 = vadd.f32 0.0, %v2771
      %2773 = vmatmul.f32.gmra.mxu0 %v289
      %v2774 = vpop.f32.mrf.mxu0
      %v2775 = vadd.f32 0.0, %v2774
      %2776 = vmatmul.f32.gmra.mxu0 %v292
      %v2777 = vpop.f32.mrf.mxu0
      %v2778 = vadd.f32 0.0, %v2777
      %2779 = vmatmul.f32.gmra.mxu0 %v295
      %v2780 = vpop.f32.mrf.mxu0
      %v2781 = vadd.f32 0.0, %v2780
      %2782 = vmatmul.f32.gmra.mxu0 %v298
      %v2783 = vpop.f32.mrf.mxu0
      %v2784 = vadd.f32 0.0, %v2783
      %2785 = vmatmul.f32.gmra.mxu0 %v301
      %v2786 = vpop.f32.mrf.mxu0
      %v2787 = vadd.f32 0.0, %v2786
      %2788 = vmatmul.f32.gmra.mxu0 %v304
      %v2789 = vpop.f32.mrf.mxu0
      %v2790 = vadd.f32 0.0, %v2789
      %2791 = vmatmul.f32.gmra.mxu0 %v307
      %v2792 = vpop.f32.mrf.mxu0
      %v2793 = vadd.f32 0.0, %v2792
      %2794 = vmatmul.f32.gmra.mxu0 %v310
      %v2795 = vpop.f32.mrf.mxu0
      %v2796 = vadd.f32 0.0, %v2795
      %2797 = vmatmul.f32.gmra.mxu0 %v313
      %v2798 = vpop.f32.mrf.mxu0
      %v2799 = vadd.f32 0.0, %v2798
      %2800 = vmatmul.f32.gmra.mxu0 %v316
      %v2801 = vpop.f32.mrf.mxu0
      %v2802 = vadd.f32 0.0, %v2801
      %2803 = vmatmul.f32.gmra.mxu0 %v319
      %v2804 = vpop.f32.mrf.mxu0
      %v2805 = vadd.f32 0.0, %v2804
      %2806 = vmatmul.f32.gmra.mxu0 %v322
      %v2807 = vpop.f32.mrf.mxu0
      %v2808 = vadd.f32 0.0, %v2807
      %2809 = vmatmul.f32.gmra.mxu0 %v325
      %v2810 = vpop.f32.mrf.mxu0
      %v2811 = vadd.f32 0.0, %v2810
      %2812 = vmatmul.f32.gmra.mxu0 %v328
      %v2813 = vpop.f32.mrf.mxu0
      %v2814 = vadd.f32 0.0, %v2813
      %2815 = vmatmul.f32.gmra.mxu0 %v331
      %v2816 = vpop.f32.mrf.mxu0
      %v2817 = vadd.f32 0.0, %v2816
      %2818 = vdwg.mxu0
      %2819 = vmatpush.msra.mxu0 0.0
      %2820 = vmatpush.msra.mxu0 0.0
      %2821 = vmatpush.msra.mxu0 0.0
      %2822 = vmatpush.msra.mxu0 0.0
      %2823 = vmatpush.msra.mxu0 0.0
      %2824 = vmatpush.msra.mxu0 0.0
      %2825 = vmatpush.msra.mxu0 0.0
      %2826 = vmatpush.msra.mxu0 0.0
      %2827 = vmatpush.msra.mxu0 0.0
      %2828 = vmatpush.msra.mxu0 0.0
      %2829 = vmatpush.msra.mxu0 0.0
      %2830 = vmatpush.msra.mxu0 0.0
      %2831 = vmatpush.msra.mxu0 0.0
      %2832 = vmatpush.msra.mxu0 0.0
      %2833 = vmatpush.msra.mxu0 %v228
      %2834 = vmatpush.msra.mxu0 %v198
      %2835 = vmatmul.f32.gmra.mxu0 %v238
      %v2836 = vpop.f32.mrf.mxu0
      %v2837 = vadd.f32 0.0, %v2836
      %2838 = vmatmul.f32.gmra.mxu0 %v241
      %v2839 = vpop.f32.mrf.mxu0
      %v2840 = vadd.f32 0.0, %v2839
      %2841 = vmatmul.f32.gmra.mxu0 %v244
      %v2842 = vpop.f32.mrf.mxu0
      %v2843 = vadd.f32 0.0, %v2842
      %2844 = vmatmul.f32.gmra.mxu0 %v247
      %v2845 = vpop.f32.mrf.mxu0
      %v2846 = vadd.f32 0.0, %v2845
      %2847 = vmatmul.f32.gmra.mxu0 %v250
      %v2848 = vpop.f32.mrf.mxu0
      %v2849 = vadd.f32 0.0, %v2848
      %2850 = vmatmul.f32.gmra.mxu0 %v253
      %v2851 = vpop.f32.mrf.mxu0
      %v2852 = vadd.f32 0.0, %v2851
      %2853 = vmatmul.f32.gmra.mxu0 %v256
      %v2854 = vpop.f32.mrf.mxu0
      %v2855 = vadd.f32 0.0, %v2854
      %2856 = vmatmul.f32.gmra.mxu0 %v259
      %v2857 = vpop.f32.mrf.mxu0
      %v2858 = vadd.f32 0.0, %v2857
      %2859 = vmatmul.f32.gmra.mxu0 %v262
      %v2860 = vpop.f32.mrf.mxu0
      %v2861 = vadd.f32 0.0, %v2860
      %2862 = vmatmul.f32.gmra.mxu0 %v265
      %v2863 = vpop.f32.mrf.mxu0
      %v2864 = vadd.f32 0.0, %v2863
      %2865 = vmatmul.f32.gmra.mxu0 %v268
      %v2866 = vpop.f32.mrf.mxu0
      %v2867 = vadd.f32 0.0, %v2866
      %2868 = vmatmul.f32.gmra.mxu0 %v271
      %v2869 = vpop.f32.mrf.mxu0
      %v2870 = vadd.f32 0.0, %v2869
      %2871 = vmatmul.f32.gmra.mxu0 %v274
      %v2872 = vpop.f32.mrf.mxu0
      %v2873 = vadd.f32 0.0, %v2872
      %2874 = vmatmul.f32.gmra.mxu0 %v277
      %v2875 = vpop.f32.mrf.mxu0
      %v2876 = vadd.f32 0.0, %v2875
      %2877 = vmatmul.f32.gmra.mxu0 %v280
      %v2878 = vpop.f32.mrf.mxu0
      %v2879 = vadd.f32 0.0, %v2878
      %2880 = vmatmul.f32.gmra.mxu0 %v283
      %v2881 = vpop.f32.mrf.mxu0
      %v2882 = vadd.f32 0.0, %v2881
      %2883 = vmatmul.f32.gmra.mxu0 %v286
      %v2884 = vpop.f32.mrf.mxu0
      %v2885 = vadd.f32 0.0, %v2884
      %2886 = vmatmul.f32.gmra.mxu0 %v289
      %v2887 = vpop.f32.mrf.mxu0
      %v2888 = vadd.f32 0.0, %v2887
      %2889 = vmatmul.f32.gmra.mxu0 %v292
      %v2890 = vpop.f32.mrf.mxu0
      %v2891 = vadd.f32 0.0, %v2890
      %2892 = vmatmul.f32.gmra.mxu0 %v295
      %v2893 = vpop.f32.mrf.mxu0
      %v2894 = vadd.f32 0.0, %v2893
      %2895 = vmatmul.f32.gmra.mxu0 %v298
      %v2896 = vpop.f32.mrf.mxu0
      %v2897 = vadd.f32 0.0, %v2896
      %2898 = vmatmul.f32.gmra.mxu0 %v301
      %v2899 = vpop.f32.mrf.mxu0
      %v2900 = vadd.f32 0.0, %v2899
      %2901 = vmatmul.f32.gmra.mxu0 %v304
      %v2902 = vpop.f32.mrf.mxu0
      %v2903 = vadd.f32 0.0, %v2902
      %2904 = vmatmul.f32.gmra.mxu0 %v307
      %v2905 = vpop.f32.mrf.mxu0
      %v2906 = vadd.f32 0.0, %v2905
      %2907 = vmatmul.f32.gmra.mxu0 %v310
      %v2908 = vpop.f32.mrf.mxu0
      %v2909 = vadd.f32 0.0, %v2908
      %2910 = vmatmul.f32.gmra.mxu0 %v313
      %v2911 = vpop.f32.mrf.mxu0
      %v2912 = vadd.f32 0.0, %v2911
      %2913 = vmatmul.f32.gmra.mxu0 %v316
      %v2914 = vpop.f32.mrf.mxu0
      %v2915 = vadd.f32 0.0, %v2914
      %2916 = vmatmul.f32.gmra.mxu0 %v319
      %v2917 = vpop.f32.mrf.mxu0
      %v2918 = vadd.f32 0.0, %v2917
      %2919 = vmatmul.f32.gmra.mxu0 %v322
      %v2920 = vpop.f32.mrf.mxu0
      %v2921 = vadd.f32 0.0, %v2920
      %2922 = vmatmul.f32.gmra.mxu0 %v325
      %v2923 = vpop.f32.mrf.mxu0
      %v2924 = vadd.f32 0.0, %v2923
      %2925 = vmatmul.f32.gmra.mxu0 %v328
      %v2926 = vpop.f32.mrf.mxu0
      %v2927 = vadd.f32 0.0, %v2926
      %2928 = vmatmul.f32.gmra.mxu0 %v331
      %v2929 = vpop.f32.mrf.mxu0
      %v2930 = vadd.f32 0.0, %v2929
      %2931 = vdwg.mxu0
      %2932 = vmatpush.msra.mxu0 0.0
      %2933 = vmatpush.msra.mxu0 0.0
      %2934 = vmatpush.msra.mxu0 0.0
      %2935 = vmatpush.msra.mxu0 0.0
      %2936 = vmatpush.msra.mxu0 0.0
      %2937 = vmatpush.msra.mxu0 0.0
      %2938 = vmatpush.msra.mxu0 0.0
      %2939 = vmatpush.msra.mxu0 0.0
      %2940 = vmatpush.msra.mxu0 0.0
      %2941 = vmatpush.msra.mxu0 0.0
      %2942 = vmatpush.msra.mxu0 0.0
      %2943 = vmatpush.msra.mxu0 0.0
      %2944 = vmatpush.msra.mxu0 0.0
      %2945 = vmatpush.msra.mxu0 0.0
      %2946 = vmatpush.msra.mxu0 %v229
      %2947 = vmatpush.msra.mxu0 %v199
      %2948 = vmatmul.f32.gmra.mxu0 %v238
      %v2949 = vpop.f32.mrf.mxu0
      %v2950 = vadd.f32 0.0, %v2949
      %2951 = vmatmul.f32.gmra.mxu0 %v241
      %v2952 = vpop.f32.mrf.mxu0
      %v2953 = vadd.f32 0.0, %v2952
      %2954 = vmatmul.f32.gmra.mxu0 %v244
      %v2955 = vpop.f32.mrf.mxu0
      %v2956 = vadd.f32 0.0, %v2955
      %2957 = vmatmul.f32.gmra.mxu0 %v247
      %v2958 = vpop.f32.mrf.mxu0
      %v2959 = vadd.f32 0.0, %v2958
      %2960 = vmatmul.f32.gmra.mxu0 %v250
      %v2961 = vpop.f32.mrf.mxu0
      %v2962 = vadd.f32 0.0, %v2961
      %2963 = vmatmul.f32.gmra.mxu0 %v253
      %v2964 = vpop.f32.mrf.mxu0
      %v2965 = vadd.f32 0.0, %v2964
      %2966 = vmatmul.f32.gmra.mxu0 %v256
      %v2967 = vpop.f32.mrf.mxu0
      %v2968 = vadd.f32 0.0, %v2967
      %2969 = vmatmul.f32.gmra.mxu0 %v259
      %v2970 = vpop.f32.mrf.mxu0
      %v2971 = vadd.f32 0.0, %v2970
      %2972 = vmatmul.f32.gmra.mxu0 %v262
      %v2973 = vpop.f32.mrf.mxu0
      %v2974 = vadd.f32 0.0, %v2973
      %2975 = vmatmul.f32.gmra.mxu0 %v265
      %v2976 = vpop.f32.mrf.mxu0
      %v2977 = vadd.f32 0.0, %v2976
      %2978 = vmatmul.f32.gmra.mxu0 %v268
      %v2979 = vpop.f32.mrf.mxu0
      %v2980 = vadd.f32 0.0, %v2979
      %2981 = vmatmul.f32.gmra.mxu0 %v271
      %v2982 = vpop.f32.mrf.mxu0
      %v2983 = vadd.f32 0.0, %v2982
      %2984 = vmatmul.f32.gmra.mxu0 %v274
      %v2985 = vpop.f32.mrf.mxu0
      %v2986 = vadd.f32 0.0, %v2985
      %2987 = vmatmul.f32.gmra.mxu0 %v277
      %v2988 = vpop.f32.mrf.mxu0
      %v2989 = vadd.f32 0.0, %v2988
      %2990 = vmatmul.f32.gmra.mxu0 %v280
      %v2991 = vpop.f32.mrf.mxu0
      %v2992 = vadd.f32 0.0, %v2991
      %2993 = vmatmul.f32.gmra.mxu0 %v283
      %v2994 = vpop.f32.mrf.mxu0
      %v2995 = vadd.f32 0.0, %v2994
      %2996 = vmatmul.f32.gmra.mxu0 %v286
      %v2997 = vpop.f32.mrf.mxu0
      %v2998 = vadd.f32 0.0, %v2997
      %2999 = vmatmul.f32.gmra.mxu0 %v289
      %v3000 = vpop.f32.mrf.mxu0
      %v3001 = vadd.f32 0.0, %v3000
      %3002 = vmatmul.f32.gmra.mxu0 %v292
      %v3003 = vpop.f32.mrf.mxu0
      %v3004 = vadd.f32 0.0, %v3003
      %3005 = vmatmul.f32.gmra.mxu0 %v295
      %v3006 = vpop.f32.mrf.mxu0
      %v3007 = vadd.f32 0.0, %v3006
      %3008 = vmatmul.f32.gmra.mxu0 %v298
      %v3009 = vpop.f32.mrf.mxu0
      %v3010 = vadd.f32 0.0, %v3009
      %3011 = vmatmul.f32.gmra.mxu0 %v301
      %v3012 = vpop.f32.mrf.mxu0
      %v3013 = vadd.f32 0.0, %v3012
      %3014 = vmatmul.f32.gmra.mxu0 %v304
      %v3015 = vpop.f32.mrf.mxu0
      %v3016 = vadd.f32 0.0, %v3015
      %3017 = vmatmul.f32.gmra.mxu0 %v307
      %v3018 = vpop.f32.mrf.mxu0
      %v3019 = vadd.f32 0.0, %v3018
      %3020 = vmatmul.f32.gmra.mxu0 %v310
      %v3021 = vpop.f32.mrf.mxu0
      %v3022 = vadd.f32 0.0, %v3021
      %3023 = vmatmul.f32.gmra.mxu0 %v313
      %v3024 = vpop.f32.mrf.mxu0
      %v3025 = vadd.f32 0.0, %v3024
      %3026 = vmatmul.f32.gmra.mxu0 %v316
      %v3027 = vpop.f32.mrf.mxu0
      %v3028 = vadd.f32 0.0, %v3027
      %3029 = vmatmul.f32.gmra.mxu0 %v319
      %v3030 = vpop.f32.mrf.mxu0
      %v3031 = vadd.f32 0.0, %v3030
      %3032 = vmatmul.f32.gmra.mxu0 %v322
      %v3033 = vpop.f32.mrf.mxu0
      %v3034 = vadd.f32 0.0, %v3033
      %3035 = vmatmul.f32.gmra.mxu0 %v325
      %v3036 = vpop.f32.mrf.mxu0
      %v3037 = vadd.f32 0.0, %v3036
      %3038 = vmatmul.f32.gmra.mxu0 %v328
      %v3039 = vpop.f32.mrf.mxu0
      %v3040 = vadd.f32 0.0, %v3039
      %3041 = vmatmul.f32.gmra.mxu0 %v331
      %v3042 = vpop.f32.mrf.mxu0
      %v3043 = vadd.f32 0.0, %v3042
      %3044 = vdwg.mxu0
      %3045 = vmatpush.msra.mxu0 0.0
      %3046 = vmatpush.msra.mxu0 0.0
      %3047 = vmatpush.msra.mxu0 0.0
      %3048 = vmatpush.msra.mxu0 0.0
      %3049 = vmatpush.msra.mxu0 0.0
      %3050 = vmatpush.msra.mxu0 0.0
      %3051 = vmatpush.msra.mxu0 0.0
      %3052 = vmatpush.msra.mxu0 0.0
      %3053 = vmatpush.msra.mxu0 0.0
      %3054 = vmatpush.msra.mxu0 0.0
      %3055 = vmatpush.msra.mxu0 0.0
      %3056 = vmatpush.msra.mxu0 0.0
      %3057 = vmatpush.msra.mxu0 0.0
      %3058 = vmatpush.msra.mxu0 0.0
      %3059 = vmatpush.msra.mxu0 %v230
      %3060 = vmatpush.msra.mxu0 %v200
      %3061 = vmatmul.f32.gmra.mxu0 %v238
      %v3062 = vpop.f32.mrf.mxu0
      %v3063 = vadd.f32 0.0, %v3062
      %3064 = vmatmul.f32.gmra.mxu0 %v241
      %v3065 = vpop.f32.mrf.mxu0
      %v3066 = vadd.f32 0.0, %v3065
      %3067 = vmatmul.f32.gmra.mxu0 %v244
      %v3068 = vpop.f32.mrf.mxu0
      %v3069 = vadd.f32 0.0, %v3068
      %3070 = vmatmul.f32.gmra.mxu0 %v247
      %v3071 = vpop.f32.mrf.mxu0
      %v3072 = vadd.f32 0.0, %v3071
      %3073 = vmatmul.f32.gmra.mxu0 %v250
      %v3074 = vpop.f32.mrf.mxu0
      %v3075 = vadd.f32 0.0, %v3074
      %3076 = vmatmul.f32.gmra.mxu0 %v253
      %v3077 = vpop.f32.mrf.mxu0
      %v3078 = vadd.f32 0.0, %v3077
      %3079 = vmatmul.f32.gmra.mxu0 %v256
      %v3080 = vpop.f32.mrf.mxu0
      %v3081 = vadd.f32 0.0, %v3080
      %3082 = vmatmul.f32.gmra.mxu0 %v259
      %v3083 = vpop.f32.mrf.mxu0
      %v3084 = vadd.f32 0.0, %v3083
      %3085 = vmatmul.f32.gmra.mxu0 %v262
      %v3086 = vpop.f32.mrf.mxu0
      %v3087 = vadd.f32 0.0, %v3086
      %3088 = vmatmul.f32.gmra.mxu0 %v265
      %v3089 = vpop.f32.mrf.mxu0
      %v3090 = vadd.f32 0.0, %v3089
      %3091 = vmatmul.f32.gmra.mxu0 %v268
      %v3092 = vpop.f32.mrf.mxu0
      %v3093 = vadd.f32 0.0, %v3092
      %3094 = vmatmul.f32.gmra.mxu0 %v271
      %v3095 = vpop.f32.mrf.mxu0
      %v3096 = vadd.f32 0.0, %v3095
      %3097 = vmatmul.f32.gmra.mxu0 %v274
      %v3098 = vpop.f32.mrf.mxu0
      %v3099 = vadd.f32 0.0, %v3098
      %3100 = vmatmul.f32.gmra.mxu0 %v277
      %v3101 = vpop.f32.mrf.mxu0
      %v3102 = vadd.f32 0.0, %v3101
      %3103 = vmatmul.f32.gmra.mxu0 %v280
      %v3104 = vpop.f32.mrf.mxu0
      %v3105 = vadd.f32 0.0, %v3104
      %3106 = vmatmul.f32.gmra.mxu0 %v283
      %v3107 = vpop.f32.mrf.mxu0
      %v3108 = vadd.f32 0.0, %v3107
      %3109 = vmatmul.f32.gmra.mxu0 %v286
      %v3110 = vpop.f32.mrf.mxu0
      %v3111 = vadd.f32 0.0, %v3110
      %3112 = vmatmul.f32.gmra.mxu0 %v289
      %v3113 = vpop.f32.mrf.mxu0
      %v3114 = vadd.f32 0.0, %v3113
      %3115 = vmatmul.f32.gmra.mxu0 %v292
      %v3116 = vpop.f32.mrf.mxu0
      %v3117 = vadd.f32 0.0, %v3116
      %3118 = vmatmul.f32.gmra.mxu0 %v295
      %v3119 = vpop.f32.mrf.mxu0
      %v3120 = vadd.f32 0.0, %v3119
      %3121 = vmatmul.f32.gmra.mxu0 %v298
      %v3122 = vpop.f32.mrf.mxu0
      %v3123 = vadd.f32 0.0, %v3122
      %3124 = vmatmul.f32.gmra.mxu0 %v301
      %v3125 = vpop.f32.mrf.mxu0
      %v3126 = vadd.f32 0.0, %v3125
      %3127 = vmatmul.f32.gmra.mxu0 %v304
      %v3128 = vpop.f32.mrf.mxu0
      %v3129 = vadd.f32 0.0, %v3128
      %3130 = vmatmul.f32.gmra.mxu0 %v307
      %v3131 = vpop.f32.mrf.mxu0
      %v3132 = vadd.f32 0.0, %v3131
      %3133 = vmatmul.f32.gmra.mxu0 %v310
      %v3134 = vpop.f32.mrf.mxu0
      %v3135 = vadd.f32 0.0, %v3134
      %3136 = vmatmul.f32.gmra.mxu0 %v313
      %v3137 = vpop.f32.mrf.mxu0
      %v3138 = vadd.f32 0.0, %v3137
      %3139 = vmatmul.f32.gmra.mxu0 %v316
      %v3140 = vpop.f32.mrf.mxu0
      %v3141 = vadd.f32 0.0, %v3140
      %3142 = vmatmul.f32.gmra.mxu0 %v319
      %v3143 = vpop.f32.mrf.mxu0
      %v3144 = vadd.f32 0.0, %v3143
      %3145 = vmatmul.f32.gmra.mxu0 %v322
      %v3146 = vpop.f32.mrf.mxu0
      %v3147 = vadd.f32 0.0, %v3146
      %3148 = vmatmul.f32.gmra.mxu0 %v325
      %v3149 = vpop.f32.mrf.mxu0
      %v3150 = vadd.f32 0.0, %v3149
      %3151 = vmatmul.f32.gmra.mxu0 %v328
      %v3152 = vpop.f32.mrf.mxu0
      %v3153 = vadd.f32 0.0, %v3152
      %3154 = vmatmul.f32.gmra.mxu0 %v331
      %v3155 = vpop.f32.mrf.mxu0
      %v3156 = vadd.f32 0.0, %v3155
      %3157 = vdwg.mxu0
      %3158 = vmatpush.msra.mxu0 0.0
      %3159 = vmatpush.msra.mxu0 0.0
      %3160 = vmatpush.msra.mxu0 0.0
      %3161 = vmatpush.msra.mxu0 0.0
      %3162 = vmatpush.msra.mxu0 0.0
      %3163 = vmatpush.msra.mxu0 0.0
      %3164 = vmatpush.msra.mxu0 0.0
      %3165 = vmatpush.msra.mxu0 0.0
      %3166 = vmatpush.msra.mxu0 0.0
      %3167 = vmatpush.msra.mxu0 0.0
      %3168 = vmatpush.msra.mxu0 0.0
      %3169 = vmatpush.msra.mxu0 0.0
      %3170 = vmatpush.msra.mxu0 0.0
      %3171 = vmatpush.msra.mxu0 0.0
      %3172 = vmatpush.msra.mxu0 %v231
      %3173 = vmatpush.msra.mxu0 %v201
      %3174 = vmatmul.f32.gmra.mxu0 %v238
      %v3175 = vpop.f32.mrf.mxu0
      %v3176 = vadd.f32 0.0, %v3175
      %3177 = vmatmul.f32.gmra.mxu0 %v241
      %v3178 = vpop.f32.mrf.mxu0
      %v3179 = vadd.f32 0.0, %v3178
      %3180 = vmatmul.f32.gmra.mxu0 %v244
      %v3181 = vpop.f32.mrf.mxu0
      %v3182 = vadd.f32 0.0, %v3181
      %3183 = vmatmul.f32.gmra.mxu0 %v247
      %v3184 = vpop.f32.mrf.mxu0
      %v3185 = vadd.f32 0.0, %v3184
      %3186 = vmatmul.f32.gmra.mxu0 %v250
      %v3187 = vpop.f32.mrf.mxu0
      %v3188 = vadd.f32 0.0, %v3187
      %3189 = vmatmul.f32.gmra.mxu0 %v253
      %v3190 = vpop.f32.mrf.mxu0
      %v3191 = vadd.f32 0.0, %v3190
      %3192 = vmatmul.f32.gmra.mxu0 %v256
      %v3193 = vpop.f32.mrf.mxu0
      %v3194 = vadd.f32 0.0, %v3193
      %3195 = vmatmul.f32.gmra.mxu0 %v259
      %v3196 = vpop.f32.mrf.mxu0
      %v3197 = vadd.f32 0.0, %v3196
      %3198 = vmatmul.f32.gmra.mxu0 %v262
      %v3199 = vpop.f32.mrf.mxu0
      %v3200 = vadd.f32 0.0, %v3199
      %3201 = vmatmul.f32.gmra.mxu0 %v265
      %v3202 = vpop.f32.mrf.mxu0
      %v3203 = vadd.f32 0.0, %v3202
      %3204 = vmatmul.f32.gmra.mxu0 %v268
      %v3205 = vpop.f32.mrf.mxu0
      %v3206 = vadd.f32 0.0, %v3205
      %3207 = vmatmul.f32.gmra.mxu0 %v271
      %v3208 = vpop.f32.mrf.mxu0
      %v3209 = vadd.f32 0.0, %v3208
      %3210 = vmatmul.f32.gmra.mxu0 %v274
      %v3211 = vpop.f32.mrf.mxu0
      %v3212 = vadd.f32 0.0, %v3211
      %3213 = vmatmul.f32.gmra.mxu0 %v277
      %v3214 = vpop.f32.mrf.mxu0
      %v3215 = vadd.f32 0.0, %v3214
      %3216 = vmatmul.f32.gmra.mxu0 %v280
      %v3217 = vpop.f32.mrf.mxu0
      %v3218 = vadd.f32 0.0, %v3217
      %3219 = vmatmul.f32.gmra.mxu0 %v283
      %v3220 = vpop.f32.mrf.mxu0
      %v3221 = vadd.f32 0.0, %v3220
      %3222 = vmatmul.f32.gmra.mxu0 %v286
      %v3223 = vpop.f32.mrf.mxu0
      %v3224 = vadd.f32 0.0, %v3223
      %3225 = vmatmul.f32.gmra.mxu0 %v289
      %v3226 = vpop.f32.mrf.mxu0
      %v3227 = vadd.f32 0.0, %v3226
      %3228 = vmatmul.f32.gmra.mxu0 %v292
      %v3229 = vpop.f32.mrf.mxu0
      %v3230 = vadd.f32 0.0, %v3229
      %3231 = vmatmul.f32.gmra.mxu0 %v295
      %v3232 = vpop.f32.mrf.mxu0
      %v3233 = vadd.f32 0.0, %v3232
      %3234 = vmatmul.f32.gmra.mxu0 %v298
      %v3235 = vpop.f32.mrf.mxu0
      %v3236 = vadd.f32 0.0, %v3235
      %3237 = vmatmul.f32.gmra.mxu0 %v301
      %v3238 = vpop.f32.mrf.mxu0
      %v3239 = vadd.f32 0.0, %v3238
      %3240 = vmatmul.f32.gmra.mxu0 %v304
      %v3241 = vpop.f32.mrf.mxu0
      %v3242 = vadd.f32 0.0, %v3241
      %3243 = vmatmul.f32.gmra.mxu0 %v307
      %v3244 = vpop.f32.mrf.mxu0
      %v3245 = vadd.f32 0.0, %v3244
      %3246 = vmatmul.f32.gmra.mxu0 %v310
      %v3247 = vpop.f32.mrf.mxu0
      %v3248 = vadd.f32 0.0, %v3247
      %3249 = vmatmul.f32.gmra.mxu0 %v313
      %v3250 = vpop.f32.mrf.mxu0
      %v3251 = vadd.f32 0.0, %v3250
      %3252 = vmatmul.f32.gmra.mxu0 %v316
      %v3253 = vpop.f32.mrf.mxu0
      %v3254 = vadd.f32 0.0, %v3253
      %3255 = vmatmul.f32.gmra.mxu0 %v319
      %v3256 = vpop.f32.mrf.mxu0
      %v3257 = vadd.f32 0.0, %v3256
      %3258 = vmatmul.f32.gmra.mxu0 %v322
      %v3259 = vpop.f32.mrf.mxu0
      %v3260 = vadd.f32 0.0, %v3259
      %3261 = vmatmul.f32.gmra.mxu0 %v325
      %v3262 = vpop.f32.mrf.mxu0
      %v3263 = vadd.f32 0.0, %v3262
      %3264 = vmatmul.f32.gmra.mxu0 %v328
      %v3265 = vpop.f32.mrf.mxu0
      %v3266 = vadd.f32 0.0, %v3265
      %3267 = vmatmul.f32.gmra.mxu0 %v331
      %v3268 = vpop.f32.mrf.mxu0
      %v3269 = vadd.f32 0.0, %v3268
      %3270 = vdwg.mxu0
      %3271 = vmatpush.msra.mxu0 0.0
      %3272 = vmatpush.msra.mxu0 0.0
      %3273 = vmatpush.msra.mxu0 0.0
      %3274 = vmatpush.msra.mxu0 0.0
      %3275 = vmatpush.msra.mxu0 0.0
      %3276 = vmatpush.msra.mxu0 0.0
      %3277 = vmatpush.msra.mxu0 0.0
      %3278 = vmatpush.msra.mxu0 0.0
      %3279 = vmatpush.msra.mxu0 0.0
      %3280 = vmatpush.msra.mxu0 0.0
      %3281 = vmatpush.msra.mxu0 0.0
      %3282 = vmatpush.msra.mxu0 0.0
      %3283 = vmatpush.msra.mxu0 0.0
      %3284 = vmatpush.msra.mxu0 0.0
      %3285 = vmatpush.msra.mxu0 %v232
      %3286 = vmatpush.msra.mxu0 %v202
      %3287 = vmatmul.f32.gmra.mxu0 %v238
      %v3288 = vpop.f32.mrf.mxu0
      %v3289 = vadd.f32 0.0, %v3288
      %3290 = vmatmul.f32.gmra.mxu0 %v241
      %v3291 = vpop.f32.mrf.mxu0
      %v3292 = vadd.f32 0.0, %v3291
      %3293 = vmatmul.f32.gmra.mxu0 %v244
      %v3294 = vpop.f32.mrf.mxu0
      %v3295 = vadd.f32 0.0, %v3294
      %3296 = vmatmul.f32.gmra.mxu0 %v247
      %v3297 = vpop.f32.mrf.mxu0
      %v3298 = vadd.f32 0.0, %v3297
      %3299 = vmatmul.f32.gmra.mxu0 %v250
      %v3300 = vpop.f32.mrf.mxu0
      %v3301 = vadd.f32 0.0, %v3300
      %3302 = vmatmul.f32.gmra.mxu0 %v253
      %v3303 = vpop.f32.mrf.mxu0
      %v3304 = vadd.f32 0.0, %v3303
      %3305 = vmatmul.f32.gmra.mxu0 %v256
      %v3306 = vpop.f32.mrf.mxu0
      %v3307 = vadd.f32 0.0, %v3306
      %3308 = vmatmul.f32.gmra.mxu0 %v259
      %v3309 = vpop.f32.mrf.mxu0
      %v3310 = vadd.f32 0.0, %v3309
      %3311 = vmatmul.f32.gmra.mxu0 %v262
      %v3312 = vpop.f32.mrf.mxu0
      %v3313 = vadd.f32 0.0, %v3312
      %3314 = vmatmul.f32.gmra.mxu0 %v265
      %v3315 = vpop.f32.mrf.mxu0
      %v3316 = vadd.f32 0.0, %v3315
      %3317 = vmatmul.f32.gmra.mxu0 %v268
      %v3318 = vpop.f32.mrf.mxu0
      %v3319 = vadd.f32 0.0, %v3318
      %3320 = vmatmul.f32.gmra.mxu0 %v271
      %v3321 = vpop.f32.mrf.mxu0
      %v3322 = vadd.f32 0.0, %v3321
      %3323 = vmatmul.f32.gmra.mxu0 %v274
      %v3324 = vpop.f32.mrf.mxu0
      %v3325 = vadd.f32 0.0, %v3324
      %3326 = vmatmul.f32.gmra.mxu0 %v277
      %v3327 = vpop.f32.mrf.mxu0
      %v3328 = vadd.f32 0.0, %v3327
      %3329 = vmatmul.f32.gmra.mxu0 %v280
      %v3330 = vpop.f32.mrf.mxu0
      %v3331 = vadd.f32 0.0, %v3330
      %3332 = vmatmul.f32.gmra.mxu0 %v283
      %v3333 = vpop.f32.mrf.mxu0
      %v3334 = vadd.f32 0.0, %v3333
      %3335 = vmatmul.f32.gmra.mxu0 %v286
      %v3336 = vpop.f32.mrf.mxu0
      %v3337 = vadd.f32 0.0, %v3336
      %3338 = vmatmul.f32.gmra.mxu0 %v289
      %v3339 = vpop.f32.mrf.mxu0
      %v3340 = vadd.f32 0.0, %v3339
      %3341 = vmatmul.f32.gmra.mxu0 %v292
      %v3342 = vpop.f32.mrf.mxu0
      %v3343 = vadd.f32 0.0, %v3342
      %3344 = vmatmul.f32.gmra.mxu0 %v295
      %v3345 = vpop.f32.mrf.mxu0
      %v3346 = vadd.f32 0.0, %v3345
      %3347 = vmatmul.f32.gmra.mxu0 %v298
      %v3348 = vpop.f32.mrf.mxu0
      %v3349 = vadd.f32 0.0, %v3348
      %3350 = vmatmul.f32.gmra.mxu0 %v301
      %v3351 = vpop.f32.mrf.mxu0
      %v3352 = vadd.f32 0.0, %v3351
      %3353 = vmatmul.f32.gmra.mxu0 %v304
      %v3354 = vpop.f32.mrf.mxu0
      %v3355 = vadd.f32 0.0, %v3354
      %3356 = vmatmul.f32.gmra.mxu0 %v307
      %v3357 = vpop.f32.mrf.mxu0
      %v3358 = vadd.f32 0.0, %v3357
      %3359 = vmatmul.f32.gmra.mxu0 %v310
      %v3360 = vpop.f32.mrf.mxu0
      %v3361 = vadd.f32 0.0, %v3360
      %3362 = vmatmul.f32.gmra.mxu0 %v313
      %v3363 = vpop.f32.mrf.mxu0
      %v3364 = vadd.f32 0.0, %v3363
      %3365 = vmatmul.f32.gmra.mxu0 %v316
      %v3366 = vpop.f32.mrf.mxu0
      %v3367 = vadd.f32 0.0, %v3366
      %3368 = vmatmul.f32.gmra.mxu0 %v319
      %v3369 = vpop.f32.mrf.mxu0
      %v3370 = vadd.f32 0.0, %v3369
      %3371 = vmatmul.f32.gmra.mxu0 %v322
      %v3372 = vpop.f32.mrf.mxu0
      %v3373 = vadd.f32 0.0, %v3372
      %3374 = vmatmul.f32.gmra.mxu0 %v325
      %v3375 = vpop.f32.mrf.mxu0
      %v3376 = vadd.f32 0.0, %v3375
      %3377 = vmatmul.f32.gmra.mxu0 %v328
      %v3378 = vpop.f32.mrf.mxu0
      %v3379 = vadd.f32 0.0, %v3378
      %3380 = vmatmul.f32.gmra.mxu0 %v331
      %v3381 = vpop.f32.mrf.mxu0
      %v3382 = vadd.f32 0.0, %v3381
      %3383 = vdwg.mxu0
      %3384 = vmatpush.msra.mxu0 0.0
      %3385 = vmatpush.msra.mxu0 0.0
      %3386 = vmatpush.msra.mxu0 0.0
      %3387 = vmatpush.msra.mxu0 0.0
      %3388 = vmatpush.msra.mxu0 0.0
      %3389 = vmatpush.msra.mxu0 0.0
      %3390 = vmatpush.msra.mxu0 0.0
      %3391 = vmatpush.msra.mxu0 0.0
      %3392 = vmatpush.msra.mxu0 0.0
      %3393 = vmatpush.msra.mxu0 0.0
      %3394 = vmatpush.msra.mxu0 0.0
      %3395 = vmatpush.msra.mxu0 0.0
      %3396 = vmatpush.msra.mxu0 0.0
      %3397 = vmatpush.msra.mxu0 0.0
      %3398 = vmatpush.msra.mxu0 %v233
      %3399 = vmatpush.msra.mxu0 %v203
      %3400 = vmatmul.f32.gmra.mxu0 %v238
      %v3401 = vpop.f32.mrf.mxu0
      %v3402 = vadd.f32 0.0, %v3401
      %3403 = vmatmul.f32.gmra.mxu0 %v241
      %v3404 = vpop.f32.mrf.mxu0
      %v3405 = vadd.f32 0.0, %v3404
      %3406 = vmatmul.f32.gmra.mxu0 %v244
      %v3407 = vpop.f32.mrf.mxu0
      %v3408 = vadd.f32 0.0, %v3407
      %3409 = vmatmul.f32.gmra.mxu0 %v247
      %v3410 = vpop.f32.mrf.mxu0
      %v3411 = vadd.f32 0.0, %v3410
      %3412 = vmatmul.f32.gmra.mxu0 %v250
      %v3413 = vpop.f32.mrf.mxu0
      %v3414 = vadd.f32 0.0, %v3413
      %3415 = vmatmul.f32.gmra.mxu0 %v253
      %v3416 = vpop.f32.mrf.mxu0
      %v3417 = vadd.f32 0.0, %v3416
      %3418 = vmatmul.f32.gmra.mxu0 %v256
      %v3419 = vpop.f32.mrf.mxu0
      %v3420 = vadd.f32 0.0, %v3419
      %3421 = vmatmul.f32.gmra.mxu0 %v259
      %v3422 = vpop.f32.mrf.mxu0
      %v3423 = vadd.f32 0.0, %v3422
      %3424 = vmatmul.f32.gmra.mxu0 %v262
      %v3425 = vpop.f32.mrf.mxu0
      %v3426 = vadd.f32 0.0, %v3425
      %3427 = vmatmul.f32.gmra.mxu0 %v265
      %v3428 = vpop.f32.mrf.mxu0
      %v3429 = vadd.f32 0.0, %v3428
      %3430 = vmatmul.f32.gmra.mxu0 %v268
      %v3431 = vpop.f32.mrf.mxu0
      %v3432 = vadd.f32 0.0, %v3431
      %3433 = vmatmul.f32.gmra.mxu0 %v271
      %v3434 = vpop.f32.mrf.mxu0
      %v3435 = vadd.f32 0.0, %v3434
      %3436 = vmatmul.f32.gmra.mxu0 %v274
      %v3437 = vpop.f32.mrf.mxu0
      %v3438 = vadd.f32 0.0, %v3437
      %3439 = vmatmul.f32.gmra.mxu0 %v277
      %v3440 = vpop.f32.mrf.mxu0
      %v3441 = vadd.f32 0.0, %v3440
      %3442 = vmatmul.f32.gmra.mxu0 %v280
      %v3443 = vpop.f32.mrf.mxu0
      %v3444 = vadd.f32 0.0, %v3443
      %3445 = vmatmul.f32.gmra.mxu0 %v283
      %v3446 = vpop.f32.mrf.mxu0
      %v3447 = vadd.f32 0.0, %v3446
      %3448 = vmatmul.f32.gmra.mxu0 %v286
      %v3449 = vpop.f32.mrf.mxu0
      %v3450 = vadd.f32 0.0, %v3449
      %3451 = vmatmul.f32.gmra.mxu0 %v289
      %v3452 = vpop.f32.mrf.mxu0
      %v3453 = vadd.f32 0.0, %v3452
      %3454 = vmatmul.f32.gmra.mxu0 %v292
      %v3455 = vpop.f32.mrf.mxu0
      %v3456 = vadd.f32 0.0, %v3455
      %3457 = vmatmul.f32.gmra.mxu0 %v295
      %v3458 = vpop.f32.mrf.mxu0
      %v3459 = vadd.f32 0.0, %v3458
      %3460 = vmatmul.f32.gmra.mxu0 %v298
      %v3461 = vpop.f32.mrf.mxu0
      %v3462 = vadd.f32 0.0, %v3461
      %3463 = vmatmul.f32.gmra.mxu0 %v301
      %v3464 = vpop.f32.mrf.mxu0
      %v3465 = vadd.f32 0.0, %v3464
      %3466 = vmatmul.f32.gmra.mxu0 %v304
      %v3467 = vpop.f32.mrf.mxu0
      %v3468 = vadd.f32 0.0, %v3467
      %3469 = vmatmul.f32.gmra.mxu0 %v307
      %v3470 = vpop.f32.mrf.mxu0
      %v3471 = vadd.f32 0.0, %v3470
      %3472 = vmatmul.f32.gmra.mxu0 %v310
      %v3473 = vpop.f32.mrf.mxu0
      %v3474 = vadd.f32 0.0, %v3473
      %3475 = vmatmul.f32.gmra.mxu0 %v313
      %v3476 = vpop.f32.mrf.mxu0
      %v3477 = vadd.f32 0.0, %v3476
      %3478 = vmatmul.f32.gmra.mxu0 %v316
      %v3479 = vpop.f32.mrf.mxu0
      %v3480 = vadd.f32 0.0, %v3479
      %3481 = vmatmul.f32.gmra.mxu0 %v319
      %v3482 = vpop.f32.mrf.mxu0
      %v3483 = vadd.f32 0.0, %v3482
      %3484 = vmatmul.f32.gmra.mxu0 %v322
      %v3485 = vpop.f32.mrf.mxu0
      %v3486 = vadd.f32 0.0, %v3485
      %3487 = vmatmul.f32.gmra.mxu0 %v325
      %v3488 = vpop.f32.mrf.mxu0
      %v3489 = vadd.f32 0.0, %v3488
      %3490 = vmatmul.f32.gmra.mxu0 %v328
      %v3491 = vpop.f32.mrf.mxu0
      %v3492 = vadd.f32 0.0, %v3491
      %3493 = vmatmul.f32.gmra.mxu0 %v331
      %v3494 = vpop.f32.mrf.mxu0
      %v3495 = vadd.f32 0.0, %v3494
      %3496 = vdwg.mxu0
      %3497 = vmatpush.msra.mxu0 0.0
      %3498 = vmatpush.msra.mxu0 0.0
      %3499 = vmatpush.msra.mxu0 0.0
      %3500 = vmatpush.msra.mxu0 0.0
      %3501 = vmatpush.msra.mxu0 0.0
      %3502 = vmatpush.msra.mxu0 0.0
      %3503 = vmatpush.msra.mxu0 0.0
      %3504 = vmatpush.msra.mxu0 0.0
      %3505 = vmatpush.msra.mxu0 0.0
      %3506 = vmatpush.msra.mxu0 0.0
      %3507 = vmatpush.msra.mxu0 0.0
      %3508 = vmatpush.msra.mxu0 0.0
      %3509 = vmatpush.msra.mxu0 0.0
      %3510 = vmatpush.msra.mxu0 0.0
      %3511 = vmatpush.msra.mxu0 %v234
      %3512 = vmatpush.msra.mxu0 %v204
      %3513 = vmatmul.f32.gmra.mxu0 %v238
      %v3514 = vpop.f32.mrf.mxu0
      %v3515 = vadd.f32 0.0, %v3514
      %3516 = vmatmul.f32.gmra.mxu0 %v241
      %v3517 = vpop.f32.mrf.mxu0
      %v3518 = vadd.f32 0.0, %v3517
      %3519 = vmatmul.f32.gmra.mxu0 %v244
      %v3520 = vpop.f32.mrf.mxu0
      %v3521 = vadd.f32 0.0, %v3520
      %3522 = vmatmul.f32.gmra.mxu0 %v247
      %v3523 = vpop.f32.mrf.mxu0
      %v3524 = vadd.f32 0.0, %v3523
      %3525 = vmatmul.f32.gmra.mxu0 %v250
      %v3526 = vpop.f32.mrf.mxu0
      %v3527 = vadd.f32 0.0, %v3526
      %3528 = vmatmul.f32.gmra.mxu0 %v253
      %v3529 = vpop.f32.mrf.mxu0
      %v3530 = vadd.f32 0.0, %v3529
      %3531 = vmatmul.f32.gmra.mxu0 %v256
      %v3532 = vpop.f32.mrf.mxu0
      %v3533 = vadd.f32 0.0, %v3532
      %3534 = vmatmul.f32.gmra.mxu0 %v259
      %v3535 = vpop.f32.mrf.mxu0
      %v3536 = vadd.f32 0.0, %v3535
      %3537 = vmatmul.f32.gmra.mxu0 %v262
      %v3538 = vpop.f32.mrf.mxu0
      %v3539 = vadd.f32 0.0, %v3538
      %3540 = vmatmul.f32.gmra.mxu0 %v265
      %v3541 = vpop.f32.mrf.mxu0
      %v3542 = vadd.f32 0.0, %v3541
      %3543 = vmatmul.f32.gmra.mxu0 %v268
      %v3544 = vpop.f32.mrf.mxu0
      %v3545 = vadd.f32 0.0, %v3544
      %3546 = vmatmul.f32.gmra.mxu0 %v271
      %v3547 = vpop.f32.mrf.mxu0
      %v3548 = vadd.f32 0.0, %v3547
      %3549 = vmatmul.f32.gmra.mxu0 %v274
      %v3550 = vpop.f32.mrf.mxu0
      %v3551 = vadd.f32 0.0, %v3550
      %3552 = vmatmul.f32.gmra.mxu0 %v277
      %v3553 = vpop.f32.mrf.mxu0
      %v3554 = vadd.f32 0.0, %v3553
      %3555 = vmatmul.f32.gmra.mxu0 %v280
      %v3556 = vpop.f32.mrf.mxu0
      %v3557 = vadd.f32 0.0, %v3556
      %3558 = vmatmul.f32.gmra.mxu0 %v283
      %v3559 = vpop.f32.mrf.mxu0
      %v3560 = vadd.f32 0.0, %v3559
      %3561 = vmatmul.f32.gmra.mxu0 %v286
      %v3562 = vpop.f32.mrf.mxu0
      %v3563 = vadd.f32 0.0, %v3562
      %3564 = vmatmul.f32.gmra.mxu0 %v289
      %v3565 = vpop.f32.mrf.mxu0
      %v3566 = vadd.f32 0.0, %v3565
      %3567 = vmatmul.f32.gmra.mxu0 %v292
      %v3568 = vpop.f32.mrf.mxu0
      %v3569 = vadd.f32 0.0, %v3568
      %3570 = vmatmul.f32.gmra.mxu0 %v295
      %v3571 = vpop.f32.mrf.mxu0
      %v3572 = vadd.f32 0.0, %v3571
      %3573 = vmatmul.f32.gmra.mxu0 %v298
      %v3574 = vpop.f32.mrf.mxu0
      %v3575 = vadd.f32 0.0, %v3574
      %3576 = vmatmul.f32.gmra.mxu0 %v301
      %v3577 = vpop.f32.mrf.mxu0
      %v3578 = vadd.f32 0.0, %v3577
      %3579 = vmatmul.f32.gmra.mxu0 %v304
      %v3580 = vpop.f32.mrf.mxu0
      %v3581 = vadd.f32 0.0, %v3580
      %3582 = vmatmul.f32.gmra.mxu0 %v307
      %v3583 = vpop.f32.mrf.mxu0
      %v3584 = vadd.f32 0.0, %v3583
      %3585 = vmatmul.f32.gmra.mxu0 %v310
      %v3586 = vpop.f32.mrf.mxu0
      %v3587 = vadd.f32 0.0, %v3586
      %3588 = vmatmul.f32.gmra.mxu0 %v313
      %v3589 = vpop.f32.mrf.mxu0
      %v3590 = vadd.f32 0.0, %v3589
      %3591 = vmatmul.f32.gmra.mxu0 %v316
      %v3592 = vpop.f32.mrf.mxu0
      %v3593 = vadd.f32 0.0, %v3592
      %3594 = vmatmul.f32.gmra.mxu0 %v319
      %v3595 = vpop.f32.mrf.mxu0
      %v3596 = vadd.f32 0.0, %v3595
      %3597 = vmatmul.f32.gmra.mxu0 %v322
      %v3598 = vpop.f32.mrf.mxu0
      %v3599 = vadd.f32 0.0, %v3598
      %3600 = vmatmul.f32.gmra.mxu0 %v325
      %v3601 = vpop.f32.mrf.mxu0
      %v3602 = vadd.f32 0.0, %v3601
      %3603 = vmatmul.f32.gmra.mxu0 %v328
      %v3604 = vpop.f32.mrf.mxu0
      %v3605 = vadd.f32 0.0, %v3604
      %3606 = vmatmul.f32.gmra.mxu0 %v331
      %v3607 = vpop.f32.mrf.mxu0
      %v3608 = vadd.f32 0.0, %v3607
      %3609 = vdwg.mxu0
      %3610 = vmatpush.msra.mxu0 0.0
      %3611 = vmatpush.msra.mxu0 0.0
      %3612 = vmatpush.msra.mxu0 0.0
      %3613 = vmatpush.msra.mxu0 0.0
      %3614 = vmatpush.msra.mxu0 0.0
      %3615 = vmatpush.msra.mxu0 0.0
      %3616 = vmatpush.msra.mxu0 0.0
      %3617 = vmatpush.msra.mxu0 0.0
      %3618 = vmatpush.msra.mxu0 0.0
      %3619 = vmatpush.msra.mxu0 0.0
      %3620 = vmatpush.msra.mxu0 0.0
      %3621 = vmatpush.msra.mxu0 0.0
      %3622 = vmatpush.msra.mxu0 0.0
      %3623 = vmatpush.msra.mxu0 0.0
      %3624 = vmatpush.msra.mxu0 %v235
      %3625 = vmatpush.msra.mxu0 %v205
      %3626 = vmatmul.f32.gmra.mxu0 %v238
      %v3627 = vpop.f32.mrf.mxu0
      %v3628 = vadd.f32 0.0, %v3627
      %3629 = vmatmul.f32.gmra.mxu0 %v241
      %v3630 = vpop.f32.mrf.mxu0
      %v3631 = vadd.f32 0.0, %v3630
      %3632 = vmatmul.f32.gmra.mxu0 %v244
      %v3633 = vpop.f32.mrf.mxu0
      %v3634 = vadd.f32 0.0, %v3633
      %3635 = vmatmul.f32.gmra.mxu0 %v247
      %v3636 = vpop.f32.mrf.mxu0
      %v3637 = vadd.f32 0.0, %v3636
      %3638 = vmatmul.f32.gmra.mxu0 %v250
      %v3639 = vpop.f32.mrf.mxu0
      %v3640 = vadd.f32 0.0, %v3639
      %3641 = vmatmul.f32.gmra.mxu0 %v253
      %v3642 = vpop.f32.mrf.mxu0
      %v3643 = vadd.f32 0.0, %v3642
      %3644 = vmatmul.f32.gmra.mxu0 %v256
      %v3645 = vpop.f32.mrf.mxu0
      %v3646 = vadd.f32 0.0, %v3645
      %3647 = vmatmul.f32.gmra.mxu0 %v259
      %v3648 = vpop.f32.mrf.mxu0
      %v3649 = vadd.f32 0.0, %v3648
      %3650 = vmatmul.f32.gmra.mxu0 %v262
      %v3651 = vpop.f32.mrf.mxu0
      %v3652 = vadd.f32 0.0, %v3651
      %3653 = vmatmul.f32.gmra.mxu0 %v265
      %v3654 = vpop.f32.mrf.mxu0
      %v3655 = vadd.f32 0.0, %v3654
      %3656 = vmatmul.f32.gmra.mxu0 %v268
      %v3657 = vpop.f32.mrf.mxu0
      %v3658 = vadd.f32 0.0, %v3657
      %3659 = vmatmul.f32.gmra.mxu0 %v271
      %v3660 = vpop.f32.mrf.mxu0
      %v3661 = vadd.f32 0.0, %v3660
      %3662 = vmatmul.f32.gmra.mxu0 %v274
      %v3663 = vpop.f32.mrf.mxu0
      %v3664 = vadd.f32 0.0, %v3663
      %3665 = vmatmul.f32.gmra.mxu0 %v277
      %v3666 = vpop.f32.mrf.mxu0
      %v3667 = vadd.f32 0.0, %v3666
      %3668 = vmatmul.f32.gmra.mxu0 %v280
      %v3669 = vpop.f32.mrf.mxu0
      %v3670 = vadd.f32 0.0, %v3669
      %3671 = vmatmul.f32.gmra.mxu0 %v283
      %v3672 = vpop.f32.mrf.mxu0
      %v3673 = vadd.f32 0.0, %v3672
      %3674 = vmatmul.f32.gmra.mxu0 %v286
      %v3675 = vpop.f32.mrf.mxu0
      %v3676 = vadd.f32 0.0, %v3675
      %3677 = vmatmul.f32.gmra.mxu0 %v289
      %v3678 = vpop.f32.mrf.mxu0
      %v3679 = vadd.f32 0.0, %v3678
      %3680 = vmatmul.f32.gmra.mxu0 %v292
      %v3681 = vpop.f32.mrf.mxu0
      %v3682 = vadd.f32 0.0, %v3681
      %3683 = vmatmul.f32.gmra.mxu0 %v295
      %v3684 = vpop.f32.mrf.mxu0
      %v3685 = vadd.f32 0.0, %v3684
      %3686 = vmatmul.f32.gmra.mxu0 %v298
      %v3687 = vpop.f32.mrf.mxu0
      %v3688 = vadd.f32 0.0, %v3687
      %3689 = vmatmul.f32.gmra.mxu0 %v301
      %v3690 = vpop.f32.mrf.mxu0
      %v3691 = vadd.f32 0.0, %v3690
      %3692 = vmatmul.f32.gmra.mxu0 %v304
      %v3693 = vpop.f32.mrf.mxu0
      %v3694 = vadd.f32 0.0, %v3693
      %3695 = vmatmul.f32.gmra.mxu0 %v307
      %v3696 = vpop.f32.mrf.mxu0
      %v3697 = vadd.f32 0.0, %v3696
      %3698 = vmatmul.f32.gmra.mxu0 %v310
      %v3699 = vpop.f32.mrf.mxu0
      %v3700 = vadd.f32 0.0, %v3699
      %3701 = vmatmul.f32.gmra.mxu0 %v313
      %v3702 = vpop.f32.mrf.mxu0
      %v3703 = vadd.f32 0.0, %v3702
      %3704 = vmatmul.f32.gmra.mxu0 %v316
      %v3705 = vpop.f32.mrf.mxu0
      %v3706 = vadd.f32 0.0, %v3705
      %3707 = vmatmul.f32.gmra.mxu0 %v319
      %v3708 = vpop.f32.mrf.mxu0
      %v3709 = vadd.f32 0.0, %v3708
      %3710 = vmatmul.f32.gmra.mxu0 %v322
      %v3711 = vpop.f32.mrf.mxu0
      %v3712 = vadd.f32 0.0, %v3711
      %3713 = vmatmul.f32.gmra.mxu0 %v325
      %v3714 = vpop.f32.mrf.mxu0
      %v3715 = vadd.f32 0.0, %v3714
      %3716 = vmatmul.f32.gmra.mxu0 %v328
      %v3717 = vpop.f32.mrf.mxu0
      %v3718 = vadd.f32 0.0, %v3717
      %3719 = vmatmul.f32.gmra.mxu0 %v331
      %v3720 = vpop.f32.mrf.mxu0
      %v3721 = vadd.f32 0.0, %v3720
      %3722 = vdwg.mxu0
      %3723 = vst [vmem:[%s143] sm:$0xff] %v351
      %3724 = vst [vmem:[%s143 + $0x8] sm:$0xff] %v464
      %3725 = vst [vmem:[%s143 + $0x10] sm:$0xff] %v577
      %3726 = vst [vmem:[%s143 + $0x18] sm:$0xff] %v690
      %3727 = vst [vmem:[%s143 + $0x20] sm:$0xff] %v803
      %3728 = vst [vmem:[%s143 + $0x28] sm:$0xff] %v916
      %3729 = vst [vmem:[%s143 + $0x30] sm:$0xff] %v1029
      %3730 = vst [vmem:[%s143 + $0x38] sm:$0xff] %v1142
      %3731 = vst [vmem:[%s143 + $0x40] sm:$0xff] %v1255
      %3732 = vst [vmem:[%s143 + $0x48] sm:$0xff] %v1368
      %3733 = vst [vmem:[%s143 + $0x50] sm:$0xff] %v1481
      %3734 = vst [vmem:[%s143 + $0x58] sm:$0xff] %v1594
      %3735 = vst [vmem:[%s143 + $0x60] sm:$0xff] %v1707
      %3736 = vst [vmem:[%s143 + $0x68] sm:$0xff] %v1820
      %3737 = vst [vmem:[%s143 + $0x70] sm:$0xff] %v1933
      %3738 = vst [vmem:[%s143 + $0x78] sm:$0xff] %v2046
      %3739 = vst [vmem:[%s143 + $0x80] sm:$0xff] %v2159
      %3740 = vst [vmem:[%s143 + $0x88] sm:$0xff] %v2272
      %3741 = vst [vmem:[%s143 + $0x90] sm:$0xff] %v2385
      %3742 = vst [vmem:[%s143 + $0x98] sm:$0xff] %v2498
      %3743 = vst [vmem:[%s143 + $0xa0] sm:$0xff] %v2611
      %3744 = vst [vmem:[%s143 + $0xa8] sm:$0xff] %v2724
      %3745 = vst [vmem:[%s143 + $0xb0] sm:$0xff] %v2837
      %3746 = vst [vmem:[%s143 + $0xb8] sm:$0xff] %v2950
      %3747 = vst [vmem:[%s143 + $0xc0] sm:$0xff] %v3063
      %3748 = vst [vmem:[%s143 + $0xc8] sm:$0xff] %v3176
      %3749 = vst [vmem:[%s143 + $0xd0] sm:$0xff] %v3289
      %3750 = vst [vmem:[%s143 + $0xd8] sm:$0xff] %v3402
      %3751 = vst [vmem:[%s143 + $0xe0] sm:$0xff] %v3515
      %vm3752 = vcmask 719872
      %3753 = vst.msk [vmem:[%s143 + $0xe8] sm:$0xff] %vm3752, %v3628
      %3754 = vst [vmem:[%s143 + $0xf0] sm:$0xff] %v354
      %3755 = vst [vmem:[%s143 + $0xf8] sm:$0xff] %v467
      %3756 = vst [vmem:[%s143 + $0x100] sm:$0xff] %v580
      %3757 = vst [vmem:[%s143 + $0x108] sm:$0xff] %v693
      %3758 = vst [vmem:[%s143 + $0x110] sm:$0xff] %v806
      %3759 = vst [vmem:[%s143 + $0x118] sm:$0xff] %v919
      %3760 = vst [vmem:[%s143 + $0x120] sm:$0xff] %v1032
      %3761 = vst [vmem:[%s143 + $0x128] sm:$0xff] %v1145
      %3762 = vst [vmem:[%s143 + $0x130] sm:$0xff] %v1258
      %3763 = vst [vmem:[%s143 + $0x138] sm:$0xff] %v1371
      %3764 = vst [vmem:[%s143 + $0x140] sm:$0xff] %v1484
      %3765 = vst [vmem:[%s143 + $0x148] sm:$0xff] %v1597
      %3766 = vst [vmem:[%s143 + $0x150] sm:$0xff] %v1710
      %3767 = vst [vmem:[%s143 + $0x158] sm:$0xff] %v1823
      %3768 = vst [vmem:[%s143 + $0x160] sm:$0xff] %v1936
      %3769 = vst [vmem:[%s143 + $0x168] sm:$0xff] %v2049
      %3770 = vst [vmem:[%s143 + $0x170] sm:$0xff] %v2162
      %3771 = vst [vmem:[%s143 + $0x178] sm:$0xff] %v2275
      %3772 = vst [vmem:[%s143 + $0x180] sm:$0xff] %v2388
      %3773 = vst [vmem:[%s143 + $0x188] sm:$0xff] %v2501
      %3774 = vst [vmem:[%s143 + $0x190] sm:$0xff] %v2614
      %3775 = vst [vmem:[%s143 + $0x198] sm:$0xff] %v2727
      %3776 = vst [vmem:[%s143 + $0x1a0] sm:$0xff] %v2840
      %3777 = vst [vmem:[%s143 + $0x1a8] sm:$0xff] %v2953
      %3778 = vst [vmem:[%s143 + $0x1b0] sm:$0xff] %v3066
      %3779 = vst [vmem:[%s143 + $0x1b8] sm:$0xff] %v3179
      %3780 = vst [vmem:[%s143 + $0x1c0] sm:$0xff] %v3292
      %3781 = vst [vmem:[%s143 + $0x1c8] sm:$0xff] %v3405
      %3782 = vst [vmem:[%s143 + $0x1d0] sm:$0xff] %v3518
      %3783 = vst.msk [vmem:[%s143 + $0x1d8] sm:$0xff] %vm3752, %v3631
      %3784 = vst [vmem:[%s143 + $0x1e0] sm:$0xff] %v357
      %3785 = vst [vmem:[%s143 + $0x1e8] sm:$0xff] %v470
      %3786 = vst [vmem:[%s143 + $0x1f0] sm:$0xff] %v583
      %3787 = vst [vmem:[%s143 + $0x1f8] sm:$0xff] %v696
      %3788 = vst [vmem:[%s143 + $0x200] sm:$0xff] %v809
      %3789 = vst [vmem:[%s143 + $0x208] sm:$0xff] %v922
      %3790 = vst [vmem:[%s143 + $0x210] sm:$0xff] %v1035
      %3791 = vst [vmem:[%s143 + $0x218] sm:$0xff] %v1148
      %3792 = vst [vmem:[%s143 + $0x220] sm:$0xff] %v1261
      %3793 = vst [vmem:[%s143 + $0x228] sm:$0xff] %v1374
      %3794 = vst [vmem:[%s143 + $0x230] sm:$0xff] %v1487
      %3795 = vst [vmem:[%s143 + $0x238] sm:$0xff] %v1600
      %3796 = vst [vmem:[%s143 + $0x240] sm:$0xff] %v1713
      %3797 = vst [vmem:[%s143 + $0x248] sm:$0xff] %v1826
      %3798 = vst [vmem:[%s143 + $0x250] sm:$0xff] %v1939
      %3799 = vst [vmem:[%s143 + $0x258] sm:$0xff] %v2052
      %3800 = vst [vmem:[%s143 + $0x260] sm:$0xff] %v2165
      %3801 = vst [vmem:[%s143 + $0x268] sm:$0xff] %v2278
      %3802 = vst [vmem:[%s143 + $0x270] sm:$0xff] %v2391
      %3803 = vst [vmem:[%s143 + $0x278] sm:$0xff] %v2504
      %3804 = vst [vmem:[%s143 + $0x280] sm:$0xff] %v2617
      %3805 = vst [vmem:[%s143 + $0x288] sm:$0xff] %v2730
      %3806 = vst [vmem:[%s143 + $0x290] sm:$0xff] %v2843
      %3807 = vst [vmem:[%s143 + $0x298] sm:$0xff] %v2956
      %3808 = vst [vmem:[%s143 + $0x2a0] sm:$0xff] %v3069
      %3809 = vst [vmem:[%s143 + $0x2a8] sm:$0xff] %v3182
      %3810 = vst [vmem:[%s143 + $0x2b0] sm:$0xff] %v3295
      %3811 = vst [vmem:[%s143 + $0x2b8] sm:$0xff] %v3408
      %3812 = vst [vmem:[%s143 + $0x2c0] sm:$0xff] %v3521
      %3813 = vst.msk [vmem:[%s143 + $0x2c8] sm:$0xff] %vm3752, %v3634
      %3814 = vst [vmem:[%s143 + $0x2d0] sm:$0xff] %v360
      %3815 = vst [vmem:[%s143 + $0x2d8] sm:$0xff] %v473
      %3816 = vst [vmem:[%s143 + $0x2e0] sm:$0xff] %v586
      %3817 = vst [vmem:[%s143 + $0x2e8] sm:$0xff] %v699
      %3818 = vst [vmem:[%s143 + $0x2f0] sm:$0xff] %v812
      %3819 = vst [vmem:[%s143 + $0x2f8] sm:$0xff] %v925
      %3820 = vst [vmem:[%s143 + $0x300] sm:$0xff] %v1038
      %3821 = vst [vmem:[%s143 + $0x308] sm:$0xff] %v1151
      %3822 = vst [vmem:[%s143 + $0x310] sm:$0xff] %v1264
      %3823 = vst [vmem:[%s143 + $0x318] sm:$0xff] %v1377
      %3824 = vst [vmem:[%s143 + $0x320] sm:$0xff] %v1490
      %3825 = vst [vmem:[%s143 + $0x328] sm:$0xff] %v1603
      %3826 = vst [vmem:[%s143 + $0x330] sm:$0xff] %v1716
      %3827 = vst [vmem:[%s143 + $0x338] sm:$0xff] %v1829
      %3828 = vst [vmem:[%s143 + $0x340] sm:$0xff] %v1942
      %3829 = vst [vmem:[%s143 + $0x348] sm:$0xff] %v2055
      %3830 = vst [vmem:[%s143 + $0x350] sm:$0xff] %v2168
      %3831 = vst [vmem:[%s143 + $0x358] sm:$0xff] %v2281
      %3832 = vst [vmem:[%s143 + $0x360] sm:$0xff] %v2394
      %3833 = vst [vmem:[%s143 + $0x368] sm:$0xff] %v2507
      %3834 = vst [vmem:[%s143 + $0x370] sm:$0xff] %v2620
      %3835 = vst [vmem:[%s143 + $0x378] sm:$0xff] %v2733
      %3836 = vst [vmem:[%s143 + $0x380] sm:$0xff] %v2846
      %3837 = vst [vmem:[%s143 + $0x388] sm:$0xff] %v2959
      %3838 = vst [vmem:[%s143 + $0x390] sm:$0xff] %v3072
      %3839 = vst [vmem:[%s143 + $0x398] sm:$0xff] %v3185
      %3840 = vst [vmem:[%s143 + $0x3a0] sm:$0xff] %v3298
      %3841 = vst [vmem:[%s143 + $0x3a8] sm:$0xff] %v3411
      %3842 = vst [vmem:[%s143 + $0x3b0] sm:$0xff] %v3524
      %3843 = vst.msk [vmem:[%s143 + $0x3b8] sm:$0xff] %vm3752, %v3637
      %3844 = vst [vmem:[%s143 + $0x3c0] sm:$0xff] %v363
      %3845 = vst [vmem:[%s143 + $0x3c8] sm:$0xff] %v476
      %3846 = vst [vmem:[%s143 + $0x3d0] sm:$0xff] %v589
      %3847 = vst [vmem:[%s143 + $0x3d8] sm:$0xff] %v702
      %3848 = vst [vmem:[%s143 + $0x3e0] sm:$0xff] %v815
      %3849 = vst [vmem:[%s143 + $0x3e8] sm:$0xff] %v928
      %3850 = vst [vmem:[%s143 + $0x3f0] sm:$0xff] %v1041
      %3851 = vst [vmem:[%s143 + $0x3f8] sm:$0xff] %v1154
      %3852 = vst [vmem:[%s143 + $0x400] sm:$0xff] %v1267
      %3853 = vst [vmem:[%s143 + $0x408] sm:$0xff] %v1380
      %3854 = vst [vmem:[%s143 + $0x410] sm:$0xff] %v1493
      %3855 = vst [vmem:[%s143 + $0x418] sm:$0xff] %v1606
      %3856 = vst [vmem:[%s143 + $0x420] sm:$0xff] %v1719
      %3857 = vst [vmem:[%s143 + $0x428] sm:$0xff] %v1832
      %3858 = vst [vmem:[%s143 + $0x430] sm:$0xff] %v1945
      %3859 = vst [vmem:[%s143 + $0x438] sm:$0xff] %v2058
      %3860 = vst [vmem:[%s143 + $0x440] sm:$0xff] %v2171
      %3861 = vst [vmem:[%s143 + $0x448] sm:$0xff] %v2284
      %3862 = vst [vmem:[%s143 + $0x450] sm:$0xff] %v2397
      %3863 = vst [vmem:[%s143 + $0x458] sm:$0xff] %v2510
      %3864 = vst [vmem:[%s143 + $0x460] sm:$0xff] %v2623
      %3865 = vst [vmem:[%s143 + $0x468] sm:$0xff] %v2736
      %3866 = vst [vmem:[%s143 + $0x470] sm:$0xff] %v2849
      %3867 = vst [vmem:[%s143 + $0x478] sm:$0xff] %v2962
      %3868 = vst [vmem:[%s143 + $0x480] sm:$0xff] %v3075
      %3869 = vst [vmem:[%s143 + $0x488] sm:$0xff] %v3188
      %3870 = vst [vmem:[%s143 + $0x490] sm:$0xff] %v3301
      %3871 = vst [vmem:[%s143 + $0x498] sm:$0xff] %v3414
      %3872 = vst [vmem:[%s143 + $0x4a0] sm:$0xff] %v3527
      %3873 = vst.msk [vmem:[%s143 + $0x4a8] sm:$0xff] %vm3752, %v3640
      %3874 = vst [vmem:[%s143 + $0x4b0] sm:$0xff] %v366
      %3875 = vst [vmem:[%s143 + $0x4b8] sm:$0xff] %v479
      %3876 = vst [vmem:[%s143 + $0x4c0] sm:$0xff] %v592
      %3877 = vst [vmem:[%s143 + $0x4c8] sm:$0xff] %v705
      %3878 = vst [vmem:[%s143 + $0x4d0] sm:$0xff] %v818
      %3879 = vst [vmem:[%s143 + $0x4d8] sm:$0xff] %v931
      %3880 = vst [vmem:[%s143 + $0x4e0] sm:$0xff] %v1044
      %3881 = vst [vmem:[%s143 + $0x4e8] sm:$0xff] %v1157
      %3882 = vst [vmem:[%s143 + $0x4f0] sm:$0xff] %v1270
      %3883 = vst [vmem:[%s143 + $0x4f8] sm:$0xff] %v1383
      %3884 = vst [vmem:[%s143 + $0x500] sm:$0xff] %v1496
      %3885 = vst [vmem:[%s143 + $0x508] sm:$0xff] %v1609
      %3886 = vst [vmem:[%s143 + $0x510] sm:$0xff] %v1722
      %3887 = vst [vmem:[%s143 + $0x518] sm:$0xff] %v1835
      %3888 = vst [vmem:[%s143 + $0x520] sm:$0xff] %v1948
      %3889 = vst [vmem:[%s143 + $0x528] sm:$0xff] %v2061
      %3890 = vst [vmem:[%s143 + $0x530] sm:$0xff] %v2174
      %3891 = vst [vmem:[%s143 + $0x538] sm:$0xff] %v2287
      %3892 = vst [vmem:[%s143 + $0x540] sm:$0xff] %v2400
      %3893 = vst [vmem:[%s143 + $0x548] sm:$0xff] %v2513
      %3894 = vst [vmem:[%s143 + $0x550] sm:$0xff] %v2626
      %3895 = vst [vmem:[%s143 + $0x558] sm:$0xff] %v2739
      %3896 = vst [vmem:[%s143 + $0x560] sm:$0xff] %v2852
      %3897 = vst [vmem:[%s143 + $0x568] sm:$0xff] %v2965
      %3898 = vst [vmem:[%s143 + $0x570] sm:$0xff] %v3078
      %3899 = vst [vmem:[%s143 + $0x578] sm:$0xff] %v3191
      %3900 = vst [vmem:[%s143 + $0x580] sm:$0xff] %v3304
      %3901 = vst [vmem:[%s143 + $0x588] sm:$0xff] %v3417
      %3902 = vst [vmem:[%s143 + $0x590] sm:$0xff] %v3530
      %3903 = vst.msk [vmem:[%s143 + $0x598] sm:$0xff] %vm3752, %v3643
      %3904 = vst [vmem:[%s143 + $0x5a0] sm:$0xff] %v369
      %3905 = vst [vmem:[%s143 + $0x5a8] sm:$0xff] %v482
      %3906 = vst [vmem:[%s143 + $0x5b0] sm:$0xff] %v595
      %3907 = vst [vmem:[%s143 + $0x5b8] sm:$0xff] %v708
      %3908 = vst [vmem:[%s143 + $0x5c0] sm:$0xff] %v821
      %3909 = vst [vmem:[%s143 + $0x5c8] sm:$0xff] %v934
      %3910 = vst [vmem:[%s143 + $0x5d0] sm:$0xff] %v1047
      %3911 = vst [vmem:[%s143 + $0x5d8] sm:$0xff] %v1160
      %3912 = vst [vmem:[%s143 + $0x5e0] sm:$0xff] %v1273
      %3913 = vst [vmem:[%s143 + $0x5e8] sm:$0xff] %v1386
      %3914 = vst [vmem:[%s143 + $0x5f0] sm:$0xff] %v1499
      %3915 = vst [vmem:[%s143 + $0x5f8] sm:$0xff] %v1612
      %3916 = vst [vmem:[%s143 + $0x600] sm:$0xff] %v1725
      %3917 = vst [vmem:[%s143 + $0x608] sm:$0xff] %v1838
      %3918 = vst [vmem:[%s143 + $0x610] sm:$0xff] %v1951
      %3919 = vst [vmem:[%s143 + $0x618] sm:$0xff] %v2064
      %3920 = vst [vmem:[%s143 + $0x620] sm:$0xff] %v2177
      %3921 = vst [vmem:[%s143 + $0x628] sm:$0xff] %v2290
      %3922 = vst [vmem:[%s143 + $0x630] sm:$0xff] %v2403
      %3923 = vst [vmem:[%s143 + $0x638] sm:$0xff] %v2516
      %3924 = vst [vmem:[%s143 + $0x640] sm:$0xff] %v2629
      %3925 = vst [vmem:[%s143 + $0x648] sm:$0xff] %v2742
      %3926 = vst [vmem:[%s143 + $0x650] sm:$0xff] %v2855
      %3927 = vst [vmem:[%s143 + $0x658] sm:$0xff] %v2968
      %3928 = vst [vmem:[%s143 + $0x660] sm:$0xff] %v3081
      %3929 = vst [vmem:[%s143 + $0x668] sm:$0xff] %v3194
      %3930 = vst [vmem:[%s143 + $0x670] sm:$0xff] %v3307
      %3931 = vst [vmem:[%s143 + $0x678] sm:$0xff] %v3420
      %3932 = vst [vmem:[%s143 + $0x680] sm:$0xff] %v3533
      %3933 = vst.msk [vmem:[%s143 + $0x688] sm:$0xff] %vm3752, %v3646
      %3934 = vst [vmem:[%s143 + $0x690] sm:$0xff] %v372
      %3935 = vst [vmem:[%s143 + $0x698] sm:$0xff] %v485
      %3936 = vst [vmem:[%s143 + $0x6a0] sm:$0xff] %v598
      %3937 = vst [vmem:[%s143 + $0x6a8] sm:$0xff] %v711
      %3938 = vst [vmem:[%s143 + $0x6b0] sm:$0xff] %v824
      %3939 = vst [vmem:[%s143 + $0x6b8] sm:$0xff] %v937
      %3940 = vst [vmem:[%s143 + $0x6c0] sm:$0xff] %v1050
      %3941 = vst [vmem:[%s143 + $0x6c8] sm:$0xff] %v1163
      %3942 = vst [vmem:[%s143 + $0x6d0] sm:$0xff] %v1276
      %3943 = vst [vmem:[%s143 + $0x6d8] sm:$0xff] %v1389
      %3944 = vst [vmem:[%s143 + $0x6e0] sm:$0xff] %v1502
      %3945 = vst [vmem:[%s143 + $0x6e8] sm:$0xff] %v1615
      %3946 = vst [vmem:[%s143 + $0x6f0] sm:$0xff] %v1728
      %3947 = vst [vmem:[%s143 + $0x6f8] sm:$0xff] %v1841
      %3948 = vst [vmem:[%s143 + $0x700] sm:$0xff] %v1954
      %3949 = vst [vmem:[%s143 + $0x708] sm:$0xff] %v2067
      %3950 = vst [vmem:[%s143 + $0x710] sm:$0xff] %v2180
      %3951 = vst [vmem:[%s143 + $0x718] sm:$0xff] %v2293
      %3952 = vst [vmem:[%s143 + $0x720] sm:$0xff] %v2406
      %3953 = vst [vmem:[%s143 + $0x728] sm:$0xff] %v2519
      %3954 = vst [vmem:[%s143 + $0x730] sm:$0xff] %v2632
      %3955 = vst [vmem:[%s143 + $0x738] sm:$0xff] %v2745
      %3956 = vst [vmem:[%s143 + $0x740] sm:$0xff] %v2858
      %3957 = vst [vmem:[%s143 + $0x748] sm:$0xff] %v2971
      %3958 = vst [vmem:[%s143 + $0x750] sm:$0xff] %v3084
      %3959 = vst [vmem:[%s143 + $0x758] sm:$0xff] %v3197
      %3960 = vst [vmem:[%s143 + $0x760] sm:$0xff] %v3310
      %3961 = vst [vmem:[%s143 + $0x768] sm:$0xff] %v3423
      %3962 = vst [vmem:[%s143 + $0x770] sm:$0xff] %v3536
      %3963 = vst.msk [vmem:[%s143 + $0x778] sm:$0xff] %vm3752, %v3649
      %3964 = vst [vmem:[%s143 + $0x780] sm:$0xff] %v375
      %3965 = vst [vmem:[%s143 + $0x788] sm:$0xff] %v488
      %3966 = vst [vmem:[%s143 + $0x790] sm:$0xff] %v601
      %3967 = vst [vmem:[%s143 + $0x798] sm:$0xff] %v714
      %3968 = vst [vmem:[%s143 + $0x7a0] sm:$0xff] %v827
      %3969 = vst [vmem:[%s143 + $0x7a8] sm:$0xff] %v940
      %3970 = vst [vmem:[%s143 + $0x7b0] sm:$0xff] %v1053
      %3971 = vst [vmem:[%s143 + $0x7b8] sm:$0xff] %v1166
      %3972 = vst [vmem:[%s143 + $0x7c0] sm:$0xff] %v1279
      %3973 = vst [vmem:[%s143 + $0x7c8] sm:$0xff] %v1392
      %3974 = vst [vmem:[%s143 + $0x7d0] sm:$0xff] %v1505
      %3975 = vst [vmem:[%s143 + $0x7d8] sm:$0xff] %v1618
      %3976 = vst [vmem:[%s143 + $0x7e0] sm:$0xff] %v1731
      %3977 = vst [vmem:[%s143 + $0x7e8] sm:$0xff] %v1844
      %3978 = vst [vmem:[%s143 + $0x7f0] sm:$0xff] %v1957
      %3979 = vst [vmem:[%s143 + $0x7f8] sm:$0xff] %v2070
      %3980 = vst [vmem:[%s143 + $0x800] sm:$0xff] %v2183
      %3981 = vst [vmem:[%s143 + $0x808] sm:$0xff] %v2296
      %3982 = vst [vmem:[%s143 + $0x810] sm:$0xff] %v2409
      %3983 = vst [vmem:[%s143 + $0x818] sm:$0xff] %v2522
      %3984 = vst [vmem:[%s143 + $0x820] sm:$0xff] %v2635
      %3985 = vst [vmem:[%s143 + $0x828] sm:$0xff] %v2748
      %3986 = vst [vmem:[%s143 + $0x830] sm:$0xff] %v2861
      %3987 = vst [vmem:[%s143 + $0x838] sm:$0xff] %v2974
      %3988 = vst [vmem:[%s143 + $0x840] sm:$0xff] %v3087
      %3989 = vst [vmem:[%s143 + $0x848] sm:$0xff] %v3200
      %3990 = vst [vmem:[%s143 + $0x850] sm:$0xff] %v3313
      %3991 = vst [vmem:[%s143 + $0x858] sm:$0xff] %v3426
      %3992 = vst [vmem:[%s143 + $0x860] sm:$0xff] %v3539
      %3993 = vst.msk [vmem:[%s143 + $0x868] sm:$0xff] %vm3752, %v3652
      %3994 = vst [vmem:[%s143 + $0x870] sm:$0xff] %v378
      %3995 = vst [vmem:[%s143 + $0x878] sm:$0xff] %v491
      %3996 = vst [vmem:[%s143 + $0x880] sm:$0xff] %v604
      %3997 = vst [vmem:[%s143 + $0x888] sm:$0xff] %v717
      %3998 = vst [vmem:[%s143 + $0x890] sm:$0xff] %v830
      %3999 = vst [vmem:[%s143 + $0x898] sm:$0xff] %v943
      %4000 = vst [vmem:[%s143 + $0x8a0] sm:$0xff] %v1056
      %4001 = vst [vmem:[%s143 + $0x8a8] sm:$0xff] %v1169
      %4002 = vst [vmem:[%s143 + $0x8b0] sm:$0xff] %v1282
      %4003 = vst [vmem:[%s143 + $0x8b8] sm:$0xff] %v1395
      %4004 = vst [vmem:[%s143 + $0x8c0] sm:$0xff] %v1508
      %4005 = vst [vmem:[%s143 + $0x8c8] sm:$0xff] %v1621
      %4006 = vst [vmem:[%s143 + $0x8d0] sm:$0xff] %v1734
      %4007 = vst [vmem:[%s143 + $0x8d8] sm:$0xff] %v1847
      %4008 = vst [vmem:[%s143 + $0x8e0] sm:$0xff] %v1960
      %4009 = vst [vmem:[%s143 + $0x8e8] sm:$0xff] %v2073
      %4010 = vst [vmem:[%s143 + $0x8f0] sm:$0xff] %v2186
      %4011 = vst [vmem:[%s143 + $0x8f8] sm:$0xff] %v2299
      %4012 = vst [vmem:[%s143 + $0x900] sm:$0xff] %v2412
      %4013 = vst [vmem:[%s143 + $0x908] sm:$0xff] %v2525
      %4014 = vst [vmem:[%s143 + $0x910] sm:$0xff] %v2638
      %4015 = vst [vmem:[%s143 + $0x918] sm:$0xff] %v2751
      %4016 = vst [vmem:[%s143 + $0x920] sm:$0xff] %v2864
      %4017 = vst [vmem:[%s143 + $0x928] sm:$0xff] %v2977
      %4018 = vst [vmem:[%s143 + $0x930] sm:$0xff] %v3090
      %4019 = vst [vmem:[%s143 + $0x938] sm:$0xff] %v3203
      %4020 = vst [vmem:[%s143 + $0x940] sm:$0xff] %v3316
      %4021 = vst [vmem:[%s143 + $0x948] sm:$0xff] %v3429
      %4022 = vst [vmem:[%s143 + $0x950] sm:$0xff] %v3542
      %4023 = vst.msk [vmem:[%s143 + $0x958] sm:$0xff] %vm3752, %v3655
      %4024 = vst [vmem:[%s143 + $0x960] sm:$0xff] %v381
      %4025 = vst [vmem:[%s143 + $0x968] sm:$0xff] %v494
      %4026 = vst [vmem:[%s143 + $0x970] sm:$0xff] %v607
      %4027 = vst [vmem:[%s143 + $0x978] sm:$0xff] %v720
      %4028 = vst [vmem:[%s143 + $0x980] sm:$0xff] %v833
      %4029 = vst [vmem:[%s143 + $0x988] sm:$0xff] %v946
      %4030 = vst [vmem:[%s143 + $0x990] sm:$0xff] %v1059
      %4031 = vst [vmem:[%s143 + $0x998] sm:$0xff] %v1172
      %4032 = vst [vmem:[%s143 + $0x9a0] sm:$0xff] %v1285
      %4033 = vst [vmem:[%s143 + $0x9a8] sm:$0xff] %v1398
      %4034 = vst [vmem:[%s143 + $0x9b0] sm:$0xff] %v1511
      %4035 = vst [vmem:[%s143 + $0x9b8] sm:$0xff] %v1624
      %4036 = vst [vmem:[%s143 + $0x9c0] sm:$0xff] %v1737
      %4037 = vst [vmem:[%s143 + $0x9c8] sm:$0xff] %v1850
      %4038 = vst [vmem:[%s143 + $0x9d0] sm:$0xff] %v1963
      %4039 = vst [vmem:[%s143 + $0x9d8] sm:$0xff] %v2076
      %4040 = vst [vmem:[%s143 + $0x9e0] sm:$0xff] %v2189
      %4041 = vst [vmem:[%s143 + $0x9e8] sm:$0xff] %v2302
      %4042 = vst [vmem:[%s143 + $0x9f0] sm:$0xff] %v2415
      %4043 = vst [vmem:[%s143 + $0x9f8] sm:$0xff] %v2528
      %4044 = vst [vmem:[%s143 + $0xa00] sm:$0xff] %v2641
      %4045 = vst [vmem:[%s143 + $0xa08] sm:$0xff] %v2754
      %4046 = vst [vmem:[%s143 + $0xa10] sm:$0xff] %v2867
      %4047 = vst [vmem:[%s143 + $0xa18] sm:$0xff] %v2980
      %4048 = vst [vmem:[%s143 + $0xa20] sm:$0xff] %v3093
      %4049 = vst [vmem:[%s143 + $0xa28] sm:$0xff] %v3206
      %4050 = vst [vmem:[%s143 + $0xa30] sm:$0xff] %v3319
      %4051 = vst [vmem:[%s143 + $0xa38] sm:$0xff] %v3432
      %4052 = vst [vmem:[%s143 + $0xa40] sm:$0xff] %v3545
      %4053 = vst.msk [vmem:[%s143 + $0xa48] sm:$0xff] %vm3752, %v3658
      %4054 = vst [vmem:[%s143 + $0xa50] sm:$0xff] %v384
      %4055 = vst [vmem:[%s143 + $0xa58] sm:$0xff] %v497
      %4056 = vst [vmem:[%s143 + $0xa60] sm:$0xff] %v610
      %4057 = vst [vmem:[%s143 + $0xa68] sm:$0xff] %v723
      %4058 = vst [vmem:[%s143 + $0xa70] sm:$0xff] %v836
      %4059 = vst [vmem:[%s143 + $0xa78] sm:$0xff] %v949
      %4060 = vst [vmem:[%s143 + $0xa80] sm:$0xff] %v1062
      %4061 = vst [vmem:[%s143 + $0xa88] sm:$0xff] %v1175
      %4062 = vst [vmem:[%s143 + $0xa90] sm:$0xff] %v1288
      %4063 = vst [vmem:[%s143 + $0xa98] sm:$0xff] %v1401
      %4064 = vst [vmem:[%s143 + $0xaa0] sm:$0xff] %v1514
      %4065 = vst [vmem:[%s143 + $0xaa8] sm:$0xff] %v1627
      %4066 = vst [vmem:[%s143 + $0xab0] sm:$0xff] %v1740
      %4067 = vst [vmem:[%s143 + $0xab8] sm:$0xff] %v1853
      %4068 = vst [vmem:[%s143 + $0xac0] sm:$0xff] %v1966
      %4069 = vst [vmem:[%s143 + $0xac8] sm:$0xff] %v2079
      %4070 = vst [vmem:[%s143 + $0xad0] sm:$0xff] %v2192
      %4071 = vst [vmem:[%s143 + $0xad8] sm:$0xff] %v2305
      %4072 = vst [vmem:[%s143 + $0xae0] sm:$0xff] %v2418
      %4073 = vst [vmem:[%s143 + $0xae8] sm:$0xff] %v2531
      %4074 = vst [vmem:[%s143 + $0xaf0] sm:$0xff] %v2644
      %4075 = vst [vmem:[%s143 + $0xaf8] sm:$0xff] %v2757
      %4076 = vst [vmem:[%s143 + $0xb00] sm:$0xff] %v2870
      %4077 = vst [vmem:[%s143 + $0xb08] sm:$0xff] %v2983
      %4078 = vst [vmem:[%s143 + $0xb10] sm:$0xff] %v3096
      %4079 = vst [vmem:[%s143 + $0xb18] sm:$0xff] %v3209
      %4080 = vst [vmem:[%s143 + $0xb20] sm:$0xff] %v3322
      %4081 = vst [vmem:[%s143 + $0xb28] sm:$0xff] %v3435
      %4082 = vst [vmem:[%s143 + $0xb30] sm:$0xff] %v3548
      %4083 = vst.msk [vmem:[%s143 + $0xb38] sm:$0xff] %vm3752, %v3661
      %4084 = vst [vmem:[%s143 + $0xb40] sm:$0xff] %v387
      %4085 = vst [vmem:[%s143 + $0xb48] sm:$0xff] %v500
      %4086 = vst [vmem:[%s143 + $0xb50] sm:$0xff] %v613
      %4087 = vst [vmem:[%s143 + $0xb58] sm:$0xff] %v726
      %4088 = vst [vmem:[%s143 + $0xb60] sm:$0xff] %v839
      %4089 = vst [vmem:[%s143 + $0xb68] sm:$0xff] %v952
      %4090 = vst [vmem:[%s143 + $0xb70] sm:$0xff] %v1065
      %4091 = vst [vmem:[%s143 + $0xb78] sm:$0xff] %v1178
      %4092 = vst [vmem:[%s143 + $0xb80] sm:$0xff] %v1291
      %4093 = vst [vmem:[%s143 + $0xb88] sm:$0xff] %v1404
      %4094 = vst [vmem:[%s143 + $0xb90] sm:$0xff] %v1517
      %4095 = vst [vmem:[%s143 + $0xb98] sm:$0xff] %v1630
      %4096 = vst [vmem:[%s143 + $0xba0] sm:$0xff] %v1743
      %4097 = vst [vmem:[%s143 + $0xba8] sm:$0xff] %v1856
      %4098 = vst [vmem:[%s143 + $0xbb0] sm:$0xff] %v1969
      %4099 = vst [vmem:[%s143 + $0xbb8] sm:$0xff] %v2082
      %4100 = vst [vmem:[%s143 + $0xbc0] sm:$0xff] %v2195
      %4101 = vst [vmem:[%s143 + $0xbc8] sm:$0xff] %v2308
      %4102 = vst [vmem:[%s143 + $0xbd0] sm:$0xff] %v2421
      %4103 = vst [vmem:[%s143 + $0xbd8] sm:$0xff] %v2534
      %4104 = vst [vmem:[%s143 + $0xbe0] sm:$0xff] %v2647
      %4105 = vst [vmem:[%s143 + $0xbe8] sm:$0xff] %v2760
      %4106 = vst [vmem:[%s143 + $0xbf0] sm:$0xff] %v2873
      %4107 = vst [vmem:[%s143 + $0xbf8] sm:$0xff] %v2986
      %4108 = vst [vmem:[%s143 + $0xc00] sm:$0xff] %v3099
      %4109 = vst [vmem:[%s143 + $0xc08] sm:$0xff] %v3212
      %4110 = vst [vmem:[%s143 + $0xc10] sm:$0xff] %v3325
      %4111 = vst [vmem:[%s143 + $0xc18] sm:$0xff] %v3438
      %4112 = vst [vmem:[%s143 + $0xc20] sm:$0xff] %v3551
      %4113 = vst.msk [vmem:[%s143 + $0xc28] sm:$0xff] %vm3752, %v3664
      %4114 = vst [vmem:[%s143 + $0xc30] sm:$0xff] %v390
      %4115 = vst [vmem:[%s143 + $0xc38] sm:$0xff] %v503
      %4116 = vst [vmem:[%s143 + $0xc40] sm:$0xff] %v616
      %4117 = vst [vmem:[%s143 + $0xc48] sm:$0xff] %v729
      %4118 = vst [vmem:[%s143 + $0xc50] sm:$0xff] %v842
      %4119 = vst [vmem:[%s143 + $0xc58] sm:$0xff] %v955
      %4120 = vst [vmem:[%s143 + $0xc60] sm:$0xff] %v1068
      %4121 = vst [vmem:[%s143 + $0xc68] sm:$0xff] %v1181
      %4122 = vst [vmem:[%s143 + $0xc70] sm:$0xff] %v1294
      %4123 = vst [vmem:[%s143 + $0xc78] sm:$0xff] %v1407
      %4124 = vst [vmem:[%s143 + $0xc80] sm:$0xff] %v1520
      %4125 = vst [vmem:[%s143 + $0xc88] sm:$0xff] %v1633
      %4126 = vst [vmem:[%s143 + $0xc90] sm:$0xff] %v1746
      %4127 = vst [vmem:[%s143 + $0xc98] sm:$0xff] %v1859
      %4128 = vst [vmem:[%s143 + $0xca0] sm:$0xff] %v1972
      %4129 = vst [vmem:[%s143 + $0xca8] sm:$0xff] %v2085
      %4130 = vst [vmem:[%s143 + $0xcb0] sm:$0xff] %v2198
      %4131 = vst [vmem:[%s143 + $0xcb8] sm:$0xff] %v2311
      %4132 = vst [vmem:[%s143 + $0xcc0] sm:$0xff] %v2424
      %4133 = vst [vmem:[%s143 + $0xcc8] sm:$0xff] %v2537
      %4134 = vst [vmem:[%s143 + $0xcd0] sm:$0xff] %v2650
      %4135 = vst [vmem:[%s143 + $0xcd8] sm:$0xff] %v2763
      %4136 = vst [vmem:[%s143 + $0xce0] sm:$0xff] %v2876
      %4137 = vst [vmem:[%s143 + $0xce8] sm:$0xff] %v2989
      %4138 = vst [vmem:[%s143 + $0xcf0] sm:$0xff] %v3102
      %4139 = vst [vmem:[%s143 + $0xcf8] sm:$0xff] %v3215
      %4140 = vst [vmem:[%s143 + $0xd00] sm:$0xff] %v3328
      %4141 = vst [vmem:[%s143 + $0xd08] sm:$0xff] %v3441
      %4142 = vst [vmem:[%s143 + $0xd10] sm:$0xff] %v3554
      %4143 = vst.msk [vmem:[%s143 + $0xd18] sm:$0xff] %vm3752, %v3667
      %4144 = vst [vmem:[%s143 + $0xd20] sm:$0xff] %v393
      %4145 = vst [vmem:[%s143 + $0xd28] sm:$0xff] %v506
      %4146 = vst [vmem:[%s143 + $0xd30] sm:$0xff] %v619
      %4147 = vst [vmem:[%s143 + $0xd38] sm:$0xff] %v732
      %4148 = vst [vmem:[%s143 + $0xd40] sm:$0xff] %v845
      %4149 = vst [vmem:[%s143 + $0xd48] sm:$0xff] %v958
      %4150 = vst [vmem:[%s143 + $0xd50] sm:$0xff] %v1071
      %4151 = vst [vmem:[%s143 + $0xd58] sm:$0xff] %v1184
      %4152 = vst [vmem:[%s143 + $0xd60] sm:$0xff] %v1297
      %4153 = vst [vmem:[%s143 + $0xd68] sm:$0xff] %v1410
      %4154 = vst [vmem:[%s143 + $0xd70] sm:$0xff] %v1523
      %4155 = vst [vmem:[%s143 + $0xd78] sm:$0xff] %v1636
      %4156 = vst [vmem:[%s143 + $0xd80] sm:$0xff] %v1749
      %4157 = vst [vmem:[%s143 + $0xd88] sm:$0xff] %v1862
      %4158 = vst [vmem:[%s143 + $0xd90] sm:$0xff] %v1975
      %4159 = vst [vmem:[%s143 + $0xd98] sm:$0xff] %v2088
      %4160 = vst [vmem:[%s143 + $0xda0] sm:$0xff] %v2201
      %4161 = vst [vmem:[%s143 + $0xda8] sm:$0xff] %v2314
      %4162 = vst [vmem:[%s143 + $0xdb0] sm:$0xff] %v2427
      %4163 = vst [vmem:[%s143 + $0xdb8] sm:$0xff] %v2540
      %4164 = vst [vmem:[%s143 + $0xdc0] sm:$0xff] %v2653
      %4165 = vst [vmem:[%s143 + $0xdc8] sm:$0xff] %v2766
      %4166 = vst [vmem:[%s143 + $0xdd0] sm:$0xff] %v2879
      %4167 = vst [vmem:[%s143 + $0xdd8] sm:$0xff] %v2992
      %4168 = vst [vmem:[%s143 + $0xde0] sm:$0xff] %v3105
      %4169 = vst [vmem:[%s143 + $0xde8] sm:$0xff] %v3218
      %4170 = vst [vmem:[%s143 + $0xdf0] sm:$0xff] %v3331
      %4171 = vst [vmem:[%s143 + $0xdf8] sm:$0xff] %v3444
      %4172 = vst [vmem:[%s143 + $0xe00] sm:$0xff] %v3557
      %4173 = vst.msk [vmem:[%s143 + $0xe08] sm:$0xff] %vm3752, %v3670
      %4174 = vst [vmem:[%s143 + $0xe10] sm:$0xff] %v396
      %4175 = vst [vmem:[%s143 + $0xe18] sm:$0xff] %v509
      %4176 = vst [vmem:[%s143 + $0xe20] sm:$0xff] %v622
      %4177 = vst [vmem:[%s143 + $0xe28] sm:$0xff] %v735
      %4178 = vst [vmem:[%s143 + $0xe30] sm:$0xff] %v848
      %4179 = vst [vmem:[%s143 + $0xe38] sm:$0xff] %v961
      %4180 = vst [vmem:[%s143 + $0xe40] sm:$0xff] %v1074
      %4181 = vst [vmem:[%s143 + $0xe48] sm:$0xff] %v1187
      %4182 = vst [vmem:[%s143 + $0xe50] sm:$0xff] %v1300
      %4183 = vst [vmem:[%s143 + $0xe58] sm:$0xff] %v1413
      %4184 = vst [vmem:[%s143 + $0xe60] sm:$0xff] %v1526
      %4185 = vst [vmem:[%s143 + $0xe68] sm:$0xff] %v1639
      %4186 = vst [vmem:[%s143 + $0xe70] sm:$0xff] %v1752
      %4187 = vst [vmem:[%s143 + $0xe78] sm:$0xff] %v1865
      %4188 = vst [vmem:[%s143 + $0xe80] sm:$0xff] %v1978
      %4189 = vst [vmem:[%s143 + $0xe88] sm:$0xff] %v2091
      %4190 = vst [vmem:[%s143 + $0xe90] sm:$0xff] %v2204
      %4191 = vst [vmem:[%s143 + $0xe98] sm:$0xff] %v2317
      %4192 = vst [vmem:[%s143 + $0xea0] sm:$0xff] %v2430
      %4193 = vst [vmem:[%s143 + $0xea8] sm:$0xff] %v2543
      %4194 = vst [vmem:[%s143 + $0xeb0] sm:$0xff] %v2656
      %4195 = vst [vmem:[%s143 + $0xeb8] sm:$0xff] %v2769
      %4196 = vst [vmem:[%s143 + $0xec0] sm:$0xff] %v2882
      %4197 = vst [vmem:[%s143 + $0xec8] sm:$0xff] %v2995
      %4198 = vst [vmem:[%s143 + $0xed0] sm:$0xff] %v3108
      %4199 = vst [vmem:[%s143 + $0xed8] sm:$0xff] %v3221
      %4200 = vst [vmem:[%s143 + $0xee0] sm:$0xff] %v3334
      %4201 = vst [vmem:[%s143 + $0xee8] sm:$0xff] %v3447
      %4202 = vst [vmem:[%s143 + $0xef0] sm:$0xff] %v3560
      %4203 = vst.msk [vmem:[%s143 + $0xef8] sm:$0xff] %vm3752, %v3673
      %4204 = vst [vmem:[%s143 + $0xf00] sm:$0xff] %v399
      %4205 = vst [vmem:[%s143 + $0xf08] sm:$0xff] %v512
      %4206 = vst [vmem:[%s143 + $0xf10] sm:$0xff] %v625
      %4207 = vst [vmem:[%s143 + $0xf18] sm:$0xff] %v738
      %4208 = vst [vmem:[%s143 + $0xf20] sm:$0xff] %v851
      %4209 = vst [vmem:[%s143 + $0xf28] sm:$0xff] %v964
      %4210 = vst [vmem:[%s143 + $0xf30] sm:$0xff] %v1077
      %4211 = vst [vmem:[%s143 + $0xf38] sm:$0xff] %v1190
      %4212 = vst [vmem:[%s143 + $0xf40] sm:$0xff] %v1303
      %4213 = vst [vmem:[%s143 + $0xf48] sm:$0xff] %v1416
      %4214 = vst [vmem:[%s143 + $0xf50] sm:$0xff] %v1529
      %4215 = vst [vmem:[%s143 + $0xf58] sm:$0xff] %v1642
      %4216 = vst [vmem:[%s143 + $0xf60] sm:$0xff] %v1755
      %4217 = vst [vmem:[%s143 + $0xf68] sm:$0xff] %v1868
      %4218 = vst [vmem:[%s143 + $0xf70] sm:$0xff] %v1981
      %4219 = vst [vmem:[%s143 + $0xf78] sm:$0xff] %v2094
      %4220 = vst [vmem:[%s143 + $0xf80] sm:$0xff] %v2207
      %4221 = vst [vmem:[%s143 + $0xf88] sm:$0xff] %v2320
      %4222 = vst [vmem:[%s143 + $0xf90] sm:$0xff] %v2433
      %4223 = vst [vmem:[%s143 + $0xf98] sm:$0xff] %v2546
      %4224 = vst [vmem:[%s143 + $0xfa0] sm:$0xff] %v2659
      %4225 = vst [vmem:[%s143 + $0xfa8] sm:$0xff] %v2772
      %4226 = vst [vmem:[%s143 + $0xfb0] sm:$0xff] %v2885
      %4227 = vst [vmem:[%s143 + $0xfb8] sm:$0xff] %v2998
      %4228 = vst [vmem:[%s143 + $0xfc0] sm:$0xff] %v3111
      %4229 = vst [vmem:[%s143 + $0xfc8] sm:$0xff] %v3224
      %4230 = vst [vmem:[%s143 + $0xfd0] sm:$0xff] %v3337
      %4231 = vst [vmem:[%s143 + $0xfd8] sm:$0xff] %v3450
      %4232 = vst [vmem:[%s143 + $0xfe0] sm:$0xff] %v3563
      %4233 = vst.msk [vmem:[%s143 + $0xfe8] sm:$0xff] %vm3752, %v3676
      %4234 = vst [vmem:[%s143 + $0xff0] sm:$0xff] %v402
      %4235 = vst [vmem:[%s143 + $0xff8] sm:$0xff] %v515
      %4236 = vst [vmem:[%s143 + $0x1000] sm:$0xff] %v628
      %4237 = vst [vmem:[%s143 + $0x1008] sm:$0xff] %v741
      %4238 = vst [vmem:[%s143 + $0x1010] sm:$0xff] %v854
      %4239 = vst [vmem:[%s143 + $0x1018] sm:$0xff] %v967
      %4240 = vst [vmem:[%s143 + $0x1020] sm:$0xff] %v1080
      %4241 = vst [vmem:[%s143 + $0x1028] sm:$0xff] %v1193
      %4242 = vst [vmem:[%s143 + $0x1030] sm:$0xff] %v1306
      %4243 = vst [vmem:[%s143 + $0x1038] sm:$0xff] %v1419
      %4244 = vst [vmem:[%s143 + $0x1040] sm:$0xff] %v1532
      %4245 = vst [vmem:[%s143 + $0x1048] sm:$0xff] %v1645
      %4246 = vst [vmem:[%s143 + $0x1050] sm:$0xff] %v1758
      %4247 = vst [vmem:[%s143 + $0x1058] sm:$0xff] %v1871
      %4248 = vst [vmem:[%s143 + $0x1060] sm:$0xff] %v1984
      %4249 = vst [vmem:[%s143 + $0x1068] sm:$0xff] %v2097
      %4250 = vst [vmem:[%s143 + $0x1070] sm:$0xff] %v2210
      %4251 = vst [vmem:[%s143 + $0x1078] sm:$0xff] %v2323
      %4252 = vst [vmem:[%s143 + $0x1080] sm:$0xff] %v2436
      %4253 = vst [vmem:[%s143 + $0x1088] sm:$0xff] %v2549
      %4254 = vst [vmem:[%s143 + $0x1090] sm:$0xff] %v2662
      %4255 = vst [vmem:[%s143 + $0x1098] sm:$0xff] %v2775
      %4256 = vst [vmem:[%s143 + $0x10a0] sm:$0xff] %v2888
      %4257 = vst [vmem:[%s143 + $0x10a8] sm:$0xff] %v3001
      %4258 = vst [vmem:[%s143 + $0x10b0] sm:$0xff] %v3114
      %4259 = vst [vmem:[%s143 + $0x10b8] sm:$0xff] %v3227
      %4260 = vst [vmem:[%s143 + $0x10c0] sm:$0xff] %v3340
      %4261 = vst [vmem:[%s143 + $0x10c8] sm:$0xff] %v3453
      %4262 = vst [vmem:[%s143 + $0x10d0] sm:$0xff] %v3566
      %4263 = vst.msk [vmem:[%s143 + $0x10d8] sm:$0xff] %vm3752, %v3679
      %4264 = vst [vmem:[%s143 + $0x10e0] sm:$0xff] %v405
      %4265 = vst [vmem:[%s143 + $0x10e8] sm:$0xff] %v518
      %4266 = vst [vmem:[%s143 + $0x10f0] sm:$0xff] %v631
      %4267 = vst [vmem:[%s143 + $0x10f8] sm:$0xff] %v744
      %4268 = vst [vmem:[%s143 + $0x1100] sm:$0xff] %v857
      %4269 = vst [vmem:[%s143 + $0x1108] sm:$0xff] %v970
      %4270 = vst [vmem:[%s143 + $0x1110] sm:$0xff] %v1083
      %4271 = vst [vmem:[%s143 + $0x1118] sm:$0xff] %v1196
      %4272 = vst [vmem:[%s143 + $0x1120] sm:$0xff] %v1309
      %4273 = vst [vmem:[%s143 + $0x1128] sm:$0xff] %v1422
      %4274 = vst [vmem:[%s143 + $0x1130] sm:$0xff] %v1535
      %4275 = vst [vmem:[%s143 + $0x1138] sm:$0xff] %v1648
      %4276 = vst [vmem:[%s143 + $0x1140] sm:$0xff] %v1761
      %4277 = vst [vmem:[%s143 + $0x1148] sm:$0xff] %v1874
      %4278 = vst [vmem:[%s143 + $0x1150] sm:$0xff] %v1987
      %4279 = vst [vmem:[%s143 + $0x1158] sm:$0xff] %v2100
      %4280 = vst [vmem:[%s143 + $0x1160] sm:$0xff] %v2213
      %4281 = vst [vmem:[%s143 + $0x1168] sm:$0xff] %v2326
      %4282 = vst [vmem:[%s143 + $0x1170] sm:$0xff] %v2439
      %4283 = vst [vmem:[%s143 + $0x1178] sm:$0xff] %v2552
      %4284 = vst [vmem:[%s143 + $0x1180] sm:$0xff] %v2665
      %4285 = vst [vmem:[%s143 + $0x1188] sm:$0xff] %v2778
      %4286 = vst [vmem:[%s143 + $0x1190] sm:$0xff] %v2891
      %4287 = vst [vmem:[%s143 + $0x1198] sm:$0xff] %v3004
      %4288 = vst [vmem:[%s143 + $0x11a0] sm:$0xff] %v3117
      %4289 = vst [vmem:[%s143 + $0x11a8] sm:$0xff] %v3230
      %4290 = vst [vmem:[%s143 + $0x11b0] sm:$0xff] %v3343
      %4291 = vst [vmem:[%s143 + $0x11b8] sm:$0xff] %v3456
      %4292 = vst [vmem:[%s143 + $0x11c0] sm:$0xff] %v3569
      %4293 = vst.msk [vmem:[%s143 + $0x11c8] sm:$0xff] %vm3752, %v3682
      %4294 = vst [vmem:[%s143 + $0x11d0] sm:$0xff] %v408
      %4295 = vst [vmem:[%s143 + $0x11d8] sm:$0xff] %v521
      %4296 = vst [vmem:[%s143 + $0x11e0] sm:$0xff] %v634
      %4297 = vst [vmem:[%s143 + $0x11e8] sm:$0xff] %v747
      %4298 = vst [vmem:[%s143 + $0x11f0] sm:$0xff] %v860
      %4299 = vst [vmem:[%s143 + $0x11f8] sm:$0xff] %v973
      %4300 = vst [vmem:[%s143 + $0x1200] sm:$0xff] %v1086
      %4301 = vst [vmem:[%s143 + $0x1208] sm:$0xff] %v1199
      %4302 = vst [vmem:[%s143 + $0x1210] sm:$0xff] %v1312
      %4303 = vst [vmem:[%s143 + $0x1218] sm:$0xff] %v1425
      %4304 = vst [vmem:[%s143 + $0x1220] sm:$0xff] %v1538
      %4305 = vst [vmem:[%s143 + $0x1228] sm:$0xff] %v1651
      %4306 = vst [vmem:[%s143 + $0x1230] sm:$0xff] %v1764
      %4307 = vst [vmem:[%s143 + $0x1238] sm:$0xff] %v1877
      %4308 = vst [vmem:[%s143 + $0x1240] sm:$0xff] %v1990
      %4309 = vst [vmem:[%s143 + $0x1248] sm:$0xff] %v2103
      %4310 = vst [vmem:[%s143 + $0x1250] sm:$0xff] %v2216
      %4311 = vst [vmem:[%s143 + $0x1258] sm:$0xff] %v2329
      %4312 = vst [vmem:[%s143 + $0x1260] sm:$0xff] %v2442
      %4313 = vst [vmem:[%s143 + $0x1268] sm:$0xff] %v2555
      %4314 = vst [vmem:[%s143 + $0x1270] sm:$0xff] %v2668
      %4315 = vst [vmem:[%s143 + $0x1278] sm:$0xff] %v2781
      %4316 = vst [vmem:[%s143 + $0x1280] sm:$0xff] %v2894
      %4317 = vst [vmem:[%s143 + $0x1288] sm:$0xff] %v3007
      %4318 = vst [vmem:[%s143 + $0x1290] sm:$0xff] %v3120
      %4319 = vst [vmem:[%s143 + $0x1298] sm:$0xff] %v3233
      %4320 = vst [vmem:[%s143 + $0x12a0] sm:$0xff] %v3346
      %4321 = vst [vmem:[%s143 + $0x12a8] sm:$0xff] %v3459
      %4322 = vst [vmem:[%s143 + $0x12b0] sm:$0xff] %v3572
      %4323 = vst.msk [vmem:[%s143 + $0x12b8] sm:$0xff] %vm3752, %v3685
      %4324 = vst [vmem:[%s143 + $0x12c0] sm:$0xff] %v411
      %4325 = vst [vmem:[%s143 + $0x12c8] sm:$0xff] %v524
      %4326 = vst [vmem:[%s143 + $0x12d0] sm:$0xff] %v637
      %4327 = vst [vmem:[%s143 + $0x12d8] sm:$0xff] %v750
      %4328 = vst [vmem:[%s143 + $0x12e0] sm:$0xff] %v863
      %4329 = vst [vmem:[%s143 + $0x12e8] sm:$0xff] %v976
      %4330 = vst [vmem:[%s143 + $0x12f0] sm:$0xff] %v1089
      %4331 = vst [vmem:[%s143 + $0x12f8] sm:$0xff] %v1202
      %4332 = vst [vmem:[%s143 + $0x1300] sm:$0xff] %v1315
      %4333 = vst [vmem:[%s143 + $0x1308] sm:$0xff] %v1428
      %4334 = vst [vmem:[%s143 + $0x1310] sm:$0xff] %v1541
      %4335 = vst [vmem:[%s143 + $0x1318] sm:$0xff] %v1654
      %4336 = vst [vmem:[%s143 + $0x1320] sm:$0xff] %v1767
      %4337 = vst [vmem:[%s143 + $0x1328] sm:$0xff] %v1880
      %4338 = vst [vmem:[%s143 + $0x1330] sm:$0xff] %v1993
      %4339 = vst [vmem:[%s143 + $0x1338] sm:$0xff] %v2106
      %4340 = vst [vmem:[%s143 + $0x1340] sm:$0xff] %v2219
      %4341 = vst [vmem:[%s143 + $0x1348] sm:$0xff] %v2332
      %4342 = vst [vmem:[%s143 + $0x1350] sm:$0xff] %v2445
      %4343 = vst [vmem:[%s143 + $0x1358] sm:$0xff] %v2558
      %4344 = vst [vmem:[%s143 + $0x1360] sm:$0xff] %v2671
      %4345 = vst [vmem:[%s143 + $0x1368] sm:$0xff] %v2784
      %4346 = vst [vmem:[%s143 + $0x1370] sm:$0xff] %v2897
      %4347 = vst [vmem:[%s143 + $0x1378] sm:$0xff] %v3010
      %4348 = vst [vmem:[%s143 + $0x1380] sm:$0xff] %v3123
      %4349 = vst [vmem:[%s143 + $0x1388] sm:$0xff] %v3236
      %4350 = vst [vmem:[%s143 + $0x1390] sm:$0xff] %v3349
      %4351 = vst [vmem:[%s143 + $0x1398] sm:$0xff] %v3462
      %4352 = vst [vmem:[%s143 + $0x13a0] sm:$0xff] %v3575
      %4353 = vst.msk [vmem:[%s143 + $0x13a8] sm:$0xff] %vm3752, %v3688
      %4354 = vst [vmem:[%s143 + $0x13b0] sm:$0xff] %v414
      %4355 = vst [vmem:[%s143 + $0x13b8] sm:$0xff] %v527
      %4356 = vst [vmem:[%s143 + $0x13c0] sm:$0xff] %v640
      %4357 = vst [vmem:[%s143 + $0x13c8] sm:$0xff] %v753
      %4358 = vst [vmem:[%s143 + $0x13d0] sm:$0xff] %v866
      %4359 = vst [vmem:[%s143 + $0x13d8] sm:$0xff] %v979
      %4360 = vst [vmem:[%s143 + $0x13e0] sm:$0xff] %v1092
      %4361 = vst [vmem:[%s143 + $0x13e8] sm:$0xff] %v1205
      %4362 = vst [vmem:[%s143 + $0x13f0] sm:$0xff] %v1318
      %4363 = vst [vmem:[%s143 + $0x13f8] sm:$0xff] %v1431
      %4364 = vst [vmem:[%s143 + $0x1400] sm:$0xff] %v1544
      %4365 = vst [vmem:[%s143 + $0x1408] sm:$0xff] %v1657
      %4366 = vst [vmem:[%s143 + $0x1410] sm:$0xff] %v1770
      %4367 = vst [vmem:[%s143 + $0x1418] sm:$0xff] %v1883
      %4368 = vst [vmem:[%s143 + $0x1420] sm:$0xff] %v1996
      %4369 = vst [vmem:[%s143 + $0x1428] sm:$0xff] %v2109
      %4370 = vst [vmem:[%s143 + $0x1430] sm:$0xff] %v2222
      %4371 = vst [vmem:[%s143 + $0x1438] sm:$0xff] %v2335
      %4372 = vst [vmem:[%s143 + $0x1440] sm:$0xff] %v2448
      %4373 = vst [vmem:[%s143 + $0x1448] sm:$0xff] %v2561
      %4374 = vst [vmem:[%s143 + $0x1450] sm:$0xff] %v2674
      %4375 = vst [vmem:[%s143 + $0x1458] sm:$0xff] %v2787
      %4376 = vst [vmem:[%s143 + $0x1460] sm:$0xff] %v2900
      %4377 = vst [vmem:[%s143 + $0x1468] sm:$0xff] %v3013
      %4378 = vst [vmem:[%s143 + $0x1470] sm:$0xff] %v3126
      %4379 = vst [vmem:[%s143 + $0x1478] sm:$0xff] %v3239
      %4380 = vst [vmem:[%s143 + $0x1480] sm:$0xff] %v3352
      %4381 = vst [vmem:[%s143 + $0x1488] sm:$0xff] %v3465
      %4382 = vst [vmem:[%s143 + $0x1490] sm:$0xff] %v3578
      %4383 = vst.msk [vmem:[%s143 + $0x1498] sm:$0xff] %vm3752, %v3691
      %4384 = vst [vmem:[%s143 + $0x14a0] sm:$0xff] %v417
      %4385 = vst [vmem:[%s143 + $0x14a8] sm:$0xff] %v530
      %4386 = vst [vmem:[%s143 + $0x14b0] sm:$0xff] %v643
      %4387 = vst [vmem:[%s143 + $0x14b8] sm:$0xff] %v756
      %4388 = vst [vmem:[%s143 + $0x14c0] sm:$0xff] %v869
      %4389 = vst [vmem:[%s143 + $0x14c8] sm:$0xff] %v982
      %4390 = vst [vmem:[%s143 + $0x14d0] sm:$0xff] %v1095
      %4391 = vst [vmem:[%s143 + $0x14d8] sm:$0xff] %v1208
      %4392 = vst [vmem:[%s143 + $0x14e0] sm:$0xff] %v1321
      %4393 = vst [vmem:[%s143 + $0x14e8] sm:$0xff] %v1434
      %4394 = vst [vmem:[%s143 + $0x14f0] sm:$0xff] %v1547
      %4395 = vst [vmem:[%s143 + $0x14f8] sm:$0xff] %v1660
      %4396 = vst [vmem:[%s143 + $0x1500] sm:$0xff] %v1773
      %4397 = vst [vmem:[%s143 + $0x1508] sm:$0xff] %v1886
      %4398 = vst [vmem:[%s143 + $0x1510] sm:$0xff] %v1999
      %4399 = vst [vmem:[%s143 + $0x1518] sm:$0xff] %v2112
      %4400 = vst [vmem:[%s143 + $0x1520] sm:$0xff] %v2225
      %4401 = vst [vmem:[%s143 + $0x1528] sm:$0xff] %v2338
      %4402 = vst [vmem:[%s143 + $0x1530] sm:$0xff] %v2451
      %4403 = vst [vmem:[%s143 + $0x1538] sm:$0xff] %v2564
      %4404 = vst [vmem:[%s143 + $0x1540] sm:$0xff] %v2677
      %4405 = vst [vmem:[%s143 + $0x1548] sm:$0xff] %v2790
      %4406 = vst [vmem:[%s143 + $0x1550] sm:$0xff] %v2903
      %4407 = vst [vmem:[%s143 + $0x1558] sm:$0xff] %v3016
      %4408 = vst [vmem:[%s143 + $0x1560] sm:$0xff] %v3129
      %4409 = vst [vmem:[%s143 + $0x1568] sm:$0xff] %v3242
      %4410 = vst [vmem:[%s143 + $0x1570] sm:$0xff] %v3355
      %4411 = vst [vmem:[%s143 + $0x1578] sm:$0xff] %v3468
      %4412 = vst [vmem:[%s143 + $0x1580] sm:$0xff] %v3581
      %4413 = vst.msk [vmem:[%s143 + $0x1588] sm:$0xff] %vm3752, %v3694
      %4414 = vst [vmem:[%s143 + $0x1590] sm:$0xff] %v420
      %4415 = vst [vmem:[%s143 + $0x1598] sm:$0xff] %v533
      %4416 = vst [vmem:[%s143 + $0x15a0] sm:$0xff] %v646
      %4417 = vst [vmem:[%s143 + $0x15a8] sm:$0xff] %v759
      %4418 = vst [vmem:[%s143 + $0x15b0] sm:$0xff] %v872
      %4419 = vst [vmem:[%s143 + $0x15b8] sm:$0xff] %v985
      %4420 = vst [vmem:[%s143 + $0x15c0] sm:$0xff] %v1098
      %4421 = vst [vmem:[%s143 + $0x15c8] sm:$0xff] %v1211
      %4422 = vst [vmem:[%s143 + $0x15d0] sm:$0xff] %v1324
      %4423 = vst [vmem:[%s143 + $0x15d8] sm:$0xff] %v1437
      %4424 = vst [vmem:[%s143 + $0x15e0] sm:$0xff] %v1550
      %4425 = vst [vmem:[%s143 + $0x15e8] sm:$0xff] %v1663
      %4426 = vst [vmem:[%s143 + $0x15f0] sm:$0xff] %v1776
      %4427 = vst [vmem:[%s143 + $0x15f8] sm:$0xff] %v1889
      %4428 = vst [vmem:[%s143 + $0x1600] sm:$0xff] %v2002
      %4429 = vst [vmem:[%s143 + $0x1608] sm:$0xff] %v2115
      %4430 = vst [vmem:[%s143 + $0x1610] sm:$0xff] %v2228
      %4431 = vst [vmem:[%s143 + $0x1618] sm:$0xff] %v2341
      %4432 = vst [vmem:[%s143 + $0x1620] sm:$0xff] %v2454
      %4433 = vst [vmem:[%s143 + $0x1628] sm:$0xff] %v2567
      %4434 = vst [vmem:[%s143 + $0x1630] sm:$0xff] %v2680
      %4435 = vst [vmem:[%s143 + $0x1638] sm:$0xff] %v2793
      %4436 = vst [vmem:[%s143 + $0x1640] sm:$0xff] %v2906
      %4437 = vst [vmem:[%s143 + $0x1648] sm:$0xff] %v3019
      %4438 = vst [vmem:[%s143 + $0x1650] sm:$0xff] %v3132
      %4439 = vst [vmem:[%s143 + $0x1658] sm:$0xff] %v3245
      %4440 = vst [vmem:[%s143 + $0x1660] sm:$0xff] %v3358
      %4441 = vst [vmem:[%s143 + $0x1668] sm:$0xff] %v3471
      %4442 = vst [vmem:[%s143 + $0x1670] sm:$0xff] %v3584
      %4443 = vst.msk [vmem:[%s143 + $0x1678] sm:$0xff] %vm3752, %v3697
      %4444 = vst [vmem:[%s143 + $0x1680] sm:$0xff] %v423
      %4445 = vst [vmem:[%s143 + $0x1688] sm:$0xff] %v536
      %4446 = vst [vmem:[%s143 + $0x1690] sm:$0xff] %v649
      %4447 = vst [vmem:[%s143 + $0x1698] sm:$0xff] %v762
      %4448 = vst [vmem:[%s143 + $0x16a0] sm:$0xff] %v875
      %4449 = vst [vmem:[%s143 + $0x16a8] sm:$0xff] %v988
      %4450 = vst [vmem:[%s143 + $0x16b0] sm:$0xff] %v1101
      %4451 = vst [vmem:[%s143 + $0x16b8] sm:$0xff] %v1214
      %4452 = vst [vmem:[%s143 + $0x16c0] sm:$0xff] %v1327
      %4453 = vst [vmem:[%s143 + $0x16c8] sm:$0xff] %v1440
      %4454 = vst [vmem:[%s143 + $0x16d0] sm:$0xff] %v1553
      %4455 = vst [vmem:[%s143 + $0x16d8] sm:$0xff] %v1666
      %4456 = vst [vmem:[%s143 + $0x16e0] sm:$0xff] %v1779
      %4457 = vst [vmem:[%s143 + $0x16e8] sm:$0xff] %v1892
      %4458 = vst [vmem:[%s143 + $0x16f0] sm:$0xff] %v2005
      %4459 = vst [vmem:[%s143 + $0x16f8] sm:$0xff] %v2118
      %4460 = vst [vmem:[%s143 + $0x1700] sm:$0xff] %v2231
      %4461 = vst [vmem:[%s143 + $0x1708] sm:$0xff] %v2344
      %4462 = vst [vmem:[%s143 + $0x1710] sm:$0xff] %v2457
      %4463 = vst [vmem:[%s143 + $0x1718] sm:$0xff] %v2570
      %4464 = vst [vmem:[%s143 + $0x1720] sm:$0xff] %v2683
      %4465 = vst [vmem:[%s143 + $0x1728] sm:$0xff] %v2796
      %4466 = vst [vmem:[%s143 + $0x1730] sm:$0xff] %v2909
      %4467 = vst [vmem:[%s143 + $0x1738] sm:$0xff] %v3022
      %4468 = vst [vmem:[%s143 + $0x1740] sm:$0xff] %v3135
      %4469 = vst [vmem:[%s143 + $0x1748] sm:$0xff] %v3248
      %4470 = vst [vmem:[%s143 + $0x1750] sm:$0xff] %v3361
      %4471 = vst [vmem:[%s143 + $0x1758] sm:$0xff] %v3474
      %4472 = vst [vmem:[%s143 + $0x1760] sm:$0xff] %v3587
      %4473 = vst.msk [vmem:[%s143 + $0x1768] sm:$0xff] %vm3752, %v3700
      %4474 = vst [vmem:[%s143 + $0x1770] sm:$0xff] %v426
      %4475 = vst [vmem:[%s143 + $0x1778] sm:$0xff] %v539
      %4476 = vst [vmem:[%s143 + $0x1780] sm:$0xff] %v652
      %4477 = vst [vmem:[%s143 + $0x1788] sm:$0xff] %v765
      %4478 = vst [vmem:[%s143 + $0x1790] sm:$0xff] %v878
      %4479 = vst [vmem:[%s143 + $0x1798] sm:$0xff] %v991
      %4480 = vst [vmem:[%s143 + $0x17a0] sm:$0xff] %v1104
      %4481 = vst [vmem:[%s143 + $0x17a8] sm:$0xff] %v1217
      %4482 = vst [vmem:[%s143 + $0x17b0] sm:$0xff] %v1330
      %4483 = vst [vmem:[%s143 + $0x17b8] sm:$0xff] %v1443
      %4484 = vst [vmem:[%s143 + $0x17c0] sm:$0xff] %v1556
      %4485 = vst [vmem:[%s143 + $0x17c8] sm:$0xff] %v1669
      %4486 = vst [vmem:[%s143 + $0x17d0] sm:$0xff] %v1782
      %4487 = vst [vmem:[%s143 + $0x17d8] sm:$0xff] %v1895
      %4488 = vst [vmem:[%s143 + $0x17e0] sm:$0xff] %v2008
      %4489 = vst [vmem:[%s143 + $0x17e8] sm:$0xff] %v2121
      %4490 = vst [vmem:[%s143 + $0x17f0] sm:$0xff] %v2234
      %4491 = vst [vmem:[%s143 + $0x17f8] sm:$0xff] %v2347
      %4492 = vst [vmem:[%s143 + $0x1800] sm:$0xff] %v2460
      %4493 = vst [vmem:[%s143 + $0x1808] sm:$0xff] %v2573
      %4494 = vst [vmem:[%s143 + $0x1810] sm:$0xff] %v2686
      %4495 = vst [vmem:[%s143 + $0x1818] sm:$0xff] %v2799
      %4496 = vst [vmem:[%s143 + $0x1820] sm:$0xff] %v2912
      %4497 = vst [vmem:[%s143 + $0x1828] sm:$0xff] %v3025
      %4498 = vst [vmem:[%s143 + $0x1830] sm:$0xff] %v3138
      %4499 = vst [vmem:[%s143 + $0x1838] sm:$0xff] %v3251
      %4500 = vst [vmem:[%s143 + $0x1840] sm:$0xff] %v3364
      %4501 = vst [vmem:[%s143 + $0x1848] sm:$0xff] %v3477
      %4502 = vst [vmem:[%s143 + $0x1850] sm:$0xff] %v3590
      %4503 = vst.msk [vmem:[%s143 + $0x1858] sm:$0xff] %vm3752, %v3703
      %4504 = vst [vmem:[%s143 + $0x1860] sm:$0xff] %v429
      %4505 = vst [vmem:[%s143 + $0x1868] sm:$0xff] %v542
      %4506 = vst [vmem:[%s143 + $0x1870] sm:$0xff] %v655
      %4507 = vst [vmem:[%s143 + $0x1878] sm:$0xff] %v768
      %4508 = vst [vmem:[%s143 + $0x1880] sm:$0xff] %v881
      %4509 = vst [vmem:[%s143 + $0x1888] sm:$0xff] %v994
      %4510 = vst [vmem:[%s143 + $0x1890] sm:$0xff] %v1107
      %4511 = vst [vmem:[%s143 + $0x1898] sm:$0xff] %v1220
      %4512 = vst [vmem:[%s143 + $0x18a0] sm:$0xff] %v1333
      %4513 = vst [vmem:[%s143 + $0x18a8] sm:$0xff] %v1446
      %4514 = vst [vmem:[%s143 + $0x18b0] sm:$0xff] %v1559
      %4515 = vst [vmem:[%s143 + $0x18b8] sm:$0xff] %v1672
      %4516 = vst [vmem:[%s143 + $0x18c0] sm:$0xff] %v1785
      %4517 = vst [vmem:[%s143 + $0x18c8] sm:$0xff] %v1898
      %4518 = vst [vmem:[%s143 + $0x18d0] sm:$0xff] %v2011
      %4519 = vst [vmem:[%s143 + $0x18d8] sm:$0xff] %v2124
      %4520 = vst [vmem:[%s143 + $0x18e0] sm:$0xff] %v2237
      %4521 = vst [vmem:[%s143 + $0x18e8] sm:$0xff] %v2350
      %4522 = vst [vmem:[%s143 + $0x18f0] sm:$0xff] %v2463
      %4523 = vst [vmem:[%s143 + $0x18f8] sm:$0xff] %v2576
      %4524 = vst [vmem:[%s143 + $0x1900] sm:$0xff] %v2689
      %4525 = vst [vmem:[%s143 + $0x1908] sm:$0xff] %v2802
      %4526 = vst [vmem:[%s143 + $0x1910] sm:$0xff] %v2915
      %4527 = vst [vmem:[%s143 + $0x1918] sm:$0xff] %v3028
      %4528 = vst [vmem:[%s143 + $0x1920] sm:$0xff] %v3141
      %4529 = vst [vmem:[%s143 + $0x1928] sm:$0xff] %v3254
      %4530 = vst [vmem:[%s143 + $0x1930] sm:$0xff] %v3367
      %4531 = vst [vmem:[%s143 + $0x1938] sm:$0xff] %v3480
      %4532 = vst [vmem:[%s143 + $0x1940] sm:$0xff] %v3593
      %4533 = vst.msk [vmem:[%s143 + $0x1948] sm:$0xff] %vm3752, %v3706
      %4534 = vst [vmem:[%s143 + $0x1950] sm:$0xff] %v432
      %4535 = vst [vmem:[%s143 + $0x1958] sm:$0xff] %v545
      %4536 = vst [vmem:[%s143 + $0x1960] sm:$0xff] %v658
      %4537 = vst [vmem:[%s143 + $0x1968] sm:$0xff] %v771
      %4538 = vst [vmem:[%s143 + $0x1970] sm:$0xff] %v884
      %4539 = vst [vmem:[%s143 + $0x1978] sm:$0xff] %v997
      %4540 = vst [vmem:[%s143 + $0x1980] sm:$0xff] %v1110
      %4541 = vst [vmem:[%s143 + $0x1988] sm:$0xff] %v1223
      %4542 = vst [vmem:[%s143 + $0x1990] sm:$0xff] %v1336
      %4543 = vst [vmem:[%s143 + $0x1998] sm:$0xff] %v1449
      %4544 = vst [vmem:[%s143 + $0x19a0] sm:$0xff] %v1562
      %4545 = vst [vmem:[%s143 + $0x19a8] sm:$0xff] %v1675
      %4546 = vst [vmem:[%s143 + $0x19b0] sm:$0xff] %v1788
      %4547 = vst [vmem:[%s143 + $0x19b8] sm:$0xff] %v1901
      %4548 = vst [vmem:[%s143 + $0x19c0] sm:$0xff] %v2014
      %4549 = vst [vmem:[%s143 + $0x19c8] sm:$0xff] %v2127
      %4550 = vst [vmem:[%s143 + $0x19d0] sm:$0xff] %v2240
      %4551 = vst [vmem:[%s143 + $0x19d8] sm:$0xff] %v2353
      %4552 = vst [vmem:[%s143 + $0x19e0] sm:$0xff] %v2466
      %4553 = vst [vmem:[%s143 + $0x19e8] sm:$0xff] %v2579
      %4554 = vst [vmem:[%s143 + $0x19f0] sm:$0xff] %v2692
      %4555 = vst [vmem:[%s143 + $0x19f8] sm:$0xff] %v2805
      %4556 = vst [vmem:[%s143 + $0x1a00] sm:$0xff] %v2918
      %4557 = vst [vmem:[%s143 + $0x1a08] sm:$0xff] %v3031
      %4558 = vst [vmem:[%s143 + $0x1a10] sm:$0xff] %v3144
      %4559 = vst [vmem:[%s143 + $0x1a18] sm:$0xff] %v3257
      %4560 = vst [vmem:[%s143 + $0x1a20] sm:$0xff] %v3370
      %4561 = vst [vmem:[%s143 + $0x1a28] sm:$0xff] %v3483
      %4562 = vst [vmem:[%s143 + $0x1a30] sm:$0xff] %v3596
      %4563 = vst.msk [vmem:[%s143 + $0x1a38] sm:$0xff] %vm3752, %v3709
      %4564 = vst [vmem:[%s143 + $0x1a40] sm:$0xff] %v435
      %4565 = vst [vmem:[%s143 + $0x1a48] sm:$0xff] %v548
      %4566 = vst [vmem:[%s143 + $0x1a50] sm:$0xff] %v661
      %4567 = vst [vmem:[%s143 + $0x1a58] sm:$0xff] %v774
      %4568 = vst [vmem:[%s143 + $0x1a60] sm:$0xff] %v887
      %4569 = vst [vmem:[%s143 + $0x1a68] sm:$0xff] %v1000
      %4570 = vst [vmem:[%s143 + $0x1a70] sm:$0xff] %v1113
      %4571 = vst [vmem:[%s143 + $0x1a78] sm:$0xff] %v1226
      %4572 = vst [vmem:[%s143 + $0x1a80] sm:$0xff] %v1339
      %4573 = vst [vmem:[%s143 + $0x1a88] sm:$0xff] %v1452
      %4574 = vst [vmem:[%s143 + $0x1a90] sm:$0xff] %v1565
      %4575 = vst [vmem:[%s143 + $0x1a98] sm:$0xff] %v1678
      %4576 = vst [vmem:[%s143 + $0x1aa0] sm:$0xff] %v1791
      %4577 = vst [vmem:[%s143 + $0x1aa8] sm:$0xff] %v1904
      %4578 = vst [vmem:[%s143 + $0x1ab0] sm:$0xff] %v2017
      %4579 = vst [vmem:[%s143 + $0x1ab8] sm:$0xff] %v2130
      %4580 = vst [vmem:[%s143 + $0x1ac0] sm:$0xff] %v2243
      %4581 = vst [vmem:[%s143 + $0x1ac8] sm:$0xff] %v2356
      %4582 = vst [vmem:[%s143 + $0x1ad0] sm:$0xff] %v2469
      %4583 = vst [vmem:[%s143 + $0x1ad8] sm:$0xff] %v2582
      %4584 = vst [vmem:[%s143 + $0x1ae0] sm:$0xff] %v2695
      %4585 = vst [vmem:[%s143 + $0x1ae8] sm:$0xff] %v2808
      %4586 = vst [vmem:[%s143 + $0x1af0] sm:$0xff] %v2921
      %4587 = vst [vmem:[%s143 + $0x1af8] sm:$0xff] %v3034
      %4588 = vst [vmem:[%s143 + $0x1b00] sm:$0xff] %v3147
      %4589 = vst [vmem:[%s143 + $0x1b08] sm:$0xff] %v3260
      %4590 = vst [vmem:[%s143 + $0x1b10] sm:$0xff] %v3373
      %4591 = vst [vmem:[%s143 + $0x1b18] sm:$0xff] %v3486
      %4592 = vst [vmem:[%s143 + $0x1b20] sm:$0xff] %v3599
      %4593 = vst.msk [vmem:[%s143 + $0x1b28] sm:$0xff] %vm3752, %v3712
      %4594 = vst [vmem:[%s143 + $0x1b30] sm:$0xff] %v438
      %4595 = vst [vmem:[%s143 + $0x1b38] sm:$0xff] %v551
      %4596 = vst [vmem:[%s143 + $0x1b40] sm:$0xff] %v664
      %4597 = vst [vmem:[%s143 + $0x1b48] sm:$0xff] %v777
      %4598 = vst [vmem:[%s143 + $0x1b50] sm:$0xff] %v890
      %4599 = vst [vmem:[%s143 + $0x1b58] sm:$0xff] %v1003
      %4600 = vst [vmem:[%s143 + $0x1b60] sm:$0xff] %v1116
      %4601 = vst [vmem:[%s143 + $0x1b68] sm:$0xff] %v1229
      %4602 = vst [vmem:[%s143 + $0x1b70] sm:$0xff] %v1342
      %4603 = vst [vmem:[%s143 + $0x1b78] sm:$0xff] %v1455
      %4604 = vst [vmem:[%s143 + $0x1b80] sm:$0xff] %v1568
      %4605 = vst [vmem:[%s143 + $0x1b88] sm:$0xff] %v1681
      %4606 = vst [vmem:[%s143 + $0x1b90] sm:$0xff] %v1794
      %4607 = vst [vmem:[%s143 + $0x1b98] sm:$0xff] %v1907
      %4608 = vst [vmem:[%s143 + $0x1ba0] sm:$0xff] %v2020
      %4609 = vst [vmem:[%s143 + $0x1ba8] sm:$0xff] %v2133
      %4610 = vst [vmem:[%s143 + $0x1bb0] sm:$0xff] %v2246
      %4611 = vst [vmem:[%s143 + $0x1bb8] sm:$0xff] %v2359
      %4612 = vst [vmem:[%s143 + $0x1bc0] sm:$0xff] %v2472
      %4613 = vst [vmem:[%s143 + $0x1bc8] sm:$0xff] %v2585
      %4614 = vst [vmem:[%s143 + $0x1bd0] sm:$0xff] %v2698
      %4615 = vst [vmem:[%s143 + $0x1bd8] sm:$0xff] %v2811
      %4616 = vst [vmem:[%s143 + $0x1be0] sm:$0xff] %v2924
      %4617 = vst [vmem:[%s143 + $0x1be8] sm:$0xff] %v3037
      %4618 = vst [vmem:[%s143 + $0x1bf0] sm:$0xff] %v3150
      %4619 = vst [vmem:[%s143 + $0x1bf8] sm:$0xff] %v3263
      %4620 = vst [vmem:[%s143 + $0x1c00] sm:$0xff] %v3376
      %4621 = vst [vmem:[%s143 + $0x1c08] sm:$0xff] %v3489
      %4622 = vst [vmem:[%s143 + $0x1c10] sm:$0xff] %v3602
      %4623 = vst.msk [vmem:[%s143 + $0x1c18] sm:$0xff] %vm3752, %v3715
      %4624 = vst [vmem:[%s143 + $0x1c20] sm:$0xff] %v441
      %4625 = vst [vmem:[%s143 + $0x1c28] sm:$0xff] %v554
      %4626 = vst [vmem:[%s143 + $0x1c30] sm:$0xff] %v667
      %4627 = vst [vmem:[%s143 + $0x1c38] sm:$0xff] %v780
      %4628 = vst [vmem:[%s143 + $0x1c40] sm:$0xff] %v893
      %4629 = vst [vmem:[%s143 + $0x1c48] sm:$0xff] %v1006
      %4630 = vst [vmem:[%s143 + $0x1c50] sm:$0xff] %v1119
      %4631 = vst [vmem:[%s143 + $0x1c58] sm:$0xff] %v1232
      %4632 = vst [vmem:[%s143 + $0x1c60] sm:$0xff] %v1345
      %4633 = vst [vmem:[%s143 + $0x1c68] sm:$0xff] %v1458
      %4634 = vst [vmem:[%s143 + $0x1c70] sm:$0xff] %v1571
      %4635 = vst [vmem:[%s143 + $0x1c78] sm:$0xff] %v1684
      %4636 = vst [vmem:[%s143 + $0x1c80] sm:$0xff] %v1797
      %4637 = vst [vmem:[%s143 + $0x1c88] sm:$0xff] %v1910
      %4638 = vst [vmem:[%s143 + $0x1c90] sm:$0xff] %v2023
      %4639 = vst [vmem:[%s143 + $0x1c98] sm:$0xff] %v2136
      %4640 = vst [vmem:[%s143 + $0x1ca0] sm:$0xff] %v2249
      %4641 = vst [vmem:[%s143 + $0x1ca8] sm:$0xff] %v2362
      %4642 = vst [vmem:[%s143 + $0x1cb0] sm:$0xff] %v2475
      %4643 = vst [vmem:[%s143 + $0x1cb8] sm:$0xff] %v2588
      %4644 = vst [vmem:[%s143 + $0x1cc0] sm:$0xff] %v2701
      %4645 = vst [vmem:[%s143 + $0x1cc8] sm:$0xff] %v2814
      %4646 = vst [vmem:[%s143 + $0x1cd0] sm:$0xff] %v2927
      %4647 = vst [vmem:[%s143 + $0x1cd8] sm:$0xff] %v3040
      %4648 = vst [vmem:[%s143 + $0x1ce0] sm:$0xff] %v3153
      %4649 = vst [vmem:[%s143 + $0x1ce8] sm:$0xff] %v3266
      %4650 = vst [vmem:[%s143 + $0x1cf0] sm:$0xff] %v3379
      %4651 = vst [vmem:[%s143 + $0x1cf8] sm:$0xff] %v3492
      %4652 = vst [vmem:[%s143 + $0x1d00] sm:$0xff] %v3605
      %4653 = vst.msk [vmem:[%s143 + $0x1d08] sm:$0xff] %vm3752, %v3718
      %4654 = vst [vmem:[%s143 + $0x1d10] sm:$0xff] %v444
      %4655 = vst [vmem:[%s143 + $0x1d18] sm:$0xff] %v557
      %4656 = vst [vmem:[%s143 + $0x1d20] sm:$0xff] %v670
      %4657 = vst [vmem:[%s143 + $0x1d28] sm:$0xff] %v783
      %4658 = vst [vmem:[%s143 + $0x1d30] sm:$0xff] %v896
      %4659 = vst [vmem:[%s143 + $0x1d38] sm:$0xff] %v1009
      %4660 = vst [vmem:[%s143 + $0x1d40] sm:$0xff] %v1122
      %4661 = vst [vmem:[%s143 + $0x1d48] sm:$0xff] %v1235
      %4662 = vst [vmem:[%s143 + $0x1d50] sm:$0xff] %v1348
      %4663 = vst [vmem:[%s143 + $0x1d58] sm:$0xff] %v1461
      %4664 = vst [vmem:[%s143 + $0x1d60] sm:$0xff] %v1574
      %4665 = vst [vmem:[%s143 + $0x1d68] sm:$0xff] %v1687
      %4666 = vst [vmem:[%s143 + $0x1d70] sm:$0xff] %v1800
      %4667 = vst [vmem:[%s143 + $0x1d78] sm:$0xff] %v1913
      %4668 = vst [vmem:[%s143 + $0x1d80] sm:$0xff] %v2026
      %4669 = vst [vmem:[%s143 + $0x1d88] sm:$0xff] %v2139
      %4670 = vst [vmem:[%s143 + $0x1d90] sm:$0xff] %v2252
      %4671 = vst [vmem:[%s143 + $0x1d98] sm:$0xff] %v2365
      %4672 = vst [vmem:[%s143 + $0x1da0] sm:$0xff] %v2478
      %4673 = vst [vmem:[%s143 + $0x1da8] sm:$0xff] %v2591
      %4674 = vst [vmem:[%s143 + $0x1db0] sm:$0xff] %v2704
      %4675 = vst [vmem:[%s143 + $0x1db8] sm:$0xff] %v2817
      %4676 = vst [vmem:[%s143 + $0x1dc0] sm:$0xff] %v2930
      %4677 = vst [vmem:[%s143 + $0x1dc8] sm:$0xff] %v3043
      %4678 = vst [vmem:[%s143 + $0x1dd0] sm:$0xff] %v3156
      %4679 = vst [vmem:[%s143 + $0x1dd8] sm:$0xff] %v3269
      %4680 = vst [vmem:[%s143 + $0x1de0] sm:$0xff] %v3382
      %4681 = vst [vmem:[%s143 + $0x1de8] sm:$0xff] %v3495
      %4682 = vst [vmem:[%s143 + $0x1df0] sm:$0xff] %v3608
      %4683 = vst.msk [vmem:[%s143 + $0x1df8] sm:$0xff] %vm3752, %v3721
      %p4684 = scmp.lt.s32.totalorder %s13, 1
      %s4685 = scalar_select %p4684, %s13, 1
      %s4686 = smul.addr %s4685, 960
      %s4687 = smul.addr %s4686, 8
      %s4688 = scalar_lea.vmem %s2, %s4687
      // Predicated region
      $region29: #{conv_transformer_forward.7} parent=27 // pred_check
        %p4689 = pneg %p78
      $region30: #{conv_transformer_forward.7} parent=27 // pred_check_branch
        %4691 = sbr.rel (%p4689) target = $region32
      $region31: #{conv_transformer_forward.7} parent=27 // pred_region
        _
      $region32: #{conv_transformer_forward.7} parent=27 // pred_fallthru
        _
    $region28: #{conv_transformer_forward.7} parent=5 // pred_fallthru
      _
    %p4692 = scmp.le.s32.totalorder 2, %s8
    // Predicated region
    $region33: #{conv_transformer_forward.7} parent=5 // pred_check
      %p4693 = pneg %p4692
    $region34: #{conv_transformer_forward.7} parent=5 // pred_check_branch
      %4695 = sbr.rel (%p4693) target = $region36
    $region35: #{conv_transformer_forward.7} parent=5 // pred_region
      %s4696 = ssub.s32 %s8, 2
      // Predicated region
      $region37: #{conv_transformer_forward.7} parent=35 // pred_check
        %p4697 = pneg %p84
      $region38: #{conv_transformer_forward.7} parent=35 // pred_check_branch
        %4699 = sbr.rel (%p4697) target = $region40
      $region39: #{conv_transformer_forward.7} parent=35 // pred_region
        %p4700 = scmp.lt.s32.totalorder %s14, 1
        %s4701 = scalar_select %p4700, %s14, 1
        %s4702 = smul.addr %s4701, 960
        %s4703 = smul.addr %s4702, 8
        %s4704 = scalar_lea.vmem %s2, %s4703
      $region40: #{conv_transformer_forward.7} parent=35 // pred_fallthru
        _
    $region36: #{conv_transformer_forward.7} parent=5 // pred_fallthru
      _
  $region6: #{conv_transformer_forward.7} parent=0 // loop_footer
    %s12 = sadd.s32 1, %s8
  $region7: #{conv_transformer_forward.7} parent=0 // loop_footer_branch
    %7 = sbr.rel target = $region3
  $region8: #{conv_transformer_forward.7} parent=0 // loop_exit
    _

</llo_original>
